<compile_context>
chip_gen: v7x
topology: tpu7x:2x2x1
jax: 0.10.0
libtpu: 0.0.40
codegen_flags: <defaults>
</compile_context>

<pallas_src>
import math

import jax
import jax.numpy as jnp
from jax.experimental import pallas as pl
from jax.experimental.pallas import tpu as pltpu

# ----------------------------- configuration --------------------------------
ENC_IN, DEC_IN, C_OUT = 4, 4, 4
SEQ_LEN, LABEL_LEN, OUT_LEN = 12, 6, 6
DEC_LEN = LABEL_LEN + OUT_LEN
D_MODEL, N_HEADS = 64, 4
D_HEAD = D_MODEL // N_HEADS
E_LAYERS, D_LAYERS = 2, 1
D_FF = 64
BATCH = 2
LN_EPS = 1e-5
BN_EPS = 1e-5
NEG = -1e30

NMAT = 34      # stacked (64,64) matrices consumed by the kernel, in order
NVEC = 45      # stacked (64,) vectors consumed by the kernel, in order

assert DEC_LEN == SEQ_LEN
assert DEC_LEN % N_HEADS == 0
assert D_FF == D_MODEL            # FFN weights share the (64,64) matrix stack

VMEM_SPEC = pl.BlockSpec(memory_space=pltpu.MemorySpace.VMEM)


# ------------------------- fixed sinusoidal embedding tables -----------------
def sinusoid_table(n, d):
    pos = jnp.arange(n, dtype=jnp.float32)[:, None]
    div = jnp.exp(jnp.arange(0, d, 2, dtype=jnp.float32) * (-(math.log(10000.0) / d)))
    tab = jnp.zeros((n, d), jnp.float32)
    tab = tab.at[:, 0::2].set(jnp.sin(pos * div))
    tab = tab.at[:, 1::2].set(jnp.cos(pos * div))
    return tab


POS_TABLE = sinusoid_table(512, D_MODEL)
MONTH_TAB = sinusoid_table(13, D_MODEL)
DAY_TAB = sinusoid_table(32, D_MODEL)
WEEKDAY_TAB = sinusoid_table(7, D_MODEL)
HOUR_TAB = sinusoid_table(24, D_MODEL)


def _temporal_embed(x_mark):
    xm = x_mark.astype(jnp.int32)
    return (HOUR_TAB[xm[:, :, 3]] + WEEKDAY_TAB[xm[:, :, 2]]
            + DAY_TAB[xm[:, :, 1]] + MONTH_TAB[xm[:, :, 0]])


# ------------------------------ the fused kernel ------------------------------
def _informer_kernel(x_enc_ref, x_dec_ref, eadd_ref, dadd_ref,
                     mat_ref, vec_ref, pw_ref, pb_ref, out_ref):
    f32 = jnp.float32

    # ---- parameter walkers over the two packed stacks ----
    _mi = [0]

    def nm():                           # next (64,64) matrix
        i = _mi[0]
        _mi[0] += 1
        return mat_ref[i]

    _vi = [0]

    def nv():                           # next (1,64) vector
        i = _vi[0]
        _vi[0] += 1
        return vec_ref[pl.ds(i, 1), :]

    # ---- small integer helpers (avoid vector // and %) ----
    def iota(shape, dim):
        return jax.lax.broadcasted_iota(jnp.int32, shape, dim)

    def blk_div(x, block, nblocks):     # floor(x/block) for x in [0, nblocks*block)
        acc = jnp.zeros_like(x)
        for t in range(1, nblocks):
            acc = acc + jnp.where(x >= t * block, 1, 0)
        return acc

    def blk_mod(x, block, nblocks):
        return x - block * blk_div(x, block, nblocks)

    def onehot(cond):
        return jnp.where(cond, 1.0, 0.0)

    # ---- in-kernel constants (built once, reused) ----
    NSE = BATCH * SEQ_LEN                           # 24 stacked rows (pre-distil / decoder)
    r = iota((NSE, NSE), 0)
    c = iota((NSE, NSE), 1)
    lrow = blk_mod(r, SEQ_LEN, BATCH)
    base = r - lrow
    prev_i = jnp.where(lrow == 0, SEQ_LEN - 1, lrow - 1)
    next_i = jnp.where(lrow == SEQ_LEN - 1, 0, lrow + 1)
    s_prev = onehot(c == base + prev_i)             # per-batch circular shift -1
    s_next = onehot(c == base + next_i)             # per-batch circular shift +1

    def make_rep(n):                                # (4n, n): replicate rows 4x
        rr = iota((N_HEADS * n, n), 0)
        cc = iota((N_HEADS * n, n), 1)
        return onehot(cc == blk_mod(rr, n, N_HEADS))

    def make_rept(n):                               # (n, 4n): sum the 4 row blocks
        rr = iota((n, N_HEADS * n), 0)
        cc = iota((n, N_HEADS * n), 1)
        return onehot(blk_mod(cc, n, N_HEADS) == rr)

    def make_hmask(n):                              # (4n, 64): lane-block == row-block
        rr = iota((N_HEADS * n, D_MODEL), 0)
        dd = iota((N_HEADS * n, D_MODEL), 1)
        return blk_div(dd, D_HEAD, N_HEADS) == blk_div(rr, n, N_HEADS)

    rep24, rept24, hm24 = make_rep(NSE), make_rept(NSE), make_hmask(NSE)
    NE2 = BATCH * (SEQ_LEN // 2)                    # 12 stacked rows after distil
    rep12, rept12, hm12 = make_rep(NE2), make_rept(NE2), make_hmask(NE2)

    # ---- building blocks ----
    def conv3(x, w0, w1, w2, b):                    # circular kernel-3 Conv1d along L
        xm = jnp.dot(s_prev, x, preferred_element_type=f32)
        xp = jnp.dot(s_next, x, preferred_element_type=f32)
        return (jnp.dot(xm, w0, preferred_element_type=f32)
                + jnp.dot(x, w1, preferred_element_type=f32)
                + jnp.dot(xp, w2, preferred_element_type=f32) + b)

    def layernorm(x, g, b):
        mu = jnp.mean(x, axis=-1, keepdims=True)
        xc = x - mu
        var = jnp.mean(xc * xc, axis=-1, keepdims=True)
        return xc * jax.lax.rsqrt(var + LN_EPS) * g + b

    def erf(x):                                     # A&S 7.1.26, |err| < 1.5e-7
        a1, a2, a3, a4, a5 = 0.254829592, -0.284496736, 1.421413741, -1.453152027, 1.061405429
        pc = 0.3275911
        ax = jnp.abs(x)
        t = 1.0 / (1.0 + pc * ax)
        poly = ((((a5 * t + a4) * t + a3) * t + a2) * t + a1) * t
        y = 1.0 - poly * jnp.exp(-(ax * ax))
        return jnp.where(x >= 0, y, -y)

    def gelu(x):
        return 0.5 * x * (1.0 + erf(x * 0.7071067811865476))

    def ffn(x, w1, b1, w2, b2):
        y = gelu(jnp.dot(x, w1, preferred_element_type=f32) + b1)
        return jnp.dot(y, w2, preferred_element_type=f32) + b2

    def softmax_rows(s):
        s = s - jnp.max(s, axis=-1, keepdims=True)
        p = jnp.exp(s)
        return p / jnp.sum(p, axis=-1, keepdims=True)   # exact divide

    def score_mask(nq, lq, nk, lk, causal):
        rr = iota((N_HEADS * nq, nk), 0)
        cc = iota((N_HEADS * nq, nk), 1)
        rq = blk_mod(rr, nq, N_HEADS)
        ok = blk_div(rq, lq, BATCH) == blk_div(cc, lk, BATCH)       # same batch block
        if causal:
            ok = ok & (blk_mod(cc, lk, BATCH) <= blk_mod(rq, lq, BATCH))
        return ok

    def mha_heads(xq, xkv, wq, bq, wk, bk, wv, bv, lq, lk, causal, rep, hmask):
        # Returns the head-and-batch-stacked, head-lane-masked contexts (4*nq, 64).
        # 1/sqrt(d_head) already folded into wq/bq.
        nq, nk = xq.shape[0], xkv.shape[0]
        q = jnp.dot(xq, wq, preferred_element_type=f32) + bq
        k = jnp.dot(xkv, wk, preferred_element_type=f32) + bk
        v = jnp.dot(xkv, wv, preferred_element_type=f32) + bv
        qbig = jnp.where(hmask, jnp.dot(rep, q, preferred_element_type=f32), 0.0)
        sc = jax.lax.dot_general(qbig, k, (((1,), (1,)), ((), ())),
                                 preferred_element_type=f32)        # (4nq, nk)
        sc = jnp.where(score_mask(nq, lq, nk, lk, causal), sc, NEG)
        p = softmax_rows(sc)                                         # ONE softmax for all heads
        return jnp.where(hmask, jnp.dot(p, v, preferred_element_type=f32), 0.0)

    def attention(xq, xkv, wq, bq, wk, bk, wv, bv, wo, bo, lq, lk, causal, rep, rept, hmask):
        o = mha_heads(xq, xkv, wq, bq, wk, bk, wv, bv, lq, lk, causal, rep, hmask)
        ctx = jnp.dot(rept, o, preferred_element_type=f32)           # fold heads -> (nq, 64)
        return jnp.dot(ctx, wo, preferred_element_type=f32) + bo

    def attention_mix(x, wq, bq, wk, bk, wv, bv, wts, bo, rep, hmask):
        # causal self-attention with AttentionLayer(mix=True) output scrambling.
        nq = x.shape[0]
        o = mha_heads(x, x, wq, bq, wk, bk, wv, bv, DEC_LEN, DEC_LEN, True, rep, hmask)
        rows_ph = DEC_LEN // N_HEADS
        rr = iota((nq, N_HEADS * nq), 0)
        cc = iota((nq, N_HEADS * nq), 1)
        ld = blk_mod(rr, DEC_LEN, BATCH)
        hh = blk_div(ld, rows_ph, N_HEADS)
        tgt0 = nq * hh + (rr - ld) + N_HEADS * (ld - rows_ph * hh)
        out = jnp.zeros((nq, D_MODEL), f32) + bo
        for kk in range(N_HEADS):                    # 4 gather + 4 weight matmuls (was 16+4)
            gk = onehot(cc == tgt0 + kk)
            out = out + jnp.dot(jnp.dot(gk, o, preferred_element_type=f32), wts[kk],
                                preferred_element_type=f32)
        return out

    # ----------------------------- encoder ------------------------------------
    w0, w1, w2 = nm(), nm(), nm()
    b = nv()
    enc = conv3(x_enc_ref[...], w0, w1, w2, b) + eadd_ref[...]       # (24, 64)

    enc_len = SEQ_LEN
    for li in range(E_LAYERS):
        rep, rept, hm = (rep24, rept24, hm24) if li == 0 else (rep12, rept12, hm12)
        wq, wk, wv, wo = nm(), nm(), nm(), nm()
        bq, bk, bv, bo = nv(), nv(), nv(), nv()
        ln1g, ln1b = nv(), nv()
        a = attention(enc, enc, wq, bq, wk, bk, wv, bv, wo, bo,
                      enc_len, enc_len, False, rep, rept, hm)
        x = layernorm(enc + a, ln1g, ln1b)
        fw1, fw2 = nm(), nm()
        fb1, fb2 = nv(), nv()
        ln2g, ln2b = nv(), nv()
        enc = layernorm(x + ffn(x, fw1, fb1, fw2, fb2), ln2g, ln2b)

        if li < E_LAYERS - 1:
            # distil ConvLayer: circular conv -> BatchNorm (batch stats over all rows)
            # -> ELU -> MaxPool1d(k=3, s=2, p=1), all on the batch-stacked rows.
            cw0, cw1, cw2 = nm(), nm(), nm()
            cb, bng, bnb = nv(), nv(), nv()
            y = conv3(enc, cw0, cw1, cw2, cb)                        # (24, 64)
            nrows = y.shape[0]
            mu = jnp.sum(y, axis=0, keepdims=True) * (1.0 / nrows)
            dcen = y - mu
            var = jnp.sum(dcen * dcen, axis=0, keepdims=True) * (1.0 / nrows)
            z = dcen * jax.lax.rsqrt(var + BN_EPS) * bng + bnb
            z = jnp.where(z > 0, z, jnp.exp(jnp.minimum(z, 0.0)) - 1.0)    # ELU(alpha=1)
            lp = enc_len // 2
            npool = BATCH * lp
            rr = iota((npool, nrows), 0)
            cc = iota((npool, nrows), 1)
            bb = blk_div(rr, lp, BATCH)
            jj = rr - lp * bb
            bbase = enc_len * bb
            ga = onehot(cc == bbase + 2 * jj)
            gb = onehot(cc == bbase + jnp.minimum(2 * jj + 1, enc_len - 1))
            gc = onehot(cc == bbase + jnp.maximum(2 * jj - 1, 0))
            enc = jnp.maximum(
                jnp.maximum(jnp.dot(ga, z, preferred_element_type=f32),
                            jnp.dot(gb, z, preferred_element_type=f32)),
                jnp.dot(gc, z, preferred_element_type=f32))          # (12, 64)
            enc_len = lp

    eng, enb = nv(), nv()
    enc = layernorm(enc, eng, enb)

    # ----------------------------- decoder ------------------------------------
    w0, w1, w2 = nm(), nm(), nm()
    b = nv()
    dec = conv3(x_dec_ref[...], w0, w1, w2, b) + dadd_ref[...]       # (24, 64)

    for _ in range(D_LAYERS):
        swq, swk, swv = nm(), nm(), nm()
        wts = [nm() for _ in range(N_HEADS)]
        sbq, sbk, sbv, sbo = nv(), nv(), nv(), nv()
        ln1g, ln1b = nv(), nv()
        x = layernorm(dec + attention_mix(dec, swq, sbq, swk, sbk, swv, sbv, wts, sbo,
                                          rep24, hm24), ln1g, ln1b)
        cwq, cwk, cwv, cwo = nm(), nm(), nm(), nm()
        cbq, cbk, cbv, cbo = nv(), nv(), nv(), nv()
        ln2g, ln2b = nv(), nv()
        x = layernorm(x + attention(x, enc, cwq, cbq, cwk, cbk, cwv, cbv, cwo, cbo,
                                    DEC_LEN, enc_len, False, rep24, rept24, hm24),
                      ln2g, ln2b)
        fw1, fw2 = nm(), nm()
        fb1, fb2 = nv(), nv()
        ln3g, ln3b = nv(), nv()
        dec = layernorm(x + ffn(x, fw1, fb1, fw2, fb2), ln3g, ln3b)

    dng, dnb = nv(), nv()
    d = layernorm(dec, dng, dnb)                                     # (24, 64)

    # tail selection (last pred_len rows of each batch block) + projection
    ntail = BATCH * OUT_LEN
    rr = iota((ntail, BATCH * DEC_LEN), 0)
    cc = iota((ntail, BATCH * DEC_LEN), 1)
    bb = blk_div(rr, OUT_LEN, BATCH)
    gtail = onehot(cc == DEC_LEN * bb + LABEL_LEN + (rr - OUT_LEN * bb))
    tail = jnp.dot(gtail, d, preferred_element_type=f32)             # (12, 64)
    out_ref[...] = jnp.dot(tail, pw_ref[...], preferred_element_type=f32) + pb_ref[...]

    assert _mi[0] == NMAT and _vi[0] == NVEC, "kernel/wrapper packing mismatch"


# ------------------------- wrapper: parameter packing -------------------------
def _pack_params(params):
    scale = 1.0 / math.sqrt(D_HEAD)
    mats, vecs = [], []

    def mat(w):
        rws, cls = w.shape
        if (rws, cls) != (D_MODEL, D_MODEL):
            w = jnp.pad(w, ((0, D_MODEL - rws), (0, D_MODEL - cls)))
        mats.append(w)

    def vec(v):
        vecs.append(v.reshape(-1))

    def conv(p):
        for t in range(3):
            mat(p["conv_w"][t])
        vec(p["conv_b"])

    def attn(p, mix=False):
        mat(p["wq"] * scale)      # 1/sqrt(d_head) folded into query projection
        mat(p["wk"])
        mat(p["wv"])
        if mix:
            for kk in range(N_HEADS):     # W-tilde_k: k-th 16-row slab of Wo tiled 4x
                mats.append(jnp.tile(p["wo"][kk * D_HEAD:(kk + 1) * D_HEAD, :], (N_HEADS, 1)))
        else:
            mat(p["wo"])
        vec(p["bq"] * scale)
        vec(p["bk"])
        vec(p["bv"])
        vec(p["bo"])

    conv(params["enc_emb"])
    for li in range(E_LAYERS):
        lp = params["enc_layers"][li]
        attn(lp["attn"])
        vec(lp["ln1_g"]); vec(lp["ln1_b"])
        mat(lp["w1"]); mat(lp["w2"])
        vec(lp["b1"]); vec(lp["b2"])
        vec(lp["ln2_g"]); vec(lp["ln2_b"])
        if li < E_LAYERS - 1:
            cp = params["conv_layers"][li]
            conv(cp)
            vec(cp["bn_g"]); vec(cp["bn_b"])
    vec(params["enc_norm_g"]); vec(params["enc_norm_b"])
    conv(params["dec_emb"])
    for di in range(D_LAYERS):
        dp = params["dec_layers"][di]
        attn(dp["self_attn"], mix=True)
        vec(dp["ln1_g"]); vec(dp["ln1_b"])
        attn(dp["cross_attn"])
        vec(dp["ln2_g"]); vec(dp["ln2_b"])
        mat(dp["w1"]); mat(dp["w2"])
        vec(dp["b1"]); vec(dp["b2"])
        vec(dp["ln3_g"]); vec(dp["ln3_b"])
    vec(params["dec_norm_g"]); vec(params["dec_norm_b"])

    assert len(mats) == NMAT and len(vecs) == NVEC, (len(mats), len(vecs))
    return jnp.stack(mats), jnp.stack(vecs)


def informer_forward(params, x_enc, x_mark_enc, x_dec, x_mark_dec):
    assert x_enc.shape == (BATCH, SEQ_LEN, ENC_IN)
    assert x_dec.shape == (BATCH, DEC_LEN, DEC_IN)
    mat_stack, vec_stack = _pack_params(params)

    enc_add = (POS_TABLE[:SEQ_LEN][None, :, :] + _temporal_embed(x_mark_enc)
               ).reshape(BATCH * SEQ_LEN, D_MODEL)
    dec_add = (POS_TABLE[:DEC_LEN][None, :, :] + _temporal_embed(x_mark_dec)
               ).reshape(BATCH * DEC_LEN, D_MODEL)
    x_enc_p = jnp.pad(x_enc.reshape(BATCH * SEQ_LEN, ENC_IN),
                      ((0, 0), (0, D_MODEL - ENC_IN)))
    x_dec_p = jnp.pad(x_dec.reshape(BATCH * DEC_LEN, DEC_IN),
                      ((0, 0), (0, D_MODEL - DEC_IN)))
    proj_w = params["proj_w"]                      # (64, 4)
    proj_b = params["proj_b"].reshape(1, C_OUT)    # (1, 4)

    out = pl.pallas_call(
        _informer_kernel,
        out_shape=jax.ShapeDtypeStruct((BATCH * OUT_LEN, C_OUT), jnp.float32),
        in_specs=[VMEM_SPEC] * 8,
        out_specs=VMEM_SPEC,
    )(x_enc_p, x_dec_p, enc_add, dec_add, mat_stack, vec_stack, proj_w, proj_b)
    return out.reshape(BATCH, OUT_LEN, C_OUT)


# ----------------------------- parameter init --------------------------------
def init_params(key):
    keys = iter(jax.random.split(key, 256))

    def nrm(shape):
        return 0.02 * jax.random.normal(next(keys), shape, dtype=jnp.float32)

    def attn_p():
        return dict(wq=nrm((D_MODEL, D_MODEL)), bq=nrm((D_MODEL,)),
                    wk=nrm((D_MODEL, D_MODEL)), bk=nrm((D_MODEL,)),
                    wv=nrm((D_MODEL, D_MODEL)), bv=nrm((D_MODEL,)),
                    wo=nrm((D_MODEL, D_MODEL)), bo=nrm((D_MODEL,)))

    def ln():
        return jnp.ones((D_MODEL,), jnp.float32), jnp.zeros((D_MODEL,), jnp.float32)

    def enc_layer_p():
        g1, b1 = ln()
        g2, b2 = ln()
        return dict(attn=attn_p(),
                    w1=nrm((D_MODEL, D_FF)), b1=nrm((D_FF,)),
                    w2=nrm((D_FF, D_MODEL)), b2=nrm((D_MODEL,)),
                    ln1_g=g1, ln1_b=b1, ln2_g=g2, ln2_b=b2)

    def conv_layer_p():
        return dict(conv_w=nrm((3, D_MODEL, D_MODEL)), conv_b=nrm((D_MODEL,)),
                    bn_g=jnp.ones((D_MODEL,), jnp.float32),
                    bn_b=jnp.zeros((D_MODEL,), jnp.float32))

    def dec_layer_p():
        g1, b1 = ln()
        g2, b2 = ln()
        g3, b3 = ln()
        return dict(self_attn=attn_p(), cross_attn=attn_p(),
                    w1=nrm((D_MODEL, D_FF)), b1=nrm((D_FF,)),
                    w2=nrm((D_FF, D_MODEL)), b2=nrm((D_MODEL,)),
                    ln1_g=g1, ln1_b=b1, ln2_g=g2, ln2_b=b2, ln3_g=g3, ln3_b=b3)

    eg, eb = ln()
    dg, db = ln()
    return dict(
        enc_emb=dict(conv_w=nrm((3, ENC_IN, D_MODEL)), conv_b=nrm((D_MODEL,))),
        dec_emb=dict(conv_w=nrm((3, DEC_IN, D_MODEL)), conv_b=nrm((D_MODEL,))),
        enc_layers=[enc_layer_p() for _ in range(E_LAYERS)],
        conv_layers=[conv_layer_p() for _ in range(E_LAYERS - 1)],
        enc_norm_g=eg, enc_norm_b=eb,
        dec_layers=[dec_layer_p() for _ in range(D_LAYERS)],
        dec_norm_g=dg, dec_norm_b=db,
        proj_w=nrm((D_MODEL, C_OUT)), proj_b=nrm((C_OUT,)),
    )


def make_marks(key, b, l):
    k0, k1, k2, k3 = jax.random.split(key, 4)
    month = jax.random.randint(k0, (b, l), 0, 13)
    day = jax.random.randint(k1, (b, l), 0, 32)
    weekday = jax.random.randint(k2, (b, l), 0, 7)
    hour = jax.random.randint(k3, (b, l), 0, 24)
    return jnp.stack([month, day, weekday, hour], axis=-1).astype(jnp.float32)


# ----------------------------------- main ------------------------------------
if __name__ == "__main__":
    params = init_params(jax.random.PRNGKey(42))

    key = jax.random.PRNGKey(0)
    ke, kd, kme, kmd = jax.random.split(key, 4)
    x_enc = jax.random.normal(ke, (BATCH, SEQ_LEN, ENC_IN), jnp.float32)
    x_dec = jax.random.normal(kd, (BATCH, DEC_LEN, DEC_IN), jnp.float32)
    x_mark_enc = make_marks(kme, BATCH, SEQ_LEN)
    x_mark_dec = make_marks(kmd, BATCH, DEC_LEN)

    fwd = jax.jit(informer_forward)
    out = fwd(params, x_enc, x_mark_enc, x_dec, x_mark_dec)
    out = jax.block_until_ready(out)

    assert out.shape == (BATCH, OUT_LEN, C_OUT), out.shape
    assert bool(jnp.all(jnp.isfinite(out)))
    print("KERNEL_OK")
</pallas_src>

<mosaic_0001>
module attributes {stable_mosaic.version = 11 : i64} {
  func.func @_informer_kernel(%arg0: memref<24x64xf32, #tpu.memory_space<vmem>>, %arg1: memref<24x64xf32, #tpu.memory_space<vmem>>, %arg2: memref<24x64xf32, #tpu.memory_space<vmem>>, %arg3: memref<24x64xf32, #tpu.memory_space<vmem>>, %arg4: memref<34x64x64xf32, #tpu.memory_space<vmem>>, %arg5: memref<45x64xf32, #tpu.memory_space<vmem>>, %arg6: memref<64x4xf32, #tpu.memory_space<vmem>>, %arg7: memref<1x4xf32, #tpu.memory_space<vmem>>, %arg8: memref<12x4xf32, #tpu.memory_space<vmem>>) attributes {dimension_semantics = [], scalar_prefetch = 0 : i64, scratch_operands = 0 : i64, tpu.core_type = #tpu.core_type<tc>} {
    %0 = tpu.iota {dimensions = array<i32: 0>} : vector<24x24xi32>
    %1 = tpu.iota {dimensions = array<i32: 1>} : vector<24x24xi32>
    %c0_i32 = arith.constant 0 : i32
    %2 = vector.broadcast %c0_i32 : i32 to vector<24x24xi32>
    %c12_i32 = arith.constant 12 : i32
    %3 = vector.broadcast %c12_i32 : i32 to vector<24x24xi32>
    %4 = arith.cmpi sge, %0, %3 : vector<24x24xi32>
    %c1_i32 = arith.constant 1 : i32
    %c0_i32_0 = arith.constant 0 : i32
    %5 = vector.broadcast %c1_i32 : i32 to vector<24x24xi32>
    %6 = vector.broadcast %c0_i32_0 : i32 to vector<24x24xi32>
    %7 = arith.select %4, %5, %6 : vector<24x24xi1>, vector<24x24xi32>
    %8 = arith.addi %2, %7 : vector<24x24xi32>
    %c12_i32_1 = arith.constant 12 : i32
    %9 = vector.broadcast %c12_i32_1 : i32 to vector<24x24xi32>
    %10 = arith.muli %9, %8 : vector<24x24xi32>
    %11 = arith.subi %0, %10 : vector<24x24xi32>
    %12 = arith.subi %0, %11 : vector<24x24xi32>
    %c0_i32_2 = arith.constant 0 : i32
    %13 = vector.broadcast %c0_i32_2 : i32 to vector<24x24xi32>
    %14 = arith.cmpi eq, %11, %13 : vector<24x24xi32>
    %c1_i32_3 = arith.constant 1 : i32
    %15 = vector.broadcast %c1_i32_3 : i32 to vector<24x24xi32>
    %16 = arith.subi %11, %15 : vector<24x24xi32>
    %c11_i32 = arith.constant 11 : i32
    %17 = vector.broadcast %c11_i32 : i32 to vector<24x24xi32>
    %18 = arith.select %14, %17, %16 : vector<24x24xi1>, vector<24x24xi32>
    %c11_i32_4 = arith.constant 11 : i32
    %19 = vector.broadcast %c11_i32_4 : i32 to vector<24x24xi32>
    %20 = arith.cmpi eq, %11, %19 : vector<24x24xi32>
    %c1_i32_5 = arith.constant 1 : i32
    %21 = vector.broadcast %c1_i32_5 : i32 to vector<24x24xi32>
    %22 = arith.addi %11, %21 : vector<24x24xi32>
    %c0_i32_6 = arith.constant 0 : i32
    %23 = vector.broadcast %c0_i32_6 : i32 to vector<24x24xi32>
    %24 = arith.select %20, %23, %22 : vector<24x24xi1>, vector<24x24xi32>
    %25 = arith.addi %12, %18 : vector<24x24xi32>
    %26 = arith.cmpi eq, %1, %25 : vector<24x24xi32>
    %cst = arith.constant 1.000000e+00 : f32
    %cst_7 = arith.constant 0.000000e+00 : f32
    %27 = vector.broadcast %cst : f32 to vector<24x24xf32>
    %28 = vector.broadcast %cst_7 : f32 to vector<24x24xf32>
    %29 = arith.select %26, %27, %28 : vector<24x24xi1>, vector<24x24xf32>
    %30 = arith.addi %12, %24 : vector<24x24xi32>
    %31 = arith.cmpi eq, %1, %30 : vector<24x24xi32>
    %cst_8 = arith.constant 1.000000e+00 : f32
    %cst_9 = arith.constant 0.000000e+00 : f32
    %32 = vector.broadcast %cst_8 : f32 to vector<24x24xf32>
    %33 = vector.broadcast %cst_9 : f32 to vector<24x24xf32>
    %34 = arith.select %31, %32, %33 : vector<24x24xi1>, vector<24x24xf32>
    %35 = tpu.iota {dimensions = array<i32: 0>} : vector<96x24xi32>
    %36 = tpu.iota {dimensions = array<i32: 1>} : vector<96x24xi32>
    %c0_i32_10 = arith.constant 0 : i32
    %37 = vector.broadcast %c0_i32_10 : i32 to vector<96x24xi32>
    %c24_i32 = arith.constant 24 : i32
    %38 = vector.broadcast %c24_i32 : i32 to vector<96x24xi32>
    %39 = arith.cmpi sge, %35, %38 : vector<96x24xi32>
    %c1_i32_11 = arith.constant 1 : i32
    %c0_i32_12 = arith.constant 0 : i32
    %40 = vector.broadcast %c1_i32_11 : i32 to vector<96x24xi32>
    %41 = vector.broadcast %c0_i32_12 : i32 to vector<96x24xi32>
    %42 = arith.select %39, %40, %41 : vector<96x24xi1>, vector<96x24xi32>
    %43 = arith.addi %37, %42 : vector<96x24xi32>
    %c48_i32 = arith.constant 48 : i32
    %44 = vector.broadcast %c48_i32 : i32 to vector<96x24xi32>
    %45 = arith.cmpi sge, %35, %44 : vector<96x24xi32>
    %c1_i32_13 = arith.constant 1 : i32
    %c0_i32_14 = arith.constant 0 : i32
    %46 = vector.broadcast %c1_i32_13 : i32 to vector<96x24xi32>
    %47 = vector.broadcast %c0_i32_14 : i32 to vector<96x24xi32>
    %48 = arith.select %45, %46, %47 : vector<96x24xi1>, vector<96x24xi32>
    %49 = arith.addi %43, %48 : vector<96x24xi32>
    %c72_i32 = arith.constant 72 : i32
    %50 = vector.broadcast %c72_i32 : i32 to vector<96x24xi32>
    %51 = arith.cmpi sge, %35, %50 : vector<96x24xi32>
    %c1_i32_15 = arith.constant 1 : i32
    %c0_i32_16 = arith.constant 0 : i32
    %52 = vector.broadcast %c1_i32_15 : i32 to vector<96x24xi32>
    %53 = vector.broadcast %c0_i32_16 : i32 to vector<96x24xi32>
    %54 = arith.select %51, %52, %53 : vector<96x24xi1>, vector<96x24xi32>
    %55 = arith.addi %49, %54 : vector<96x24xi32>
    %c24_i32_17 = arith.constant 24 : i32
    %56 = vector.broadcast %c24_i32_17 : i32 to vector<96x24xi32>
    %57 = arith.muli %56, %55 : vector<96x24xi32>
    %58 = arith.subi %35, %57 : vector<96x24xi32>
    %59 = arith.cmpi eq, %36, %58 : vector<96x24xi32>
    %cst_18 = arith.constant 1.000000e+00 : f32
    %cst_19 = arith.constant 0.000000e+00 : f32
    %60 = vector.broadcast %cst_18 : f32 to vector<96x24xf32>
    %61 = vector.broadcast %cst_19 : f32 to vector<96x24xf32>
    %62 = arith.select %59, %60, %61 : vector<96x24xi1>, vector<96x24xf32>
    %63 = tpu.iota {dimensions = array<i32: 0>} : vector<24x96xi32>
    %64 = tpu.iota {dimensions = array<i32: 1>} : vector<24x96xi32>
    %c0_i32_20 = arith.constant 0 : i32
    %65 = vector.broadcast %c0_i32_20 : i32 to vector<24x96xi32>
    %c24_i32_21 = arith.constant 24 : i32
    %66 = vector.broadcast %c24_i32_21 : i32 to vector<24x96xi32>
    %67 = arith.cmpi sge, %64, %66 : vector<24x96xi32>
    %c1_i32_22 = arith.constant 1 : i32
    %c0_i32_23 = arith.constant 0 : i32
    %68 = vector.broadcast %c1_i32_22 : i32 to vector<24x96xi32>
    %69 = vector.broadcast %c0_i32_23 : i32 to vector<24x96xi32>
    %70 = arith.select %67, %68, %69 : vector<24x96xi1>, vector<24x96xi32>
    %71 = arith.addi %65, %70 : vector<24x96xi32>
    %c48_i32_24 = arith.constant 48 : i32
    %72 = vector.broadcast %c48_i32_24 : i32 to vector<24x96xi32>
    %73 = arith.cmpi sge, %64, %72 : vector<24x96xi32>
    %c1_i32_25 = arith.constant 1 : i32
    %c0_i32_26 = arith.constant 0 : i32
    %74 = vector.broadcast %c1_i32_25 : i32 to vector<24x96xi32>
    %75 = vector.broadcast %c0_i32_26 : i32 to vector<24x96xi32>
    %76 = arith.select %73, %74, %75 : vector<24x96xi1>, vector<24x96xi32>
    %77 = arith.addi %71, %76 : vector<24x96xi32>
    %c72_i32_27 = arith.constant 72 : i32
    %78 = vector.broadcast %c72_i32_27 : i32 to vector<24x96xi32>
    %79 = arith.cmpi sge, %64, %78 : vector<24x96xi32>
    %c1_i32_28 = arith.constant 1 : i32
    %c0_i32_29 = arith.constant 0 : i32
    %80 = vector.broadcast %c1_i32_28 : i32 to vector<24x96xi32>
    %81 = vector.broadcast %c0_i32_29 : i32 to vector<24x96xi32>
    %82 = arith.select %79, %80, %81 : vector<24x96xi1>, vector<24x96xi32>
    %83 = arith.addi %77, %82 : vector<24x96xi32>
    %c24_i32_30 = arith.constant 24 : i32
    %84 = vector.broadcast %c24_i32_30 : i32 to vector<24x96xi32>
    %85 = arith.muli %84, %83 : vector<24x96xi32>
    %86 = arith.subi %64, %85 : vector<24x96xi32>
    %87 = arith.cmpi eq, %86, %63 : vector<24x96xi32>
    %cst_31 = arith.constant 1.000000e+00 : f32
    %cst_32 = arith.constant 0.000000e+00 : f32
    %88 = vector.broadcast %cst_31 : f32 to vector<24x96xf32>
    %89 = vector.broadcast %cst_32 : f32 to vector<24x96xf32>
    %90 = arith.select %87, %88, %89 : vector<24x96xi1>, vector<24x96xf32>
    %91 = tpu.iota {dimensions = array<i32: 0>} : vector<96x64xi32>
    %92 = tpu.iota {dimensions = array<i32: 1>} : vector<96x64xi32>
    %c0_i32_33 = arith.constant 0 : i32
    %93 = vector.broadcast %c0_i32_33 : i32 to vector<96x64xi32>
    %c16_i32 = arith.constant 16 : i32
    %94 = vector.broadcast %c16_i32 : i32 to vector<96x64xi32>
    %95 = arith.cmpi sge, %92, %94 : vector<96x64xi32>
    %c1_i32_34 = arith.constant 1 : i32
    %c0_i32_35 = arith.constant 0 : i32
    %96 = vector.broadcast %c1_i32_34 : i32 to vector<96x64xi32>
    %97 = vector.broadcast %c0_i32_35 : i32 to vector<96x64xi32>
    %98 = arith.select %95, %96, %97 : vector<96x64xi1>, vector<96x64xi32>
    %99 = arith.addi %93, %98 : vector<96x64xi32>
    %c32_i32 = arith.constant 32 : i32
    %100 = vector.broadcast %c32_i32 : i32 to vector<96x64xi32>
    %101 = arith.cmpi sge, %92, %100 : vector<96x64xi32>
    %c1_i32_36 = arith.constant 1 : i32
    %c0_i32_37 = arith.constant 0 : i32
    %102 = vector.broadcast %c1_i32_36 : i32 to vector<96x64xi32>
    %103 = vector.broadcast %c0_i32_37 : i32 to vector<96x64xi32>
    %104 = arith.select %101, %102, %103 : vector<96x64xi1>, vector<96x64xi32>
    %105 = arith.addi %99, %104 : vector<96x64xi32>
    %c48_i32_38 = arith.constant 48 : i32
    %106 = vector.broadcast %c48_i32_38 : i32 to vector<96x64xi32>
    %107 = arith.cmpi sge, %92, %106 : vector<96x64xi32>
    %c1_i32_39 = arith.constant 1 : i32
    %c0_i32_40 = arith.constant 0 : i32
    %108 = vector.broadcast %c1_i32_39 : i32 to vector<96x64xi32>
    %109 = vector.broadcast %c0_i32_40 : i32 to vector<96x64xi32>
    %110 = arith.select %107, %108, %109 : vector<96x64xi1>, vector<96x64xi32>
    %111 = arith.addi %105, %110 : vector<96x64xi32>
    %c0_i32_41 = arith.constant 0 : i32
    %112 = vector.broadcast %c0_i32_41 : i32 to vector<96x64xi32>
    %c24_i32_42 = arith.constant 24 : i32
    %113 = vector.broadcast %c24_i32_42 : i32 to vector<96x64xi32>
    %114 = arith.cmpi sge, %91, %113 : vector<96x64xi32>
    %c1_i32_43 = arith.constant 1 : i32
    %c0_i32_44 = arith.constant 0 : i32
    %115 = vector.broadcast %c1_i32_43 : i32 to vector<96x64xi32>
    %116 = vector.broadcast %c0_i32_44 : i32 to vector<96x64xi32>
    %117 = arith.select %114, %115, %116 : vector<96x64xi1>, vector<96x64xi32>
    %118 = arith.addi %112, %117 : vector<96x64xi32>
    %c48_i32_45 = arith.constant 48 : i32
    %119 = vector.broadcast %c48_i32_45 : i32 to vector<96x64xi32>
    %120 = arith.cmpi sge, %91, %119 : vector<96x64xi32>
    %c1_i32_46 = arith.constant 1 : i32
    %c0_i32_47 = arith.constant 0 : i32
    %121 = vector.broadcast %c1_i32_46 : i32 to vector<96x64xi32>
    %122 = vector.broadcast %c0_i32_47 : i32 to vector<96x64xi32>
    %123 = arith.select %120, %121, %122 : vector<96x64xi1>, vector<96x64xi32>
    %124 = arith.addi %118, %123 : vector<96x64xi32>
    %c72_i32_48 = arith.constant 72 : i32
    %125 = vector.broadcast %c72_i32_48 : i32 to vector<96x64xi32>
    %126 = arith.cmpi sge, %91, %125 : vector<96x64xi32>
    %c1_i32_49 = arith.constant 1 : i32
    %c0_i32_50 = arith.constant 0 : i32
    %127 = vector.broadcast %c1_i32_49 : i32 to vector<96x64xi32>
    %128 = vector.broadcast %c0_i32_50 : i32 to vector<96x64xi32>
    %129 = arith.select %126, %127, %128 : vector<96x64xi1>, vector<96x64xi32>
    %130 = arith.addi %124, %129 : vector<96x64xi32>
    %131 = arith.cmpi eq, %111, %130 : vector<96x64xi32>
    %132 = tpu.iota {dimensions = array<i32: 0>} : vector<48x12xi32>
    %133 = tpu.iota {dimensions = array<i32: 1>} : vector<48x12xi32>
    %c0_i32_51 = arith.constant 0 : i32
    %134 = vector.broadcast %c0_i32_51 : i32 to vector<48x12xi32>
    %c12_i32_52 = arith.constant 12 : i32
    %135 = vector.broadcast %c12_i32_52 : i32 to vector<48x12xi32>
    %136 = arith.cmpi sge, %132, %135 : vector<48x12xi32>
    %c1_i32_53 = arith.constant 1 : i32
    %c0_i32_54 = arith.constant 0 : i32
    %137 = vector.broadcast %c1_i32_53 : i32 to vector<48x12xi32>
    %138 = vector.broadcast %c0_i32_54 : i32 to vector<48x12xi32>
    %139 = arith.select %136, %137, %138 : vector<48x12xi1>, vector<48x12xi32>
    %140 = arith.addi %134, %139 : vector<48x12xi32>
    %c24_i32_55 = arith.constant 24 : i32
    %141 = vector.broadcast %c24_i32_55 : i32 to vector<48x12xi32>
    %142 = arith.cmpi sge, %132, %141 : vector<48x12xi32>
    %c1_i32_56 = arith.constant 1 : i32
    %c0_i32_57 = arith.constant 0 : i32
    %143 = vector.broadcast %c1_i32_56 : i32 to vector<48x12xi32>
    %144 = vector.broadcast %c0_i32_57 : i32 to vector<48x12xi32>
    %145 = arith.select %142, %143, %144 : vector<48x12xi1>, vector<48x12xi32>
    %146 = arith.addi %140, %145 : vector<48x12xi32>
    %c36_i32 = arith.constant 36 : i32
    %147 = vector.broadcast %c36_i32 : i32 to vector<48x12xi32>
    %148 = arith.cmpi sge, %132, %147 : vector<48x12xi32>
    %c1_i32_58 = arith.constant 1 : i32
    %c0_i32_59 = arith.constant 0 : i32
    %149 = vector.broadcast %c1_i32_58 : i32 to vector<48x12xi32>
    %150 = vector.broadcast %c0_i32_59 : i32 to vector<48x12xi32>
    %151 = arith.select %148, %149, %150 : vector<48x12xi1>, vector<48x12xi32>
    %152 = arith.addi %146, %151 : vector<48x12xi32>
    %c12_i32_60 = arith.constant 12 : i32
    %153 = vector.broadcast %c12_i32_60 : i32 to vector<48x12xi32>
    %154 = arith.muli %153, %152 : vector<48x12xi32>
    %155 = arith.subi %132, %154 : vector<48x12xi32>
    %156 = arith.cmpi eq, %133, %155 : vector<48x12xi32>
    %cst_61 = arith.constant 1.000000e+00 : f32
    %cst_62 = arith.constant 0.000000e+00 : f32
    %157 = vector.broadcast %cst_61 : f32 to vector<48x12xf32>
    %158 = vector.broadcast %cst_62 : f32 to vector<48x12xf32>
    %159 = arith.select %156, %157, %158 : vector<48x12xi1>, vector<48x12xf32>
    %160 = tpu.iota {dimensions = array<i32: 0>} : vector<12x48xi32>
    %161 = tpu.iota {dimensions = array<i32: 1>} : vector<12x48xi32>
    %c0_i32_63 = arith.constant 0 : i32
    %162 = vector.broadcast %c0_i32_63 : i32 to vector<12x48xi32>
    %c12_i32_64 = arith.constant 12 : i32
    %163 = vector.broadcast %c12_i32_64 : i32 to vector<12x48xi32>
    %164 = arith.cmpi sge, %161, %163 : vector<12x48xi32>
    %c1_i32_65 = arith.constant 1 : i32
    %c0_i32_66 = arith.constant 0 : i32
    %165 = vector.broadcast %c1_i32_65 : i32 to vector<12x48xi32>
    %166 = vector.broadcast %c0_i32_66 : i32 to vector<12x48xi32>
    %167 = arith.select %164, %165, %166 : vector<12x48xi1>, vector<12x48xi32>
    %168 = arith.addi %162, %167 : vector<12x48xi32>
    %c24_i32_67 = arith.constant 24 : i32
    %169 = vector.broadcast %c24_i32_67 : i32 to vector<12x48xi32>
    %170 = arith.cmpi sge, %161, %169 : vector<12x48xi32>
    %c1_i32_68 = arith.constant 1 : i32
    %c0_i32_69 = arith.constant 0 : i32
    %171 = vector.broadcast %c1_i32_68 : i32 to vector<12x48xi32>
    %172 = vector.broadcast %c0_i32_69 : i32 to vector<12x48xi32>
    %173 = arith.select %170, %171, %172 : vector<12x48xi1>, vector<12x48xi32>
    %174 = arith.addi %168, %173 : vector<12x48xi32>
    %c36_i32_70 = arith.constant 36 : i32
    %175 = vector.broadcast %c36_i32_70 : i32 to vector<12x48xi32>
    %176 = arith.cmpi sge, %161, %175 : vector<12x48xi32>
    %c1_i32_71 = arith.constant 1 : i32
    %c0_i32_72 = arith.constant 0 : i32
    %177 = vector.broadcast %c1_i32_71 : i32 to vector<12x48xi32>
    %178 = vector.broadcast %c0_i32_72 : i32 to vector<12x48xi32>
    %179 = arith.select %176, %177, %178 : vector<12x48xi1>, vector<12x48xi32>
    %180 = arith.addi %174, %179 : vector<12x48xi32>
    %c12_i32_73 = arith.constant 12 : i32
    %181 = vector.broadcast %c12_i32_73 : i32 to vector<12x48xi32>
    %182 = arith.muli %181, %180 : vector<12x48xi32>
    %183 = arith.subi %161, %182 : vector<12x48xi32>
    %184 = arith.cmpi eq, %183, %160 : vector<12x48xi32>
    %cst_74 = arith.constant 1.000000e+00 : f32
    %cst_75 = arith.constant 0.000000e+00 : f32
    %185 = vector.broadcast %cst_74 : f32 to vector<12x48xf32>
    %186 = vector.broadcast %cst_75 : f32 to vector<12x48xf32>
    %187 = arith.select %184, %185, %186 : vector<12x48xi1>, vector<12x48xf32>
    %188 = tpu.iota {dimensions = array<i32: 0>} : vector<48x64xi32>
    %189 = tpu.iota {dimensions = array<i32: 1>} : vector<48x64xi32>
    %c0_i32_76 = arith.constant 0 : i32
    %190 = vector.broadcast %c0_i32_76 : i32 to vector<48x64xi32>
    %c16_i32_77 = arith.constant 16 : i32
    %191 = vector.broadcast %c16_i32_77 : i32 to vector<48x64xi32>
    %192 = arith.cmpi sge, %189, %191 : vector<48x64xi32>
    %c1_i32_78 = arith.constant 1 : i32
    %c0_i32_79 = arith.constant 0 : i32
    %193 = vector.broadcast %c1_i32_78 : i32 to vector<48x64xi32>
    %194 = vector.broadcast %c0_i32_79 : i32 to vector<48x64xi32>
    %195 = arith.select %192, %193, %194 : vector<48x64xi1>, vector<48x64xi32>
    %196 = arith.addi %190, %195 : vector<48x64xi32>
    %c32_i32_80 = arith.constant 32 : i32
    %197 = vector.broadcast %c32_i32_80 : i32 to vector<48x64xi32>
    %198 = arith.cmpi sge, %189, %197 : vector<48x64xi32>
    %c1_i32_81 = arith.constant 1 : i32
    %c0_i32_82 = arith.constant 0 : i32
    %199 = vector.broadcast %c1_i32_81 : i32 to vector<48x64xi32>
    %200 = vector.broadcast %c0_i32_82 : i32 to vector<48x64xi32>
    %201 = arith.select %198, %199, %200 : vector<48x64xi1>, vector<48x64xi32>
    %202 = arith.addi %196, %201 : vector<48x64xi32>
    %c48_i32_83 = arith.constant 48 : i32
    %203 = vector.broadcast %c48_i32_83 : i32 to vector<48x64xi32>
    %204 = arith.cmpi sge, %189, %203 : vector<48x64xi32>
    %c1_i32_84 = arith.constant 1 : i32
    %c0_i32_85 = arith.constant 0 : i32
    %205 = vector.broadcast %c1_i32_84 : i32 to vector<48x64xi32>
    %206 = vector.broadcast %c0_i32_85 : i32 to vector<48x64xi32>
    %207 = arith.select %204, %205, %206 : vector<48x64xi1>, vector<48x64xi32>
    %208 = arith.addi %202, %207 : vector<48x64xi32>
    %c0_i32_86 = arith.constant 0 : i32
    %209 = vector.broadcast %c0_i32_86 : i32 to vector<48x64xi32>
    %c12_i32_87 = arith.constant 12 : i32
    %210 = vector.broadcast %c12_i32_87 : i32 to vector<48x64xi32>
    %211 = arith.cmpi sge, %188, %210 : vector<48x64xi32>
    %c1_i32_88 = arith.constant 1 : i32
    %c0_i32_89 = arith.constant 0 : i32
    %212 = vector.broadcast %c1_i32_88 : i32 to vector<48x64xi32>
    %213 = vector.broadcast %c0_i32_89 : i32 to vector<48x64xi32>
    %214 = arith.select %211, %212, %213 : vector<48x64xi1>, vector<48x64xi32>
    %215 = arith.addi %209, %214 : vector<48x64xi32>
    %c24_i32_90 = arith.constant 24 : i32
    %216 = vector.broadcast %c24_i32_90 : i32 to vector<48x64xi32>
    %217 = arith.cmpi sge, %188, %216 : vector<48x64xi32>
    %c1_i32_91 = arith.constant 1 : i32
    %c0_i32_92 = arith.constant 0 : i32
    %218 = vector.broadcast %c1_i32_91 : i32 to vector<48x64xi32>
    %219 = vector.broadcast %c0_i32_92 : i32 to vector<48x64xi32>
    %220 = arith.select %217, %218, %219 : vector<48x64xi1>, vector<48x64xi32>
    %221 = arith.addi %215, %220 : vector<48x64xi32>
    %c36_i32_93 = arith.constant 36 : i32
    %222 = vector.broadcast %c36_i32_93 : i32 to vector<48x64xi32>
    %223 = arith.cmpi sge, %188, %222 : vector<48x64xi32>
    %c1_i32_94 = arith.constant 1 : i32
    %c0_i32_95 = arith.constant 0 : i32
    %224 = vector.broadcast %c1_i32_94 : i32 to vector<48x64xi32>
    %225 = vector.broadcast %c0_i32_95 : i32 to vector<48x64xi32>
    %226 = arith.select %223, %224, %225 : vector<48x64xi1>, vector<48x64xi32>
    %227 = arith.addi %221, %226 : vector<48x64xi32>
    %228 = arith.cmpi eq, %208, %227 : vector<48x64xi32>
    %c0 = arith.constant 0 : index
    %c0_96 = arith.constant 0 : index
    %c0_97 = arith.constant 0 : index
    %229 = vector.load %arg4[%c0, %c0_96, %c0_97] : memref<34x64x64xf32, #tpu.memory_space<vmem>>, vector<1x64x64xf32>
    %230 = vector.shape_cast %229 : vector<1x64x64xf32> to vector<64x64xf32>
    %c1 = arith.constant 1 : index
    %c0_98 = arith.constant 0 : index
    %c0_99 = arith.constant 0 : index
    %231 = vector.load %arg4[%c1, %c0_98, %c0_99] : memref<34x64x64xf32, #tpu.memory_space<vmem>>, vector<1x64x64xf32>
    %232 = vector.shape_cast %231 : vector<1x64x64xf32> to vector<64x64xf32>
    %c2 = arith.constant 2 : index
    %c0_100 = arith.constant 0 : index
    %c0_101 = arith.constant 0 : index
    %233 = vector.load %arg4[%c2, %c0_100, %c0_101] : memref<34x64x64xf32, #tpu.memory_space<vmem>>, vector<1x64x64xf32>
    %234 = vector.shape_cast %233 : vector<1x64x64xf32> to vector<64x64xf32>
    %c0_102 = arith.constant 0 : index
    %c0_103 = arith.constant 0 : index
    %235 = vector.load %arg5[%c0_102, %c0_103] : memref<45x64xf32, #tpu.memory_space<vmem>>, vector<1x64xf32>
    %c0_104 = arith.constant 0 : index
    %c0_105 = arith.constant 0 : index
    %236 = vector.load %arg0[%c0_104, %c0_105] : memref<24x64xf32, #tpu.memory_space<vmem>>, vector<24x64xf32>
    %cst_106 = arith.constant dense<0.000000e+00> : vector<24x64xf32>
    %237 = tpu.matmul %29, %236, %cst_106 {dimension_numbers = #tpu.dot_dimension_numbers<[1], [0], [0], [1], [0, 0, 1, 1], [], []>} : vector<24x24xf32>, vector<24x64xf32>, vector<24x64xf32> -> vector<24x64xf32>
    %cst_107 = arith.constant dense<0.000000e+00> : vector<24x64xf32>
    %238 = tpu.matmul %34, %236, %cst_107 {dimension_numbers = #tpu.dot_dimension_numbers<[1], [0], [0], [1], [0, 0, 1, 1], [], []>} : vector<24x24xf32>, vector<24x64xf32>, vector<24x64xf32> -> vector<24x64xf32>
    %cst_108 = arith.constant dense<0.000000e+00> : vector<24x64xf32>
    %239 = tpu.matmul %237, %230, %cst_108 {dimension_numbers = #tpu.dot_dimension_numbers<[1], [0], [0], [1], [0, 0, 1, 1], [], []>} : vector<24x64xf32>, vector<64x64xf32>, vector<24x64xf32> -> vector<24x64xf32>
    %cst_109 = arith.constant dense<0.000000e+00> : vector<24x64xf32>
    %240 = tpu.matmul %236, %232, %cst_109 {dimension_numbers = #tpu.dot_dimension_numbers<[1], [0], [0], [1], [0, 0, 1, 1], [], []>} : vector<24x64xf32>, vector<64x64xf32>, vector<24x64xf32> -> vector<24x64xf32>
    %241 = arith.addf %239, %240 : vector<24x64xf32>
    %cst_110 = arith.constant dense<0.000000e+00> : vector<24x64xf32>
    %242 = tpu.matmul %238, %234, %cst_110 {dimension_numbers = #tpu.dot_dimension_numbers<[1], [0], [0], [1], [0, 0, 1, 1], [], []>} : vector<24x64xf32>, vector<64x64xf32>, vector<24x64xf32> -> vector<24x64xf32>
    %243 = arith.addf %241, %242 : vector<24x64xf32>
    %244 = vector.broadcast %235 : vector<1x64xf32> to vector<24x64xf32>
    %245 = arith.addf %243, %244 : vector<24x64xf32>
    %c0_111 = arith.constant 0 : index
    %c0_112 = arith.constant 0 : index
    %246 = vector.load %arg2[%c0_111, %c0_112] : memref<24x64xf32, #tpu.memory_space<vmem>>, vector<24x64xf32>
    %247 = arith.addf %245, %246 : vector<24x64xf32>
    %c3 = arith.constant 3 : index
    %c0_113 = arith.constant 0 : index
    %c0_114 = arith.constant 0 : index
    %248 = vector.load %arg4[%c3, %c0_113, %c0_114] : memref<34x64x64xf32, #tpu.memory_space<vmem>>, vector<1x64x64xf32>
    %249 = vector.shape_cast %248 : vector<1x64x64xf32> to vector<64x64xf32>
    %c4 = arith.constant 4 : index
    %c0_115 = arith.constant 0 : index
    %c0_116 = arith.constant 0 : index
    %250 = vector.load %arg4[%c4, %c0_115, %c0_116] : memref<34x64x64xf32, #tpu.memory_space<vmem>>, vector<1x64x64xf32>
    %251 = vector.shape_cast %250 : vector<1x64x64xf32> to vector<64x64xf32>
    %c5 = arith.constant 5 : index
    %c0_117 = arith.constant 0 : index
    %c0_118 = arith.constant 0 : index
    %252 = vector.load %arg4[%c5, %c0_117, %c0_118] : memref<34x64x64xf32, #tpu.memory_space<vmem>>, vector<1x64x64xf32>
    %253 = vector.shape_cast %252 : vector<1x64x64xf32> to vector<64x64xf32>
    %c6 = arith.constant 6 : index
    %c0_119 = arith.constant 0 : index
    %c0_120 = arith.constant 0 : index
    %254 = vector.load %arg4[%c6, %c0_119, %c0_120] : memref<34x64x64xf32, #tpu.memory_space<vmem>>, vector<1x64x64xf32>
    %255 = vector.shape_cast %254 : vector<1x64x64xf32> to vector<64x64xf32>
    %c1_121 = arith.constant 1 : index
    %c0_122 = arith.constant 0 : index
    %256 = vector.load %arg5[%c1_121, %c0_122] : memref<45x64xf32, #tpu.memory_space<vmem>>, vector<1x64xf32>
    %c2_123 = arith.constant 2 : index
    %c0_124 = arith.constant 0 : index
    %257 = vector.load %arg5[%c2_123, %c0_124] : memref<45x64xf32, #tpu.memory_space<vmem>>, vector<1x64xf32>
    %c3_125 = arith.constant 3 : index
    %c0_126 = arith.constant 0 : index
    %258 = vector.load %arg5[%c3_125, %c0_126] : memref<45x64xf32, #tpu.memory_space<vmem>>, vector<1x64xf32>
    %c4_127 = arith.constant 4 : index
    %c0_128 = arith.constant 0 : index
    %259 = vector.load %arg5[%c4_127, %c0_128] : memref<45x64xf32, #tpu.memory_space<vmem>>, vector<1x64xf32>
    %c5_129 = arith.constant 5 : index
    %c0_130 = arith.constant 0 : index
    %260 = vector.load %arg5[%c5_129, %c0_130] : memref<45x64xf32, #tpu.memory_space<vmem>>, vector<1x64xf32>
    %c6_131 = arith.constant 6 : index
    %c0_132 = arith.constant 0 : index
    %261 = vector.load %arg5[%c6_131, %c0_132] : memref<45x64xf32, #tpu.memory_space<vmem>>, vector<1x64xf32>
    %cst_133 = arith.constant dense<0.000000e+00> : vector<24x64xf32>
    %262 = tpu.matmul %247, %249, %cst_133 {dimension_numbers = #tpu.dot_dimension_numbers<[1], [0], [0], [1], [0, 0, 1, 1], [], []>} : vector<24x64xf32>, vector<64x64xf32>, vector<24x64xf32> -> vector<24x64xf32>
    %263 = vector.broadcast %256 : vector<1x64xf32> to vector<24x64xf32>
    %264 = arith.addf %262, %263 : vector<24x64xf32>
    %cst_134 = arith.constant dense<0.000000e+00> : vector<24x64xf32>
    %265 = tpu.matmul %247, %251, %cst_134 {dimension_numbers = #tpu.dot_dimension_numbers<[1], [0], [0], [1], [0, 0, 1, 1], [], []>} : vector<24x64xf32>, vector<64x64xf32>, vector<24x64xf32> -> vector<24x64xf32>
    %266 = vector.broadcast %257 : vector<1x64xf32> to vector<24x64xf32>
    %267 = arith.addf %265, %266 : vector<24x64xf32>
    %cst_135 = arith.constant dense<0.000000e+00> : vector<24x64xf32>
    %268 = tpu.matmul %247, %253, %cst_135 {dimension_numbers = #tpu.dot_dimension_numbers<[1], [0], [0], [1], [0, 0, 1, 1], [], []>} : vector<24x64xf32>, vector<64x64xf32>, vector<24x64xf32> -> vector<24x64xf32>
    %269 = vector.broadcast %258 : vector<1x64xf32> to vector<24x64xf32>
    %270 = arith.addf %268, %269 : vector<24x64xf32>
    %cst_136 = arith.constant dense<0.000000e+00> : vector<96x64xf32>
    %271 = tpu.matmul %62, %264, %cst_136 {dimension_numbers = #tpu.dot_dimension_numbers<[1], [0], [0], [1], [0, 0, 1, 1], [], []>} : vector<96x24xf32>, vector<24x64xf32>, vector<96x64xf32> -> vector<96x64xf32>
    %cst_137 = arith.constant 0.000000e+00 : f32
    %272 = vector.broadcast %cst_137 : f32 to vector<96x64xf32>
    %273 = arith.select %131, %271, %272 : vector<96x64xi1>, vector<96x64xf32>
    %cst_138 = arith.constant dense<0.000000e+00> : vector<96x24xf32>
    %274 = tpu.matmul %273, %267, %cst_138 {dimension_numbers = #tpu.dot_dimension_numbers<[1], [1], [0], [0], [0, 0, 1, 0], [], []>} : vector<96x64xf32>, vector<24x64xf32>, vector<96x24xf32> -> vector<96x24xf32>
    %275 = tpu.iota {dimensions = array<i32: 0>} : vector<96x24xi32>
    %276 = tpu.iota {dimensions = array<i32: 1>} : vector<96x24xi32>
    %c0_i32_139 = arith.constant 0 : i32
    %277 = vector.broadcast %c0_i32_139 : i32 to vector<96x24xi32>
    %c24_i32_140 = arith.constant 24 : i32
    %278 = vector.broadcast %c24_i32_140 : i32 to vector<96x24xi32>
    %279 = arith.cmpi sge, %275, %278 : vector<96x24xi32>
    %c1_i32_141 = arith.constant 1 : i32
    %c0_i32_142 = arith.constant 0 : i32
    %280 = vector.broadcast %c1_i32_141 : i32 to vector<96x24xi32>
    %281 = vector.broadcast %c0_i32_142 : i32 to vector<96x24xi32>
    %282 = arith.select %279, %280, %281 : vector<96x24xi1>, vector<96x24xi32>
    %283 = arith.addi %277, %282 : vector<96x24xi32>
    %c48_i32_143 = arith.constant 48 : i32
    %284 = vector.broadcast %c48_i32_143 : i32 to vector<96x24xi32>
    %285 = arith.cmpi sge, %275, %284 : vector<96x24xi32>
    %c1_i32_144 = arith.constant 1 : i32
    %c0_i32_145 = arith.constant 0 : i32
    %286 = vector.broadcast %c1_i32_144 : i32 to vector<96x24xi32>
    %287 = vector.broadcast %c0_i32_145 : i32 to vector<96x24xi32>
    %288 = arith.select %285, %286, %287 : vector<96x24xi1>, vector<96x24xi32>
    %289 = arith.addi %283, %288 : vector<96x24xi32>
    %c72_i32_146 = arith.constant 72 : i32
    %290 = vector.broadcast %c72_i32_146 : i32 to vector<96x24xi32>
    %291 = arith.cmpi sge, %275, %290 : vector<96x24xi32>
    %c1_i32_147 = arith.constant 1 : i32
    %c0_i32_148 = arith.constant 0 : i32
    %292 = vector.broadcast %c1_i32_147 : i32 to vector<96x24xi32>
    %293 = vector.broadcast %c0_i32_148 : i32 to vector<96x24xi32>
    %294 = arith.select %291, %292, %293 : vector<96x24xi1>, vector<96x24xi32>
    %295 = arith.addi %289, %294 : vector<96x24xi32>
    %c24_i32_149 = arith.constant 24 : i32
    %296 = vector.broadcast %c24_i32_149 : i32 to vector<96x24xi32>
    %297 = arith.muli %296, %295 : vector<96x24xi32>
    %298 = arith.subi %275, %297 : vector<96x24xi32>
    %c0_i32_150 = arith.constant 0 : i32
    %299 = vector.broadcast %c0_i32_150 : i32 to vector<96x24xi32>
    %c12_i32_151 = arith.constant 12 : i32
    %300 = vector.broadcast %c12_i32_151 : i32 to vector<96x24xi32>
    %301 = arith.cmpi sge, %298, %300 : vector<96x24xi32>
    %c1_i32_152 = arith.constant 1 : i32
    %c0_i32_153 = arith.constant 0 : i32
    %302 = vector.broadcast %c1_i32_152 : i32 to vector<96x24xi32>
    %303 = vector.broadcast %c0_i32_153 : i32 to vector<96x24xi32>
    %304 = arith.select %301, %302, %303 : vector<96x24xi1>, vector<96x24xi32>
    %305 = arith.addi %299, %304 : vector<96x24xi32>
    %c0_i32_154 = arith.constant 0 : i32
    %306 = vector.broadcast %c0_i32_154 : i32 to vector<96x24xi32>
    %c12_i32_155 = arith.constant 12 : i32
    %307 = vector.broadcast %c12_i32_155 : i32 to vector<96x24xi32>
    %308 = arith.cmpi sge, %276, %307 : vector<96x24xi32>
    %c1_i32_156 = arith.constant 1 : i32
    %c0_i32_157 = arith.constant 0 : i32
    %309 = vector.broadcast %c1_i32_156 : i32 to vector<96x24xi32>
    %310 = vector.broadcast %c0_i32_157 : i32 to vector<96x24xi32>
    %311 = arith.select %308, %309, %310 : vector<96x24xi1>, vector<96x24xi32>
    %312 = arith.addi %306, %311 : vector<96x24xi32>
    %313 = arith.cmpi eq, %305, %312 : vector<96x24xi32>
    %cst_158 = arith.constant -1.000000e+30 : f32
    %314 = vector.broadcast %cst_158 : f32 to vector<96x24xf32>
    %315 = arith.select %313, %274, %314 : vector<96x24xi1>, vector<96x24xf32>
    %cst_159 = arith.constant dense<0xFF800000> : vector<96xf32>
    %316 = vector.multi_reduction <maximumf>, %315, %cst_159 [1] : vector<96x24xf32> to vector<96xf32>
    %317 = vector.shape_cast %316 : vector<96xf32> to vector<96x1xf32>
    %318 = vector.broadcast %317 : vector<96x1xf32> to vector<96x24xf32>
    %319 = arith.subf %315, %318 : vector<96x24xf32>
    %320 = math.exp %319 : vector<96x24xf32>
    %cst_160 = arith.constant dense<0.000000e+00> : vector<96xf32>
    %321 = vector.multi_reduction <add>, %320, %cst_160 [1] : vector<96x24xf32> to vector<96xf32>
    %322 = vector.shape_cast %321 : vector<96xf32> to vector<96x1xf32>
    %323 = vector.broadcast %322 : vector<96x1xf32> to vector<96x24xf32>
    %324 = arith.divf %320, %323 : vector<96x24xf32>
    %cst_161 = arith.constant dense<0.000000e+00> : vector<96x64xf32>
    %325 = tpu.matmul %324, %270, %cst_161 {dimension_numbers = #tpu.dot_dimension_numbers<[1], [0], [0], [1], [0, 0, 1, 1], [], []>} : vector<96x24xf32>, vector<24x64xf32>, vector<96x64xf32> -> vector<96x64xf32>
    %cst_162 = arith.constant 0.000000e+00 : f32
    %326 = vector.broadcast %cst_162 : f32 to vector<96x64xf32>
    %327 = arith.select %131, %325, %326 : vector<96x64xi1>, vector<96x64xf32>
    %cst_163 = arith.constant dense<0.000000e+00> : vector<24x64xf32>
    %328 = tpu.matmul %90, %327, %cst_163 {dimension_numbers = #tpu.dot_dimension_numbers<[1], [0], [0], [1], [0, 0, 1, 1], [], []>} : vector<24x96xf32>, vector<96x64xf32>, vector<24x64xf32> -> vector<24x64xf32>
    %cst_164 = arith.constant dense<0.000000e+00> : vector<24x64xf32>
    %329 = tpu.matmul %328, %255, %cst_164 {dimension_numbers = #tpu.dot_dimension_numbers<[1], [0], [0], [1], [0, 0, 1, 1], [], []>} : vector<24x64xf32>, vector<64x64xf32>, vector<24x64xf32> -> vector<24x64xf32>
    %330 = vector.broadcast %259 : vector<1x64xf32> to vector<24x64xf32>
    %331 = arith.addf %329, %330 : vector<24x64xf32>
    %332 = arith.addf %247, %331 : vector<24x64xf32>
    %cst_165 = arith.constant dense<0.000000e+00> : vector<24xf32>
    %333 = vector.multi_reduction <add>, %332, %cst_165 [1] : vector<24x64xf32> to vector<24xf32>
    %334 = vector.shape_cast %333 : vector<24xf32> to vector<24x1xf32>
    %cst_166 = arith.constant 6.400000e+01 : f32
    %335 = vector.broadcast %cst_166 : f32 to vector<24x1xf32>
    %336 = arith.divf %334, %335 : vector<24x1xf32>
    %337 = vector.broadcast %336 : vector<24x1xf32> to vector<24x64xf32>
    %338 = arith.subf %332, %337 : vector<24x64xf32>
    %339 = arith.mulf %338, %338 : vector<24x64xf32>
    %cst_167 = arith.constant dense<0.000000e+00> : vector<24xf32>
    %340 = vector.multi_reduction <add>, %339, %cst_167 [1] : vector<24x64xf32> to vector<24xf32>
    %341 = vector.shape_cast %340 : vector<24xf32> to vector<24x1xf32>
    %cst_168 = arith.constant 6.400000e+01 : f32
    %342 = vector.broadcast %cst_168 : f32 to vector<24x1xf32>
    %343 = arith.divf %341, %342 : vector<24x1xf32>
    %cst_169 = arith.constant 9.99999974E-6 : f32
    %344 = vector.broadcast %cst_169 : f32 to vector<24x1xf32>
    %345 = arith.addf %343, %344 : vector<24x1xf32>
    %346 = math.rsqrt %345 : vector<24x1xf32>
    %347 = vector.broadcast %346 : vector<24x1xf32> to vector<24x64xf32>
    %348 = arith.mulf %338, %347 : vector<24x64xf32>
    %349 = vector.broadcast %260 : vector<1x64xf32> to vector<24x64xf32>
    %350 = arith.mulf %348, %349 : vector<24x64xf32>
    %351 = vector.broadcast %261 : vector<1x64xf32> to vector<24x64xf32>
    %352 = arith.addf %350, %351 : vector<24x64xf32>
    %c7 = arith.constant 7 : index
    %c0_170 = arith.constant 0 : index
    %c0_171 = arith.constant 0 : index
    %353 = vector.load %arg4[%c7, %c0_170, %c0_171] : memref<34x64x64xf32, #tpu.memory_space<vmem>>, vector<1x64x64xf32>
    %354 = vector.shape_cast %353 : vector<1x64x64xf32> to vector<64x64xf32>
    %c8 = arith.constant 8 : index
    %c0_172 = arith.constant 0 : index
    %c0_173 = arith.constant 0 : index
    %355 = vector.load %arg4[%c8, %c0_172, %c0_173] : memref<34x64x64xf32, #tpu.memory_space<vmem>>, vector<1x64x64xf32>
    %356 = vector.shape_cast %355 : vector<1x64x64xf32> to vector<64x64xf32>
    %c7_174 = arith.constant 7 : index
    %c0_175 = arith.constant 0 : index
    %357 = vector.load %arg5[%c7_174, %c0_175] : memref<45x64xf32, #tpu.memory_space<vmem>>, vector<1x64xf32>
    %c8_176 = arith.constant 8 : index
    %c0_177 = arith.constant 0 : index
    %358 = vector.load %arg5[%c8_176, %c0_177] : memref<45x64xf32, #tpu.memory_space<vmem>>, vector<1x64xf32>
    %c9 = arith.constant 9 : index
    %c0_178 = arith.constant 0 : index
    %359 = vector.load %arg5[%c9, %c0_178] : memref<45x64xf32, #tpu.memory_space<vmem>>, vector<1x64xf32>
    %c10 = arith.constant 10 : index
    %c0_179 = arith.constant 0 : index
    %360 = vector.load %arg5[%c10, %c0_179] : memref<45x64xf32, #tpu.memory_space<vmem>>, vector<1x64xf32>
    %cst_180 = arith.constant dense<0.000000e+00> : vector<24x64xf32>
    %361 = tpu.matmul %352, %354, %cst_180 {dimension_numbers = #tpu.dot_dimension_numbers<[1], [0], [0], [1], [0, 0, 1, 1], [], []>} : vector<24x64xf32>, vector<64x64xf32>, vector<24x64xf32> -> vector<24x64xf32>
    %362 = vector.broadcast %357 : vector<1x64xf32> to vector<24x64xf32>
    %363 = arith.addf %361, %362 : vector<24x64xf32>
    %cst_181 = arith.constant 5.000000e-01 : f32
    %364 = vector.broadcast %cst_181 : f32 to vector<24x64xf32>
    %365 = arith.mulf %364, %363 : vector<24x64xf32>
    %cst_182 = arith.constant 0.707106769 : f32
    %366 = vector.broadcast %cst_182 : f32 to vector<24x64xf32>
    %367 = arith.mulf %363, %366 : vector<24x64xf32>
    %368 = math.absf %367 : vector<24x64xf32>
    %cst_183 = arith.constant 0.327591091 : f32
    %369 = vector.broadcast %cst_183 : f32 to vector<24x64xf32>
    %370 = arith.mulf %369, %368 : vector<24x64xf32>
    %cst_184 = arith.constant 1.000000e+00 : f32
    %371 = vector.broadcast %cst_184 : f32 to vector<24x64xf32>
    %372 = arith.addf %371, %370 : vector<24x64xf32>
    %cst_185 = arith.constant 1.000000e+00 : f32
    %373 = vector.broadcast %cst_185 : f32 to vector<24x64xf32>
    %374 = arith.divf %373, %372 : vector<24x64xf32>
    %cst_186 = arith.constant 1.06140542 : f32
    %375 = vector.broadcast %cst_186 : f32 to vector<24x64xf32>
    %376 = arith.mulf %375, %374 : vector<24x64xf32>
    %cst_187 = arith.constant -1.45315206 : f32
    %377 = vector.broadcast %cst_187 : f32 to vector<24x64xf32>
    %378 = arith.addf %376, %377 : vector<24x64xf32>
    %379 = arith.mulf %378, %374 : vector<24x64xf32>
    %cst_188 = arith.constant 1.42141378 : f32
    %380 = vector.broadcast %cst_188 : f32 to vector<24x64xf32>
    %381 = arith.addf %379, %380 : vector<24x64xf32>
    %382 = arith.mulf %381, %374 : vector<24x64xf32>
    %cst_189 = arith.constant -0.284496725 : f32
    %383 = vector.broadcast %cst_189 : f32 to vector<24x64xf32>
    %384 = arith.addf %382, %383 : vector<24x64xf32>
    %385 = arith.mulf %384, %374 : vector<24x64xf32>
    %cst_190 = arith.constant 0.254829586 : f32
    %386 = vector.broadcast %cst_190 : f32 to vector<24x64xf32>
    %387 = arith.addf %385, %386 : vector<24x64xf32>
    %388 = arith.mulf %387, %374 : vector<24x64xf32>
    %389 = arith.mulf %368, %368 : vector<24x64xf32>
    %cst_191 = arith.constant 0.000000e+00 : f32
    %390 = vector.broadcast %cst_191 : f32 to vector<24x64xf32>
    %391 = arith.subf %390, %389 : vector<24x64xf32>
    %392 = math.exp %391 : vector<24x64xf32>
    %393 = arith.mulf %388, %392 : vector<24x64xf32>
    %cst_192 = arith.constant 1.000000e+00 : f32
    %394 = vector.broadcast %cst_192 : f32 to vector<24x64xf32>
    %395 = arith.subf %394, %393 : vector<24x64xf32>
    %cst_193 = arith.constant 0.000000e+00 : f32
    %396 = vector.broadcast %cst_193 : f32 to vector<24x64xf32>
    %397 = arith.cmpf oge, %367, %396 : vector<24x64xf32>
    %cst_194 = arith.constant 0.000000e+00 : f32
    %398 = vector.broadcast %cst_194 : f32 to vector<24x64xf32>
    %399 = arith.subf %398, %395 : vector<24x64xf32>
    %400 = arith.select %397, %395, %399 : vector<24x64xi1>, vector<24x64xf32>
    %cst_195 = arith.constant 1.000000e+00 : f32
    %401 = vector.broadcast %cst_195 : f32 to vector<24x64xf32>
    %402 = arith.addf %401, %400 : vector<24x64xf32>
    %403 = arith.mulf %365, %402 : vector<24x64xf32>
    %cst_196 = arith.constant dense<0.000000e+00> : vector<24x64xf32>
    %404 = tpu.matmul %403, %356, %cst_196 {dimension_numbers = #tpu.dot_dimension_numbers<[1], [0], [0], [1], [0, 0, 1, 1], [], []>} : vector<24x64xf32>, vector<64x64xf32>, vector<24x64xf32> -> vector<24x64xf32>
    %405 = vector.broadcast %358 : vector<1x64xf32> to vector<24x64xf32>
    %406 = arith.addf %404, %405 : vector<24x64xf32>
    %407 = arith.addf %352, %406 : vector<24x64xf32>
    %cst_197 = arith.constant dense<0.000000e+00> : vector<24xf32>
    %408 = vector.multi_reduction <add>, %407, %cst_197 [1] : vector<24x64xf32> to vector<24xf32>
    %409 = vector.shape_cast %408 : vector<24xf32> to vector<24x1xf32>
    %cst_198 = arith.constant 6.400000e+01 : f32
    %410 = vector.broadcast %cst_198 : f32 to vector<24x1xf32>
    %411 = arith.divf %409, %410 : vector<24x1xf32>
    %412 = vector.broadcast %411 : vector<24x1xf32> to vector<24x64xf32>
    %413 = arith.subf %407, %412 : vector<24x64xf32>
    %414 = arith.mulf %413, %413 : vector<24x64xf32>
    %cst_199 = arith.constant dense<0.000000e+00> : vector<24xf32>
    %415 = vector.multi_reduction <add>, %414, %cst_199 [1] : vector<24x64xf32> to vector<24xf32>
    %416 = vector.shape_cast %415 : vector<24xf32> to vector<24x1xf32>
    %cst_200 = arith.constant 6.400000e+01 : f32
    %417 = vector.broadcast %cst_200 : f32 to vector<24x1xf32>
    %418 = arith.divf %416, %417 : vector<24x1xf32>
    %cst_201 = arith.constant 9.99999974E-6 : f32
    %419 = vector.broadcast %cst_201 : f32 to vector<24x1xf32>
    %420 = arith.addf %418, %419 : vector<24x1xf32>
    %421 = math.rsqrt %420 : vector<24x1xf32>
    %422 = vector.broadcast %421 : vector<24x1xf32> to vector<24x64xf32>
    %423 = arith.mulf %413, %422 : vector<24x64xf32>
    %424 = vector.broadcast %359 : vector<1x64xf32> to vector<24x64xf32>
    %425 = arith.mulf %423, %424 : vector<24x64xf32>
    %426 = vector.broadcast %360 : vector<1x64xf32> to vector<24x64xf32>
    %427 = arith.addf %425, %426 : vector<24x64xf32>
    %c9_202 = arith.constant 9 : index
    %c0_203 = arith.constant 0 : index
    %c0_204 = arith.constant 0 : index
    %428 = vector.load %arg4[%c9_202, %c0_203, %c0_204] : memref<34x64x64xf32, #tpu.memory_space<vmem>>, vector<1x64x64xf32>
    %429 = vector.shape_cast %428 : vector<1x64x64xf32> to vector<64x64xf32>
    %c10_205 = arith.constant 10 : index
    %c0_206 = arith.constant 0 : index
    %c0_207 = arith.constant 0 : index
    %430 = vector.load %arg4[%c10_205, %c0_206, %c0_207] : memref<34x64x64xf32, #tpu.memory_space<vmem>>, vector<1x64x64xf32>
    %431 = vector.shape_cast %430 : vector<1x64x64xf32> to vector<64x64xf32>
    %c11 = arith.constant 11 : index
    %c0_208 = arith.constant 0 : index
    %c0_209 = arith.constant 0 : index
    %432 = vector.load %arg4[%c11, %c0_208, %c0_209] : memref<34x64x64xf32, #tpu.memory_space<vmem>>, vector<1x64x64xf32>
    %433 = vector.shape_cast %432 : vector<1x64x64xf32> to vector<64x64xf32>
    %c11_210 = arith.constant 11 : index
    %c0_211 = arith.constant 0 : index
    %434 = vector.load %arg5[%c11_210, %c0_211] : memref<45x64xf32, #tpu.memory_space<vmem>>, vector<1x64xf32>
    %c12 = arith.constant 12 : index
    %c0_212 = arith.constant 0 : index
    %435 = vector.load %arg5[%c12, %c0_212] : memref<45x64xf32, #tpu.memory_space<vmem>>, vector<1x64xf32>
    %c13 = arith.constant 13 : index
    %c0_213 = arith.constant 0 : index
    %436 = vector.load %arg5[%c13, %c0_213] : memref<45x64xf32, #tpu.memory_space<vmem>>, vector<1x64xf32>
    %cst_214 = arith.constant dense<0.000000e+00> : vector<24x64xf32>
    %437 = tpu.matmul %29, %427, %cst_214 {dimension_numbers = #tpu.dot_dimension_numbers<[1], [0], [0], [1], [0, 0, 1, 1], [], []>} : vector<24x24xf32>, vector<24x64xf32>, vector<24x64xf32> -> vector<24x64xf32>
    %cst_215 = arith.constant dense<0.000000e+00> : vector<24x64xf32>
    %438 = tpu.matmul %34, %427, %cst_215 {dimension_numbers = #tpu.dot_dimension_numbers<[1], [0], [0], [1], [0, 0, 1, 1], [], []>} : vector<24x24xf32>, vector<24x64xf32>, vector<24x64xf32> -> vector<24x64xf32>
    %cst_216 = arith.constant dense<0.000000e+00> : vector<24x64xf32>
    %439 = tpu.matmul %437, %429, %cst_216 {dimension_numbers = #tpu.dot_dimension_numbers<[1], [0], [0], [1], [0, 0, 1, 1], [], []>} : vector<24x64xf32>, vector<64x64xf32>, vector<24x64xf32> -> vector<24x64xf32>
    %cst_217 = arith.constant dense<0.000000e+00> : vector<24x64xf32>
    %440 = tpu.matmul %427, %431, %cst_217 {dimension_numbers = #tpu.dot_dimension_numbers<[1], [0], [0], [1], [0, 0, 1, 1], [], []>} : vector<24x64xf32>, vector<64x64xf32>, vector<24x64xf32> -> vector<24x64xf32>
    %441 = arith.addf %439, %440 : vector<24x64xf32>
    %cst_218 = arith.constant dense<0.000000e+00> : vector<24x64xf32>
    %442 = tpu.matmul %438, %433, %cst_218 {dimension_numbers = #tpu.dot_dimension_numbers<[1], [0], [0], [1], [0, 0, 1, 1], [], []>} : vector<24x64xf32>, vector<64x64xf32>, vector<24x64xf32> -> vector<24x64xf32>
    %443 = arith.addf %441, %442 : vector<24x64xf32>
    %444 = vector.broadcast %434 : vector<1x64xf32> to vector<24x64xf32>
    %445 = arith.addf %443, %444 : vector<24x64xf32>
    %cst_219 = arith.constant dense<0.000000e+00> : vector<64xf32>
    %446 = vector.multi_reduction <add>, %445, %cst_219 [0] : vector<24x64xf32> to vector<64xf32>
    %447 = vector.shape_cast %446 : vector<64xf32> to vector<1x64xf32>
    %cst_220 = arith.constant 0.0416666679 : f32
    %448 = vector.broadcast %cst_220 : f32 to vector<1x64xf32>
    %449 = arith.mulf %447, %448 : vector<1x64xf32>
    %450 = vector.broadcast %449 : vector<1x64xf32> to vector<24x64xf32>
    %451 = arith.subf %445, %450 : vector<24x64xf32>
    %452 = arith.mulf %451, %451 : vector<24x64xf32>
    %cst_221 = arith.constant dense<0.000000e+00> : vector<64xf32>
    %453 = vector.multi_reduction <add>, %452, %cst_221 [0] : vector<24x64xf32> to vector<64xf32>
    %454 = vector.shape_cast %453 : vector<64xf32> to vector<1x64xf32>
    %cst_222 = arith.constant 0.0416666679 : f32
    %455 = vector.broadcast %cst_222 : f32 to vector<1x64xf32>
    %456 = arith.mulf %454, %455 : vector<1x64xf32>
    %cst_223 = arith.constant 9.99999974E-6 : f32
    %457 = vector.broadcast %cst_223 : f32 to vector<1x64xf32>
    %458 = arith.addf %456, %457 : vector<1x64xf32>
    %459 = math.rsqrt %458 : vector<1x64xf32>
    %460 = vector.broadcast %459 : vector<1x64xf32> to vector<24x64xf32>
    %461 = arith.mulf %451, %460 : vector<24x64xf32>
    %462 = vector.broadcast %435 : vector<1x64xf32> to vector<24x64xf32>
    %463 = arith.mulf %461, %462 : vector<24x64xf32>
    %464 = vector.broadcast %436 : vector<1x64xf32> to vector<24x64xf32>
    %465 = arith.addf %463, %464 : vector<24x64xf32>
    %cst_224 = arith.constant 0.000000e+00 : f32
    %466 = vector.broadcast %cst_224 : f32 to vector<24x64xf32>
    %467 = arith.cmpf ogt, %465, %466 : vector<24x64xf32>
    %cst_225 = arith.constant 0.000000e+00 : f32
    %468 = vector.broadcast %cst_225 : f32 to vector<24x64xf32>
    %469 = arith.minimumf %465, %468 : vector<24x64xf32>
    %470 = math.exp %469 : vector<24x64xf32>
    %cst_226 = arith.constant 1.000000e+00 : f32
    %471 = vector.broadcast %cst_226 : f32 to vector<24x64xf32>
    %472 = arith.subf %470, %471 : vector<24x64xf32>
    %473 = arith.select %467, %465, %472 : vector<24x64xi1>, vector<24x64xf32>
    %474 = tpu.iota {dimensions = array<i32: 0>} : vector<12x24xi32>
    %475 = tpu.iota {dimensions = array<i32: 1>} : vector<12x24xi32>
    %c0_i32_227 = arith.constant 0 : i32
    %476 = vector.broadcast %c0_i32_227 : i32 to vector<12x24xi32>
    %c6_i32 = arith.constant 6 : i32
    %477 = vector.broadcast %c6_i32 : i32 to vector<12x24xi32>
    %478 = arith.cmpi sge, %474, %477 : vector<12x24xi32>
    %c1_i32_228 = arith.constant 1 : i32
    %c0_i32_229 = arith.constant 0 : i32
    %479 = vector.broadcast %c1_i32_228 : i32 to vector<12x24xi32>
    %480 = vector.broadcast %c0_i32_229 : i32 to vector<12x24xi32>
    %481 = arith.select %478, %479, %480 : vector<12x24xi1>, vector<12x24xi32>
    %482 = arith.addi %476, %481 : vector<12x24xi32>
    %c6_i32_230 = arith.constant 6 : i32
    %483 = vector.broadcast %c6_i32_230 : i32 to vector<12x24xi32>
    %484 = arith.muli %483, %482 : vector<12x24xi32>
    %485 = arith.subi %474, %484 : vector<12x24xi32>
    %c12_i32_231 = arith.constant 12 : i32
    %486 = vector.broadcast %c12_i32_231 : i32 to vector<12x24xi32>
    %487 = arith.muli %486, %482 : vector<12x24xi32>
    %c2_i32 = arith.constant 2 : i32
    %488 = vector.broadcast %c2_i32 : i32 to vector<12x24xi32>
    %489 = arith.muli %488, %485 : vector<12x24xi32>
    %490 = arith.addi %487, %489 : vector<12x24xi32>
    %491 = arith.cmpi eq, %475, %490 : vector<12x24xi32>
    %cst_232 = arith.constant 1.000000e+00 : f32
    %cst_233 = arith.constant 0.000000e+00 : f32
    %492 = vector.broadcast %cst_232 : f32 to vector<12x24xf32>
    %493 = vector.broadcast %cst_233 : f32 to vector<12x24xf32>
    %494 = arith.select %491, %492, %493 : vector<12x24xi1>, vector<12x24xf32>
    %c2_i32_234 = arith.constant 2 : i32
    %495 = vector.broadcast %c2_i32_234 : i32 to vector<12x24xi32>
    %496 = arith.muli %495, %485 : vector<12x24xi32>
    %c1_i32_235 = arith.constant 1 : i32
    %497 = vector.broadcast %c1_i32_235 : i32 to vector<12x24xi32>
    %498 = arith.addi %496, %497 : vector<12x24xi32>
    %c11_i32_236 = arith.constant 11 : i32
    %499 = vector.broadcast %c11_i32_236 : i32 to vector<12x24xi32>
    %500 = arith.minsi %498, %499 : vector<12x24xi32>
    %501 = arith.addi %487, %500 : vector<12x24xi32>
    %502 = arith.cmpi eq, %475, %501 : vector<12x24xi32>
    %cst_237 = arith.constant 1.000000e+00 : f32
    %cst_238 = arith.constant 0.000000e+00 : f32
    %503 = vector.broadcast %cst_237 : f32 to vector<12x24xf32>
    %504 = vector.broadcast %cst_238 : f32 to vector<12x24xf32>
    %505 = arith.select %502, %503, %504 : vector<12x24xi1>, vector<12x24xf32>
    %c2_i32_239 = arith.constant 2 : i32
    %506 = vector.broadcast %c2_i32_239 : i32 to vector<12x24xi32>
    %507 = arith.muli %506, %485 : vector<12x24xi32>
    %c1_i32_240 = arith.constant 1 : i32
    %508 = vector.broadcast %c1_i32_240 : i32 to vector<12x24xi32>
    %509 = arith.subi %507, %508 : vector<12x24xi32>
    %c0_i32_241 = arith.constant 0 : i32
    %510 = vector.broadcast %c0_i32_241 : i32 to vector<12x24xi32>
    %511 = arith.maxsi %509, %510 : vector<12x24xi32>
    %512 = arith.addi %487, %511 : vector<12x24xi32>
    %513 = arith.cmpi eq, %475, %512 : vector<12x24xi32>
    %cst_242 = arith.constant 1.000000e+00 : f32
    %cst_243 = arith.constant 0.000000e+00 : f32
    %514 = vector.broadcast %cst_242 : f32 to vector<12x24xf32>
    %515 = vector.broadcast %cst_243 : f32 to vector<12x24xf32>
    %516 = arith.select %513, %514, %515 : vector<12x24xi1>, vector<12x24xf32>
    %cst_244 = arith.constant dense<0.000000e+00> : vector<12x64xf32>
    %517 = tpu.matmul %494, %473, %cst_244 {dimension_numbers = #tpu.dot_dimension_numbers<[1], [0], [0], [1], [0, 0, 1, 1], [], []>} : vector<12x24xf32>, vector<24x64xf32>, vector<12x64xf32> -> vector<12x64xf32>
    %cst_245 = arith.constant dense<0.000000e+00> : vector<12x64xf32>
    %518 = tpu.matmul %505, %473, %cst_245 {dimension_numbers = #tpu.dot_dimension_numbers<[1], [0], [0], [1], [0, 0, 1, 1], [], []>} : vector<12x24xf32>, vector<24x64xf32>, vector<12x64xf32> -> vector<12x64xf32>
    %519 = arith.maximumf %517, %518 : vector<12x64xf32>
    %cst_246 = arith.constant dense<0.000000e+00> : vector<12x64xf32>
    %520 = tpu.matmul %516, %473, %cst_246 {dimension_numbers = #tpu.dot_dimension_numbers<[1], [0], [0], [1], [0, 0, 1, 1], [], []>} : vector<12x24xf32>, vector<24x64xf32>, vector<12x64xf32> -> vector<12x64xf32>
    %521 = arith.maximumf %519, %520 : vector<12x64xf32>
    %c12_247 = arith.constant 12 : index
    %c0_248 = arith.constant 0 : index
    %c0_249 = arith.constant 0 : index
    %522 = vector.load %arg4[%c12_247, %c0_248, %c0_249] : memref<34x64x64xf32, #tpu.memory_space<vmem>>, vector<1x64x64xf32>
    %523 = vector.shape_cast %522 : vector<1x64x64xf32> to vector<64x64xf32>
    %c13_250 = arith.constant 13 : index
    %c0_251 = arith.constant 0 : index
    %c0_252 = arith.constant 0 : index
    %524 = vector.load %arg4[%c13_250, %c0_251, %c0_252] : memref<34x64x64xf32, #tpu.memory_space<vmem>>, vector<1x64x64xf32>
    %525 = vector.shape_cast %524 : vector<1x64x64xf32> to vector<64x64xf32>
    %c14 = arith.constant 14 : index
    %c0_253 = arith.constant 0 : index
    %c0_254 = arith.constant 0 : index
    %526 = vector.load %arg4[%c14, %c0_253, %c0_254] : memref<34x64x64xf32, #tpu.memory_space<vmem>>, vector<1x64x64xf32>
    %527 = vector.shape_cast %526 : vector<1x64x64xf32> to vector<64x64xf32>
    %c15 = arith.constant 15 : index
    %c0_255 = arith.constant 0 : index
    %c0_256 = arith.constant 0 : index
    %528 = vector.load %arg4[%c15, %c0_255, %c0_256] : memref<34x64x64xf32, #tpu.memory_space<vmem>>, vector<1x64x64xf32>
    %529 = vector.shape_cast %528 : vector<1x64x64xf32> to vector<64x64xf32>
    %c14_257 = arith.constant 14 : index
    %c0_258 = arith.constant 0 : index
    %530 = vector.load %arg5[%c14_257, %c0_258] : memref<45x64xf32, #tpu.memory_space<vmem>>, vector<1x64xf32>
    %c15_259 = arith.constant 15 : index
    %c0_260 = arith.constant 0 : index
    %531 = vector.load %arg5[%c15_259, %c0_260] : memref<45x64xf32, #tpu.memory_space<vmem>>, vector<1x64xf32>
    %c16 = arith.constant 16 : index
    %c0_261 = arith.constant 0 : index
    %532 = vector.load %arg5[%c16, %c0_261] : memref<45x64xf32, #tpu.memory_space<vmem>>, vector<1x64xf32>
    %c17 = arith.constant 17 : index
    %c0_262 = arith.constant 0 : index
    %533 = vector.load %arg5[%c17, %c0_262] : memref<45x64xf32, #tpu.memory_space<vmem>>, vector<1x64xf32>
    %c18 = arith.constant 18 : index
    %c0_263 = arith.constant 0 : index
    %534 = vector.load %arg5[%c18, %c0_263] : memref<45x64xf32, #tpu.memory_space<vmem>>, vector<1x64xf32>
    %c19 = arith.constant 19 : index
    %c0_264 = arith.constant 0 : index
    %535 = vector.load %arg5[%c19, %c0_264] : memref<45x64xf32, #tpu.memory_space<vmem>>, vector<1x64xf32>
    %cst_265 = arith.constant dense<0.000000e+00> : vector<12x64xf32>
    %536 = tpu.matmul %521, %523, %cst_265 {dimension_numbers = #tpu.dot_dimension_numbers<[1], [0], [0], [1], [0, 0, 1, 1], [], []>} : vector<12x64xf32>, vector<64x64xf32>, vector<12x64xf32> -> vector<12x64xf32>
    %537 = vector.broadcast %530 : vector<1x64xf32> to vector<12x64xf32>
    %538 = arith.addf %536, %537 : vector<12x64xf32>
    %cst_266 = arith.constant dense<0.000000e+00> : vector<12x64xf32>
    %539 = tpu.matmul %521, %525, %cst_266 {dimension_numbers = #tpu.dot_dimension_numbers<[1], [0], [0], [1], [0, 0, 1, 1], [], []>} : vector<12x64xf32>, vector<64x64xf32>, vector<12x64xf32> -> vector<12x64xf32>
    %540 = vector.broadcast %531 : vector<1x64xf32> to vector<12x64xf32>
    %541 = arith.addf %539, %540 : vector<12x64xf32>
    %cst_267 = arith.constant dense<0.000000e+00> : vector<12x64xf32>
    %542 = tpu.matmul %521, %527, %cst_267 {dimension_numbers = #tpu.dot_dimension_numbers<[1], [0], [0], [1], [0, 0, 1, 1], [], []>} : vector<12x64xf32>, vector<64x64xf32>, vector<12x64xf32> -> vector<12x64xf32>
    %543 = vector.broadcast %532 : vector<1x64xf32> to vector<12x64xf32>
    %544 = arith.addf %542, %543 : vector<12x64xf32>
    %cst_268 = arith.constant dense<0.000000e+00> : vector<48x64xf32>
    %545 = tpu.matmul %159, %538, %cst_268 {dimension_numbers = #tpu.dot_dimension_numbers<[1], [0], [0], [1], [0, 0, 1, 1], [], []>} : vector<48x12xf32>, vector<12x64xf32>, vector<48x64xf32> -> vector<48x64xf32>
    %cst_269 = arith.constant 0.000000e+00 : f32
    %546 = vector.broadcast %cst_269 : f32 to vector<48x64xf32>
    %547 = arith.select %228, %545, %546 : vector<48x64xi1>, vector<48x64xf32>
    %cst_270 = arith.constant dense<0.000000e+00> : vector<48x12xf32>
    %548 = tpu.matmul %547, %541, %cst_270 {dimension_numbers = #tpu.dot_dimension_numbers<[1], [1], [0], [0], [0, 0, 1, 0], [], []>} : vector<48x64xf32>, vector<12x64xf32>, vector<48x12xf32> -> vector<48x12xf32>
    %549 = tpu.iota {dimensions = array<i32: 0>} : vector<48x12xi32>
    %550 = tpu.iota {dimensions = array<i32: 1>} : vector<48x12xi32>
    %c0_i32_271 = arith.constant 0 : i32
    %551 = vector.broadcast %c0_i32_271 : i32 to vector<48x12xi32>
    %c12_i32_272 = arith.constant 12 : i32
    %552 = vector.broadcast %c12_i32_272 : i32 to vector<48x12xi32>
    %553 = arith.cmpi sge, %549, %552 : vector<48x12xi32>
    %c1_i32_273 = arith.constant 1 : i32
    %c0_i32_274 = arith.constant 0 : i32
    %554 = vector.broadcast %c1_i32_273 : i32 to vector<48x12xi32>
    %555 = vector.broadcast %c0_i32_274 : i32 to vector<48x12xi32>
    %556 = arith.select %553, %554, %555 : vector<48x12xi1>, vector<48x12xi32>
    %557 = arith.addi %551, %556 : vector<48x12xi32>
    %c24_i32_275 = arith.constant 24 : i32
    %558 = vector.broadcast %c24_i32_275 : i32 to vector<48x12xi32>
    %559 = arith.cmpi sge, %549, %558 : vector<48x12xi32>
    %c1_i32_276 = arith.constant 1 : i32
    %c0_i32_277 = arith.constant 0 : i32
    %560 = vector.broadcast %c1_i32_276 : i32 to vector<48x12xi32>
    %561 = vector.broadcast %c0_i32_277 : i32 to vector<48x12xi32>
    %562 = arith.select %559, %560, %561 : vector<48x12xi1>, vector<48x12xi32>
    %563 = arith.addi %557, %562 : vector<48x12xi32>
    %c36_i32_278 = arith.constant 36 : i32
    %564 = vector.broadcast %c36_i32_278 : i32 to vector<48x12xi32>
    %565 = arith.cmpi sge, %549, %564 : vector<48x12xi32>
    %c1_i32_279 = arith.constant 1 : i32
    %c0_i32_280 = arith.constant 0 : i32
    %566 = vector.broadcast %c1_i32_279 : i32 to vector<48x12xi32>
    %567 = vector.broadcast %c0_i32_280 : i32 to vector<48x12xi32>
    %568 = arith.select %565, %566, %567 : vector<48x12xi1>, vector<48x12xi32>
    %569 = arith.addi %563, %568 : vector<48x12xi32>
    %c12_i32_281 = arith.constant 12 : i32
    %570 = vector.broadcast %c12_i32_281 : i32 to vector<48x12xi32>
    %571 = arith.muli %570, %569 : vector<48x12xi32>
    %572 = arith.subi %549, %571 : vector<48x12xi32>
    %c0_i32_282 = arith.constant 0 : i32
    %573 = vector.broadcast %c0_i32_282 : i32 to vector<48x12xi32>
    %c6_i32_283 = arith.constant 6 : i32
    %574 = vector.broadcast %c6_i32_283 : i32 to vector<48x12xi32>
    %575 = arith.cmpi sge, %572, %574 : vector<48x12xi32>
    %c1_i32_284 = arith.constant 1 : i32
    %c0_i32_285 = arith.constant 0 : i32
    %576 = vector.broadcast %c1_i32_284 : i32 to vector<48x12xi32>
    %577 = vector.broadcast %c0_i32_285 : i32 to vector<48x12xi32>
    %578 = arith.select %575, %576, %577 : vector<48x12xi1>, vector<48x12xi32>
    %579 = arith.addi %573, %578 : vector<48x12xi32>
    %c0_i32_286 = arith.constant 0 : i32
    %580 = vector.broadcast %c0_i32_286 : i32 to vector<48x12xi32>
    %c6_i32_287 = arith.constant 6 : i32
    %581 = vector.broadcast %c6_i32_287 : i32 to vector<48x12xi32>
    %582 = arith.cmpi sge, %550, %581 : vector<48x12xi32>
    %c1_i32_288 = arith.constant 1 : i32
    %c0_i32_289 = arith.constant 0 : i32
    %583 = vector.broadcast %c1_i32_288 : i32 to vector<48x12xi32>
    %584 = vector.broadcast %c0_i32_289 : i32 to vector<48x12xi32>
    %585 = arith.select %582, %583, %584 : vector<48x12xi1>, vector<48x12xi32>
    %586 = arith.addi %580, %585 : vector<48x12xi32>
    %587 = arith.cmpi eq, %579, %586 : vector<48x12xi32>
    %cst_290 = arith.constant -1.000000e+30 : f32
    %588 = vector.broadcast %cst_290 : f32 to vector<48x12xf32>
    %589 = arith.select %587, %548, %588 : vector<48x12xi1>, vector<48x12xf32>
    %cst_291 = arith.constant dense<0xFF800000> : vector<48xf32>
    %590 = vector.multi_reduction <maximumf>, %589, %cst_291 [1] : vector<48x12xf32> to vector<48xf32>
    %591 = vector.shape_cast %590 : vector<48xf32> to vector<48x1xf32>
    %592 = vector.broadcast %591 : vector<48x1xf32> to vector<48x12xf32>
    %593 = arith.subf %589, %592 : vector<48x12xf32>
    %594 = math.exp %593 : vector<48x12xf32>
    %cst_292 = arith.constant dense<0.000000e+00> : vector<48xf32>
    %595 = vector.multi_reduction <add>, %594, %cst_292 [1] : vector<48x12xf32> to vector<48xf32>
    %596 = vector.shape_cast %595 : vector<48xf32> to vector<48x1xf32>
    %597 = vector.broadcast %596 : vector<48x1xf32> to vector<48x12xf32>
    %598 = arith.divf %594, %597 : vector<48x12xf32>
    %cst_293 = arith.constant dense<0.000000e+00> : vector<48x64xf32>
    %599 = tpu.matmul %598, %544, %cst_293 {dimension_numbers = #tpu.dot_dimension_numbers<[1], [0], [0], [1], [0, 0, 1, 1], [], []>} : vector<48x12xf32>, vector<12x64xf32>, vector<48x64xf32> -> vector<48x64xf32>
    %cst_294 = arith.constant 0.000000e+00 : f32
    %600 = vector.broadcast %cst_294 : f32 to vector<48x64xf32>
    %601 = arith.select %228, %599, %600 : vector<48x64xi1>, vector<48x64xf32>
    %cst_295 = arith.constant dense<0.000000e+00> : vector<12x64xf32>
    %602 = tpu.matmul %187, %601, %cst_295 {dimension_numbers = #tpu.dot_dimension_numbers<[1], [0], [0], [1], [0, 0, 1, 1], [], []>} : vector<12x48xf32>, vector<48x64xf32>, vector<12x64xf32> -> vector<12x64xf32>
    %cst_296 = arith.constant dense<0.000000e+00> : vector<12x64xf32>
    %603 = tpu.matmul %602, %529, %cst_296 {dimension_numbers = #tpu.dot_dimension_numbers<[1], [0], [0], [1], [0, 0, 1, 1], [], []>} : vector<12x64xf32>, vector<64x64xf32>, vector<12x64xf32> -> vector<12x64xf32>
    %604 = vector.broadcast %533 : vector<1x64xf32> to vector<12x64xf32>
    %605 = arith.addf %603, %604 : vector<12x64xf32>
    %606 = arith.addf %521, %605 : vector<12x64xf32>
    %cst_297 = arith.constant dense<0.000000e+00> : vector<12xf32>
    %607 = vector.multi_reduction <add>, %606, %cst_297 [1] : vector<12x64xf32> to vector<12xf32>
    %608 = vector.shape_cast %607 : vector<12xf32> to vector<12x1xf32>
    %cst_298 = arith.constant 6.400000e+01 : f32
    %609 = vector.broadcast %cst_298 : f32 to vector<12x1xf32>
    %610 = arith.divf %608, %609 : vector<12x1xf32>
    %611 = vector.broadcast %610 : vector<12x1xf32> to vector<12x64xf32>
    %612 = arith.subf %606, %611 : vector<12x64xf32>
    %613 = arith.mulf %612, %612 : vector<12x64xf32>
    %cst_299 = arith.constant dense<0.000000e+00> : vector<12xf32>
    %614 = vector.multi_reduction <add>, %613, %cst_299 [1] : vector<12x64xf32> to vector<12xf32>
    %615 = vector.shape_cast %614 : vector<12xf32> to vector<12x1xf32>
    %cst_300 = arith.constant 6.400000e+01 : f32
    %616 = vector.broadcast %cst_300 : f32 to vector<12x1xf32>
    %617 = arith.divf %615, %616 : vector<12x1xf32>
    %cst_301 = arith.constant 9.99999974E-6 : f32
    %618 = vector.broadcast %cst_301 : f32 to vector<12x1xf32>
    %619 = arith.addf %617, %618 : vector<12x1xf32>
    %620 = math.rsqrt %619 : vector<12x1xf32>
    %621 = vector.broadcast %620 : vector<12x1xf32> to vector<12x64xf32>
    %622 = arith.mulf %612, %621 : vector<12x64xf32>
    %623 = vector.broadcast %534 : vector<1x64xf32> to vector<12x64xf32>
    %624 = arith.mulf %622, %623 : vector<12x64xf32>
    %625 = vector.broadcast %535 : vector<1x64xf32> to vector<12x64xf32>
    %626 = arith.addf %624, %625 : vector<12x64xf32>
    %c16_302 = arith.constant 16 : index
    %c0_303 = arith.constant 0 : index
    %c0_304 = arith.constant 0 : index
    %627 = vector.load %arg4[%c16_302, %c0_303, %c0_304] : memref<34x64x64xf32, #tpu.memory_space<vmem>>, vector<1x64x64xf32>
    %628 = vector.shape_cast %627 : vector<1x64x64xf32> to vector<64x64xf32>
    %c17_305 = arith.constant 17 : index
    %c0_306 = arith.constant 0 : index
    %c0_307 = arith.constant 0 : index
    %629 = vector.load %arg4[%c17_305, %c0_306, %c0_307] : memref<34x64x64xf32, #tpu.memory_space<vmem>>, vector<1x64x64xf32>
    %630 = vector.shape_cast %629 : vector<1x64x64xf32> to vector<64x64xf32>
    %c20 = arith.constant 20 : index
    %c0_308 = arith.constant 0 : index
    %631 = vector.load %arg5[%c20, %c0_308] : memref<45x64xf32, #tpu.memory_space<vmem>>, vector<1x64xf32>
    %c21 = arith.constant 21 : index
    %c0_309 = arith.constant 0 : index
    %632 = vector.load %arg5[%c21, %c0_309] : memref<45x64xf32, #tpu.memory_space<vmem>>, vector<1x64xf32>
    %c22 = arith.constant 22 : index
    %c0_310 = arith.constant 0 : index
    %633 = vector.load %arg5[%c22, %c0_310] : memref<45x64xf32, #tpu.memory_space<vmem>>, vector<1x64xf32>
    %c23 = arith.constant 23 : index
    %c0_311 = arith.constant 0 : index
    %634 = vector.load %arg5[%c23, %c0_311] : memref<45x64xf32, #tpu.memory_space<vmem>>, vector<1x64xf32>
    %cst_312 = arith.constant dense<0.000000e+00> : vector<12x64xf32>
    %635 = tpu.matmul %626, %628, %cst_312 {dimension_numbers = #tpu.dot_dimension_numbers<[1], [0], [0], [1], [0, 0, 1, 1], [], []>} : vector<12x64xf32>, vector<64x64xf32>, vector<12x64xf32> -> vector<12x64xf32>
    %636 = vector.broadcast %631 : vector<1x64xf32> to vector<12x64xf32>
    %637 = arith.addf %635, %636 : vector<12x64xf32>
    %cst_313 = arith.constant 5.000000e-01 : f32
    %638 = vector.broadcast %cst_313 : f32 to vector<12x64xf32>
    %639 = arith.mulf %638, %637 : vector<12x64xf32>
    %cst_314 = arith.constant 0.707106769 : f32
    %640 = vector.broadcast %cst_314 : f32 to vector<12x64xf32>
    %641 = arith.mulf %637, %640 : vector<12x64xf32>
    %642 = math.absf %641 : vector<12x64xf32>
    %cst_315 = arith.constant 0.327591091 : f32
    %643 = vector.broadcast %cst_315 : f32 to vector<12x64xf32>
    %644 = arith.mulf %643, %642 : vector<12x64xf32>
    %cst_316 = arith.constant 1.000000e+00 : f32
    %645 = vector.broadcast %cst_316 : f32 to vector<12x64xf32>
    %646 = arith.addf %645, %644 : vector<12x64xf32>
    %cst_317 = arith.constant 1.000000e+00 : f32
    %647 = vector.broadcast %cst_317 : f32 to vector<12x64xf32>
    %648 = arith.divf %647, %646 : vector<12x64xf32>
    %cst_318 = arith.constant 1.06140542 : f32
    %649 = vector.broadcast %cst_318 : f32 to vector<12x64xf32>
    %650 = arith.mulf %649, %648 : vector<12x64xf32>
    %cst_319 = arith.constant -1.45315206 : f32
    %651 = vector.broadcast %cst_319 : f32 to vector<12x64xf32>
    %652 = arith.addf %650, %651 : vector<12x64xf32>
    %653 = arith.mulf %652, %648 : vector<12x64xf32>
    %cst_320 = arith.constant 1.42141378 : f32
    %654 = vector.broadcast %cst_320 : f32 to vector<12x64xf32>
    %655 = arith.addf %653, %654 : vector<12x64xf32>
    %656 = arith.mulf %655, %648 : vector<12x64xf32>
    %cst_321 = arith.constant -0.284496725 : f32
    %657 = vector.broadcast %cst_321 : f32 to vector<12x64xf32>
    %658 = arith.addf %656, %657 : vector<12x64xf32>
    %659 = arith.mulf %658, %648 : vector<12x64xf32>
    %cst_322 = arith.constant 0.254829586 : f32
    %660 = vector.broadcast %cst_322 : f32 to vector<12x64xf32>
    %661 = arith.addf %659, %660 : vector<12x64xf32>
    %662 = arith.mulf %661, %648 : vector<12x64xf32>
    %663 = arith.mulf %642, %642 : vector<12x64xf32>
    %cst_323 = arith.constant 0.000000e+00 : f32
    %664 = vector.broadcast %cst_323 : f32 to vector<12x64xf32>
    %665 = arith.subf %664, %663 : vector<12x64xf32>
    %666 = math.exp %665 : vector<12x64xf32>
    %667 = arith.mulf %662, %666 : vector<12x64xf32>
    %cst_324 = arith.constant 1.000000e+00 : f32
    %668 = vector.broadcast %cst_324 : f32 to vector<12x64xf32>
    %669 = arith.subf %668, %667 : vector<12x64xf32>
    %cst_325 = arith.constant 0.000000e+00 : f32
    %670 = vector.broadcast %cst_325 : f32 to vector<12x64xf32>
    %671 = arith.cmpf oge, %641, %670 : vector<12x64xf32>
    %cst_326 = arith.constant 0.000000e+00 : f32
    %672 = vector.broadcast %cst_326 : f32 to vector<12x64xf32>
    %673 = arith.subf %672, %669 : vector<12x64xf32>
    %674 = arith.select %671, %669, %673 : vector<12x64xi1>, vector<12x64xf32>
    %cst_327 = arith.constant 1.000000e+00 : f32
    %675 = vector.broadcast %cst_327 : f32 to vector<12x64xf32>
    %676 = arith.addf %675, %674 : vector<12x64xf32>
    %677 = arith.mulf %639, %676 : vector<12x64xf32>
    %cst_328 = arith.constant dense<0.000000e+00> : vector<12x64xf32>
    %678 = tpu.matmul %677, %630, %cst_328 {dimension_numbers = #tpu.dot_dimension_numbers<[1], [0], [0], [1], [0, 0, 1, 1], [], []>} : vector<12x64xf32>, vector<64x64xf32>, vector<12x64xf32> -> vector<12x64xf32>
    %679 = vector.broadcast %632 : vector<1x64xf32> to vector<12x64xf32>
    %680 = arith.addf %678, %679 : vector<12x64xf32>
    %681 = arith.addf %626, %680 : vector<12x64xf32>
    %cst_329 = arith.constant dense<0.000000e+00> : vector<12xf32>
    %682 = vector.multi_reduction <add>, %681, %cst_329 [1] : vector<12x64xf32> to vector<12xf32>
    %683 = vector.shape_cast %682 : vector<12xf32> to vector<12x1xf32>
    %cst_330 = arith.constant 6.400000e+01 : f32
    %684 = vector.broadcast %cst_330 : f32 to vector<12x1xf32>
    %685 = arith.divf %683, %684 : vector<12x1xf32>
    %686 = vector.broadcast %685 : vector<12x1xf32> to vector<12x64xf32>
    %687 = arith.subf %681, %686 : vector<12x64xf32>
    %688 = arith.mulf %687, %687 : vector<12x64xf32>
    %cst_331 = arith.constant dense<0.000000e+00> : vector<12xf32>
    %689 = vector.multi_reduction <add>, %688, %cst_331 [1] : vector<12x64xf32> to vector<12xf32>
    %690 = vector.shape_cast %689 : vector<12xf32> to vector<12x1xf32>
    %cst_332 = arith.constant 6.400000e+01 : f32
    %691 = vector.broadcast %cst_332 : f32 to vector<12x1xf32>
    %692 = arith.divf %690, %691 : vector<12x1xf32>
    %cst_333 = arith.constant 9.99999974E-6 : f32
    %693 = vector.broadcast %cst_333 : f32 to vector<12x1xf32>
    %694 = arith.addf %692, %693 : vector<12x1xf32>
    %695 = math.rsqrt %694 : vector<12x1xf32>
    %696 = vector.broadcast %695 : vector<12x1xf32> to vector<12x64xf32>
    %697 = arith.mulf %687, %696 : vector<12x64xf32>
    %698 = vector.broadcast %633 : vector<1x64xf32> to vector<12x64xf32>
    %699 = arith.mulf %697, %698 : vector<12x64xf32>
    %700 = vector.broadcast %634 : vector<1x64xf32> to vector<12x64xf32>
    %701 = arith.addf %699, %700 : vector<12x64xf32>
    %c24 = arith.constant 24 : index
    %c0_334 = arith.constant 0 : index
    %702 = vector.load %arg5[%c24, %c0_334] : memref<45x64xf32, #tpu.memory_space<vmem>>, vector<1x64xf32>
    %c25 = arith.constant 25 : index
    %c0_335 = arith.constant 0 : index
    %703 = vector.load %arg5[%c25, %c0_335] : memref<45x64xf32, #tpu.memory_space<vmem>>, vector<1x64xf32>
    %cst_336 = arith.constant dense<0.000000e+00> : vector<12xf32>
    %704 = vector.multi_reduction <add>, %701, %cst_336 [1] : vector<12x64xf32> to vector<12xf32>
    %705 = vector.shape_cast %704 : vector<12xf32> to vector<12x1xf32>
    %cst_337 = arith.constant 6.400000e+01 : f32
    %706 = vector.broadcast %cst_337 : f32 to vector<12x1xf32>
    %707 = arith.divf %705, %706 : vector<12x1xf32>
    %708 = vector.broadcast %707 : vector<12x1xf32> to vector<12x64xf32>
    %709 = arith.subf %701, %708 : vector<12x64xf32>
    %710 = arith.mulf %709, %709 : vector<12x64xf32>
    %cst_338 = arith.constant dense<0.000000e+00> : vector<12xf32>
    %711 = vector.multi_reduction <add>, %710, %cst_338 [1] : vector<12x64xf32> to vector<12xf32>
    %712 = vector.shape_cast %711 : vector<12xf32> to vector<12x1xf32>
    %cst_339 = arith.constant 6.400000e+01 : f32
    %713 = vector.broadcast %cst_339 : f32 to vector<12x1xf32>
    %714 = arith.divf %712, %713 : vector<12x1xf32>
    %cst_340 = arith.constant 9.99999974E-6 : f32
    %715 = vector.broadcast %cst_340 : f32 to vector<12x1xf32>
    %716 = arith.addf %714, %715 : vector<12x1xf32>
    %717 = math.rsqrt %716 : vector<12x1xf32>
    %718 = vector.broadcast %717 : vector<12x1xf32> to vector<12x64xf32>
    %719 = arith.mulf %709, %718 : vector<12x64xf32>
    %720 = vector.broadcast %702 : vector<1x64xf32> to vector<12x64xf32>
    %721 = arith.mulf %719, %720 : vector<12x64xf32>
    %722 = vector.broadcast %703 : vector<1x64xf32> to vector<12x64xf32>
    %723 = arith.addf %721, %722 : vector<12x64xf32>
    %c18_341 = arith.constant 18 : index
    %c0_342 = arith.constant 0 : index
    %c0_343 = arith.constant 0 : index
    %724 = vector.load %arg4[%c18_341, %c0_342, %c0_343] : memref<34x64x64xf32, #tpu.memory_space<vmem>>, vector<1x64x64xf32>
    %725 = vector.shape_cast %724 : vector<1x64x64xf32> to vector<64x64xf32>
    %c19_344 = arith.constant 19 : index
    %c0_345 = arith.constant 0 : index
    %c0_346 = arith.constant 0 : index
    %726 = vector.load %arg4[%c19_344, %c0_345, %c0_346] : memref<34x64x64xf32, #tpu.memory_space<vmem>>, vector<1x64x64xf32>
    %727 = vector.shape_cast %726 : vector<1x64x64xf32> to vector<64x64xf32>
    %c20_347 = arith.constant 20 : index
    %c0_348 = arith.constant 0 : index
    %c0_349 = arith.constant 0 : index
    %728 = vector.load %arg4[%c20_347, %c0_348, %c0_349] : memref<34x64x64xf32, #tpu.memory_space<vmem>>, vector<1x64x64xf32>
    %729 = vector.shape_cast %728 : vector<1x64x64xf32> to vector<64x64xf32>
    %c26 = arith.constant 26 : index
    %c0_350 = arith.constant 0 : index
    %730 = vector.load %arg5[%c26, %c0_350] : memref<45x64xf32, #tpu.memory_space<vmem>>, vector<1x64xf32>
    %c0_351 = arith.constant 0 : index
    %c0_352 = arith.constant 0 : index
    %731 = vector.load %arg1[%c0_351, %c0_352] : memref<24x64xf32, #tpu.memory_space<vmem>>, vector<24x64xf32>
    %cst_353 = arith.constant dense<0.000000e+00> : vector<24x64xf32>
    %732 = tpu.matmul %29, %731, %cst_353 {dimension_numbers = #tpu.dot_dimension_numbers<[1], [0], [0], [1], [0, 0, 1, 1], [], []>} : vector<24x24xf32>, vector<24x64xf32>, vector<24x64xf32> -> vector<24x64xf32>
    %cst_354 = arith.constant dense<0.000000e+00> : vector<24x64xf32>
    %733 = tpu.matmul %34, %731, %cst_354 {dimension_numbers = #tpu.dot_dimension_numbers<[1], [0], [0], [1], [0, 0, 1, 1], [], []>} : vector<24x24xf32>, vector<24x64xf32>, vector<24x64xf32> -> vector<24x64xf32>
    %cst_355 = arith.constant dense<0.000000e+00> : vector<24x64xf32>
    %734 = tpu.matmul %732, %725, %cst_355 {dimension_numbers = #tpu.dot_dimension_numbers<[1], [0], [0], [1], [0, 0, 1, 1], [], []>} : vector<24x64xf32>, vector<64x64xf32>, vector<24x64xf32> -> vector<24x64xf32>
    %cst_356 = arith.constant dense<0.000000e+00> : vector<24x64xf32>
    %735 = tpu.matmul %731, %727, %cst_356 {dimension_numbers = #tpu.dot_dimension_numbers<[1], [0], [0], [1], [0, 0, 1, 1], [], []>} : vector<24x64xf32>, vector<64x64xf32>, vector<24x64xf32> -> vector<24x64xf32>
    %736 = arith.addf %734, %735 : vector<24x64xf32>
    %cst_357 = arith.constant dense<0.000000e+00> : vector<24x64xf32>
    %737 = tpu.matmul %733, %729, %cst_357 {dimension_numbers = #tpu.dot_dimension_numbers<[1], [0], [0], [1], [0, 0, 1, 1], [], []>} : vector<24x64xf32>, vector<64x64xf32>, vector<24x64xf32> -> vector<24x64xf32>
    %738 = arith.addf %736, %737 : vector<24x64xf32>
    %739 = vector.broadcast %730 : vector<1x64xf32> to vector<24x64xf32>
    %740 = arith.addf %738, %739 : vector<24x64xf32>
    %c0_358 = arith.constant 0 : index
    %c0_359 = arith.constant 0 : index
    %741 = vector.load %arg3[%c0_358, %c0_359] : memref<24x64xf32, #tpu.memory_space<vmem>>, vector<24x64xf32>
    %742 = arith.addf %740, %741 : vector<24x64xf32>
    %c21_360 = arith.constant 21 : index
    %c0_361 = arith.constant 0 : index
    %c0_362 = arith.constant 0 : index
    %743 = vector.load %arg4[%c21_360, %c0_361, %c0_362] : memref<34x64x64xf32, #tpu.memory_space<vmem>>, vector<1x64x64xf32>
    %744 = vector.shape_cast %743 : vector<1x64x64xf32> to vector<64x64xf32>
    %c22_363 = arith.constant 22 : index
    %c0_364 = arith.constant 0 : index
    %c0_365 = arith.constant 0 : index
    %745 = vector.load %arg4[%c22_363, %c0_364, %c0_365] : memref<34x64x64xf32, #tpu.memory_space<vmem>>, vector<1x64x64xf32>
    %746 = vector.shape_cast %745 : vector<1x64x64xf32> to vector<64x64xf32>
    %c23_366 = arith.constant 23 : index
    %c0_367 = arith.constant 0 : index
    %c0_368 = arith.constant 0 : index
    %747 = vector.load %arg4[%c23_366, %c0_367, %c0_368] : memref<34x64x64xf32, #tpu.memory_space<vmem>>, vector<1x64x64xf32>
    %748 = vector.shape_cast %747 : vector<1x64x64xf32> to vector<64x64xf32>
    %c24_369 = arith.constant 24 : index
    %c0_370 = arith.constant 0 : index
    %c0_371 = arith.constant 0 : index
    %749 = vector.load %arg4[%c24_369, %c0_370, %c0_371] : memref<34x64x64xf32, #tpu.memory_space<vmem>>, vector<1x64x64xf32>
    %750 = vector.shape_cast %749 : vector<1x64x64xf32> to vector<64x64xf32>
    %c25_372 = arith.constant 25 : index
    %c0_373 = arith.constant 0 : index
    %c0_374 = arith.constant 0 : index
    %751 = vector.load %arg4[%c25_372, %c0_373, %c0_374] : memref<34x64x64xf32, #tpu.memory_space<vmem>>, vector<1x64x64xf32>
    %752 = vector.shape_cast %751 : vector<1x64x64xf32> to vector<64x64xf32>
    %c26_375 = arith.constant 26 : index
    %c0_376 = arith.constant 0 : index
    %c0_377 = arith.constant 0 : index
    %753 = vector.load %arg4[%c26_375, %c0_376, %c0_377] : memref<34x64x64xf32, #tpu.memory_space<vmem>>, vector<1x64x64xf32>
    %754 = vector.shape_cast %753 : vector<1x64x64xf32> to vector<64x64xf32>
    %c27 = arith.constant 27 : index
    %c0_378 = arith.constant 0 : index
    %c0_379 = arith.constant 0 : index
    %755 = vector.load %arg4[%c27, %c0_378, %c0_379] : memref<34x64x64xf32, #tpu.memory_space<vmem>>, vector<1x64x64xf32>
    %756 = vector.shape_cast %755 : vector<1x64x64xf32> to vector<64x64xf32>
    %c27_380 = arith.constant 27 : index
    %c0_381 = arith.constant 0 : index
    %757 = vector.load %arg5[%c27_380, %c0_381] : memref<45x64xf32, #tpu.memory_space<vmem>>, vector<1x64xf32>
    %c28 = arith.constant 28 : index
    %c0_382 = arith.constant 0 : index
    %758 = vector.load %arg5[%c28, %c0_382] : memref<45x64xf32, #tpu.memory_space<vmem>>, vector<1x64xf32>
    %c29 = arith.constant 29 : index
    %c0_383 = arith.constant 0 : index
    %759 = vector.load %arg5[%c29, %c0_383] : memref<45x64xf32, #tpu.memory_space<vmem>>, vector<1x64xf32>
    %c30 = arith.constant 30 : index
    %c0_384 = arith.constant 0 : index
    %760 = vector.load %arg5[%c30, %c0_384] : memref<45x64xf32, #tpu.memory_space<vmem>>, vector<1x64xf32>
    %c31 = arith.constant 31 : index
    %c0_385 = arith.constant 0 : index
    %761 = vector.load %arg5[%c31, %c0_385] : memref<45x64xf32, #tpu.memory_space<vmem>>, vector<1x64xf32>
    %c32 = arith.constant 32 : index
    %c0_386 = arith.constant 0 : index
    %762 = vector.load %arg5[%c32, %c0_386] : memref<45x64xf32, #tpu.memory_space<vmem>>, vector<1x64xf32>
    %cst_387 = arith.constant dense<0.000000e+00> : vector<24x64xf32>
    %763 = tpu.matmul %742, %744, %cst_387 {dimension_numbers = #tpu.dot_dimension_numbers<[1], [0], [0], [1], [0, 0, 1, 1], [], []>} : vector<24x64xf32>, vector<64x64xf32>, vector<24x64xf32> -> vector<24x64xf32>
    %764 = vector.broadcast %757 : vector<1x64xf32> to vector<24x64xf32>
    %765 = arith.addf %763, %764 : vector<24x64xf32>
    %cst_388 = arith.constant dense<0.000000e+00> : vector<24x64xf32>
    %766 = tpu.matmul %742, %746, %cst_388 {dimension_numbers = #tpu.dot_dimension_numbers<[1], [0], [0], [1], [0, 0, 1, 1], [], []>} : vector<24x64xf32>, vector<64x64xf32>, vector<24x64xf32> -> vector<24x64xf32>
    %767 = vector.broadcast %758 : vector<1x64xf32> to vector<24x64xf32>
    %768 = arith.addf %766, %767 : vector<24x64xf32>
    %cst_389 = arith.constant dense<0.000000e+00> : vector<24x64xf32>
    %769 = tpu.matmul %742, %748, %cst_389 {dimension_numbers = #tpu.dot_dimension_numbers<[1], [0], [0], [1], [0, 0, 1, 1], [], []>} : vector<24x64xf32>, vector<64x64xf32>, vector<24x64xf32> -> vector<24x64xf32>
    %770 = vector.broadcast %759 : vector<1x64xf32> to vector<24x64xf32>
    %771 = arith.addf %769, %770 : vector<24x64xf32>
    %cst_390 = arith.constant dense<0.000000e+00> : vector<96x64xf32>
    %772 = tpu.matmul %62, %765, %cst_390 {dimension_numbers = #tpu.dot_dimension_numbers<[1], [0], [0], [1], [0, 0, 1, 1], [], []>} : vector<96x24xf32>, vector<24x64xf32>, vector<96x64xf32> -> vector<96x64xf32>
    %cst_391 = arith.constant 0.000000e+00 : f32
    %773 = vector.broadcast %cst_391 : f32 to vector<96x64xf32>
    %774 = arith.select %131, %772, %773 : vector<96x64xi1>, vector<96x64xf32>
    %cst_392 = arith.constant dense<0.000000e+00> : vector<96x24xf32>
    %775 = tpu.matmul %774, %768, %cst_392 {dimension_numbers = #tpu.dot_dimension_numbers<[1], [1], [0], [0], [0, 0, 1, 0], [], []>} : vector<96x64xf32>, vector<24x64xf32>, vector<96x24xf32> -> vector<96x24xf32>
    %776 = tpu.iota {dimensions = array<i32: 0>} : vector<96x24xi32>
    %777 = tpu.iota {dimensions = array<i32: 1>} : vector<96x24xi32>
    %c0_i32_393 = arith.constant 0 : i32
    %778 = vector.broadcast %c0_i32_393 : i32 to vector<96x24xi32>
    %c24_i32_394 = arith.constant 24 : i32
    %779 = vector.broadcast %c24_i32_394 : i32 to vector<96x24xi32>
    %780 = arith.cmpi sge, %776, %779 : vector<96x24xi32>
    %c1_i32_395 = arith.constant 1 : i32
    %c0_i32_396 = arith.constant 0 : i32
    %781 = vector.broadcast %c1_i32_395 : i32 to vector<96x24xi32>
    %782 = vector.broadcast %c0_i32_396 : i32 to vector<96x24xi32>
    %783 = arith.select %780, %781, %782 : vector<96x24xi1>, vector<96x24xi32>
    %784 = arith.addi %778, %783 : vector<96x24xi32>
    %c48_i32_397 = arith.constant 48 : i32
    %785 = vector.broadcast %c48_i32_397 : i32 to vector<96x24xi32>
    %786 = arith.cmpi sge, %776, %785 : vector<96x24xi32>
    %c1_i32_398 = arith.constant 1 : i32
    %c0_i32_399 = arith.constant 0 : i32
    %787 = vector.broadcast %c1_i32_398 : i32 to vector<96x24xi32>
    %788 = vector.broadcast %c0_i32_399 : i32 to vector<96x24xi32>
    %789 = arith.select %786, %787, %788 : vector<96x24xi1>, vector<96x24xi32>
    %790 = arith.addi %784, %789 : vector<96x24xi32>
    %c72_i32_400 = arith.constant 72 : i32
    %791 = vector.broadcast %c72_i32_400 : i32 to vector<96x24xi32>
    %792 = arith.cmpi sge, %776, %791 : vector<96x24xi32>
    %c1_i32_401 = arith.constant 1 : i32
    %c0_i32_402 = arith.constant 0 : i32
    %793 = vector.broadcast %c1_i32_401 : i32 to vector<96x24xi32>
    %794 = vector.broadcast %c0_i32_402 : i32 to vector<96x24xi32>
    %795 = arith.select %792, %793, %794 : vector<96x24xi1>, vector<96x24xi32>
    %796 = arith.addi %790, %795 : vector<96x24xi32>
    %c24_i32_403 = arith.constant 24 : i32
    %797 = vector.broadcast %c24_i32_403 : i32 to vector<96x24xi32>
    %798 = arith.muli %797, %796 : vector<96x24xi32>
    %799 = arith.subi %776, %798 : vector<96x24xi32>
    %c0_i32_404 = arith.constant 0 : i32
    %800 = vector.broadcast %c0_i32_404 : i32 to vector<96x24xi32>
    %c12_i32_405 = arith.constant 12 : i32
    %801 = vector.broadcast %c12_i32_405 : i32 to vector<96x24xi32>
    %802 = arith.cmpi sge, %799, %801 : vector<96x24xi32>
    %c1_i32_406 = arith.constant 1 : i32
    %c0_i32_407 = arith.constant 0 : i32
    %803 = vector.broadcast %c1_i32_406 : i32 to vector<96x24xi32>
    %804 = vector.broadcast %c0_i32_407 : i32 to vector<96x24xi32>
    %805 = arith.select %802, %803, %804 : vector<96x24xi1>, vector<96x24xi32>
    %806 = arith.addi %800, %805 : vector<96x24xi32>
    %c0_i32_408 = arith.constant 0 : i32
    %807 = vector.broadcast %c0_i32_408 : i32 to vector<96x24xi32>
    %c12_i32_409 = arith.constant 12 : i32
    %808 = vector.broadcast %c12_i32_409 : i32 to vector<96x24xi32>
    %809 = arith.cmpi sge, %777, %808 : vector<96x24xi32>
    %c1_i32_410 = arith.constant 1 : i32
    %c0_i32_411 = arith.constant 0 : i32
    %810 = vector.broadcast %c1_i32_410 : i32 to vector<96x24xi32>
    %811 = vector.broadcast %c0_i32_411 : i32 to vector<96x24xi32>
    %812 = arith.select %809, %810, %811 : vector<96x24xi1>, vector<96x24xi32>
    %813 = arith.addi %807, %812 : vector<96x24xi32>
    %814 = arith.cmpi eq, %806, %813 : vector<96x24xi32>
    %c0_i32_412 = arith.constant 0 : i32
    %815 = vector.broadcast %c0_i32_412 : i32 to vector<96x24xi32>
    %c12_i32_413 = arith.constant 12 : i32
    %816 = vector.broadcast %c12_i32_413 : i32 to vector<96x24xi32>
    %817 = arith.cmpi sge, %777, %816 : vector<96x24xi32>
    %c1_i32_414 = arith.constant 1 : i32
    %c0_i32_415 = arith.constant 0 : i32
    %818 = vector.broadcast %c1_i32_414 : i32 to vector<96x24xi32>
    %819 = vector.broadcast %c0_i32_415 : i32 to vector<96x24xi32>
    %820 = arith.select %817, %818, %819 : vector<96x24xi1>, vector<96x24xi32>
    %821 = arith.addi %815, %820 : vector<96x24xi32>
    %c12_i32_416 = arith.constant 12 : i32
    %822 = vector.broadcast %c12_i32_416 : i32 to vector<96x24xi32>
    %823 = arith.muli %822, %821 : vector<96x24xi32>
    %824 = arith.subi %777, %823 : vector<96x24xi32>
    %c0_i32_417 = arith.constant 0 : i32
    %825 = vector.broadcast %c0_i32_417 : i32 to vector<96x24xi32>
    %c12_i32_418 = arith.constant 12 : i32
    %826 = vector.broadcast %c12_i32_418 : i32 to vector<96x24xi32>
    %827 = arith.cmpi sge, %799, %826 : vector<96x24xi32>
    %c1_i32_419 = arith.constant 1 : i32
    %c0_i32_420 = arith.constant 0 : i32
    %828 = vector.broadcast %c1_i32_419 : i32 to vector<96x24xi32>
    %829 = vector.broadcast %c0_i32_420 : i32 to vector<96x24xi32>
    %830 = arith.select %827, %828, %829 : vector<96x24xi1>, vector<96x24xi32>
    %831 = arith.addi %825, %830 : vector<96x24xi32>
    %c12_i32_421 = arith.constant 12 : i32
    %832 = vector.broadcast %c12_i32_421 : i32 to vector<96x24xi32>
    %833 = arith.muli %832, %831 : vector<96x24xi32>
    %834 = arith.subi %799, %833 : vector<96x24xi32>
    %835 = arith.cmpi sle, %824, %834 : vector<96x24xi32>
    %836 = arith.andi %814, %835 : vector<96x24xi1>
    %cst_422 = arith.constant -1.000000e+30 : f32
    %837 = vector.broadcast %cst_422 : f32 to vector<96x24xf32>
    %838 = arith.select %836, %775, %837 : vector<96x24xi1>, vector<96x24xf32>
    %cst_423 = arith.constant dense<0xFF800000> : vector<96xf32>
    %839 = vector.multi_reduction <maximumf>, %838, %cst_423 [1] : vector<96x24xf32> to vector<96xf32>
    %840 = vector.shape_cast %839 : vector<96xf32> to vector<96x1xf32>
    %841 = vector.broadcast %840 : vector<96x1xf32> to vector<96x24xf32>
    %842 = arith.subf %838, %841 : vector<96x24xf32>
    %843 = math.exp %842 : vector<96x24xf32>
    %cst_424 = arith.constant dense<0.000000e+00> : vector<96xf32>
    %844 = vector.multi_reduction <add>, %843, %cst_424 [1] : vector<96x24xf32> to vector<96xf32>
    %845 = vector.shape_cast %844 : vector<96xf32> to vector<96x1xf32>
    %846 = vector.broadcast %845 : vector<96x1xf32> to vector<96x24xf32>
    %847 = arith.divf %843, %846 : vector<96x24xf32>
    %cst_425 = arith.constant dense<0.000000e+00> : vector<96x64xf32>
    %848 = tpu.matmul %847, %771, %cst_425 {dimension_numbers = #tpu.dot_dimension_numbers<[1], [0], [0], [1], [0, 0, 1, 1], [], []>} : vector<96x24xf32>, vector<24x64xf32>, vector<96x64xf32> -> vector<96x64xf32>
    %cst_426 = arith.constant 0.000000e+00 : f32
    %849 = vector.broadcast %cst_426 : f32 to vector<96x64xf32>
    %850 = arith.select %131, %848, %849 : vector<96x64xi1>, vector<96x64xf32>
    %851 = tpu.iota {dimensions = array<i32: 0>} : vector<24x96xi32>
    %852 = tpu.iota {dimensions = array<i32: 1>} : vector<24x96xi32>
    %c0_i32_427 = arith.constant 0 : i32
    %853 = vector.broadcast %c0_i32_427 : i32 to vector<24x96xi32>
    %c12_i32_428 = arith.constant 12 : i32
    %854 = vector.broadcast %c12_i32_428 : i32 to vector<24x96xi32>
    %855 = arith.cmpi sge, %851, %854 : vector<24x96xi32>
    %c1_i32_429 = arith.constant 1 : i32
    %c0_i32_430 = arith.constant 0 : i32
    %856 = vector.broadcast %c1_i32_429 : i32 to vector<24x96xi32>
    %857 = vector.broadcast %c0_i32_430 : i32 to vector<24x96xi32>
    %858 = arith.select %855, %856, %857 : vector<24x96xi1>, vector<24x96xi32>
    %859 = arith.addi %853, %858 : vector<24x96xi32>
    %c12_i32_431 = arith.constant 12 : i32
    %860 = vector.broadcast %c12_i32_431 : i32 to vector<24x96xi32>
    %861 = arith.muli %860, %859 : vector<24x96xi32>
    %862 = arith.subi %851, %861 : vector<24x96xi32>
    %c0_i32_432 = arith.constant 0 : i32
    %863 = vector.broadcast %c0_i32_432 : i32 to vector<24x96xi32>
    %c3_i32 = arith.constant 3 : i32
    %864 = vector.broadcast %c3_i32 : i32 to vector<24x96xi32>
    %865 = arith.cmpi sge, %862, %864 : vector<24x96xi32>
    %c1_i32_433 = arith.constant 1 : i32
    %c0_i32_434 = arith.constant 0 : i32
    %866 = vector.broadcast %c1_i32_433 : i32 to vector<24x96xi32>
    %867 = vector.broadcast %c0_i32_434 : i32 to vector<24x96xi32>
    %868 = arith.select %865, %866, %867 : vector<24x96xi1>, vector<24x96xi32>
    %869 = arith.addi %863, %868 : vector<24x96xi32>
    %c6_i32_435 = arith.constant 6 : i32
    %870 = vector.broadcast %c6_i32_435 : i32 to vector<24x96xi32>
    %871 = arith.cmpi sge, %862, %870 : vector<24x96xi32>
    %c1_i32_436 = arith.constant 1 : i32
    %c0_i32_437 = arith.constant 0 : i32
    %872 = vector.broadcast %c1_i32_436 : i32 to vector<24x96xi32>
    %873 = vector.broadcast %c0_i32_437 : i32 to vector<24x96xi32>
    %874 = arith.select %871, %872, %873 : vector<24x96xi1>, vector<24x96xi32>
    %875 = arith.addi %869, %874 : vector<24x96xi32>
    %c9_i32 = arith.constant 9 : i32
    %876 = vector.broadcast %c9_i32 : i32 to vector<24x96xi32>
    %877 = arith.cmpi sge, %862, %876 : vector<24x96xi32>
    %c1_i32_438 = arith.constant 1 : i32
    %c0_i32_439 = arith.constant 0 : i32
    %878 = vector.broadcast %c1_i32_438 : i32 to vector<24x96xi32>
    %879 = vector.broadcast %c0_i32_439 : i32 to vector<24x96xi32>
    %880 = arith.select %877, %878, %879 : vector<24x96xi1>, vector<24x96xi32>
    %881 = arith.addi %875, %880 : vector<24x96xi32>
    %c24_i32_440 = arith.constant 24 : i32
    %882 = vector.broadcast %c24_i32_440 : i32 to vector<24x96xi32>
    %883 = arith.muli %882, %881 : vector<24x96xi32>
    %884 = arith.subi %851, %862 : vector<24x96xi32>
    %885 = arith.addi %883, %884 : vector<24x96xi32>
    %c3_i32_441 = arith.constant 3 : i32
    %886 = vector.broadcast %c3_i32_441 : i32 to vector<24x96xi32>
    %887 = arith.muli %886, %881 : vector<24x96xi32>
    %888 = arith.subi %862, %887 : vector<24x96xi32>
    %c4_i32 = arith.constant 4 : i32
    %889 = vector.broadcast %c4_i32 : i32 to vector<24x96xi32>
    %890 = arith.muli %889, %888 : vector<24x96xi32>
    %891 = arith.addi %885, %890 : vector<24x96xi32>
    %cst_442 = arith.constant 0.000000e+00 : f32
    %892 = vector.broadcast %cst_442 : f32 to vector<24x64xf32>
    %893 = vector.broadcast %760 : vector<1x64xf32> to vector<24x64xf32>
    %894 = arith.addf %892, %893 : vector<24x64xf32>
    %c0_i32_443 = arith.constant 0 : i32
    %895 = vector.broadcast %c0_i32_443 : i32 to vector<24x96xi32>
    %896 = arith.addi %891, %895 : vector<24x96xi32>
    %897 = arith.cmpi eq, %852, %896 : vector<24x96xi32>
    %cst_444 = arith.constant 1.000000e+00 : f32
    %cst_445 = arith.constant 0.000000e+00 : f32
    %898 = vector.broadcast %cst_444 : f32 to vector<24x96xf32>
    %899 = vector.broadcast %cst_445 : f32 to vector<24x96xf32>
    %900 = arith.select %897, %898, %899 : vector<24x96xi1>, vector<24x96xf32>
    %cst_446 = arith.constant dense<0.000000e+00> : vector<24x64xf32>
    %901 = tpu.matmul %900, %850, %cst_446 {dimension_numbers = #tpu.dot_dimension_numbers<[1], [0], [0], [1], [0, 0, 1, 1], [], []>} : vector<24x96xf32>, vector<96x64xf32>, vector<24x64xf32> -> vector<24x64xf32>
    %cst_447 = arith.constant dense<0.000000e+00> : vector<24x64xf32>
    %902 = tpu.matmul %901, %750, %cst_447 {dimension_numbers = #tpu.dot_dimension_numbers<[1], [0], [0], [1], [0, 0, 1, 1], [], []>} : vector<24x64xf32>, vector<64x64xf32>, vector<24x64xf32> -> vector<24x64xf32>
    %903 = arith.addf %894, %902 : vector<24x64xf32>
    %c1_i32_448 = arith.constant 1 : i32
    %904 = vector.broadcast %c1_i32_448 : i32 to vector<24x96xi32>
    %905 = arith.addi %891, %904 : vector<24x96xi32>
    %906 = arith.cmpi eq, %852, %905 : vector<24x96xi32>
    %cst_449 = arith.constant 1.000000e+00 : f32
    %cst_450 = arith.constant 0.000000e+00 : f32
    %907 = vector.broadcast %cst_449 : f32 to vector<24x96xf32>
    %908 = vector.broadcast %cst_450 : f32 to vector<24x96xf32>
    %909 = arith.select %906, %907, %908 : vector<24x96xi1>, vector<24x96xf32>
    %cst_451 = arith.constant dense<0.000000e+00> : vector<24x64xf32>
    %910 = tpu.matmul %909, %850, %cst_451 {dimension_numbers = #tpu.dot_dimension_numbers<[1], [0], [0], [1], [0, 0, 1, 1], [], []>} : vector<24x96xf32>, vector<96x64xf32>, vector<24x64xf32> -> vector<24x64xf32>
    %cst_452 = arith.constant dense<0.000000e+00> : vector<24x64xf32>
    %911 = tpu.matmul %910, %752, %cst_452 {dimension_numbers = #tpu.dot_dimension_numbers<[1], [0], [0], [1], [0, 0, 1, 1], [], []>} : vector<24x64xf32>, vector<64x64xf32>, vector<24x64xf32> -> vector<24x64xf32>
    %912 = arith.addf %903, %911 : vector<24x64xf32>
    %c2_i32_453 = arith.constant 2 : i32
    %913 = vector.broadcast %c2_i32_453 : i32 to vector<24x96xi32>
    %914 = arith.addi %891, %913 : vector<24x96xi32>
    %915 = arith.cmpi eq, %852, %914 : vector<24x96xi32>
    %cst_454 = arith.constant 1.000000e+00 : f32
    %cst_455 = arith.constant 0.000000e+00 : f32
    %916 = vector.broadcast %cst_454 : f32 to vector<24x96xf32>
    %917 = vector.broadcast %cst_455 : f32 to vector<24x96xf32>
    %918 = arith.select %915, %916, %917 : vector<24x96xi1>, vector<24x96xf32>
    %cst_456 = arith.constant dense<0.000000e+00> : vector<24x64xf32>
    %919 = tpu.matmul %918, %850, %cst_456 {dimension_numbers = #tpu.dot_dimension_numbers<[1], [0], [0], [1], [0, 0, 1, 1], [], []>} : vector<24x96xf32>, vector<96x64xf32>, vector<24x64xf32> -> vector<24x64xf32>
    %cst_457 = arith.constant dense<0.000000e+00> : vector<24x64xf32>
    %920 = tpu.matmul %919, %754, %cst_457 {dimension_numbers = #tpu.dot_dimension_numbers<[1], [0], [0], [1], [0, 0, 1, 1], [], []>} : vector<24x64xf32>, vector<64x64xf32>, vector<24x64xf32> -> vector<24x64xf32>
    %921 = arith.addf %912, %920 : vector<24x64xf32>
    %c3_i32_458 = arith.constant 3 : i32
    %922 = vector.broadcast %c3_i32_458 : i32 to vector<24x96xi32>
    %923 = arith.addi %891, %922 : vector<24x96xi32>
    %924 = arith.cmpi eq, %852, %923 : vector<24x96xi32>
    %cst_459 = arith.constant 1.000000e+00 : f32
    %cst_460 = arith.constant 0.000000e+00 : f32
    %925 = vector.broadcast %cst_459 : f32 to vector<24x96xf32>
    %926 = vector.broadcast %cst_460 : f32 to vector<24x96xf32>
    %927 = arith.select %924, %925, %926 : vector<24x96xi1>, vector<24x96xf32>
    %cst_461 = arith.constant dense<0.000000e+00> : vector<24x64xf32>
    %928 = tpu.matmul %927, %850, %cst_461 {dimension_numbers = #tpu.dot_dimension_numbers<[1], [0], [0], [1], [0, 0, 1, 1], [], []>} : vector<24x96xf32>, vector<96x64xf32>, vector<24x64xf32> -> vector<24x64xf32>
    %cst_462 = arith.constant dense<0.000000e+00> : vector<24x64xf32>
    %929 = tpu.matmul %928, %756, %cst_462 {dimension_numbers = #tpu.dot_dimension_numbers<[1], [0], [0], [1], [0, 0, 1, 1], [], []>} : vector<24x64xf32>, vector<64x64xf32>, vector<24x64xf32> -> vector<24x64xf32>
    %930 = arith.addf %921, %929 : vector<24x64xf32>
    %931 = arith.addf %742, %930 : vector<24x64xf32>
    %cst_463 = arith.constant dense<0.000000e+00> : vector<24xf32>
    %932 = vector.multi_reduction <add>, %931, %cst_463 [1] : vector<24x64xf32> to vector<24xf32>
    %933 = vector.shape_cast %932 : vector<24xf32> to vector<24x1xf32>
    %cst_464 = arith.constant 6.400000e+01 : f32
    %934 = vector.broadcast %cst_464 : f32 to vector<24x1xf32>
    %935 = arith.divf %933, %934 : vector<24x1xf32>
    %936 = vector.broadcast %935 : vector<24x1xf32> to vector<24x64xf32>
    %937 = arith.subf %931, %936 : vector<24x64xf32>
    %938 = arith.mulf %937, %937 : vector<24x64xf32>
    %cst_465 = arith.constant dense<0.000000e+00> : vector<24xf32>
    %939 = vector.multi_reduction <add>, %938, %cst_465 [1] : vector<24x64xf32> to vector<24xf32>
    %940 = vector.shape_cast %939 : vector<24xf32> to vector<24x1xf32>
    %cst_466 = arith.constant 6.400000e+01 : f32
    %941 = vector.broadcast %cst_466 : f32 to vector<24x1xf32>
    %942 = arith.divf %940, %941 : vector<24x1xf32>
    %cst_467 = arith.constant 9.99999974E-6 : f32
    %943 = vector.broadcast %cst_467 : f32 to vector<24x1xf32>
    %944 = arith.addf %942, %943 : vector<24x1xf32>
    %945 = math.rsqrt %944 : vector<24x1xf32>
    %946 = vector.broadcast %945 : vector<24x1xf32> to vector<24x64xf32>
    %947 = arith.mulf %937, %946 : vector<24x64xf32>
    %948 = vector.broadcast %761 : vector<1x64xf32> to vector<24x64xf32>
    %949 = arith.mulf %947, %948 : vector<24x64xf32>
    %950 = vector.broadcast %762 : vector<1x64xf32> to vector<24x64xf32>
    %951 = arith.addf %949, %950 : vector<24x64xf32>
    %c28_468 = arith.constant 28 : index
    %c0_469 = arith.constant 0 : index
    %c0_470 = arith.constant 0 : index
    %952 = vector.load %arg4[%c28_468, %c0_469, %c0_470] : memref<34x64x64xf32, #tpu.memory_space<vmem>>, vector<1x64x64xf32>
    %953 = vector.shape_cast %952 : vector<1x64x64xf32> to vector<64x64xf32>
    %c29_471 = arith.constant 29 : index
    %c0_472 = arith.constant 0 : index
    %c0_473 = arith.constant 0 : index
    %954 = vector.load %arg4[%c29_471, %c0_472, %c0_473] : memref<34x64x64xf32, #tpu.memory_space<vmem>>, vector<1x64x64xf32>
    %955 = vector.shape_cast %954 : vector<1x64x64xf32> to vector<64x64xf32>
    %c30_474 = arith.constant 30 : index
    %c0_475 = arith.constant 0 : index
    %c0_476 = arith.constant 0 : index
    %956 = vector.load %arg4[%c30_474, %c0_475, %c0_476] : memref<34x64x64xf32, #tpu.memory_space<vmem>>, vector<1x64x64xf32>
    %957 = vector.shape_cast %956 : vector<1x64x64xf32> to vector<64x64xf32>
    %c31_477 = arith.constant 31 : index
    %c0_478 = arith.constant 0 : index
    %c0_479 = arith.constant 0 : index
    %958 = vector.load %arg4[%c31_477, %c0_478, %c0_479] : memref<34x64x64xf32, #tpu.memory_space<vmem>>, vector<1x64x64xf32>
    %959 = vector.shape_cast %958 : vector<1x64x64xf32> to vector<64x64xf32>
    %c33 = arith.constant 33 : index
    %c0_480 = arith.constant 0 : index
    %960 = vector.load %arg5[%c33, %c0_480] : memref<45x64xf32, #tpu.memory_space<vmem>>, vector<1x64xf32>
    %c34 = arith.constant 34 : index
    %c0_481 = arith.constant 0 : index
    %961 = vector.load %arg5[%c34, %c0_481] : memref<45x64xf32, #tpu.memory_space<vmem>>, vector<1x64xf32>
    %c35 = arith.constant 35 : index
    %c0_482 = arith.constant 0 : index
    %962 = vector.load %arg5[%c35, %c0_482] : memref<45x64xf32, #tpu.memory_space<vmem>>, vector<1x64xf32>
    %c36 = arith.constant 36 : index
    %c0_483 = arith.constant 0 : index
    %963 = vector.load %arg5[%c36, %c0_483] : memref<45x64xf32, #tpu.memory_space<vmem>>, vector<1x64xf32>
    %c37 = arith.constant 37 : index
    %c0_484 = arith.constant 0 : index
    %964 = vector.load %arg5[%c37, %c0_484] : memref<45x64xf32, #tpu.memory_space<vmem>>, vector<1x64xf32>
    %c38 = arith.constant 38 : index
    %c0_485 = arith.constant 0 : index
    %965 = vector.load %arg5[%c38, %c0_485] : memref<45x64xf32, #tpu.memory_space<vmem>>, vector<1x64xf32>
    %cst_486 = arith.constant dense<0.000000e+00> : vector<24x64xf32>
    %966 = tpu.matmul %951, %953, %cst_486 {dimension_numbers = #tpu.dot_dimension_numbers<[1], [0], [0], [1], [0, 0, 1, 1], [], []>} : vector<24x64xf32>, vector<64x64xf32>, vector<24x64xf32> -> vector<24x64xf32>
    %967 = vector.broadcast %960 : vector<1x64xf32> to vector<24x64xf32>
    %968 = arith.addf %966, %967 : vector<24x64xf32>
    %cst_487 = arith.constant dense<0.000000e+00> : vector<12x64xf32>
    %969 = tpu.matmul %723, %955, %cst_487 {dimension_numbers = #tpu.dot_dimension_numbers<[1], [0], [0], [1], [0, 0, 1, 1], [], []>} : vector<12x64xf32>, vector<64x64xf32>, vector<12x64xf32> -> vector<12x64xf32>
    %970 = vector.broadcast %961 : vector<1x64xf32> to vector<12x64xf32>
    %971 = arith.addf %969, %970 : vector<12x64xf32>
    %cst_488 = arith.constant dense<0.000000e+00> : vector<12x64xf32>
    %972 = tpu.matmul %723, %957, %cst_488 {dimension_numbers = #tpu.dot_dimension_numbers<[1], [0], [0], [1], [0, 0, 1, 1], [], []>} : vector<12x64xf32>, vector<64x64xf32>, vector<12x64xf32> -> vector<12x64xf32>
    %973 = vector.broadcast %962 : vector<1x64xf32> to vector<12x64xf32>
    %974 = arith.addf %972, %973 : vector<12x64xf32>
    %cst_489 = arith.constant dense<0.000000e+00> : vector<96x64xf32>
    %975 = tpu.matmul %62, %968, %cst_489 {dimension_numbers = #tpu.dot_dimension_numbers<[1], [0], [0], [1], [0, 0, 1, 1], [], []>} : vector<96x24xf32>, vector<24x64xf32>, vector<96x64xf32> -> vector<96x64xf32>
    %cst_490 = arith.constant 0.000000e+00 : f32
    %976 = vector.broadcast %cst_490 : f32 to vector<96x64xf32>
    %977 = arith.select %131, %975, %976 : vector<96x64xi1>, vector<96x64xf32>
    %cst_491 = arith.constant dense<0.000000e+00> : vector<96x12xf32>
    %978 = tpu.matmul %977, %971, %cst_491 {dimension_numbers = #tpu.dot_dimension_numbers<[1], [1], [0], [0], [0, 0, 1, 0], [], []>} : vector<96x64xf32>, vector<12x64xf32>, vector<96x12xf32> -> vector<96x12xf32>
    %979 = tpu.iota {dimensions = array<i32: 0>} : vector<96x12xi32>
    %980 = tpu.iota {dimensions = array<i32: 1>} : vector<96x12xi32>
    %c0_i32_492 = arith.constant 0 : i32
    %981 = vector.broadcast %c0_i32_492 : i32 to vector<96x12xi32>
    %c24_i32_493 = arith.constant 24 : i32
    %982 = vector.broadcast %c24_i32_493 : i32 to vector<96x12xi32>
    %983 = arith.cmpi sge, %979, %982 : vector<96x12xi32>
    %c1_i32_494 = arith.constant 1 : i32
    %c0_i32_495 = arith.constant 0 : i32
    %984 = vector.broadcast %c1_i32_494 : i32 to vector<96x12xi32>
    %985 = vector.broadcast %c0_i32_495 : i32 to vector<96x12xi32>
    %986 = arith.select %983, %984, %985 : vector<96x12xi1>, vector<96x12xi32>
    %987 = arith.addi %981, %986 : vector<96x12xi32>
    %c48_i32_496 = arith.constant 48 : i32
    %988 = vector.broadcast %c48_i32_496 : i32 to vector<96x12xi32>
    %989 = arith.cmpi sge, %979, %988 : vector<96x12xi32>
    %c1_i32_497 = arith.constant 1 : i32
    %c0_i32_498 = arith.constant 0 : i32
    %990 = vector.broadcast %c1_i32_497 : i32 to vector<96x12xi32>
    %991 = vector.broadcast %c0_i32_498 : i32 to vector<96x12xi32>
    %992 = arith.select %989, %990, %991 : vector<96x12xi1>, vector<96x12xi32>
    %993 = arith.addi %987, %992 : vector<96x12xi32>
    %c72_i32_499 = arith.constant 72 : i32
    %994 = vector.broadcast %c72_i32_499 : i32 to vector<96x12xi32>
    %995 = arith.cmpi sge, %979, %994 : vector<96x12xi32>
    %c1_i32_500 = arith.constant 1 : i32
    %c0_i32_501 = arith.constant 0 : i32
    %996 = vector.broadcast %c1_i32_500 : i32 to vector<96x12xi32>
    %997 = vector.broadcast %c0_i32_501 : i32 to vector<96x12xi32>
    %998 = arith.select %995, %996, %997 : vector<96x12xi1>, vector<96x12xi32>
    %999 = arith.addi %993, %998 : vector<96x12xi32>
    %c24_i32_502 = arith.constant 24 : i32
    %1000 = vector.broadcast %c24_i32_502 : i32 to vector<96x12xi32>
    %1001 = arith.muli %1000, %999 : vector<96x12xi32>
    %1002 = arith.subi %979, %1001 : vector<96x12xi32>
    %c0_i32_503 = arith.constant 0 : i32
    %1003 = vector.broadcast %c0_i32_503 : i32 to vector<96x12xi32>
    %c12_i32_504 = arith.constant 12 : i32
    %1004 = vector.broadcast %c12_i32_504 : i32 to vector<96x12xi32>
    %1005 = arith.cmpi sge, %1002, %1004 : vector<96x12xi32>
    %c1_i32_505 = arith.constant 1 : i32
    %c0_i32_506 = arith.constant 0 : i32
    %1006 = vector.broadcast %c1_i32_505 : i32 to vector<96x12xi32>
    %1007 = vector.broadcast %c0_i32_506 : i32 to vector<96x12xi32>
    %1008 = arith.select %1005, %1006, %1007 : vector<96x12xi1>, vector<96x12xi32>
    %1009 = arith.addi %1003, %1008 : vector<96x12xi32>
    %c0_i32_507 = arith.constant 0 : i32
    %1010 = vector.broadcast %c0_i32_507 : i32 to vector<96x12xi32>
    %c6_i32_508 = arith.constant 6 : i32
    %1011 = vector.broadcast %c6_i32_508 : i32 to vector<96x12xi32>
    %1012 = arith.cmpi sge, %980, %1011 : vector<96x12xi32>
    %c1_i32_509 = arith.constant 1 : i32
    %c0_i32_510 = arith.constant 0 : i32
    %1013 = vector.broadcast %c1_i32_509 : i32 to vector<96x12xi32>
    %1014 = vector.broadcast %c0_i32_510 : i32 to vector<96x12xi32>
    %1015 = arith.select %1012, %1013, %1014 : vector<96x12xi1>, vector<96x12xi32>
    %1016 = arith.addi %1010, %1015 : vector<96x12xi32>
    %1017 = arith.cmpi eq, %1009, %1016 : vector<96x12xi32>
    %cst_511 = arith.constant -1.000000e+30 : f32
    %1018 = vector.broadcast %cst_511 : f32 to vector<96x12xf32>
    %1019 = arith.select %1017, %978, %1018 : vector<96x12xi1>, vector<96x12xf32>
    %cst_512 = arith.constant dense<0xFF800000> : vector<96xf32>
    %1020 = vector.multi_reduction <maximumf>, %1019, %cst_512 [1] : vector<96x12xf32> to vector<96xf32>
    %1021 = vector.shape_cast %1020 : vector<96xf32> to vector<96x1xf32>
    %1022 = vector.broadcast %1021 : vector<96x1xf32> to vector<96x12xf32>
    %1023 = arith.subf %1019, %1022 : vector<96x12xf32>
    %1024 = math.exp %1023 : vector<96x12xf32>
    %cst_513 = arith.constant dense<0.000000e+00> : vector<96xf32>
    %1025 = vector.multi_reduction <add>, %1024, %cst_513 [1] : vector<96x12xf32> to vector<96xf32>
    %1026 = vector.shape_cast %1025 : vector<96xf32> to vector<96x1xf32>
    %1027 = vector.broadcast %1026 : vector<96x1xf32> to vector<96x12xf32>
    %1028 = arith.divf %1024, %1027 : vector<96x12xf32>
    %cst_514 = arith.constant dense<0.000000e+00> : vector<96x64xf32>
    %1029 = tpu.matmul %1028, %974, %cst_514 {dimension_numbers = #tpu.dot_dimension_numbers<[1], [0], [0], [1], [0, 0, 1, 1], [], []>} : vector<96x12xf32>, vector<12x64xf32>, vector<96x64xf32> -> vector<96x64xf32>
    %cst_515 = arith.constant 0.000000e+00 : f32
    %1030 = vector.broadcast %cst_515 : f32 to vector<96x64xf32>
    %1031 = arith.select %131, %1029, %1030 : vector<96x64xi1>, vector<96x64xf32>
    %cst_516 = arith.constant dense<0.000000e+00> : vector<24x64xf32>
    %1032 = tpu.matmul %90, %1031, %cst_516 {dimension_numbers = #tpu.dot_dimension_numbers<[1], [0], [0], [1], [0, 0, 1, 1], [], []>} : vector<24x96xf32>, vector<96x64xf32>, vector<24x64xf32> -> vector<24x64xf32>
    %cst_517 = arith.constant dense<0.000000e+00> : vector<24x64xf32>
    %1033 = tpu.matmul %1032, %959, %cst_517 {dimension_numbers = #tpu.dot_dimension_numbers<[1], [0], [0], [1], [0, 0, 1, 1], [], []>} : vector<24x64xf32>, vector<64x64xf32>, vector<24x64xf32> -> vector<24x64xf32>
    %1034 = vector.broadcast %963 : vector<1x64xf32> to vector<24x64xf32>
    %1035 = arith.addf %1033, %1034 : vector<24x64xf32>
    %1036 = arith.addf %951, %1035 : vector<24x64xf32>
    %cst_518 = arith.constant dense<0.000000e+00> : vector<24xf32>
    %1037 = vector.multi_reduction <add>, %1036, %cst_518 [1] : vector<24x64xf32> to vector<24xf32>
    %1038 = vector.shape_cast %1037 : vector<24xf32> to vector<24x1xf32>
    %cst_519 = arith.constant 6.400000e+01 : f32
    %1039 = vector.broadcast %cst_519 : f32 to vector<24x1xf32>
    %1040 = arith.divf %1038, %1039 : vector<24x1xf32>
    %1041 = vector.broadcast %1040 : vector<24x1xf32> to vector<24x64xf32>
    %1042 = arith.subf %1036, %1041 : vector<24x64xf32>
    %1043 = arith.mulf %1042, %1042 : vector<24x64xf32>
    %cst_520 = arith.constant dense<0.000000e+00> : vector<24xf32>
    %1044 = vector.multi_reduction <add>, %1043, %cst_520 [1] : vector<24x64xf32> to vector<24xf32>
    %1045 = vector.shape_cast %1044 : vector<24xf32> to vector<24x1xf32>
    %cst_521 = arith.constant 6.400000e+01 : f32
    %1046 = vector.broadcast %cst_521 : f32 to vector<24x1xf32>
    %1047 = arith.divf %1045, %1046 : vector<24x1xf32>
    %cst_522 = arith.constant 9.99999974E-6 : f32
    %1048 = vector.broadcast %cst_522 : f32 to vector<24x1xf32>
    %1049 = arith.addf %1047, %1048 : vector<24x1xf32>
    %1050 = math.rsqrt %1049 : vector<24x1xf32>
    %1051 = vector.broadcast %1050 : vector<24x1xf32> to vector<24x64xf32>
    %1052 = arith.mulf %1042, %1051 : vector<24x64xf32>
    %1053 = vector.broadcast %964 : vector<1x64xf32> to vector<24x64xf32>
    %1054 = arith.mulf %1052, %1053 : vector<24x64xf32>
    %1055 = vector.broadcast %965 : vector<1x64xf32> to vector<24x64xf32>
    %1056 = arith.addf %1054, %1055 : vector<24x64xf32>
    %c32_523 = arith.constant 32 : index
    %c0_524 = arith.constant 0 : index
    %c0_525 = arith.constant 0 : index
    %1057 = vector.load %arg4[%c32_523, %c0_524, %c0_525] : memref<34x64x64xf32, #tpu.memory_space<vmem>>, vector<1x64x64xf32>
    %1058 = vector.shape_cast %1057 : vector<1x64x64xf32> to vector<64x64xf32>
    %c33_526 = arith.constant 33 : index
    %c0_527 = arith.constant 0 : index
    %c0_528 = arith.constant 0 : index
    %1059 = vector.load %arg4[%c33_526, %c0_527, %c0_528] : memref<34x64x64xf32, #tpu.memory_space<vmem>>, vector<1x64x64xf32>
    %1060 = vector.shape_cast %1059 : vector<1x64x64xf32> to vector<64x64xf32>
    %c39 = arith.constant 39 : index
    %c0_529 = arith.constant 0 : index
    %1061 = vector.load %arg5[%c39, %c0_529] : memref<45x64xf32, #tpu.memory_space<vmem>>, vector<1x64xf32>
    %c40 = arith.constant 40 : index
    %c0_530 = arith.constant 0 : index
    %1062 = vector.load %arg5[%c40, %c0_530] : memref<45x64xf32, #tpu.memory_space<vmem>>, vector<1x64xf32>
    %c41 = arith.constant 41 : index
    %c0_531 = arith.constant 0 : index
    %1063 = vector.load %arg5[%c41, %c0_531] : memref<45x64xf32, #tpu.memory_space<vmem>>, vector<1x64xf32>
    %c42 = arith.constant 42 : index
    %c0_532 = arith.constant 0 : index
    %1064 = vector.load %arg5[%c42, %c0_532] : memref<45x64xf32, #tpu.memory_space<vmem>>, vector<1x64xf32>
    %cst_533 = arith.constant dense<0.000000e+00> : vector<24x64xf32>
    %1065 = tpu.matmul %1056, %1058, %cst_533 {dimension_numbers = #tpu.dot_dimension_numbers<[1], [0], [0], [1], [0, 0, 1, 1], [], []>} : vector<24x64xf32>, vector<64x64xf32>, vector<24x64xf32> -> vector<24x64xf32>
    %1066 = vector.broadcast %1061 : vector<1x64xf32> to vector<24x64xf32>
    %1067 = arith.addf %1065, %1066 : vector<24x64xf32>
    %cst_534 = arith.constant 5.000000e-01 : f32
    %1068 = vector.broadcast %cst_534 : f32 to vector<24x64xf32>
    %1069 = arith.mulf %1068, %1067 : vector<24x64xf32>
    %cst_535 = arith.constant 0.707106769 : f32
    %1070 = vector.broadcast %cst_535 : f32 to vector<24x64xf32>
    %1071 = arith.mulf %1067, %1070 : vector<24x64xf32>
    %1072 = math.absf %1071 : vector<24x64xf32>
    %cst_536 = arith.constant 0.327591091 : f32
    %1073 = vector.broadcast %cst_536 : f32 to vector<24x64xf32>
    %1074 = arith.mulf %1073, %1072 : vector<24x64xf32>
    %cst_537 = arith.constant 1.000000e+00 : f32
    %1075 = vector.broadcast %cst_537 : f32 to vector<24x64xf32>
    %1076 = arith.addf %1075, %1074 : vector<24x64xf32>
    %cst_538 = arith.constant 1.000000e+00 : f32
    %1077 = vector.broadcast %cst_538 : f32 to vector<24x64xf32>
    %1078 = arith.divf %1077, %1076 : vector<24x64xf32>
    %cst_539 = arith.constant 1.06140542 : f32
    %1079 = vector.broadcast %cst_539 : f32 to vector<24x64xf32>
    %1080 = arith.mulf %1079, %1078 : vector<24x64xf32>
    %cst_540 = arith.constant -1.45315206 : f32
    %1081 = vector.broadcast %cst_540 : f32 to vector<24x64xf32>
    %1082 = arith.addf %1080, %1081 : vector<24x64xf32>
    %1083 = arith.mulf %1082, %1078 : vector<24x64xf32>
    %cst_541 = arith.constant 1.42141378 : f32
    %1084 = vector.broadcast %cst_541 : f32 to vector<24x64xf32>
    %1085 = arith.addf %1083, %1084 : vector<24x64xf32>
    %1086 = arith.mulf %1085, %1078 : vector<24x64xf32>
    %cst_542 = arith.constant -0.284496725 : f32
    %1087 = vector.broadcast %cst_542 : f32 to vector<24x64xf32>
    %1088 = arith.addf %1086, %1087 : vector<24x64xf32>
    %1089 = arith.mulf %1088, %1078 : vector<24x64xf32>
    %cst_543 = arith.constant 0.254829586 : f32
    %1090 = vector.broadcast %cst_543 : f32 to vector<24x64xf32>
    %1091 = arith.addf %1089, %1090 : vector<24x64xf32>
    %1092 = arith.mulf %1091, %1078 : vector<24x64xf32>
    %1093 = arith.mulf %1072, %1072 : vector<24x64xf32>
    %cst_544 = arith.constant 0.000000e+00 : f32
    %1094 = vector.broadcast %cst_544 : f32 to vector<24x64xf32>
    %1095 = arith.subf %1094, %1093 : vector<24x64xf32>
    %1096 = math.exp %1095 : vector<24x64xf32>
    %1097 = arith.mulf %1092, %1096 : vector<24x64xf32>
    %cst_545 = arith.constant 1.000000e+00 : f32
    %1098 = vector.broadcast %cst_545 : f32 to vector<24x64xf32>
    %1099 = arith.subf %1098, %1097 : vector<24x64xf32>
    %cst_546 = arith.constant 0.000000e+00 : f32
    %1100 = vector.broadcast %cst_546 : f32 to vector<24x64xf32>
    %1101 = arith.cmpf oge, %1071, %1100 : vector<24x64xf32>
    %cst_547 = arith.constant 0.000000e+00 : f32
    %1102 = vector.broadcast %cst_547 : f32 to vector<24x64xf32>
    %1103 = arith.subf %1102, %1099 : vector<24x64xf32>
    %1104 = arith.select %1101, %1099, %1103 : vector<24x64xi1>, vector<24x64xf32>
    %cst_548 = arith.constant 1.000000e+00 : f32
    %1105 = vector.broadcast %cst_548 : f32 to vector<24x64xf32>
    %1106 = arith.addf %1105, %1104 : vector<24x64xf32>
    %1107 = arith.mulf %1069, %1106 : vector<24x64xf32>
    %cst_549 = arith.constant dense<0.000000e+00> : vector<24x64xf32>
    %1108 = tpu.matmul %1107, %1060, %cst_549 {dimension_numbers = #tpu.dot_dimension_numbers<[1], [0], [0], [1], [0, 0, 1, 1], [], []>} : vector<24x64xf32>, vector<64x64xf32>, vector<24x64xf32> -> vector<24x64xf32>
    %1109 = vector.broadcast %1062 : vector<1x64xf32> to vector<24x64xf32>
    %1110 = arith.addf %1108, %1109 : vector<24x64xf32>
    %1111 = arith.addf %1056, %1110 : vector<24x64xf32>
    %cst_550 = arith.constant dense<0.000000e+00> : vector<24xf32>
    %1112 = vector.multi_reduction <add>, %1111, %cst_550 [1] : vector<24x64xf32> to vector<24xf32>
    %1113 = vector.shape_cast %1112 : vector<24xf32> to vector<24x1xf32>
    %cst_551 = arith.constant 6.400000e+01 : f32
    %1114 = vector.broadcast %cst_551 : f32 to vector<24x1xf32>
    %1115 = arith.divf %1113, %1114 : vector<24x1xf32>
    %1116 = vector.broadcast %1115 : vector<24x1xf32> to vector<24x64xf32>
    %1117 = arith.subf %1111, %1116 : vector<24x64xf32>
    %1118 = arith.mulf %1117, %1117 : vector<24x64xf32>
    %cst_552 = arith.constant dense<0.000000e+00> : vector<24xf32>
    %1119 = vector.multi_reduction <add>, %1118, %cst_552 [1] : vector<24x64xf32> to vector<24xf32>
    %1120 = vector.shape_cast %1119 : vector<24xf32> to vector<24x1xf32>
    %cst_553 = arith.constant 6.400000e+01 : f32
    %1121 = vector.broadcast %cst_553 : f32 to vector<24x1xf32>
    %1122 = arith.divf %1120, %1121 : vector<24x1xf32>
    %cst_554 = arith.constant 9.99999974E-6 : f32
    %1123 = vector.broadcast %cst_554 : f32 to vector<24x1xf32>
    %1124 = arith.addf %1122, %1123 : vector<24x1xf32>
    %1125 = math.rsqrt %1124 : vector<24x1xf32>
    %1126 = vector.broadcast %1125 : vector<24x1xf32> to vector<24x64xf32>
    %1127 = arith.mulf %1117, %1126 : vector<24x64xf32>
    %1128 = vector.broadcast %1063 : vector<1x64xf32> to vector<24x64xf32>
    %1129 = arith.mulf %1127, %1128 : vector<24x64xf32>
    %1130 = vector.broadcast %1064 : vector<1x64xf32> to vector<24x64xf32>
    %1131 = arith.addf %1129, %1130 : vector<24x64xf32>
    %c43 = arith.constant 43 : index
    %c0_555 = arith.constant 0 : index
    %1132 = vector.load %arg5[%c43, %c0_555] : memref<45x64xf32, #tpu.memory_space<vmem>>, vector<1x64xf32>
    %c44 = arith.constant 44 : index
    %c0_556 = arith.constant 0 : index
    %1133 = vector.load %arg5[%c44, %c0_556] : memref<45x64xf32, #tpu.memory_space<vmem>>, vector<1x64xf32>
    %cst_557 = arith.constant dense<0.000000e+00> : vector<24xf32>
    %1134 = vector.multi_reduction <add>, %1131, %cst_557 [1] : vector<24x64xf32> to vector<24xf32>
    %1135 = vector.shape_cast %1134 : vector<24xf32> to vector<24x1xf32>
    %cst_558 = arith.constant 6.400000e+01 : f32
    %1136 = vector.broadcast %cst_558 : f32 to vector<24x1xf32>
    %1137 = arith.divf %1135, %1136 : vector<24x1xf32>
    %1138 = vector.broadcast %1137 : vector<24x1xf32> to vector<24x64xf32>
    %1139 = arith.subf %1131, %1138 : vector<24x64xf32>
    %1140 = arith.mulf %1139, %1139 : vector<24x64xf32>
    %cst_559 = arith.constant dense<0.000000e+00> : vector<24xf32>
    %1141 = vector.multi_reduction <add>, %1140, %cst_559 [1] : vector<24x64xf32> to vector<24xf32>
    %1142 = vector.shape_cast %1141 : vector<24xf32> to vector<24x1xf32>
    %cst_560 = arith.constant 6.400000e+01 : f32
    %1143 = vector.broadcast %cst_560 : f32 to vector<24x1xf32>
    %1144 = arith.divf %1142, %1143 : vector<24x1xf32>
    %cst_561 = arith.constant 9.99999974E-6 : f32
    %1145 = vector.broadcast %cst_561 : f32 to vector<24x1xf32>
    %1146 = arith.addf %1144, %1145 : vector<24x1xf32>
    %1147 = math.rsqrt %1146 : vector<24x1xf32>
    %1148 = vector.broadcast %1147 : vector<24x1xf32> to vector<24x64xf32>
    %1149 = arith.mulf %1139, %1148 : vector<24x64xf32>
    %1150 = vector.broadcast %1132 : vector<1x64xf32> to vector<24x64xf32>
    %1151 = arith.mulf %1149, %1150 : vector<24x64xf32>
    %1152 = vector.broadcast %1133 : vector<1x64xf32> to vector<24x64xf32>
    %1153 = arith.addf %1151, %1152 : vector<24x64xf32>
    %1154 = tpu.iota {dimensions = array<i32: 0>} : vector<12x24xi32>
    %1155 = tpu.iota {dimensions = array<i32: 1>} : vector<12x24xi32>
    %c0_i32_562 = arith.constant 0 : i32
    %1156 = vector.broadcast %c0_i32_562 : i32 to vector<12x24xi32>
    %c6_i32_563 = arith.constant 6 : i32
    %1157 = vector.broadcast %c6_i32_563 : i32 to vector<12x24xi32>
    %1158 = arith.cmpi sge, %1154, %1157 : vector<12x24xi32>
    %c1_i32_564 = arith.constant 1 : i32
    %c0_i32_565 = arith.constant 0 : i32
    %1159 = vector.broadcast %c1_i32_564 : i32 to vector<12x24xi32>
    %1160 = vector.broadcast %c0_i32_565 : i32 to vector<12x24xi32>
    %1161 = arith.select %1158, %1159, %1160 : vector<12x24xi1>, vector<12x24xi32>
    %1162 = arith.addi %1156, %1161 : vector<12x24xi32>
    %c12_i32_566 = arith.constant 12 : i32
    %1163 = vector.broadcast %c12_i32_566 : i32 to vector<12x24xi32>
    %1164 = arith.muli %1163, %1162 : vector<12x24xi32>
    %c6_i32_567 = arith.constant 6 : i32
    %1165 = vector.broadcast %c6_i32_567 : i32 to vector<12x24xi32>
    %1166 = arith.addi %1164, %1165 : vector<12x24xi32>
    %c6_i32_568 = arith.constant 6 : i32
    %1167 = vector.broadcast %c6_i32_568 : i32 to vector<12x24xi32>
    %1168 = arith.muli %1167, %1162 : vector<12x24xi32>
    %1169 = arith.subi %1154, %1168 : vector<12x24xi32>
    %1170 = arith.addi %1166, %1169 : vector<12x24xi32>
    %1171 = arith.cmpi eq, %1155, %1170 : vector<12x24xi32>
    %cst_569 = arith.constant 1.000000e+00 : f32
    %cst_570 = arith.constant 0.000000e+00 : f32
    %1172 = vector.broadcast %cst_569 : f32 to vector<12x24xf32>
    %1173 = vector.broadcast %cst_570 : f32 to vector<12x24xf32>
    %1174 = arith.select %1171, %1172, %1173 : vector<12x24xi1>, vector<12x24xf32>
    %cst_571 = arith.constant dense<0.000000e+00> : vector<12x64xf32>
    %1175 = tpu.matmul %1174, %1153, %cst_571 {dimension_numbers = #tpu.dot_dimension_numbers<[1], [0], [0], [1], [0, 0, 1, 1], [], []>} : vector<12x24xf32>, vector<24x64xf32>, vector<12x64xf32> -> vector<12x64xf32>
    %c0_572 = arith.constant 0 : index
    %c0_573 = arith.constant 0 : index
    %1176 = vector.load %arg6[%c0_572, %c0_573] : memref<64x4xf32, #tpu.memory_space<vmem>>, vector<64x4xf32>
    %cst_574 = arith.constant dense<0.000000e+00> : vector<12x4xf32>
    %1177 = tpu.matmul %1175, %1176, %cst_574 {dimension_numbers = #tpu.dot_dimension_numbers<[1], [0], [0], [1], [0, 0, 1, 1], [], []>} : vector<12x64xf32>, vector<64x4xf32>, vector<12x4xf32> -> vector<12x4xf32>
    %c0_575 = arith.constant 0 : index
    %c0_576 = arith.constant 0 : index
    %1178 = vector.load %arg7[%c0_575, %c0_576] : memref<1x4xf32, #tpu.memory_space<vmem>>, vector<1x4xf32>
    %1179 = vector.broadcast %1178 : vector<1x4xf32> to vector<12x4xf32>
    %1180 = arith.addf %1177, %1179 : vector<12x4xf32>
    %c0_577 = arith.constant 0 : index
    %c0_578 = arith.constant 0 : index
    %1181 = vector.load %arg8[%c0_577, %c0_578] : memref<12x4xf32, #tpu.memory_space<vmem>>, vector<12x4xf32>
    tpu.vector_store %arg8[%c0_577, %c0_578], %1180 {strides = array<i32>} : memref<12x4xf32, #tpu.memory_space<vmem>>, vector<12x4xf32>,
    return
  }
}

</mosaic_0001>

<llo_original>
// kernel: informer_forward.1
$region0: #{informer_forward.1}
  #allocation0 [shape = 'u32[]', space=smem, size = 0x4, offset = 0x4, fixed_abs, tag = 'smem constant byte address 0x4 - core index']
  #allocation1 [shape = 'u32[144,128]{1,0:T(1,128)}', space=vmem, size = 0x12000, scoped, tag = 'internal scratch']
  %s0 = inlined_call_operand.vmem [shape: f32[24,64], index: 0, kind: input, shape index: {}]
  %s1 = inlined_call_operand.vmem [shape: f32[24,64], index: 1, kind: input, shape index: {}]
  %s2 = inlined_call_operand.vmem [shape: f32[24,64], index: 2, kind: input, shape index: {}]
  %s3 = inlined_call_operand.vmem [shape: f32[24,64], index: 3, kind: input, shape index: {}]
  %s4 = inlined_call_operand.vmem [shape: f32[34,64,64], index: 4, kind: input, shape index: {}]
  %s5 = inlined_call_operand.vmem [shape: f32[45,64], index: 5, kind: input, shape index: {}]
  %s6 = inlined_call_operand.vmem [shape: f32[64,4], index: 6, kind: input, shape index: {}]
  %s7 = inlined_call_operand.vmem [shape: f32[1,4], index: 7, kind: input, shape index: {}]
  %s8 = inlined_call_operand.vmem [shape: f32[12,4], index: 8, kind: output, shape index: {}]
  %s9 = sld [smem:[#allocation0]]
  $region42: #{informer_forward.1} parent=0
    _
  %s11 = ssub.s32 1, %s9
  %s12 = scalar_select 0, %s11, %s9
  // Predicated region
  $region2: #{informer_forward.1} parent=0 // pred_check
    _
  $region3: #{informer_forward.1} parent=0 // pred_check_branch
    %14 = sbr.rel (0) target = $region5
  $region4: #{informer_forward.1} parent=0 // pred_region
    _
  $region5: #{informer_forward.1} parent=0 // pred_fallthru
    _
  // Predicated region
  $region6: #{informer_forward.1} parent=0 // pred_check
    _
  $region7: #{informer_forward.1} parent=0 // pred_check_branch
    %16 = sbr.rel (0) target = $region9
  $region8: #{informer_forward.1} parent=0 // pred_region
    _
  $region9: #{informer_forward.1} parent=0 // pred_fallthru
    _
  // Predicated region
  $region10: #{informer_forward.1} parent=0 // pred_check
    _
  $region11: #{informer_forward.1} parent=0 // pred_check_branch
    %18 = sbr.rel (0) target = $region13
  $region12: #{informer_forward.1} parent=0 // pred_region
    _
  $region13: #{informer_forward.1} parent=0 // pred_fallthru
    _
  // Predicated region
  $region14: #{informer_forward.1} parent=0 // pred_check
    _
  $region15: #{informer_forward.1} parent=0 // pred_check_branch
    %20 = sbr.rel (0) target = $region17
  $region16: #{informer_forward.1} parent=0 // pred_region
    _
  $region17: #{informer_forward.1} parent=0 // pred_fallthru
    _
  // Predicated region
  $region18: #{informer_forward.1} parent=0 // pred_check
    _
  $region19: #{informer_forward.1} parent=0 // pred_check_branch
    %22 = sbr.rel (0) target = $region21
  $region20: #{informer_forward.1} parent=0 // pred_region
    _
  $region21: #{informer_forward.1} parent=0 // pred_fallthru
    _
  // Predicated region
  $region22: #{informer_forward.1} parent=0 // pred_check
    _
  $region23: #{informer_forward.1} parent=0 // pred_check_branch
    %24 = sbr.rel (0) target = $region25
  $region24: #{informer_forward.1} parent=0 // pred_region
    _
  $region25: #{informer_forward.1} parent=0 // pred_fallthru
    _
  // Predicated region
  $region26: #{informer_forward.1} parent=0 // pred_check
    _
  $region27: #{informer_forward.1} parent=0 // pred_check_branch
    %26 = sbr.rel (0) target = $region29
  $region28: #{informer_forward.1} parent=0 // pred_region
    _
  $region29: #{informer_forward.1} parent=0 // pred_fallthru
    _
  // Predicated region
  $region30: #{informer_forward.1} parent=0 // pred_check
    _
  $region31: #{informer_forward.1} parent=0 // pred_check_branch
    %28 = sbr.rel (0) target = $region33
  $region32: #{informer_forward.1} parent=0 // pred_region
    _
  $region33: #{informer_forward.1} parent=0 // pred_fallthru
    _
  %v29 = vlaneseq
  %v30 = vshrl.u32 %v29, 7
  %v31 = vadd.s32 %v30, 8
  %v32 = vadd.s32 %v30, 16
  %v33 = vlaneseq
  %v34 = vand.u32 %v33, 127
  %vm35 = vcmp.ge.s32.totalorder %v30, 12
  %vm36 = vcmp.ge.s32.totalorder %v31, 12
  %vm37 = vcmp.ge.s32.totalorder %v32, 12
  %v38 = vsel %vm35, 1, 0
  %v39 = vsel %vm36, 1, 0
  %v40 = vsel %vm37, 1, 0
  %v41 = vmul.u32 %v38, 12
  %v42 = vmul.u32 %v39, 12
  %v43 = vmul.u32 %v40, 12
  %v44 = vsub.s32 %v30, %v41
  %v45 = vsub.s32 %v31, %v42
  %v46 = vsub.s32 %v32, %v43
  %v47 = vsub.s32 %v30, %v44
  %v48 = vsub.s32 %v31, %v45
  %v49 = vsub.s32 %v32, %v46
  %vm50 = vcmp.eq.s32.totalorder %v44, 0
  %vm51 = vcmp.eq.s32.totalorder %v45, 0
  %vm52 = vcmp.eq.s32.totalorder %v46, 0
  %v53 = vsub.s32 %v44, 1
  %v54 = vsub.s32 %v45, 1
  %v55 = vsub.s32 %v46, 1
  %v56 = vsel %vm50, 11, %v53
  %v57 = vsel %vm51, 11, %v54
  %v58 = vsel %vm52, 11, %v55
  %vm59 = vcmp.eq.s32.totalorder %v44, 11
  %vm60 = vcmp.eq.s32.totalorder %v45, 11
  %vm61 = vcmp.eq.s32.totalorder %v46, 11
  %v62 = vadd.s32 %v44, 1
  %v63 = vadd.s32 %v45, 1
  %v64 = vadd.s32 %v46, 1
  %v65 = vsel %vm59, 0, %v62
  %v66 = vsel %vm60, 0, %v63
  %v67 = vsel %vm61, 0, %v64
  %v68 = vadd.s32 %v47, %v56
  %v69 = vadd.s32 %v48, %v57
  %v70 = vadd.s32 %v49, %v58
  %vm71 = vcmp.eq.s32.totalorder %v34, %v68
  %vm72 = vcmp.eq.s32.totalorder %v34, %v69
  %vm73 = vcmp.eq.s32.totalorder %v34, %v70
  %v74 = vsel %vm71, 1.0, 0.0
  %v75 = vsel %vm72, 1.0, 0.0
  %v76 = vsel %vm73, 1.0, 0.0
  %v77 = vadd.s32 %v47, %v65
  %v78 = vadd.s32 %v48, %v66
  %v79 = vadd.s32 %v49, %v67
  %vm80 = vcmp.eq.s32.totalorder %v34, %v77
  %vm81 = vcmp.eq.s32.totalorder %v34, %v78
  %vm82 = vcmp.eq.s32.totalorder %v34, %v79
  %v83 = vsel %vm80, 1.0, 0.0
  %v84 = vsel %vm81, 1.0, 0.0
  %v85 = vsel %vm82, 1.0, 0.0
  %v86 = vadd.s32 %v30, 24
  %v87 = vadd.s32 %v30, 32
  %v88 = vadd.s32 %v30, 40
  %v89 = vadd.s32 %v30, 48
  %v90 = vadd.s32 %v30, 56
  %v91 = vadd.s32 %v30, 64
  %v92 = vadd.s32 %v30, 72
  %v93 = vadd.s32 %v30, 80
  %v94 = vadd.s32 %v30, 88
  %vm95 = vcmp.ge.s32.totalorder %v30, 24
  %vm96 = vcmp.ge.s32.totalorder %v31, 24
  %vm97 = vcmp.ge.s32.totalorder %v32, 24
  %vm98 = vcmp.ge.s32.totalorder %v86, 24
  %vm99 = vcmp.ge.s32.totalorder %v87, 24
  %vm100 = vcmp.ge.s32.totalorder %v88, 24
  %vm101 = vcmp.ge.s32.totalorder %v89, 24
  %vm102 = vcmp.ge.s32.totalorder %v90, 24
  %vm103 = vcmp.ge.s32.totalorder %v91, 24
  %vm104 = vcmp.ge.s32.totalorder %v92, 24
  %vm105 = vcmp.ge.s32.totalorder %v93, 24
  %vm106 = vcmp.ge.s32.totalorder %v94, 24
  %v107 = vsel %vm95, 1, 0
  %v108 = vsel %vm96, 1, 0
  %v109 = vsel %vm97, 1, 0
  %v110 = vsel %vm98, 1, 0
  %v111 = vsel %vm99, 1, 0
  %v112 = vsel %vm100, 1, 0
  %v113 = vsel %vm101, 1, 0
  %v114 = vsel %vm102, 1, 0
  %v115 = vsel %vm103, 1, 0
  %v116 = vsel %vm104, 1, 0
  %v117 = vsel %vm105, 1, 0
  %v118 = vsel %vm106, 1, 0
  %vm119 = vcmp.ge.s32.totalorder %v30, 48
  %vm120 = vcmp.ge.s32.totalorder %v31, 48
  %vm121 = vcmp.ge.s32.totalorder %v32, 48
  %vm122 = vcmp.ge.s32.totalorder %v86, 48
  %vm123 = vcmp.ge.s32.totalorder %v87, 48
  %vm124 = vcmp.ge.s32.totalorder %v88, 48
  %vm125 = vcmp.ge.s32.totalorder %v89, 48
  %vm126 = vcmp.ge.s32.totalorder %v90, 48
  %vm127 = vcmp.ge.s32.totalorder %v91, 48
  %vm128 = vcmp.ge.s32.totalorder %v92, 48
  %vm129 = vcmp.ge.s32.totalorder %v93, 48
  %vm130 = vcmp.ge.s32.totalorder %v94, 48
  %v131 = vsel %vm119, 1, 0
  %v132 = vsel %vm120, 1, 0
  %v133 = vsel %vm121, 1, 0
  %v134 = vsel %vm122, 1, 0
  %v135 = vsel %vm123, 1, 0
  %v136 = vsel %vm124, 1, 0
  %v137 = vsel %vm125, 1, 0
  %v138 = vsel %vm126, 1, 0
  %v139 = vsel %vm127, 1, 0
  %v140 = vsel %vm128, 1, 0
  %v141 = vsel %vm129, 1, 0
  %v142 = vsel %vm130, 1, 0
  %v143 = vadd.s32 %v107, %v131
  %v144 = vadd.s32 %v108, %v132
  %v145 = vadd.s32 %v109, %v133
  %v146 = vadd.s32 %v110, %v134
  %v147 = vadd.s32 %v111, %v135
  %v148 = vadd.s32 %v112, %v136
  %v149 = vadd.s32 %v113, %v137
  %v150 = vadd.s32 %v114, %v138
  %v151 = vadd.s32 %v115, %v139
  %v152 = vadd.s32 %v116, %v140
  %v153 = vadd.s32 %v117, %v141
  %v154 = vadd.s32 %v118, %v142
  %vm155 = vcmp.ge.s32.totalorder %v30, 72
  %vm156 = vcmp.ge.s32.totalorder %v31, 72
  %vm157 = vcmp.ge.s32.totalorder %v32, 72
  %vm158 = vcmp.ge.s32.totalorder %v86, 72
  %vm159 = vcmp.ge.s32.totalorder %v87, 72
  %vm160 = vcmp.ge.s32.totalorder %v88, 72
  %vm161 = vcmp.ge.s32.totalorder %v89, 72
  %vm162 = vcmp.ge.s32.totalorder %v90, 72
  %vm163 = vcmp.ge.s32.totalorder %v91, 72
  %vm164 = vcmp.ge.s32.totalorder %v92, 72
  %vm165 = vcmp.ge.s32.totalorder %v93, 72
  %vm166 = vcmp.ge.s32.totalorder %v94, 72
  %v167 = vsel %vm155, 1, 0
  %v168 = vsel %vm156, 1, 0
  %v169 = vsel %vm157, 1, 0
  %v170 = vsel %vm158, 1, 0
  %v171 = vsel %vm159, 1, 0
  %v172 = vsel %vm160, 1, 0
  %v173 = vsel %vm161, 1, 0
  %v174 = vsel %vm162, 1, 0
  %v175 = vsel %vm163, 1, 0
  %v176 = vsel %vm164, 1, 0
  %v177 = vsel %vm165, 1, 0
  %v178 = vsel %vm166, 1, 0
  %v179 = vadd.s32 %v143, %v167
  %v180 = vadd.s32 %v144, %v168
  %v181 = vadd.s32 %v145, %v169
  %v182 = vadd.s32 %v146, %v170
  %v183 = vadd.s32 %v147, %v171
  %v184 = vadd.s32 %v148, %v172
  %v185 = vadd.s32 %v149, %v173
  %v186 = vadd.s32 %v150, %v174
  %v187 = vadd.s32 %v151, %v175
  %v188 = vadd.s32 %v152, %v176
  %v189 = vadd.s32 %v153, %v177
  %v190 = vadd.s32 %v154, %v178
  %v191 = vmul.u32 %v179, 24
  %v192 = vmul.u32 %v180, 24
  %v193 = vmul.u32 %v181, 24
  %v194 = vmul.u32 %v182, 24
  %v195 = vmul.u32 %v183, 24
  %v196 = vmul.u32 %v184, 24
  %v197 = vmul.u32 %v185, 24
  %v198 = vmul.u32 %v186, 24
  %v199 = vmul.u32 %v187, 24
  %v200 = vmul.u32 %v188, 24
  %v201 = vmul.u32 %v189, 24
  %v202 = vmul.u32 %v190, 24
  %v203 = vsub.s32 %v30, %v191
  %v204 = vsub.s32 %v31, %v192
  %v205 = vsub.s32 %v32, %v193
  %v206 = vsub.s32 %v86, %v194
  %v207 = vsub.s32 %v87, %v195
  %v208 = vsub.s32 %v88, %v196
  %v209 = vsub.s32 %v89, %v197
  %v210 = vsub.s32 %v90, %v198
  %v211 = vsub.s32 %v91, %v199
  %v212 = vsub.s32 %v92, %v200
  %v213 = vsub.s32 %v93, %v201
  %v214 = vsub.s32 %v94, %v202
  %vm215 = vcmp.eq.s32.totalorder %v34, %v203
  %vm216 = vcmp.eq.s32.totalorder %v34, %v204
  %vm217 = vcmp.eq.s32.totalorder %v34, %v205
  %vm218 = vcmp.eq.s32.totalorder %v34, %v206
  %vm219 = vcmp.eq.s32.totalorder %v34, %v207
  %vm220 = vcmp.eq.s32.totalorder %v34, %v208
  %vm221 = vcmp.eq.s32.totalorder %v34, %v209
  %vm222 = vcmp.eq.s32.totalorder %v34, %v210
  %vm223 = vcmp.eq.s32.totalorder %v34, %v211
  %vm224 = vcmp.eq.s32.totalorder %v34, %v212
  %vm225 = vcmp.eq.s32.totalorder %v34, %v213
  %vm226 = vcmp.eq.s32.totalorder %v34, %v214
  %v227 = vsel %vm215, 1.0, 0.0
  %v228 = vsel %vm216, 1.0, 0.0
  %v229 = vsel %vm217, 1.0, 0.0
  %v230 = vsel %vm218, 1.0, 0.0
  %v231 = vsel %vm219, 1.0, 0.0
  %v232 = vsel %vm220, 1.0, 0.0
  %v233 = vsel %vm221, 1.0, 0.0
  %v234 = vsel %vm222, 1.0, 0.0
  %v235 = vsel %vm223, 1.0, 0.0
  %v236 = vsel %vm224, 1.0, 0.0
  %v237 = vsel %vm225, 1.0, 0.0
  %v238 = vsel %vm226, 1.0, 0.0
  %vm239 = vcmp.ge.s32.totalorder %v34, 24
  %v240 = vsel %vm239, 1, 0
  %vm241 = vcmp.ge.s32.totalorder %v34, 48
  %v242 = vsel %vm241, 1, 0
  %v243 = vadd.s32 %v240, %v242
  %vm244 = vcmp.ge.s32.totalorder %v34, 72
  %v245 = vsel %vm244, 1, 0
  %v246 = vadd.s32 %v243, %v245
  %v247 = vmul.u32 %v246, 24
  %v248 = vsub.s32 %v34, %v247
  %vm249 = vcmp.eq.s32.totalorder %v248, %v30
  %vm250 = vcmp.eq.s32.totalorder %v248, %v31
  %vm251 = vcmp.eq.s32.totalorder %v248, %v32
  %v252 = vsel %vm249, 1.0, 0.0
  %v253 = vsel %vm250, 1.0, 0.0
  %v254 = vsel %vm251, 1.0, 0.0
  %vm255 = vcmp.ge.s32.totalorder %v34, 16
  %v256 = vsel %vm255, 1, 0
  %vm257 = vcmp.ge.s32.totalorder %v34, 32
  %v258 = vsel %vm257, 1, 0
  %v259 = vadd.s32 %v256, %v258
  %v260 = vadd.s32 %v259, %v242
  %vm261 = vcmp.eq.s32.totalorder %v260, %v179
  %vm262 = vcmp.eq.s32.totalorder %v260, %v180
  %vm263 = vcmp.eq.s32.totalorder %v260, %v181
  %vm264 = vcmp.eq.s32.totalorder %v260, %v182
  %vm265 = vcmp.eq.s32.totalorder %v260, %v183
  %vm266 = vcmp.eq.s32.totalorder %v260, %v184
  %vm267 = vcmp.eq.s32.totalorder %v260, %v185
  %vm268 = vcmp.eq.s32.totalorder %v260, %v186
  %vm269 = vcmp.eq.s32.totalorder %v260, %v187
  %vm270 = vcmp.eq.s32.totalorder %v260, %v188
  %vm271 = vcmp.eq.s32.totalorder %v260, %v189
  %vm272 = vcmp.eq.s32.totalorder %v260, %v190
  %vm273 = vcmp.ge.s32.totalorder %v86, 12
  %vm274 = vcmp.ge.s32.totalorder %v87, 12
  %vm275 = vcmp.ge.s32.totalorder %v88, 12
  %v276 = vsel %vm273, 1, 0
  %v277 = vsel %vm274, 1, 0
  %v278 = vsel %vm275, 1, 0
  %v279 = vadd.s32 %v38, %v107
  %v280 = vadd.s32 %v39, %v108
  %v281 = vadd.s32 %v40, %v109
  %v282 = vadd.s32 %v276, %v110
  %v283 = vadd.s32 %v277, %v111
  %v284 = vadd.s32 %v278, %v112
  %vm285 = vcmp.ge.s32.totalorder %v30, 36
  %vm286 = vcmp.ge.s32.totalorder %v31, 36
  %vm287 = vcmp.ge.s32.totalorder %v32, 36
  %vm288 = vcmp.ge.s32.totalorder %v86, 36
  %vm289 = vcmp.ge.s32.totalorder %v87, 36
  %vm290 = vcmp.ge.s32.totalorder %v88, 36
  %v291 = vsel %vm285, 1, 0
  %v292 = vsel %vm286, 1, 0
  %v293 = vsel %vm287, 1, 0
  %v294 = vsel %vm288, 1, 0
  %v295 = vsel %vm289, 1, 0
  %v296 = vsel %vm290, 1, 0
  %v297 = vadd.s32 %v279, %v291
  %v298 = vadd.s32 %v280, %v292
  %v299 = vadd.s32 %v281, %v293
  %v300 = vadd.s32 %v282, %v294
  %v301 = vadd.s32 %v283, %v295
  %v302 = vadd.s32 %v284, %v296
  %v303 = vmul.u32 %v297, 12
  %v304 = vmul.u32 %v298, 12
  %v305 = vmul.u32 %v299, 12
  %v306 = vmul.u32 %v300, 12
  %v307 = vmul.u32 %v301, 12
  %v308 = vmul.u32 %v302, 12
  %v309 = vsub.s32 %v30, %v303
  %v310 = vsub.s32 %v31, %v304
  %v311 = vsub.s32 %v32, %v305
  %v312 = vsub.s32 %v86, %v306
  %v313 = vsub.s32 %v87, %v307
  %v314 = vsub.s32 %v88, %v308
  %vm315 = vcmp.eq.s32.totalorder %v34, %v309
  %vm316 = vcmp.eq.s32.totalorder %v34, %v310
  %vm317 = vcmp.eq.s32.totalorder %v34, %v311
  %vm318 = vcmp.eq.s32.totalorder %v34, %v312
  %vm319 = vcmp.eq.s32.totalorder %v34, %v313
  %vm320 = vcmp.eq.s32.totalorder %v34, %v314
  %v321 = vsel %vm315, 1.0, 0.0
  %v322 = vsel %vm316, 1.0, 0.0
  %v323 = vsel %vm317, 1.0, 0.0
  %v324 = vsel %vm318, 1.0, 0.0
  %v325 = vsel %vm319, 1.0, 0.0
  %v326 = vsel %vm320, 1.0, 0.0
  %vm327 = vcmp.ge.s32.totalorder %v34, 12
  %v328 = vsel %vm327, 1, 0
  %v329 = vadd.s32 %v328, %v240
  %vm330 = vcmp.ge.s32.totalorder %v34, 36
  %v331 = vsel %vm330, 1, 0
  %v332 = vadd.s32 %v329, %v331
  %v333 = vmul.u32 %v332, 12
  %v334 = vsub.s32 %v34, %v333
  %vm335 = vcmp.eq.s32.totalorder %v334, %v30
  %vm336 = vcmp.eq.s32.totalorder %v334, %v31
  %v337 = vsel %vm335, 1.0, 0.0
  %v338 = vsel %vm336, 1.0, 0.0
  %vm339 = vcmp.eq.s32.totalorder %v260, %v297
  %vm340 = vcmp.eq.s32.totalorder %v260, %v298
  %vm341 = vcmp.eq.s32.totalorder %v260, %v299
  %vm342 = vcmp.eq.s32.totalorder %v260, %v300
  %vm343 = vcmp.eq.s32.totalorder %v260, %v301
  %vm344 = vcmp.eq.s32.totalorder %v260, %v302
  %v345 = vld [vmem:[%s4] sm:$0xff]
  %v346 = vld [vmem:[%s4 + $0x8] sm:$0xff]
  %v347 = vld [vmem:[%s4 + $0x10] sm:$0xff]
  %v348 = vld [vmem:[%s4 + $0x18] sm:$0xff]
  %v349 = vld [vmem:[%s4 + $0x20] sm:$0xff]
  %v350 = vld [vmem:[%s4 + $0x28] sm:$0xff]
  %v351 = vld [vmem:[%s4 + $0x30] sm:$0xff]
  %v352 = vld [vmem:[%s4 + $0x38] sm:$0xff]
  %s353 = scalar_lea.vmem %s4, 64
  %v354 = vld [vmem:[%s353] sm:$0xff]
  %v355 = vld [vmem:[%s353 + $0x8] sm:$0xff]
  %v356 = vld [vmem:[%s353 + $0x10] sm:$0xff]
  %v357 = vld [vmem:[%s353 + $0x18] sm:$0xff]
  %v358 = vld [vmem:[%s353 + $0x20] sm:$0xff]
  %v359 = vld [vmem:[%s353 + $0x28] sm:$0xff]
  %v360 = vld [vmem:[%s353 + $0x30] sm:$0xff]
  %v361 = vld [vmem:[%s353 + $0x38] sm:$0xff]
  %s362 = scalar_lea.vmem %s4, 128
  %v363 = vld [vmem:[%s362] sm:$0xff]
  %v364 = vld [vmem:[%s362 + $0x8] sm:$0xff]
  %v365 = vld [vmem:[%s362 + $0x10] sm:$0xff]
  %v366 = vld [vmem:[%s362 + $0x18] sm:$0xff]
  %v367 = vld [vmem:[%s362 + $0x20] sm:$0xff]
  %v368 = vld [vmem:[%s362 + $0x28] sm:$0xff]
  %v369 = vld [vmem:[%s362 + $0x30] sm:$0xff]
  %v370 = vld [vmem:[%s362 + $0x38] sm:$0xff]
  %v371 = vld [vmem:[%s5] sm:$0x1]
  %v372 = vld [vmem:[%s0] sm:$0xff]
  %v373 = vld [vmem:[%s0 + $0x8] sm:$0xff]
  %v374 = vld [vmem:[%s0 + $0x10] sm:$0xff]
  %vm375 = vcmask 195584
  %v377 = vsel %vm375, %v74, 0
  %v380 = vsel %vm375, %v75, 0
  %v383 = vsel %vm375, %v76, 0
  %385 = vmatprep.subr.mxu0 0.0
  %386 = vmatpush1.msra.mxu0 %v372
  %387 = vmatprep.subr.mxu0 0.0
  %388 = vmatpush1.msra.mxu0 %v373
  %389 = vmatprep.subr.mxu0 0.0
  %390 = vmatpush1.msra.mxu0 %v374
  %391 = vmatprep.subr.mxu0 0.0
  %392 = vmatpush1.msra.mxu0 0.0
  %393 = vmatprep.subr.mxu0 0.0
  %394 = vmatpush1.msra.mxu0 0.0
  %395 = vmatprep.subr.mxu0 0.0
  %396 = vmatpush1.msra.mxu0 0.0
  %397 = vmatprep.subr.mxu0 0.0
  %398 = vmatpush1.msra.mxu0 0.0
  %399 = vmatprep.subr.mxu0 0.0
  %400 = vmatpush1.msra.mxu0 0.0
  %401 = vmatprep.subr.mxu0 0.0
  %402 = vmatpush1.msra.mxu0 0.0
  %403 = vmatprep.subr.mxu0 0.0
  %404 = vmatpush1.msra.mxu0 0.0
  %405 = vmatprep.subr.mxu0 0.0
  %406 = vmatpush1.msra.mxu0 0.0
  %407 = vmatprep.subr.mxu0 0.0
  %408 = vmatpush1.msra.mxu0 0.0
  %409 = vmatprep.subr.mxu0 0.0
  %410 = vmatpush1.msra.mxu0 0.0
  %411 = vmatprep.subr.mxu0 0.0
  %412 = vmatpush1.msra.mxu0 0.0
  %413 = vmatprep.subr.mxu0 0.0
  %414 = vmatpush1.msra.mxu0 0.0
  %415 = vmatprep.subr.mxu0 0.0
  %416 = vmatpush1.msra.mxu0 0.0
  %417 = vmatprep.subr.mxu0 0.0
  %418 = vmatpush1.msra.mxu0 0.0
  %419 = vmatprep.subr.mxu0 0.0
  %420 = vmatpush1.msra.mxu0 0.0
  %421 = vmatprep.subr.mxu0 0.0
  %422 = vmatpush1.msra.mxu0 0.0
  %423 = vmatprep.subr.mxu0 0.0
  %424 = vmatpush1.msra.mxu0 0.0
  %425 = vmatprep.subr.mxu0 0.0
  %426 = vmatpush1.msra.mxu0 0.0
  %427 = vmatprep.subr.mxu0 0.0
  %428 = vmatpush1.msra.mxu0 0.0
  %429 = vmatprep.subr.mxu0 0.0
  %430 = vmatpush1.msra.mxu0 0.0
  %431 = vmatprep.subr.mxu0 0.0
  %432 = vmatpush1.msra.mxu0 0.0
  %433 = vmatprep.subr.mxu0 0.0
  %434 = vmatpush1.msra.mxu0 0.0
  %435 = vmatprep.subr.mxu0 0.0
  %436 = vmatpush1.msra.mxu0 0.0
  %437 = vmatprep.subr.mxu0 0.0
  %438 = vmatpush1.msra.mxu0 0.0
  %439 = vmatprep.subr.mxu0 0.0
  %440 = vmatpush1.msra.mxu0 0.0
  %441 = vmatprep.subr.mxu0 0.0
  %442 = vmatpush1.msra.mxu0 0.0
  %443 = vmatprep.subr.mxu0 0.0
  %444 = vmatpush1.msra.mxu0 0.0
  %445 = vmatprep.subr.mxu0 0.0
  %446 = vmatpush1.msra.mxu0 0.0
  %447 = vmatprep.subr.mxu0 0.0
  %448 = vmatpush1.msra.mxu0 0.0
  %449 = vmatprep.mubr.f32.mxu0 0.0
  %450 = vmatmul.mubr.f32.gmra.mrb[0].mxu0 %v377
  %v451 = vpop.f32.mrb[0].mxu0
  %v452 = vadd.f32 0.0, %v451
  %v453 = vpop.f32.mrb[0].mxu0
  %454 = vmatprep.mubr.f32.mxu0 0.0
  %455 = vmatmul.mubr.f32.gmra.mrb[0].mxu0 %v380
  %v456 = vpop.f32.mrb[0].mxu0
  %v457 = vadd.f32 0.0, %v456
  %v458 = vpop.f32.mrb[0].mxu0
  %459 = vmatprep.mubr.f32.mxu0 0.0
  %460 = vmatmul.mubr.f32.gmra.mrb[0].mxu0 %v383
  %v461 = vpop.f32.mrb[0].mxu0
  %v462 = vadd.f32 0.0, %v461
  %v463 = vpop.f32.mrb[0].mxu0
  %464 = vdwg.mxu0
  %v466 = vsel %vm375, %v83, 0
  %v469 = vsel %vm375, %v84, 0
  %v472 = vsel %vm375, %v85, 0
  %474 = vmatprep.subr.mxu0 0.0
  %475 = vmatpush1.msra.mxu0 %v372
  %476 = vmatprep.subr.mxu0 0.0
  %477 = vmatpush1.msra.mxu0 %v373
  %478 = vmatprep.subr.mxu0 0.0
  %479 = vmatpush1.msra.mxu0 %v374
  %480 = vmatprep.subr.mxu0 0.0
  %481 = vmatpush1.msra.mxu0 0.0
  %482 = vmatprep.subr.mxu0 0.0
  %483 = vmatpush1.msra.mxu0 0.0
  %484 = vmatprep.subr.mxu0 0.0
  %485 = vmatpush1.msra.mxu0 0.0
  %486 = vmatprep.subr.mxu0 0.0
  %487 = vmatpush1.msra.mxu0 0.0
  %488 = vmatprep.subr.mxu0 0.0
  %489 = vmatpush1.msra.mxu0 0.0
  %490 = vmatprep.subr.mxu0 0.0
  %491 = vmatpush1.msra.mxu0 0.0
  %492 = vmatprep.subr.mxu0 0.0
  %493 = vmatpush1.msra.mxu0 0.0
  %494 = vmatprep.subr.mxu0 0.0
  %495 = vmatpush1.msra.mxu0 0.0
  %496 = vmatprep.subr.mxu0 0.0
  %497 = vmatpush1.msra.mxu0 0.0
  %498 = vmatprep.subr.mxu0 0.0
  %499 = vmatpush1.msra.mxu0 0.0
  %500 = vmatprep.subr.mxu0 0.0
  %501 = vmatpush1.msra.mxu0 0.0
  %502 = vmatprep.subr.mxu0 0.0
  %503 = vmatpush1.msra.mxu0 0.0
  %504 = vmatprep.subr.mxu0 0.0
  %505 = vmatpush1.msra.mxu0 0.0
  %506 = vmatprep.subr.mxu0 0.0
  %507 = vmatpush1.msra.mxu0 0.0
  %508 = vmatprep.subr.mxu0 0.0
  %509 = vmatpush1.msra.mxu0 0.0
  %510 = vmatprep.subr.mxu0 0.0
  %511 = vmatpush1.msra.mxu0 0.0
  %512 = vmatprep.subr.mxu0 0.0
  %513 = vmatpush1.msra.mxu0 0.0
  %514 = vmatprep.subr.mxu0 0.0
  %515 = vmatpush1.msra.mxu0 0.0
  %516 = vmatprep.subr.mxu0 0.0
  %517 = vmatpush1.msra.mxu0 0.0
  %518 = vmatprep.subr.mxu0 0.0
  %519 = vmatpush1.msra.mxu0 0.0
  %520 = vmatprep.subr.mxu0 0.0
  %521 = vmatpush1.msra.mxu0 0.0
  %522 = vmatprep.subr.mxu0 0.0
  %523 = vmatpush1.msra.mxu0 0.0
  %524 = vmatprep.subr.mxu0 0.0
  %525 = vmatpush1.msra.mxu0 0.0
  %526 = vmatprep.subr.mxu0 0.0
  %527 = vmatpush1.msra.mxu0 0.0
  %528 = vmatprep.subr.mxu0 0.0
  %529 = vmatpush1.msra.mxu0 0.0
  %530 = vmatprep.subr.mxu0 0.0
  %531 = vmatpush1.msra.mxu0 0.0
  %532 = vmatprep.subr.mxu0 0.0
  %533 = vmatpush1.msra.mxu0 0.0
  %534 = vmatprep.subr.mxu0 0.0
  %535 = vmatpush1.msra.mxu0 0.0
  %536 = vmatprep.subr.mxu0 0.0
  %537 = vmatpush1.msra.mxu0 0.0
  %538 = vmatprep.mubr.f32.mxu0 0.0
  %539 = vmatmul.mubr.f32.gmra.mrb[0].mxu0 %v466
  %v540 = vpop.f32.mrb[0].mxu0
  %v541 = vadd.f32 0.0, %v540
  %v542 = vpop.f32.mrb[0].mxu0
  %543 = vmatprep.mubr.f32.mxu0 0.0
  %544 = vmatmul.mubr.f32.gmra.mrb[0].mxu0 %v469
  %v545 = vpop.f32.mrb[0].mxu0
  %v546 = vadd.f32 0.0, %v545
  %v547 = vpop.f32.mrb[0].mxu0
  %548 = vmatprep.mubr.f32.mxu0 0.0
  %549 = vmatmul.mubr.f32.gmra.mrb[0].mxu0 %v472
  %v550 = vpop.f32.mrb[0].mxu0
  %v551 = vadd.f32 0.0, %v550
  %v552 = vpop.f32.mrb[0].mxu0
  %553 = vdwg.mxu0
  %vm554 = vcmask 523264
  %v556 = vsel %vm554, %v372, 0
  %v559 = vsel %vm554, %v373, 0
  %v562 = vsel %vm554, %v374, 0
  %564 = vmatprep.subr.mxu0 0.0
  %565 = vmatpush1.msra.mxu0 %v354
  %566 = vmatprep.subr.mxu0 0.0
  %567 = vmatpush1.msra.mxu0 %v355
  %568 = vmatprep.subr.mxu0 0.0
  %569 = vmatpush1.msra.mxu0 %v356
  %570 = vmatprep.subr.mxu0 0.0
  %571 = vmatpush1.msra.mxu0 %v357
  %572 = vmatprep.subr.mxu0 0.0
  %573 = vmatpush1.msra.mxu0 %v358
  %574 = vmatprep.subr.mxu0 0.0
  %575 = vmatpush1.msra.mxu0 %v359
  %576 = vmatprep.subr.mxu0 0.0
  %577 = vmatpush1.msra.mxu0 %v360
  %578 = vmatprep.subr.mxu0 0.0
  %579 = vmatpush1.msra.mxu0 %v361
  %580 = vmatprep.subr.mxu0 0.0
  %581 = vmatpush1.msra.mxu0 0.0
  %582 = vmatprep.subr.mxu0 0.0
  %583 = vmatpush1.msra.mxu0 0.0
  %584 = vmatprep.subr.mxu0 0.0
  %585 = vmatpush1.msra.mxu0 0.0
  %586 = vmatprep.subr.mxu0 0.0
  %587 = vmatpush1.msra.mxu0 0.0
  %588 = vmatprep.subr.mxu0 0.0
  %589 = vmatpush1.msra.mxu0 0.0
  %590 = vmatprep.subr.mxu0 0.0
  %591 = vmatpush1.msra.mxu0 0.0
  %592 = vmatprep.subr.mxu0 0.0
  %593 = vmatpush1.msra.mxu0 0.0
  %594 = vmatprep.subr.mxu0 0.0
  %595 = vmatpush1.msra.mxu0 0.0
  %596 = vmatprep.subr.mxu0 0.0
  %597 = vmatpush1.msra.mxu0 0.0
  %598 = vmatprep.subr.mxu0 0.0
  %599 = vmatpush1.msra.mxu0 0.0
  %600 = vmatprep.subr.mxu0 0.0
  %601 = vmatpush1.msra.mxu0 0.0
  %602 = vmatprep.subr.mxu0 0.0
  %603 = vmatpush1.msra.mxu0 0.0
  %604 = vmatprep.subr.mxu0 0.0
  %605 = vmatpush1.msra.mxu0 0.0
  %606 = vmatprep.subr.mxu0 0.0
  %607 = vmatpush1.msra.mxu0 0.0
  %608 = vmatprep.subr.mxu0 0.0
  %609 = vmatpush1.msra.mxu0 0.0
  %610 = vmatprep.subr.mxu0 0.0
  %611 = vmatpush1.msra.mxu0 0.0
  %612 = vmatprep.subr.mxu0 0.0
  %613 = vmatpush1.msra.mxu0 0.0
  %614 = vmatprep.subr.mxu0 0.0
  %615 = vmatpush1.msra.mxu0 0.0
  %616 = vmatprep.subr.mxu0 0.0
  %617 = vmatpush1.msra.mxu0 0.0
  %618 = vmatprep.subr.mxu0 0.0
  %619 = vmatpush1.msra.mxu0 0.0
  %620 = vmatprep.subr.mxu0 0.0
  %621 = vmatpush1.msra.mxu0 0.0
  %622 = vmatprep.subr.mxu0 0.0
  %623 = vmatpush1.msra.mxu0 0.0
  %624 = vmatprep.subr.mxu0 0.0
  %625 = vmatpush1.msra.mxu0 0.0
  %626 = vmatprep.subr.mxu0 0.0
  %627 = vmatpush1.msra.mxu0 0.0
  %628 = vmatprep.mubr.f32.mxu0 0.0
  %629 = vmatmul.mubr.f32.gmra.mrb[0].mxu0 %v556
  %v630 = vpop.f32.mrb[0].mxu0
  %v631 = vadd.f32 0.0, %v630
  %v632 = vpop.f32.mrb[0].mxu0
  %633 = vmatprep.mubr.f32.mxu0 0.0
  %634 = vmatmul.mubr.f32.gmra.mrb[0].mxu0 %v559
  %v635 = vpop.f32.mrb[0].mxu0
  %v636 = vadd.f32 0.0, %v635
  %v637 = vpop.f32.mrb[0].mxu0
  %638 = vmatprep.mubr.f32.mxu0 0.0
  %639 = vmatmul.mubr.f32.gmra.mrb[0].mxu0 %v562
  %v640 = vpop.f32.mrb[0].mxu0
  %v641 = vadd.f32 0.0, %v640
  %v642 = vpop.f32.mrb[0].mxu0
  %643 = vdwg.mxu0
  %v645 = vsel %vm554, %v452, 0
  %v648 = vsel %vm554, %v457, 0
  %v651 = vsel %vm554, %v462, 0
  %653 = vmatprep.subr.mxu0 0.0
  %654 = vmatpush1.msra.mxu0 %v345
  %655 = vmatprep.subr.mxu0 0.0
  %656 = vmatpush1.msra.mxu0 %v346
  %657 = vmatprep.subr.mxu0 0.0
  %658 = vmatpush1.msra.mxu0 %v347
  %659 = vmatprep.subr.mxu0 0.0
  %660 = vmatpush1.msra.mxu0 %v348
  %661 = vmatprep.subr.mxu0 0.0
  %662 = vmatpush1.msra.mxu0 %v349
  %663 = vmatprep.subr.mxu0 0.0
  %664 = vmatpush1.msra.mxu0 %v350
  %665 = vmatprep.subr.mxu0 0.0
  %666 = vmatpush1.msra.mxu0 %v351
  %667 = vmatprep.subr.mxu0 0.0
  %668 = vmatpush1.msra.mxu0 %v352
  %669 = vmatprep.subr.mxu0 0.0
  %670 = vmatpush1.msra.mxu0 0.0
  %671 = vmatprep.subr.mxu0 0.0
  %672 = vmatpush1.msra.mxu0 0.0
  %673 = vmatprep.subr.mxu0 0.0
  %674 = vmatpush1.msra.mxu0 0.0
  %675 = vmatprep.subr.mxu0 0.0
  %676 = vmatpush1.msra.mxu0 0.0
  %677 = vmatprep.subr.mxu0 0.0
  %678 = vmatpush1.msra.mxu0 0.0
  %679 = vmatprep.subr.mxu0 0.0
  %680 = vmatpush1.msra.mxu0 0.0
  %681 = vmatprep.subr.mxu0 0.0
  %682 = vmatpush1.msra.mxu0 0.0
  %683 = vmatprep.subr.mxu0 0.0
  %684 = vmatpush1.msra.mxu0 0.0
  %685 = vmatprep.subr.mxu0 0.0
  %686 = vmatpush1.msra.mxu0 0.0
  %687 = vmatprep.subr.mxu0 0.0
  %688 = vmatpush1.msra.mxu0 0.0
  %689 = vmatprep.subr.mxu0 0.0
  %690 = vmatpush1.msra.mxu0 0.0
  %691 = vmatprep.subr.mxu0 0.0
  %692 = vmatpush1.msra.mxu0 0.0
  %693 = vmatprep.subr.mxu0 0.0
  %694 = vmatpush1.msra.mxu0 0.0
  %695 = vmatprep.subr.mxu0 0.0
  %696 = vmatpush1.msra.mxu0 0.0
  %697 = vmatprep.subr.mxu0 0.0
  %698 = vmatpush1.msra.mxu0 0.0
  %699 = vmatprep.subr.mxu0 0.0
  %700 = vmatpush1.msra.mxu0 0.0
  %701 = vmatprep.subr.mxu0 0.0
  %702 = vmatpush1.msra.mxu0 0.0
  %703 = vmatprep.subr.mxu0 0.0
  %704 = vmatpush1.msra.mxu0 0.0
  %705 = vmatprep.subr.mxu0 0.0
  %706 = vmatpush1.msra.mxu0 0.0
  %707 = vmatprep.subr.mxu0 0.0
  %708 = vmatpush1.msra.mxu0 0.0
  %709 = vmatprep.subr.mxu0 0.0
  %710 = vmatpush1.msra.mxu0 0.0
  %711 = vmatprep.subr.mxu0 0.0
  %712 = vmatpush1.msra.mxu0 0.0
  %713 = vmatprep.subr.mxu0 0.0
  %714 = vmatpush1.msra.mxu0 0.0
  %715 = vmatprep.subr.mxu0 0.0
  %716 = vmatpush1.msra.mxu0 0.0
  %717 = vmatprep.mubr.f32.mxu0 0.0
  %718 = vmatmul.mubr.f32.gmra.mrb[0].mxu0 %v645
  %v719 = vpop.f32.mrb[0].mxu0
  %v720 = vadd.f32 %v631, %v719
  %v721 = vpop.f32.mrb[0].mxu0
  %722 = vmatprep.mubr.f32.mxu0 0.0
  %723 = vmatmul.mubr.f32.gmra.mrb[0].mxu0 %v648
  %v724 = vpop.f32.mrb[0].mxu0
  %v725 = vadd.f32 %v636, %v724
  %v726 = vpop.f32.mrb[0].mxu0
  %727 = vmatprep.mubr.f32.mxu0 0.0
  %728 = vmatmul.mubr.f32.gmra.mrb[0].mxu0 %v651
  %v729 = vpop.f32.mrb[0].mxu0
  %v730 = vadd.f32 %v641, %v729
  %v731 = vpop.f32.mrb[0].mxu0
  %732 = vdwg.mxu0
  %v734 = vsel %vm554, %v541, 0
  %v737 = vsel %vm554, %v546, 0
  %v740 = vsel %vm554, %v551, 0
  %742 = vmatprep.subr.mxu0 0.0
  %743 = vmatpush1.msra.mxu0 %v363
  %744 = vmatprep.subr.mxu0 0.0
  %745 = vmatpush1.msra.mxu0 %v364
  %746 = vmatprep.subr.mxu0 0.0
  %747 = vmatpush1.msra.mxu0 %v365
  %748 = vmatprep.subr.mxu0 0.0
  %749 = vmatpush1.msra.mxu0 %v366
  %750 = vmatprep.subr.mxu0 0.0
  %751 = vmatpush1.msra.mxu0 %v367
  %752 = vmatprep.subr.mxu0 0.0
  %753 = vmatpush1.msra.mxu0 %v368
  %754 = vmatprep.subr.mxu0 0.0
  %755 = vmatpush1.msra.mxu0 %v369
  %756 = vmatprep.subr.mxu0 0.0
  %757 = vmatpush1.msra.mxu0 %v370
  %758 = vmatprep.subr.mxu0 0.0
  %759 = vmatpush1.msra.mxu0 0.0
  %760 = vmatprep.subr.mxu0 0.0
  %761 = vmatpush1.msra.mxu0 0.0
  %762 = vmatprep.subr.mxu0 0.0
  %763 = vmatpush1.msra.mxu0 0.0
  %764 = vmatprep.subr.mxu0 0.0
  %765 = vmatpush1.msra.mxu0 0.0
  %766 = vmatprep.subr.mxu0 0.0
  %767 = vmatpush1.msra.mxu0 0.0
  %768 = vmatprep.subr.mxu0 0.0
  %769 = vmatpush1.msra.mxu0 0.0
  %770 = vmatprep.subr.mxu0 0.0
  %771 = vmatpush1.msra.mxu0 0.0
  %772 = vmatprep.subr.mxu0 0.0
  %773 = vmatpush1.msra.mxu0 0.0
  %774 = vmatprep.subr.mxu0 0.0
  %775 = vmatpush1.msra.mxu0 0.0
  %776 = vmatprep.subr.mxu0 0.0
  %777 = vmatpush1.msra.mxu0 0.0
  %778 = vmatprep.subr.mxu0 0.0
  %779 = vmatpush1.msra.mxu0 0.0
  %780 = vmatprep.subr.mxu0 0.0
  %781 = vmatpush1.msra.mxu0 0.0
  %782 = vmatprep.subr.mxu0 0.0
  %783 = vmatpush1.msra.mxu0 0.0
  %784 = vmatprep.subr.mxu0 0.0
  %785 = vmatpush1.msra.mxu0 0.0
  %786 = vmatprep.subr.mxu0 0.0
  %787 = vmatpush1.msra.mxu0 0.0
  %788 = vmatprep.subr.mxu0 0.0
  %789 = vmatpush1.msra.mxu0 0.0
  %790 = vmatprep.subr.mxu0 0.0
  %791 = vmatpush1.msra.mxu0 0.0
  %792 = vmatprep.subr.mxu0 0.0
  %793 = vmatpush1.msra.mxu0 0.0
  %794 = vmatprep.subr.mxu0 0.0
  %795 = vmatpush1.msra.mxu0 0.0
  %796 = vmatprep.subr.mxu0 0.0
  %797 = vmatpush1.msra.mxu0 0.0
  %798 = vmatprep.subr.mxu0 0.0
  %799 = vmatpush1.msra.mxu0 0.0
  %800 = vmatprep.subr.mxu0 0.0
  %801 = vmatpush1.msra.mxu0 0.0
  %802 = vmatprep.subr.mxu0 0.0
  %803 = vmatpush1.msra.mxu0 0.0
  %804 = vmatprep.subr.mxu0 0.0
  %805 = vmatpush1.msra.mxu0 0.0
  %806 = vmatprep.mubr.f32.mxu0 0.0
  %807 = vmatmul.mubr.f32.gmra.mrb[0].mxu0 %v734
  %v808 = vpop.f32.mrb[0].mxu0
  %v809 = vadd.f32 0.0, %v808
  %v810 = vpop.f32.mrb[0].mxu0
  %811 = vmatprep.mubr.f32.mxu0 0.0
  %812 = vmatmul.mubr.f32.gmra.mrb[0].mxu0 %v737
  %v813 = vpop.f32.mrb[0].mxu0
  %v814 = vadd.f32 0.0, %v813
  %v815 = vpop.f32.mrb[0].mxu0
  %816 = vmatprep.mubr.f32.mxu0 0.0
  %817 = vmatmul.mubr.f32.gmra.mrb[0].mxu0 %v740
  %v818 = vpop.f32.mrb[0].mxu0
  %v819 = vadd.f32 0.0, %v818
  %v820 = vpop.f32.mrb[0].mxu0
  %821 = vdwg.mxu0
  %v822 = vadd.f32 %v720, %v809
  %v823 = vadd.f32 %v725, %v814
  %v824 = vadd.f32 %v730, %v819
  %v825 = vlaneseq
  %v826 = vshrl.u32 %v825, 7
  %v827 = vsub.s32 0, %v826
  %v828 = vrot.slane %v371, %v827
  %v829 = vadd.f32 %v822, %v828
  %v830 = vadd.f32 %v823, %v828
  %v831 = vadd.f32 %v824, %v828
  %v832 = vld [vmem:[%s2] sm:$0xff]
  %v833 = vld [vmem:[%s2 + $0x8] sm:$0xff]
  %v834 = vld [vmem:[%s2 + $0x10] sm:$0xff]
  %v835 = vadd.f32 %v829, %v832
  %v836 = vadd.f32 %v830, %v833
  %v837 = vadd.f32 %v831, %v834
  %s838 = scalar_lea.vmem %s4, 192
  %v839 = vld [vmem:[%s838] sm:$0xff]
  %v840 = vld [vmem:[%s838 + $0x8] sm:$0xff]
  %v841 = vld [vmem:[%s838 + $0x10] sm:$0xff]
  %v842 = vld [vmem:[%s838 + $0x18] sm:$0xff]
  %v843 = vld [vmem:[%s838 + $0x20] sm:$0xff]
  %v844 = vld [vmem:[%s838 + $0x28] sm:$0xff]
  %v845 = vld [vmem:[%s838 + $0x30] sm:$0xff]
  %v846 = vld [vmem:[%s838 + $0x38] sm:$0xff]
  %s847 = scalar_lea.vmem %s4, 256
  %v848 = vld [vmem:[%s847] sm:$0xff]
  %v849 = vld [vmem:[%s847 + $0x8] sm:$0xff]
  %v850 = vld [vmem:[%s847 + $0x10] sm:$0xff]
  %v851 = vld [vmem:[%s847 + $0x18] sm:$0xff]
  %v852 = vld [vmem:[%s847 + $0x20] sm:$0xff]
  %v853 = vld [vmem:[%s847 + $0x28] sm:$0xff]
  %v854 = vld [vmem:[%s847 + $0x30] sm:$0xff]
  %v855 = vld [vmem:[%s847 + $0x38] sm:$0xff]
  %s856 = scalar_lea.vmem %s4, 320
  %v857 = vld [vmem:[%s856] sm:$0xff]
  %v858 = vld [vmem:[%s856 + $0x8] sm:$0xff]
  %v859 = vld [vmem:[%s856 + $0x10] sm:$0xff]
  %v860 = vld [vmem:[%s856 + $0x18] sm:$0xff]
  %v861 = vld [vmem:[%s856 + $0x20] sm:$0xff]
  %v862 = vld [vmem:[%s856 + $0x28] sm:$0xff]
  %v863 = vld [vmem:[%s856 + $0x30] sm:$0xff]
  %v864 = vld [vmem:[%s856 + $0x38] sm:$0xff]
  %s865 = scalar_lea.vmem %s4, 384
  %v866 = vld [vmem:[%s865] sm:$0xff]
  %v867 = vld [vmem:[%s865 + $0x8] sm:$0xff]
  %v868 = vld [vmem:[%s865 + $0x10] sm:$0xff]
  %v869 = vld [vmem:[%s865 + $0x18] sm:$0xff]
  %v870 = vld [vmem:[%s865 + $0x20] sm:$0xff]
  %v871 = vld [vmem:[%s865 + $0x28] sm:$0xff]
  %v872 = vld [vmem:[%s865 + $0x30] sm:$0xff]
  %v873 = vld [vmem:[%s865 + $0x38] sm:$0xff]
  %v874 = vld [vmem:[%s5 + $0x1] sm:$0x1]
  %v875 = vld [vmem:[%s5 + $0x2] sm:$0x1]
  %v876 = vld [vmem:[%s5 + $0x3] sm:$0x1]
  %v877 = vld [vmem:[%s5 + $0x4] sm:$0x1]
  %v878 = vld [vmem:[%s5 + $0x5] sm:$0x1]
  %v879 = vld [vmem:[%s5 + $0x6] sm:$0x1]
  %v880 = vlaneseq
  %v881 = vshrl.u32 %v880, 7
  %v882 = vsub.s32 0, %v881
  %v883 = vrot.slane %v874, %v882
  %v885 = vsel %vm554, %v835, 0
  %v888 = vsel %vm554, %v836, 0
  %v891 = vsel %vm554, %v837, 0
  %893 = vmatprep.subr.mxu0 0.0
  %894 = vmatpush1.msra.mxu0 %v839
  %895 = vmatprep.subr.mxu0 0.0
  %896 = vmatpush1.msra.mxu0 %v840
  %897 = vmatprep.subr.mxu0 0.0
  %898 = vmatpush1.msra.mxu0 %v841
  %899 = vmatprep.subr.mxu0 0.0
  %900 = vmatpush1.msra.mxu0 %v842
  %901 = vmatprep.subr.mxu0 0.0
  %902 = vmatpush1.msra.mxu0 %v843
  %903 = vmatprep.subr.mxu0 0.0
  %904 = vmatpush1.msra.mxu0 %v844
  %905 = vmatprep.subr.mxu0 0.0
  %906 = vmatpush1.msra.mxu0 %v845
  %907 = vmatprep.subr.mxu0 0.0
  %908 = vmatpush1.msra.mxu0 %v846
  %909 = vmatprep.subr.mxu0 0.0
  %910 = vmatpush1.msra.mxu0 0.0
  %911 = vmatprep.subr.mxu0 0.0
  %912 = vmatpush1.msra.mxu0 0.0
  %913 = vmatprep.subr.mxu0 0.0
  %914 = vmatpush1.msra.mxu0 0.0
  %915 = vmatprep.subr.mxu0 0.0
  %916 = vmatpush1.msra.mxu0 0.0
  %917 = vmatprep.subr.mxu0 0.0
  %918 = vmatpush1.msra.mxu0 0.0
  %919 = vmatprep.subr.mxu0 0.0
  %920 = vmatpush1.msra.mxu0 0.0
  %921 = vmatprep.subr.mxu0 0.0
  %922 = vmatpush1.msra.mxu0 0.0
  %923 = vmatprep.subr.mxu0 0.0
  %924 = vmatpush1.msra.mxu0 0.0
  %925 = vmatprep.subr.mxu0 0.0
  %926 = vmatpush1.msra.mxu0 0.0
  %927 = vmatprep.subr.mxu0 0.0
  %928 = vmatpush1.msra.mxu0 0.0
  %929 = vmatprep.subr.mxu0 0.0
  %930 = vmatpush1.msra.mxu0 0.0
  %931 = vmatprep.subr.mxu0 0.0
  %932 = vmatpush1.msra.mxu0 0.0
  %933 = vmatprep.subr.mxu0 0.0
  %934 = vmatpush1.msra.mxu0 0.0
  %935 = vmatprep.subr.mxu0 0.0
  %936 = vmatpush1.msra.mxu0 0.0
  %937 = vmatprep.subr.mxu0 0.0
  %938 = vmatpush1.msra.mxu0 0.0
  %939 = vmatprep.subr.mxu0 0.0
  %940 = vmatpush1.msra.mxu0 0.0
  %941 = vmatprep.subr.mxu0 0.0
  %942 = vmatpush1.msra.mxu0 0.0
  %943 = vmatprep.subr.mxu0 0.0
  %944 = vmatpush1.msra.mxu0 0.0
  %945 = vmatprep.subr.mxu0 0.0
  %946 = vmatpush1.msra.mxu0 0.0
  %947 = vmatprep.subr.mxu0 0.0
  %948 = vmatpush1.msra.mxu0 0.0
  %949 = vmatprep.subr.mxu0 0.0
  %950 = vmatpush1.msra.mxu0 0.0
  %951 = vmatprep.subr.mxu0 0.0
  %952 = vmatpush1.msra.mxu0 0.0
  %953 = vmatprep.subr.mxu0 0.0
  %954 = vmatpush1.msra.mxu0 0.0
  %955 = vmatprep.subr.mxu0 0.0
  %956 = vmatpush1.msra.mxu0 0.0
  %957 = vmatprep.mubr.f32.mxu0 0.0
  %958 = vmatmul.mubr.f32.gmra.mrb[0].mxu0 %v885
  %v959 = vpop.f32.mrb[0].mxu0
  %v960 = vadd.f32 %v883, %v959
  %v961 = vpop.f32.mrb[0].mxu0
  %962 = vmatprep.mubr.f32.mxu0 0.0
  %963 = vmatmul.mubr.f32.gmra.mrb[0].mxu0 %v888
  %v964 = vpop.f32.mrb[0].mxu0
  %v965 = vadd.f32 %v883, %v964
  %v966 = vpop.f32.mrb[0].mxu0
  %967 = vmatprep.mubr.f32.mxu0 0.0
  %968 = vmatmul.mubr.f32.gmra.mrb[0].mxu0 %v891
  %v969 = vpop.f32.mrb[0].mxu0
  %v970 = vadd.f32 %v883, %v969
  %v971 = vpop.f32.mrb[0].mxu0
  %972 = vdwg.mxu0
  %v973 = vlaneseq
  %v974 = vshrl.u32 %v973, 7
  %v975 = vsub.s32 0, %v974
  %v976 = vrot.slane %v875, %v975
  %977 = vmatprep.subr.mxu0 0.0
  %978 = vmatpush1.msra.mxu0 %v848
  %979 = vmatprep.subr.mxu0 0.0
  %980 = vmatpush1.msra.mxu0 %v849
  %981 = vmatprep.subr.mxu0 0.0
  %982 = vmatpush1.msra.mxu0 %v850
  %983 = vmatprep.subr.mxu0 0.0
  %984 = vmatpush1.msra.mxu0 %v851
  %985 = vmatprep.subr.mxu0 0.0
  %986 = vmatpush1.msra.mxu0 %v852
  %987 = vmatprep.subr.mxu0 0.0
  %988 = vmatpush1.msra.mxu0 %v853
  %989 = vmatprep.subr.mxu0 0.0
  %990 = vmatpush1.msra.mxu0 %v854
  %991 = vmatprep.subr.mxu0 0.0
  %992 = vmatpush1.msra.mxu0 %v855
  %993 = vmatprep.subr.mxu0 0.0
  %994 = vmatpush1.msra.mxu0 0.0
  %995 = vmatprep.subr.mxu0 0.0
  %996 = vmatpush1.msra.mxu0 0.0
  %997 = vmatprep.subr.mxu0 0.0
  %998 = vmatpush1.msra.mxu0 0.0
  %999 = vmatprep.subr.mxu0 0.0
  %1000 = vmatpush1.msra.mxu0 0.0
  %1001 = vmatprep.subr.mxu0 0.0
  %1002 = vmatpush1.msra.mxu0 0.0
  %1003 = vmatprep.subr.mxu0 0.0
  %1004 = vmatpush1.msra.mxu0 0.0
  %1005 = vmatprep.subr.mxu0 0.0
  %1006 = vmatpush1.msra.mxu0 0.0
  %1007 = vmatprep.subr.mxu0 0.0
  %1008 = vmatpush1.msra.mxu0 0.0
  %1009 = vmatprep.subr.mxu0 0.0
  %1010 = vmatpush1.msra.mxu0 0.0
  %1011 = vmatprep.subr.mxu0 0.0
  %1012 = vmatpush1.msra.mxu0 0.0
  %1013 = vmatprep.subr.mxu0 0.0
  %1014 = vmatpush1.msra.mxu0 0.0
  %1015 = vmatprep.subr.mxu0 0.0
  %1016 = vmatpush1.msra.mxu0 0.0
  %1017 = vmatprep.subr.mxu0 0.0
  %1018 = vmatpush1.msra.mxu0 0.0
  %1019 = vmatprep.subr.mxu0 0.0
  %1020 = vmatpush1.msra.mxu0 0.0
  %1021 = vmatprep.subr.mxu0 0.0
  %1022 = vmatpush1.msra.mxu0 0.0
  %1023 = vmatprep.subr.mxu0 0.0
  %1024 = vmatpush1.msra.mxu0 0.0
  %1025 = vmatprep.subr.mxu0 0.0
  %1026 = vmatpush1.msra.mxu0 0.0
  %1027 = vmatprep.subr.mxu0 0.0
  %1028 = vmatpush1.msra.mxu0 0.0
  %1029 = vmatprep.subr.mxu0 0.0
  %1030 = vmatpush1.msra.mxu0 0.0
  %1031 = vmatprep.subr.mxu0 0.0
  %1032 = vmatpush1.msra.mxu0 0.0
  %1033 = vmatprep.subr.mxu0 0.0
  %1034 = vmatpush1.msra.mxu0 0.0
  %1035 = vmatprep.subr.mxu0 0.0
  %1036 = vmatpush1.msra.mxu0 0.0
  %1037 = vmatprep.subr.mxu0 0.0
  %1038 = vmatpush1.msra.mxu0 0.0
  %1039 = vmatprep.subr.mxu0 0.0
  %1040 = vmatpush1.msra.mxu0 0.0
  %1041 = vmatprep.mubr.f32.mxu0 0.0
  %1042 = vmatmul.mubr.f32.gmra.mrb[0].mxu0 %v885
  %v1043 = vpop.f32.mrb[0].mxu0
  %v1044 = vadd.f32 %v976, %v1043
  %v1045 = vpop.f32.mrb[0].mxu0
  %1046 = vmatprep.mubr.f32.mxu0 0.0
  %1047 = vmatmul.mubr.f32.gmra.mrb[0].mxu0 %v888
  %v1048 = vpop.f32.mrb[0].mxu0
  %v1049 = vadd.f32 %v976, %v1048
  %v1050 = vpop.f32.mrb[0].mxu0
  %1051 = vmatprep.mubr.f32.mxu0 0.0
  %1052 = vmatmul.mubr.f32.gmra.mrb[0].mxu0 %v891
  %v1053 = vpop.f32.mrb[0].mxu0
  %v1054 = vadd.f32 %v976, %v1053
  %v1055 = vpop.f32.mrb[0].mxu0
  %1056 = vdwg.mxu0
  %v1057 = vlaneseq
  %v1058 = vshrl.u32 %v1057, 7
  %v1059 = vsub.s32 0, %v1058
  %v1060 = vrot.slane %v876, %v1059
  %1061 = vmatprep.subr.mxu0 0.0
  %1062 = vmatpush1.msra.mxu0 %v857
  %1063 = vmatprep.subr.mxu0 0.0
  %1064 = vmatpush1.msra.mxu0 %v858
  %1065 = vmatprep.subr.mxu0 0.0
  %1066 = vmatpush1.msra.mxu0 %v859
  %1067 = vmatprep.subr.mxu0 0.0
  %1068 = vmatpush1.msra.mxu0 %v860
  %1069 = vmatprep.subr.mxu0 0.0
  %1070 = vmatpush1.msra.mxu0 %v861
  %1071 = vmatprep.subr.mxu0 0.0
  %1072 = vmatpush1.msra.mxu0 %v862
  %1073 = vmatprep.subr.mxu0 0.0
  %1074 = vmatpush1.msra.mxu0 %v863
  %1075 = vmatprep.subr.mxu0 0.0
  %1076 = vmatpush1.msra.mxu0 %v864
  %1077 = vmatprep.subr.mxu0 0.0
  %1078 = vmatpush1.msra.mxu0 0.0
  %1079 = vmatprep.subr.mxu0 0.0
  %1080 = vmatpush1.msra.mxu0 0.0
  %1081 = vmatprep.subr.mxu0 0.0
  %1082 = vmatpush1.msra.mxu0 0.0
  %1083 = vmatprep.subr.mxu0 0.0
  %1084 = vmatpush1.msra.mxu0 0.0
  %1085 = vmatprep.subr.mxu0 0.0
  %1086 = vmatpush1.msra.mxu0 0.0
  %1087 = vmatprep.subr.mxu0 0.0
  %1088 = vmatpush1.msra.mxu0 0.0
  %1089 = vmatprep.subr.mxu0 0.0
  %1090 = vmatpush1.msra.mxu0 0.0
  %1091 = vmatprep.subr.mxu0 0.0
  %1092 = vmatpush1.msra.mxu0 0.0
  %1093 = vmatprep.subr.mxu0 0.0
  %1094 = vmatpush1.msra.mxu0 0.0
  %1095 = vmatprep.subr.mxu0 0.0
  %1096 = vmatpush1.msra.mxu0 0.0
  %1097 = vmatprep.subr.mxu0 0.0
  %1098 = vmatpush1.msra.mxu0 0.0
  %1099 = vmatprep.subr.mxu0 0.0
  %1100 = vmatpush1.msra.mxu0 0.0
  %1101 = vmatprep.subr.mxu0 0.0
  %1102 = vmatpush1.msra.mxu0 0.0
  %1103 = vmatprep.subr.mxu0 0.0
  %1104 = vmatpush1.msra.mxu0 0.0
  %1105 = vmatprep.subr.mxu0 0.0
  %1106 = vmatpush1.msra.mxu0 0.0
  %1107 = vmatprep.subr.mxu0 0.0
  %1108 = vmatpush1.msra.mxu0 0.0
  %1109 = vmatprep.subr.mxu0 0.0
  %1110 = vmatpush1.msra.mxu0 0.0
  %1111 = vmatprep.subr.mxu0 0.0
  %1112 = vmatpush1.msra.mxu0 0.0
  %1113 = vmatprep.subr.mxu0 0.0
  %1114 = vmatpush1.msra.mxu0 0.0
  %1115 = vmatprep.subr.mxu0 0.0
  %1116 = vmatpush1.msra.mxu0 0.0
  %1117 = vmatprep.subr.mxu0 0.0
  %1118 = vmatpush1.msra.mxu0 0.0
  %1119 = vmatprep.subr.mxu0 0.0
  %1120 = vmatpush1.msra.mxu0 0.0
  %1121 = vmatprep.subr.mxu0 0.0
  %1122 = vmatpush1.msra.mxu0 0.0
  %1123 = vmatprep.subr.mxu0 0.0
  %1124 = vmatpush1.msra.mxu0 0.0
  %1125 = vmatprep.mubr.f32.mxu0 0.0
  %1126 = vmatmul.mubr.f32.gmra.mrb[0].mxu0 %v885
  %v1127 = vpop.f32.mrb[0].mxu0
  %v1128 = vadd.f32 %v1060, %v1127
  %v1129 = vpop.f32.mrb[0].mxu0
  %1130 = vmatprep.mubr.f32.mxu0 0.0
  %1131 = vmatmul.mubr.f32.gmra.mrb[0].mxu0 %v888
  %v1132 = vpop.f32.mrb[0].mxu0
  %v1133 = vadd.f32 %v1060, %v1132
  %v1134 = vpop.f32.mrb[0].mxu0
  %1135 = vmatprep.mubr.f32.mxu0 0.0
  %1136 = vmatmul.mubr.f32.gmra.mrb[0].mxu0 %v891
  %v1137 = vpop.f32.mrb[0].mxu0
  %v1138 = vadd.f32 %v1060, %v1137
  %v1139 = vpop.f32.mrb[0].mxu0
  %1140 = vdwg.mxu0
  %v1142 = vsel %vm375, %v227, 0
  %v1145 = vsel %vm375, %v228, 0
  %v1148 = vsel %vm375, %v229, 0
  %v1151 = vsel %vm375, %v230, 0
  %v1154 = vsel %vm375, %v231, 0
  %v1157 = vsel %vm375, %v232, 0
  %v1160 = vsel %vm375, %v233, 0
  %v1163 = vsel %vm375, %v234, 0
  %v1166 = vsel %vm375, %v235, 0
  %v1169 = vsel %vm375, %v236, 0
  %v1172 = vsel %vm375, %v237, 0
  %v1175 = vsel %vm375, %v238, 0
  %1177 = vmatprep.subr.mxu0 0.0
  %1178 = vmatpush1.msra.mxu0 %v960
  %1179 = vmatprep.subr.mxu0 0.0
  %1180 = vmatpush1.msra.mxu0 %v965
  %1181 = vmatprep.subr.mxu0 0.0
  %1182 = vmatpush1.msra.mxu0 %v970
  %1183 = vmatprep.subr.mxu0 0.0
  %1184 = vmatpush1.msra.mxu0 0.0
  %1185 = vmatprep.subr.mxu0 0.0
  %1186 = vmatpush1.msra.mxu0 0.0
  %1187 = vmatprep.subr.mxu0 0.0
  %1188 = vmatpush1.msra.mxu0 0.0
  %1189 = vmatprep.subr.mxu0 0.0
  %1190 = vmatpush1.msra.mxu0 0.0
  %1191 = vmatprep.subr.mxu0 0.0
  %1192 = vmatpush1.msra.mxu0 0.0
  %1193 = vmatprep.subr.mxu0 0.0
  %1194 = vmatpush1.msra.mxu0 0.0
  %1195 = vmatprep.subr.mxu0 0.0
  %1196 = vmatpush1.msra.mxu0 0.0
  %1197 = vmatprep.subr.mxu0 0.0
  %1198 = vmatpush1.msra.mxu0 0.0
  %1199 = vmatprep.subr.mxu0 0.0
  %1200 = vmatpush1.msra.mxu0 0.0
  %1201 = vmatprep.subr.mxu0 0.0
  %1202 = vmatpush1.msra.mxu0 0.0
  %1203 = vmatprep.subr.mxu0 0.0
  %1204 = vmatpush1.msra.mxu0 0.0
  %1205 = vmatprep.subr.mxu0 0.0
  %1206 = vmatpush1.msra.mxu0 0.0
  %1207 = vmatprep.subr.mxu0 0.0
  %1208 = vmatpush1.msra.mxu0 0.0
  %1209 = vmatprep.subr.mxu0 0.0
  %1210 = vmatpush1.msra.mxu0 0.0
  %1211 = vmatprep.subr.mxu0 0.0
  %1212 = vmatpush1.msra.mxu0 0.0
  %1213 = vmatprep.subr.mxu0 0.0
  %1214 = vmatpush1.msra.mxu0 0.0
  %1215 = vmatprep.subr.mxu0 0.0
  %1216 = vmatpush1.msra.mxu0 0.0
  %1217 = vmatprep.subr.mxu0 0.0
  %1218 = vmatpush1.msra.mxu0 0.0
  %1219 = vmatprep.subr.mxu0 0.0
  %1220 = vmatpush1.msra.mxu0 0.0
  %1221 = vmatprep.subr.mxu0 0.0
  %1222 = vmatpush1.msra.mxu0 0.0
  %1223 = vmatprep.subr.mxu0 0.0
  %1224 = vmatpush1.msra.mxu0 0.0
  %1225 = vmatprep.subr.mxu0 0.0
  %1226 = vmatpush1.msra.mxu0 0.0
  %1227 = vmatprep.subr.mxu0 0.0
  %1228 = vmatpush1.msra.mxu0 0.0
  %1229 = vmatprep.subr.mxu0 0.0
  %1230 = vmatpush1.msra.mxu0 0.0
  %1231 = vmatprep.subr.mxu0 0.0
  %1232 = vmatpush1.msra.mxu0 0.0
  %1233 = vmatprep.subr.mxu0 0.0
  %1234 = vmatpush1.msra.mxu0 0.0
  %1235 = vmatprep.subr.mxu0 0.0
  %1236 = vmatpush1.msra.mxu0 0.0
  %1237 = vmatprep.subr.mxu0 0.0
  %1238 = vmatpush1.msra.mxu0 0.0
  %1239 = vmatprep.subr.mxu0 0.0
  %1240 = vmatpush1.msra.mxu0 0.0
  %1241 = vmatprep.mubr.f32.mxu0 0.0
  %1242 = vmatmul.mubr.f32.gmra.mrb[0].mxu0 %v1142
  %v1243 = vpop.f32.mrb[0].mxu0
  %v1244 = vadd.f32 0.0, %v1243
  %v1245 = vpop.f32.mrb[0].mxu0
  %1246 = vmatprep.mubr.f32.mxu0 0.0
  %1247 = vmatmul.mubr.f32.gmra.mrb[0].mxu0 %v1145
  %v1248 = vpop.f32.mrb[0].mxu0
  %v1249 = vadd.f32 0.0, %v1248
  %v1250 = vpop.f32.mrb[0].mxu0
  %1251 = vmatprep.mubr.f32.mxu0 0.0
  %1252 = vmatmul.mubr.f32.gmra.mrb[0].mxu0 %v1148
  %v1253 = vpop.f32.mrb[0].mxu0
  %v1254 = vadd.f32 0.0, %v1253
  %v1255 = vpop.f32.mrb[0].mxu0
  %1256 = vmatprep.mubr.f32.mxu0 0.0
  %1257 = vmatmul.mubr.f32.gmra.mrb[0].mxu0 %v1151
  %v1258 = vpop.f32.mrb[0].mxu0
  %v1259 = vadd.f32 0.0, %v1258
  %v1260 = vpop.f32.mrb[0].mxu0
  %1261 = vmatprep.mubr.f32.mxu0 0.0
  %1262 = vmatmul.mubr.f32.gmra.mrb[0].mxu0 %v1154
  %v1263 = vpop.f32.mrb[0].mxu0
  %v1264 = vadd.f32 0.0, %v1263
  %v1265 = vpop.f32.mrb[0].mxu0
  %1266 = vmatprep.mubr.f32.mxu0 0.0
  %1267 = vmatmul.mubr.f32.gmra.mrb[0].mxu0 %v1157
  %v1268 = vpop.f32.mrb[0].mxu0
  %v1269 = vadd.f32 0.0, %v1268
  %v1270 = vpop.f32.mrb[0].mxu0
  %1271 = vmatprep.mubr.f32.mxu0 0.0
  %1272 = vmatmul.mubr.f32.gmra.mrb[0].mxu0 %v1160
  %v1273 = vpop.f32.mrb[0].mxu0
  %v1274 = vadd.f32 0.0, %v1273
  %v1275 = vpop.f32.mrb[0].mxu0
  %1276 = vmatprep.mubr.f32.mxu0 0.0
  %1277 = vmatmul.mubr.f32.gmra.mrb[0].mxu0 %v1163
  %v1278 = vpop.f32.mrb[0].mxu0
  %v1279 = vadd.f32 0.0, %v1278
  %v1280 = vpop.f32.mrb[0].mxu0
  %1281 = vmatprep.mubr.f32.mxu0 0.0
  %1282 = vmatmul.mubr.f32.gmra.mrb[0].mxu0 %v1166
  %v1283 = vpop.f32.mrb[0].mxu0
  %v1284 = vadd.f32 0.0, %v1283
  %v1285 = vpop.f32.mrb[0].mxu0
  %1286 = vmatprep.mubr.f32.mxu0 0.0
  %1287 = vmatmul.mubr.f32.gmra.mrb[0].mxu0 %v1169
  %v1288 = vpop.f32.mrb[0].mxu0
  %v1289 = vadd.f32 0.0, %v1288
  %v1290 = vpop.f32.mrb[0].mxu0
  %1291 = vmatprep.mubr.f32.mxu0 0.0
  %1292 = vmatmul.mubr.f32.gmra.mrb[0].mxu0 %v1172
  %v1293 = vpop.f32.mrb[0].mxu0
  %v1294 = vadd.f32 0.0, %v1293
  %v1295 = vpop.f32.mrb[0].mxu0
  %1296 = vmatprep.mubr.f32.mxu0 0.0
  %1297 = vmatmul.mubr.f32.gmra.mrb[0].mxu0 %v1175
  %v1298 = vpop.f32.mrb[0].mxu0
  %v1299 = vadd.f32 0.0, %v1298
  %v1300 = vpop.f32.mrb[0].mxu0
  %1301 = vdwg.mxu0
  %v1302 = vsel %vm261, %v1244, 0.0
  %v1303 = vsel %vm262, %v1249, 0.0
  %v1304 = vsel %vm263, %v1254, 0.0
  %v1305 = vsel %vm264, %v1259, 0.0
  %v1306 = vsel %vm265, %v1264, 0.0
  %v1307 = vsel %vm266, %v1269, 0.0
  %v1308 = vsel %vm267, %v1274, 0.0
  %v1309 = vsel %vm268, %v1279, 0.0
  %v1310 = vsel %vm269, %v1284, 0.0
  %v1311 = vsel %vm270, %v1289, 0.0
  %v1312 = vsel %vm271, %v1294, 0.0
  %v1313 = vsel %vm272, %v1299, 0.0
  %v1315 = vsel %vm554, %v1302, 0
  %v1318 = vsel %vm554, %v1303, 0
  %v1321 = vsel %vm554, %v1304, 0
  %v1324 = vsel %vm554, %v1305, 0
  %v1327 = vsel %vm554, %v1306, 0
  %v1330 = vsel %vm554, %v1307, 0
  %v1333 = vsel %vm554, %v1308, 0
  %v1336 = vsel %vm554, %v1309, 0
  %v1339 = vsel %vm554, %v1310, 0
  %v1342 = vsel %vm554, %v1311, 0
  %v1345 = vsel %vm554, %v1312, 0
  %v1348 = vsel %vm554, %v1313, 0
  %v1351 = vsel %vm554, %v1044, 0
  %v1354 = vsel %vm554, %v1049, 0
  %v1357 = vsel %vm554, %v1054, 0
  %1359 = vmatprep.subr.mxu0 0.0
  %1360 = vmatpush1.xpose.msra.mxu0 %v1351
  %1361 = vmatprep.subr.mxu0 0.0
  %1362 = vmatpush1.xpose.msra.mxu0 %v1354
  %1363 = vmatprep.subr.mxu0 0.0
  %1364 = vmatpush1.xpose.msra.mxu0 %v1357
  %1365 = vmatprep.subr.mxu0 0.0
  %1366 = vmatpush1.xpose.msra.mxu0 0.0
  %1367 = vmatprep.subr.mxu0 0.0
  %1368 = vmatpush1.xpose.msra.mxu0 0.0
  %1369 = vmatprep.subr.mxu0 0.0
  %1370 = vmatpush1.xpose.msra.mxu0 0.0
  %1371 = vmatprep.subr.mxu0 0.0
  %1372 = vmatpush1.xpose.msra.mxu0 0.0
  %1373 = vmatprep.subr.mxu0 0.0
  %1374 = vmatpush1.xpose.msra.mxu0 0.0
  %1375 = vmatprep.subr.mxu0 0.0
  %1376 = vmatpush1.xpose.msra.mxu0 0.0
  %1377 = vmatprep.subr.mxu0 0.0
  %1378 = vmatpush1.xpose.msra.mxu0 0.0
  %1379 = vmatprep.subr.mxu0 0.0
  %1380 = vmatpush1.xpose.msra.mxu0 0.0
  %1381 = vmatprep.subr.mxu0 0.0
  %1382 = vmatpush1.xpose.msra.mxu0 0.0
  %1383 = vmatprep.subr.mxu0 0.0
  %1384 = vmatpush1.xpose.msra.mxu0 0.0
  %1385 = vmatprep.subr.mxu0 0.0
  %1386 = vmatpush1.xpose.msra.mxu0 0.0
  %1387 = vmatprep.subr.mxu0 0.0
  %1388 = vmatpush1.xpose.msra.mxu0 0.0
  %1389 = vmatprep.subr.mxu0 0.0
  %1390 = vmatpush1.xpose.msra.mxu0 0.0
  %1391 = vmatprep.subr.mxu0 0.0
  %1392 = vmatpush1.xpose.msra.mxu0 0.0
  %1393 = vmatprep.subr.mxu0 0.0
  %1394 = vmatpush1.xpose.msra.mxu0 0.0
  %1395 = vmatprep.subr.mxu0 0.0
  %1396 = vmatpush1.xpose.msra.mxu0 0.0
  %1397 = vmatprep.subr.mxu0 0.0
  %1398 = vmatpush1.xpose.msra.mxu0 0.0
  %1399 = vmatprep.subr.mxu0 0.0
  %1400 = vmatpush1.xpose.msra.mxu0 0.0
  %1401 = vmatprep.subr.mxu0 0.0
  %1402 = vmatpush1.xpose.msra.mxu0 0.0
  %1403 = vmatprep.subr.mxu0 0.0
  %1404 = vmatpush1.xpose.msra.mxu0 0.0
  %1405 = vmatprep.subr.mxu0 0.0
  %1406 = vmatpush1.xpose.msra.mxu0 0.0
  %1407 = vmatprep.subr.mxu0 0.0
  %1408 = vmatpush1.xpose.msra.mxu0 0.0
  %1409 = vmatprep.subr.mxu0 0.0
  %1410 = vmatpush1.xpose.msra.mxu0 0.0
  %1411 = vmatprep.subr.mxu0 0.0
  %1412 = vmatpush1.xpose.msra.mxu0 0.0
  %1413 = vmatprep.subr.mxu0 0.0
  %1414 = vmatpush1.xpose.msra.mxu0 0.0
  %1415 = vmatprep.subr.mxu0 0.0
  %1416 = vmatpush1.xpose.msra.mxu0 0.0
  %1417 = vmatprep.subr.mxu0 0.0
  %1418 = vmatpush1.xpose.msra.mxu0 0.0
  %1419 = vmatprep.subr.mxu0 0.0
  %1420 = vmatpush1.xpose.msra.mxu0 0.0
  %1421 = vmatprep.subr.mxu0 0.0
  %1422 = vmatpush1.xpose.msra.mxu0 0.0
  %1423 = vmatprep.mubr.f32.mxu0 0.0
  %1424 = vmatmul.mubr.f32.gmra.mrb[0].mxu0 %v1315
  %v1425 = vpop.f32.mrb[0].mxu0
  %v1426 = vadd.f32 0.0, %v1425
  %v1427 = vpop.f32.mrb[0].mxu0
  %1428 = vmatprep.mubr.f32.mxu0 0.0
  %1429 = vmatmul.mubr.f32.gmra.mrb[0].mxu0 %v1318
  %v1430 = vpop.f32.mrb[0].mxu0
  %v1431 = vadd.f32 0.0, %v1430
  %v1432 = vpop.f32.mrb[0].mxu0
  %1433 = vmatprep.mubr.f32.mxu0 0.0
  %1434 = vmatmul.mubr.f32.gmra.mrb[0].mxu0 %v1321
  %v1435 = vpop.f32.mrb[0].mxu0
  %v1436 = vadd.f32 0.0, %v1435
  %v1437 = vpop.f32.mrb[0].mxu0
  %1438 = vmatprep.mubr.f32.mxu0 0.0
  %1439 = vmatmul.mubr.f32.gmra.mrb[0].mxu0 %v1324
  %v1440 = vpop.f32.mrb[0].mxu0
  %v1441 = vadd.f32 0.0, %v1440
  %v1442 = vpop.f32.mrb[0].mxu0
  %1443 = vmatprep.mubr.f32.mxu0 0.0
  %1444 = vmatmul.mubr.f32.gmra.mrb[0].mxu0 %v1327
  %v1445 = vpop.f32.mrb[0].mxu0
  %v1446 = vadd.f32 0.0, %v1445
  %v1447 = vpop.f32.mrb[0].mxu0
  %1448 = vmatprep.mubr.f32.mxu0 0.0
  %1449 = vmatmul.mubr.f32.gmra.mrb[0].mxu0 %v1330
  %v1450 = vpop.f32.mrb[0].mxu0
  %v1451 = vadd.f32 0.0, %v1450
  %v1452 = vpop.f32.mrb[0].mxu0
  %1453 = vmatprep.mubr.f32.mxu0 0.0
  %1454 = vmatmul.mubr.f32.gmra.mrb[0].mxu0 %v1333
  %v1455 = vpop.f32.mrb[0].mxu0
  %v1456 = vadd.f32 0.0, %v1455
  %v1457 = vpop.f32.mrb[0].mxu0
  %1458 = vmatprep.mubr.f32.mxu0 0.0
  %1459 = vmatmul.mubr.f32.gmra.mrb[0].mxu0 %v1336
  %v1460 = vpop.f32.mrb[0].mxu0
  %v1461 = vadd.f32 0.0, %v1460
  %v1462 = vpop.f32.mrb[0].mxu0
  %1463 = vmatprep.mubr.f32.mxu0 0.0
  %1464 = vmatmul.mubr.f32.gmra.mrb[0].mxu0 %v1339
  %v1465 = vpop.f32.mrb[0].mxu0
  %v1466 = vadd.f32 0.0, %v1465
  %v1467 = vpop.f32.mrb[0].mxu0
  %1468 = vmatprep.mubr.f32.mxu0 0.0
  %1469 = vmatmul.mubr.f32.gmra.mrb[0].mxu0 %v1342
  %v1470 = vpop.f32.mrb[0].mxu0
  %v1471 = vadd.f32 0.0, %v1470
  %v1472 = vpop.f32.mrb[0].mxu0
  %1473 = vmatprep.mubr.f32.mxu0 0.0
  %1474 = vmatmul.mubr.f32.gmra.mrb[0].mxu0 %v1345
  %v1475 = vpop.f32.mrb[0].mxu0
  %v1476 = vadd.f32 0.0, %v1475
  %v1477 = vpop.f32.mrb[0].mxu0
  %1478 = vmatprep.mubr.f32.mxu0 0.0
  %1479 = vmatmul.mubr.f32.gmra.mrb[0].mxu0 %v1348
  %v1480 = vpop.f32.mrb[0].mxu0
  %v1481 = vadd.f32 0.0, %v1480
  %v1482 = vpop.f32.mrb[0].mxu0
  %1483 = vdwg.mxu0
  %vm1484 = vcmp.ge.s32.totalorder %v203, 12
  %vm1485 = vcmp.ge.s32.totalorder %v204, 12
  %vm1486 = vcmp.ge.s32.totalorder %v205, 12
  %vm1487 = vcmp.ge.s32.totalorder %v206, 12
  %vm1488 = vcmp.ge.s32.totalorder %v207, 12
  %vm1489 = vcmp.ge.s32.totalorder %v208, 12
  %vm1490 = vcmp.ge.s32.totalorder %v209, 12
  %vm1491 = vcmp.ge.s32.totalorder %v210, 12
  %vm1492 = vcmp.ge.s32.totalorder %v211, 12
  %vm1493 = vcmp.ge.s32.totalorder %v212, 12
  %vm1494 = vcmp.ge.s32.totalorder %v213, 12
  %vm1495 = vcmp.ge.s32.totalorder %v214, 12
  %v1496 = vsel %vm1484, 1, 0
  %v1497 = vsel %vm1485, 1, 0
  %v1498 = vsel %vm1486, 1, 0
  %v1499 = vsel %vm1487, 1, 0
  %v1500 = vsel %vm1488, 1, 0
  %v1501 = vsel %vm1489, 1, 0
  %v1502 = vsel %vm1490, 1, 0
  %v1503 = vsel %vm1491, 1, 0
  %v1504 = vsel %vm1492, 1, 0
  %v1505 = vsel %vm1493, 1, 0
  %v1506 = vsel %vm1494, 1, 0
  %v1507 = vsel %vm1495, 1, 0
  %vm1508 = vcmp.eq.s32.totalorder %v1496, %v328
  %vm1509 = vcmp.eq.s32.totalorder %v1497, %v328
  %vm1510 = vcmp.eq.s32.totalorder %v1498, %v328
  %vm1511 = vcmp.eq.s32.totalorder %v1499, %v328
  %vm1512 = vcmp.eq.s32.totalorder %v1500, %v328
  %vm1513 = vcmp.eq.s32.totalorder %v1501, %v328
  %vm1514 = vcmp.eq.s32.totalorder %v1502, %v328
  %vm1515 = vcmp.eq.s32.totalorder %v1503, %v328
  %vm1516 = vcmp.eq.s32.totalorder %v1504, %v328
  %vm1517 = vcmp.eq.s32.totalorder %v1505, %v328
  %vm1518 = vcmp.eq.s32.totalorder %v1506, %v328
  %vm1519 = vcmp.eq.s32.totalorder %v1507, %v328
  %v1520 = vsel %vm1508, %v1426, -1e+30
  %v1521 = vsel %vm1509, %v1431, -1e+30
  %v1522 = vsel %vm1510, %v1436, -1e+30
  %v1523 = vsel %vm1511, %v1441, -1e+30
  %v1524 = vsel %vm1512, %v1446, -1e+30
  %v1525 = vsel %vm1513, %v1451, -1e+30
  %v1526 = vsel %vm1514, %v1456, -1e+30
  %v1527 = vsel %vm1515, %v1461, -1e+30
  %v1528 = vsel %vm1516, %v1466, -1e+30
  %v1529 = vsel %vm1517, %v1471, -1e+30
  %v1530 = vsel %vm1518, %v1476, -1e+30
  %v1531 = vsel %vm1519, %v1481, -1e+30
  %v1532 = vsel %vm375, %v1520, -inf
  %1533 = vmax.xlane.f32.xlu0 %v1532
  %v1534 = vpop.xlane.xlu0 %1533
  %v1535 = vsel %vm375, %v1521, -inf
  %1536 = vmax.xlane.f32.xlu0 %v1535
  %v1537 = vpop.xlane.xlu0 %1536
  %v1538 = vsel %vm375, %v1522, -inf
  %1539 = vmax.xlane.f32.xlu0 %v1538
  %v1540 = vpop.xlane.xlu0 %1539
  %v1541 = vsel %vm375, %v1523, -inf
  %1542 = vmax.xlane.f32.xlu0 %v1541
  %v1543 = vpop.xlane.xlu0 %1542
  %v1544 = vsel %vm375, %v1524, -inf
  %1545 = vmax.xlane.f32.xlu0 %v1544
  %v1546 = vpop.xlane.xlu0 %1545
  %v1547 = vsel %vm375, %v1525, -inf
  %1548 = vmax.xlane.f32.xlu0 %v1547
  %v1549 = vpop.xlane.xlu0 %1548
  %v1550 = vsel %vm375, %v1526, -inf
  %1551 = vmax.xlane.f32.xlu0 %v1550
  %v1552 = vpop.xlane.xlu0 %1551
  %v1553 = vsel %vm375, %v1527, -inf
  %1554 = vmax.xlane.f32.xlu0 %v1553
  %v1555 = vpop.xlane.xlu0 %1554
  %v1556 = vsel %vm375, %v1528, -inf
  %1557 = vmax.xlane.f32.xlu0 %v1556
  %v1558 = vpop.xlane.xlu0 %1557
  %v1559 = vsel %vm375, %v1529, -inf
  %1560 = vmax.xlane.f32.xlu0 %v1559
  %v1561 = vpop.xlane.xlu0 %1560
  %v1562 = vsel %vm375, %v1530, -inf
  %1563 = vmax.xlane.f32.xlu0 %v1562
  %v1564 = vpop.xlane.xlu0 %1563
  %v1565 = vsel %vm375, %v1531, -inf
  %1566 = vmax.xlane.f32.xlu0 %v1565
  %v1567 = vpop.xlane.xlu0 %1566
  %v1568 = vsub.f32 %v1520, %v1534
  %v1569 = vsub.f32 %v1521, %v1537
  %v1570 = vsub.f32 %v1522, %v1540
  %v1571 = vsub.f32 %v1523, %v1543
  %v1572 = vsub.f32 %v1524, %v1546
  %v1573 = vsub.f32 %v1525, %v1549
  %v1574 = vsub.f32 %v1526, %v1552
  %v1575 = vsub.f32 %v1527, %v1555
  %v1576 = vsub.f32 %v1528, %v1558
  %v1577 = vsub.f32 %v1529, %v1561
  %v1578 = vsub.f32 %v1530, %v1564
  %v1579 = vsub.f32 %v1531, %v1567
  %v1580 = vmul.f32 %v1568, 1.442695
  %v1581 = vpow.pop %v1580
  %v1582 = vmul.f32 %v1569, 1.442695
  %v1583 = vpow.pop %v1582
  %v1584 = vmul.f32 %v1570, 1.442695
  %v1585 = vpow.pop %v1584
  %v1586 = vmul.f32 %v1571, 1.442695
  %v1587 = vpow.pop %v1586
  %v1588 = vmul.f32 %v1572, 1.442695
  %v1589 = vpow.pop %v1588
  %v1590 = vmul.f32 %v1573, 1.442695
  %v1591 = vpow.pop %v1590
  %v1592 = vmul.f32 %v1574, 1.442695
  %v1593 = vpow.pop %v1592
  %v1594 = vmul.f32 %v1575, 1.442695
  %v1595 = vpow.pop %v1594
  %v1596 = vmul.f32 %v1576, 1.442695
  %v1597 = vpow.pop %v1596
  %v1598 = vmul.f32 %v1577, 1.442695
  %v1599 = vpow.pop %v1598
  %v1600 = vmul.f32 %v1578, 1.442695
  %v1601 = vpow.pop %v1600
  %v1602 = vmul.f32 %v1579, 1.442695
  %v1603 = vpow.pop %v1602
  %v1604 = vsel %vm375, %v1581, 0.0
  %1605 = vadd.xlane.f32.xlu0 %v1604
  %v1606 = vpop.xlane.xlu0 %1605
  %v1607 = vsel %vm375, %v1583, 0.0
  %1608 = vadd.xlane.f32.xlu0 %v1607
  %v1609 = vpop.xlane.xlu0 %1608
  %v1610 = vsel %vm375, %v1585, 0.0
  %1611 = vadd.xlane.f32.xlu0 %v1610
  %v1612 = vpop.xlane.xlu0 %1611
  %v1613 = vsel %vm375, %v1587, 0.0
  %1614 = vadd.xlane.f32.xlu0 %v1613
  %v1615 = vpop.xlane.xlu0 %1614
  %v1616 = vsel %vm375, %v1589, 0.0
  %1617 = vadd.xlane.f32.xlu0 %v1616
  %v1618 = vpop.xlane.xlu0 %1617
  %v1619 = vsel %vm375, %v1591, 0.0
  %1620 = vadd.xlane.f32.xlu0 %v1619
  %v1621 = vpop.xlane.xlu0 %1620
  %v1622 = vsel %vm375, %v1593, 0.0
  %1623 = vadd.xlane.f32.xlu0 %v1622
  %v1624 = vpop.xlane.xlu0 %1623
  %v1625 = vsel %vm375, %v1595, 0.0
  %1626 = vadd.xlane.f32.xlu0 %v1625
  %v1627 = vpop.xlane.xlu0 %1626
  %v1628 = vsel %vm375, %v1597, 0.0
  %1629 = vadd.xlane.f32.xlu0 %v1628
  %v1630 = vpop.xlane.xlu0 %1629
  %v1631 = vsel %vm375, %v1599, 0.0
  %1632 = vadd.xlane.f32.xlu0 %v1631
  %v1633 = vpop.xlane.xlu0 %1632
  %v1634 = vsel %vm375, %v1601, 0.0
  %1635 = vadd.xlane.f32.xlu0 %v1634
  %v1636 = vpop.xlane.xlu0 %1635
  %v1637 = vsel %vm375, %v1603, 0.0
  %1638 = vadd.xlane.f32.xlu0 %v1637
  %v1639 = vpop.xlane.xlu0 %1638
  %v1640 = vrcp.pop %v1606
  %v1641 = vmul.f32 %v1581, %v1640
  %v1642 = vrcp.pop %v1609
  %v1643 = vmul.f32 %v1583, %v1642
  %v1644 = vrcp.pop %v1612
  %v1645 = vmul.f32 %v1585, %v1644
  %v1646 = vrcp.pop %v1615
  %v1647 = vmul.f32 %v1587, %v1646
  %v1648 = vrcp.pop %v1618
  %v1649 = vmul.f32 %v1589, %v1648
  %v1650 = vrcp.pop %v1621
  %v1651 = vmul.f32 %v1591, %v1650
  %v1652 = vrcp.pop %v1624
  %v1653 = vmul.f32 %v1593, %v1652
  %v1654 = vrcp.pop %v1627
  %v1655 = vmul.f32 %v1595, %v1654
  %v1656 = vrcp.pop %v1630
  %v1657 = vmul.f32 %v1597, %v1656
  %v1658 = vrcp.pop %v1633
  %v1659 = vmul.f32 %v1599, %v1658
  %v1660 = vrcp.pop %v1636
  %v1661 = vmul.f32 %v1601, %v1660
  %v1662 = vrcp.pop %v1639
  %v1663 = vmul.f32 %v1603, %v1662
  %v1665 = vsel %vm375, %v1641, 0
  %v1668 = vsel %vm375, %v1643, 0
  %v1671 = vsel %vm375, %v1645, 0
  %v1674 = vsel %vm375, %v1647, 0
  %v1677 = vsel %vm375, %v1649, 0
  %v1680 = vsel %vm375, %v1651, 0
  %v1683 = vsel %vm375, %v1653, 0
  %v1686 = vsel %vm375, %v1655, 0
  %v1689 = vsel %vm375, %v1657, 0
  %v1692 = vsel %vm375, %v1659, 0
  %v1695 = vsel %vm375, %v1661, 0
  %v1698 = vsel %vm375, %v1663, 0
  %1700 = vmatprep.subr.mxu0 0.0
  %1701 = vmatpush1.msra.mxu0 %v1128
  %1702 = vmatprep.subr.mxu0 0.0
  %1703 = vmatpush1.msra.mxu0 %v1133
  %1704 = vmatprep.subr.mxu0 0.0
  %1705 = vmatpush1.msra.mxu0 %v1138
  %1706 = vmatprep.subr.mxu0 0.0
  %1707 = vmatpush1.msra.mxu0 0.0
  %1708 = vmatprep.subr.mxu0 0.0
  %1709 = vmatpush1.msra.mxu0 0.0
  %1710 = vmatprep.subr.mxu0 0.0
  %1711 = vmatpush1.msra.mxu0 0.0
  %1712 = vmatprep.subr.mxu0 0.0
  %1713 = vmatpush1.msra.mxu0 0.0
  %1714 = vmatprep.subr.mxu0 0.0
  %1715 = vmatpush1.msra.mxu0 0.0
  %1716 = vmatprep.subr.mxu0 0.0
  %1717 = vmatpush1.msra.mxu0 0.0
  %1718 = vmatprep.subr.mxu0 0.0
  %1719 = vmatpush1.msra.mxu0 0.0
  %1720 = vmatprep.subr.mxu0 0.0
  %1721 = vmatpush1.msra.mxu0 0.0
  %1722 = vmatprep.subr.mxu0 0.0
  %1723 = vmatpush1.msra.mxu0 0.0
  %1724 = vmatprep.subr.mxu0 0.0
  %1725 = vmatpush1.msra.mxu0 0.0
  %1726 = vmatprep.subr.mxu0 0.0
  %1727 = vmatpush1.msra.mxu0 0.0
  %1728 = vmatprep.subr.mxu0 0.0
  %1729 = vmatpush1.msra.mxu0 0.0
  %1730 = vmatprep.subr.mxu0 0.0
  %1731 = vmatpush1.msra.mxu0 0.0
  %1732 = vmatprep.subr.mxu0 0.0
  %1733 = vmatpush1.msra.mxu0 0.0
  %1734 = vmatprep.subr.mxu0 0.0
  %1735 = vmatpush1.msra.mxu0 0.0
  %1736 = vmatprep.subr.mxu0 0.0
  %1737 = vmatpush1.msra.mxu0 0.0
  %1738 = vmatprep.subr.mxu0 0.0
  %1739 = vmatpush1.msra.mxu0 0.0
  %1740 = vmatprep.subr.mxu0 0.0
  %1741 = vmatpush1.msra.mxu0 0.0
  %1742 = vmatprep.subr.mxu0 0.0
  %1743 = vmatpush1.msra.mxu0 0.0
  %1744 = vmatprep.subr.mxu0 0.0
  %1745 = vmatpush1.msra.mxu0 0.0
  %1746 = vmatprep.subr.mxu0 0.0
  %1747 = vmatpush1.msra.mxu0 0.0
  %1748 = vmatprep.subr.mxu0 0.0
  %1749 = vmatpush1.msra.mxu0 0.0
  %1750 = vmatprep.subr.mxu0 0.0
  %1751 = vmatpush1.msra.mxu0 0.0
  %1752 = vmatprep.subr.mxu0 0.0
  %1753 = vmatpush1.msra.mxu0 0.0
  %1754 = vmatprep.subr.mxu0 0.0
  %1755 = vmatpush1.msra.mxu0 0.0
  %1756 = vmatprep.subr.mxu0 0.0
  %1757 = vmatpush1.msra.mxu0 0.0
  %1758 = vmatprep.subr.mxu0 0.0
  %1759 = vmatpush1.msra.mxu0 0.0
  %1760 = vmatprep.subr.mxu0 0.0
  %1761 = vmatpush1.msra.mxu0 0.0
  %1762 = vmatprep.subr.mxu0 0.0
  %1763 = vmatpush1.msra.mxu0 0.0
  %1764 = vmatprep.mubr.f32.mxu0 0.0
  %1765 = vmatmul.mubr.f32.gmra.mrb[0].mxu0 %v1665
  %v1766 = vpop.f32.mrb[0].mxu0
  %v1767 = vadd.f32 0.0, %v1766
  %v1768 = vpop.f32.mrb[0].mxu0
  %1769 = vmatprep.mubr.f32.mxu0 0.0
  %1770 = vmatmul.mubr.f32.gmra.mrb[0].mxu0 %v1668
  %v1771 = vpop.f32.mrb[0].mxu0
  %v1772 = vadd.f32 0.0, %v1771
  %v1773 = vpop.f32.mrb[0].mxu0
  %1774 = vmatprep.mubr.f32.mxu0 0.0
  %1775 = vmatmul.mubr.f32.gmra.mrb[0].mxu0 %v1671
  %v1776 = vpop.f32.mrb[0].mxu0
  %v1777 = vadd.f32 0.0, %v1776
  %v1778 = vpop.f32.mrb[0].mxu0
  %1779 = vmatprep.mubr.f32.mxu0 0.0
  %1780 = vmatmul.mubr.f32.gmra.mrb[0].mxu0 %v1674
  %v1781 = vpop.f32.mrb[0].mxu0
  %v1782 = vadd.f32 0.0, %v1781
  %v1783 = vpop.f32.mrb[0].mxu0
  %1784 = vmatprep.mubr.f32.mxu0 0.0
  %1785 = vmatmul.mubr.f32.gmra.mrb[0].mxu0 %v1677
  %v1786 = vpop.f32.mrb[0].mxu0
  %v1787 = vadd.f32 0.0, %v1786
  %v1788 = vpop.f32.mrb[0].mxu0
  %1789 = vmatprep.mubr.f32.mxu0 0.0
  %1790 = vmatmul.mubr.f32.gmra.mrb[0].mxu0 %v1680
  %v1791 = vpop.f32.mrb[0].mxu0
  %v1792 = vadd.f32 0.0, %v1791
  %v1793 = vpop.f32.mrb[0].mxu0
  %1794 = vmatprep.mubr.f32.mxu0 0.0
  %1795 = vmatmul.mubr.f32.gmra.mrb[0].mxu0 %v1683
  %v1796 = vpop.f32.mrb[0].mxu0
  %v1797 = vadd.f32 0.0, %v1796
  %v1798 = vpop.f32.mrb[0].mxu0
  %1799 = vmatprep.mubr.f32.mxu0 0.0
  %1800 = vmatmul.mubr.f32.gmra.mrb[0].mxu0 %v1686
  %v1801 = vpop.f32.mrb[0].mxu0
  %v1802 = vadd.f32 0.0, %v1801
  %v1803 = vpop.f32.mrb[0].mxu0
  %1804 = vmatprep.mubr.f32.mxu0 0.0
  %1805 = vmatmul.mubr.f32.gmra.mrb[0].mxu0 %v1689
  %v1806 = vpop.f32.mrb[0].mxu0
  %v1807 = vadd.f32 0.0, %v1806
  %v1808 = vpop.f32.mrb[0].mxu0
  %1809 = vmatprep.mubr.f32.mxu0 0.0
  %1810 = vmatmul.mubr.f32.gmra.mrb[0].mxu0 %v1692
  %v1811 = vpop.f32.mrb[0].mxu0
  %v1812 = vadd.f32 0.0, %v1811
  %v1813 = vpop.f32.mrb[0].mxu0
  %1814 = vmatprep.mubr.f32.mxu0 0.0
  %1815 = vmatmul.mubr.f32.gmra.mrb[0].mxu0 %v1695
  %v1816 = vpop.f32.mrb[0].mxu0
  %v1817 = vadd.f32 0.0, %v1816
  %v1818 = vpop.f32.mrb[0].mxu0
  %1819 = vmatprep.mubr.f32.mxu0 0.0
  %1820 = vmatmul.mubr.f32.gmra.mrb[0].mxu0 %v1698
  %v1821 = vpop.f32.mrb[0].mxu0
  %v1822 = vadd.f32 0.0, %v1821
  %v1823 = vpop.f32.mrb[0].mxu0
  %1824 = vdwg.mxu0
  %v1825 = vsel %vm261, %v1767, 0.0
  %v1826 = vsel %vm262, %v1772, 0.0
  %v1827 = vsel %vm263, %v1777, 0.0
  %v1828 = vsel %vm264, %v1782, 0.0
  %v1829 = vsel %vm265, %v1787, 0.0
  %v1830 = vsel %vm266, %v1792, 0.0
  %v1831 = vsel %vm267, %v1797, 0.0
  %v1832 = vsel %vm268, %v1802, 0.0
  %v1833 = vsel %vm269, %v1807, 0.0
  %v1834 = vsel %vm270, %v1812, 0.0
  %v1835 = vsel %vm271, %v1817, 0.0
  %v1836 = vsel %vm272, %v1822, 0.0
  %vm1837 = vcmask 785408
  %v1839 = vsel %vm1837, %v252, 0
  %v1842 = vsel %vm1837, %v253, 0
  %v1845 = vsel %vm1837, %v254, 0
  %1847 = vmatprep.subr.mxu0 0.0
  %1848 = vmatpush1.msra.mxu0 %v1825
  %1849 = vmatprep.subr.mxu0 0.0
  %1850 = vmatpush1.msra.mxu0 %v1826
  %1851 = vmatprep.subr.mxu0 0.0
  %1852 = vmatpush1.msra.mxu0 %v1827
  %1853 = vmatprep.subr.mxu0 0.0
  %1854 = vmatpush1.msra.mxu0 %v1828
  %1855 = vmatprep.subr.mxu0 0.0
  %1856 = vmatpush1.msra.mxu0 %v1829
  %1857 = vmatprep.subr.mxu0 0.0
  %1858 = vmatpush1.msra.mxu0 %v1830
  %1859 = vmatprep.subr.mxu0 0.0
  %1860 = vmatpush1.msra.mxu0 %v1831
  %1861 = vmatprep.subr.mxu0 0.0
  %1862 = vmatpush1.msra.mxu0 %v1832
  %1863 = vmatprep.subr.mxu0 0.0
  %1864 = vmatpush1.msra.mxu0 %v1833
  %1865 = vmatprep.subr.mxu0 0.0
  %1866 = vmatpush1.msra.mxu0 %v1834
  %1867 = vmatprep.subr.mxu0 0.0
  %1868 = vmatpush1.msra.mxu0 %v1835
  %1869 = vmatprep.subr.mxu0 0.0
  %1870 = vmatpush1.msra.mxu0 %v1836
  %1871 = vmatprep.subr.mxu0 0.0
  %1872 = vmatpush1.msra.mxu0 0.0
  %1873 = vmatprep.subr.mxu0 0.0
  %1874 = vmatpush1.msra.mxu0 0.0
  %1875 = vmatprep.subr.mxu0 0.0
  %1876 = vmatpush1.msra.mxu0 0.0
  %1877 = vmatprep.subr.mxu0 0.0
  %1878 = vmatpush1.msra.mxu0 0.0
  %1879 = vmatprep.subr.mxu0 0.0
  %1880 = vmatpush1.msra.mxu0 0.0
  %1881 = vmatprep.subr.mxu0 0.0
  %1882 = vmatpush1.msra.mxu0 0.0
  %1883 = vmatprep.subr.mxu0 0.0
  %1884 = vmatpush1.msra.mxu0 0.0
  %1885 = vmatprep.subr.mxu0 0.0
  %1886 = vmatpush1.msra.mxu0 0.0
  %1887 = vmatprep.subr.mxu0 0.0
  %1888 = vmatpush1.msra.mxu0 0.0
  %1889 = vmatprep.subr.mxu0 0.0
  %1890 = vmatpush1.msra.mxu0 0.0
  %1891 = vmatprep.subr.mxu0 0.0
  %1892 = vmatpush1.msra.mxu0 0.0
  %1893 = vmatprep.subr.mxu0 0.0
  %1894 = vmatpush1.msra.mxu0 0.0
  %1895 = vmatprep.subr.mxu0 0.0
  %1896 = vmatpush1.msra.mxu0 0.0
  %1897 = vmatprep.subr.mxu0 0.0
  %1898 = vmatpush1.msra.mxu0 0.0
  %1899 = vmatprep.subr.mxu0 0.0
  %1900 = vmatpush1.msra.mxu0 0.0
  %1901 = vmatprep.subr.mxu0 0.0
  %1902 = vmatpush1.msra.mxu0 0.0
  %1903 = vmatprep.subr.mxu0 0.0
  %1904 = vmatpush1.msra.mxu0 0.0
  %1905 = vmatprep.subr.mxu0 0.0
  %1906 = vmatpush1.msra.mxu0 0.0
  %1907 = vmatprep.subr.mxu0 0.0
  %1908 = vmatpush1.msra.mxu0 0.0
  %1909 = vmatprep.subr.mxu0 0.0
  %1910 = vmatpush1.msra.mxu0 0.0
  %1911 = vmatprep.mubr.f32.mxu0 0.0
  %1912 = vmatmul.mubr.f32.gmra.mrb[0].mxu0 %v1839
  %v1913 = vpop.f32.mrb[0].mxu0
  %v1914 = vadd.f32 0.0, %v1913
  %v1915 = vpop.f32.mrb[0].mxu0
  %1916 = vmatprep.mubr.f32.mxu0 0.0
  %1917 = vmatmul.mubr.f32.gmra.mrb[0].mxu0 %v1842
  %v1918 = vpop.f32.mrb[0].mxu0
  %v1919 = vadd.f32 0.0, %v1918
  %v1920 = vpop.f32.mrb[0].mxu0
  %1921 = vmatprep.mubr.f32.mxu0 0.0
  %1922 = vmatmul.mubr.f32.gmra.mrb[0].mxu0 %v1845
  %v1923 = vpop.f32.mrb[0].mxu0
  %v1924 = vadd.f32 0.0, %v1923
  %v1925 = vpop.f32.mrb[0].mxu0
  %1926 = vdwg.mxu0
  %v1927 = vlaneseq
  %v1928 = vshrl.u32 %v1927, 7
  %v1929 = vsub.s32 0, %v1928
  %v1930 = vrot.slane %v877, %v1929
  %v1932 = vsel %vm554, %v1914, 0
  %v1935 = vsel %vm554, %v1919, 0
  %v1938 = vsel %vm554, %v1924, 0
  %1940 = vmatprep.subr.mxu0 0.0
  %1941 = vmatpush1.msra.mxu0 %v866
  %1942 = vmatprep.subr.mxu0 0.0
  %1943 = vmatpush1.msra.mxu0 %v867
  %1944 = vmatprep.subr.mxu0 0.0
  %1945 = vmatpush1.msra.mxu0 %v868
  %1946 = vmatprep.subr.mxu0 0.0
  %1947 = vmatpush1.msra.mxu0 %v869
  %1948 = vmatprep.subr.mxu0 0.0
  %1949 = vmatpush1.msra.mxu0 %v870
  %1950 = vmatprep.subr.mxu0 0.0
  %1951 = vmatpush1.msra.mxu0 %v871
  %1952 = vmatprep.subr.mxu0 0.0
  %1953 = vmatpush1.msra.mxu0 %v872
  %1954 = vmatprep.subr.mxu0 0.0
  %1955 = vmatpush1.msra.mxu0 %v873
  %1956 = vmatprep.subr.mxu0 0.0
  %1957 = vmatpush1.msra.mxu0 0.0
  %1958 = vmatprep.subr.mxu0 0.0
  %1959 = vmatpush1.msra.mxu0 0.0
  %1960 = vmatprep.subr.mxu0 0.0
  %1961 = vmatpush1.msra.mxu0 0.0
  %1962 = vmatprep.subr.mxu0 0.0
  %1963 = vmatpush1.msra.mxu0 0.0
  %1964 = vmatprep.subr.mxu0 0.0
  %1965 = vmatpush1.msra.mxu0 0.0
  %1966 = vmatprep.subr.mxu0 0.0
  %1967 = vmatpush1.msra.mxu0 0.0
  %1968 = vmatprep.subr.mxu0 0.0
  %1969 = vmatpush1.msra.mxu0 0.0
  %1970 = vmatprep.subr.mxu0 0.0
  %1971 = vmatpush1.msra.mxu0 0.0
  %1972 = vmatprep.subr.mxu0 0.0
  %1973 = vmatpush1.msra.mxu0 0.0
  %1974 = vmatprep.subr.mxu0 0.0
  %1975 = vmatpush1.msra.mxu0 0.0
  %1976 = vmatprep.subr.mxu0 0.0
  %1977 = vmatpush1.msra.mxu0 0.0
  %1978 = vmatprep.subr.mxu0 0.0
  %1979 = vmatpush1.msra.mxu0 0.0
  %1980 = vmatprep.subr.mxu0 0.0
  %1981 = vmatpush1.msra.mxu0 0.0
  %1982 = vmatprep.subr.mxu0 0.0
  %1983 = vmatpush1.msra.mxu0 0.0
  %1984 = vmatprep.subr.mxu0 0.0
  %1985 = vmatpush1.msra.mxu0 0.0
  %1986 = vmatprep.subr.mxu0 0.0
  %1987 = vmatpush1.msra.mxu0 0.0
  %1988 = vmatprep.subr.mxu0 0.0
  %1989 = vmatpush1.msra.mxu0 0.0
  %1990 = vmatprep.subr.mxu0 0.0
  %1991 = vmatpush1.msra.mxu0 0.0
  %1992 = vmatprep.subr.mxu0 0.0
  %1993 = vmatpush1.msra.mxu0 0.0
  %1994 = vmatprep.subr.mxu0 0.0
  %1995 = vmatpush1.msra.mxu0 0.0
  %1996 = vmatprep.subr.mxu0 0.0
  %1997 = vmatpush1.msra.mxu0 0.0
  %1998 = vmatprep.subr.mxu0 0.0
  %1999 = vmatpush1.msra.mxu0 0.0
  %2000 = vmatprep.subr.mxu0 0.0
  %2001 = vmatpush1.msra.mxu0 0.0
  %2002 = vmatprep.subr.mxu0 0.0
  %2003 = vmatpush1.msra.mxu0 0.0
  %2004 = vmatprep.mubr.f32.mxu0 0.0
  %2005 = vmatmul.mubr.f32.gmra.mrb[0].mxu0 %v1932
  %v2006 = vpop.f32.mrb[0].mxu0
  %v2007 = vadd.f32 %v1930, %v2006
  %v2008 = vpop.f32.mrb[0].mxu0
  %2009 = vmatprep.mubr.f32.mxu0 0.0
  %2010 = vmatmul.mubr.f32.gmra.mrb[0].mxu0 %v1935
  %v2011 = vpop.f32.mrb[0].mxu0
  %v2012 = vadd.f32 %v1930, %v2011
  %v2013 = vpop.f32.mrb[0].mxu0
  %2014 = vmatprep.mubr.f32.mxu0 0.0
  %2015 = vmatmul.mubr.f32.gmra.mrb[0].mxu0 %v1938
  %v2016 = vpop.f32.mrb[0].mxu0
  %v2017 = vadd.f32 %v1930, %v2016
  %v2018 = vpop.f32.mrb[0].mxu0
  %2019 = vdwg.mxu0
  %v2020 = vadd.f32 %v835, %v2007
  %v2021 = vadd.f32 %v836, %v2012
  %v2022 = vadd.f32 %v837, %v2017
  %v2023 = vsel %vm554, %v2020, 0.0
  %2024 = vadd.xlane.f32.xlu0 %v2023
  %v2025 = vpop.xlane.xlu0 %2024
  %v2026 = vsel %vm554, %v2021, 0.0
  %2027 = vadd.xlane.f32.xlu0 %v2026
  %v2028 = vpop.xlane.xlu0 %2027
  %v2029 = vsel %vm554, %v2022, 0.0
  %2030 = vadd.xlane.f32.xlu0 %v2029
  %v2031 = vpop.xlane.xlu0 %2030
  %v2032 = vrcp.pop 64.0
  %v2033 = vmul.f32 %v2025, %v2032
  %v2034 = vmul.f32 %v2028, %v2032
  %v2035 = vmul.f32 %v2031, %v2032
  %v2036 = vsub.f32 %v2020, %v2033
  %v2037 = vsub.f32 %v2021, %v2034
  %v2038 = vsub.f32 %v2022, %v2035
  %v2039 = vmul.f32 %v2036, %v2036
  %v2040 = vmul.f32 %v2037, %v2037
  %v2041 = vmul.f32 %v2038, %v2038
  %v2042 = vsel %vm554, %v2039, 0.0
  %2043 = vadd.xlane.f32.xlu0 %v2042
  %v2044 = vpop.xlane.xlu0 %2043
  %v2045 = vsel %vm554, %v2040, 0.0
  %2046 = vadd.xlane.f32.xlu0 %v2045
  %v2047 = vpop.xlane.xlu0 %2046
  %v2048 = vsel %vm554, %v2041, 0.0
  %2049 = vadd.xlane.f32.xlu0 %v2048
  %v2050 = vpop.xlane.xlu0 %2049
  %v2051 = vmul.f32 %v2044, %v2032
  %v2052 = vmul.f32 %v2047, %v2032
  %v2053 = vmul.f32 %v2050, %v2032
  %v2054 = vadd.f32 %v2051, 1e-05
  %v2055 = vadd.f32 %v2052, 1e-05
  %v2056 = vadd.f32 %v2053, 1e-05
  %v2057 = vrsqrt.pop %v2054
  %v2058 = vrsqrt.pop %v2055
  %v2059 = vrsqrt.pop %v2056
  %v2060 = vmul.f32 %v2036, %v2057
  %v2061 = vmul.f32 %v2037, %v2058
  %v2062 = vmul.f32 %v2038, %v2059
  %v2063 = vlaneseq
  %v2064 = vshrl.u32 %v2063, 7
  %v2065 = vsub.s32 0, %v2064
  %v2066 = vrot.slane %v878, %v2065
  %v2067 = vmul.f32 %v2060, %v2066
  %v2068 = vmul.f32 %v2061, %v2066
  %v2069 = vmul.f32 %v2062, %v2066
  %v2070 = vlaneseq
  %v2071 = vshrl.u32 %v2070, 7
  %v2072 = vsub.s32 0, %v2071
  %v2073 = vrot.slane %v879, %v2072
  %v2074 = vadd.f32 %v2067, %v2073
  %v2075 = vadd.f32 %v2068, %v2073
  %v2076 = vadd.f32 %v2069, %v2073
  %s2077 = scalar_lea.vmem %s4, 448
  %v2078 = vld [vmem:[%s2077] sm:$0xff]
  %v2079 = vld [vmem:[%s2077 + $0x8] sm:$0xff]
  %v2080 = vld [vmem:[%s2077 + $0x10] sm:$0xff]
  %v2081 = vld [vmem:[%s2077 + $0x18] sm:$0xff]
  %v2082 = vld [vmem:[%s2077 + $0x20] sm:$0xff]
  %v2083 = vld [vmem:[%s2077 + $0x28] sm:$0xff]
  %v2084 = vld [vmem:[%s2077 + $0x30] sm:$0xff]
  %v2085 = vld [vmem:[%s2077 + $0x38] sm:$0xff]
  %s2086 = scalar_lea.vmem %s4, 512
  %v2087 = vld [vmem:[%s2086] sm:$0xff]
  %v2088 = vld [vmem:[%s2086 + $0x8] sm:$0xff]
  %v2089 = vld [vmem:[%s2086 + $0x10] sm:$0xff]
  %v2090 = vld [vmem:[%s2086 + $0x18] sm:$0xff]
  %v2091 = vld [vmem:[%s2086 + $0x20] sm:$0xff]
  %v2092 = vld [vmem:[%s2086 + $0x28] sm:$0xff]
  %v2093 = vld [vmem:[%s2086 + $0x30] sm:$0xff]
  %v2094 = vld [vmem:[%s2086 + $0x38] sm:$0xff]
  %v2095 = vld [vmem:[%s5 + $0x7] sm:$0x1]
  %v2096 = vld [vmem:[%s5 + $0x8] sm:$0x1]
  %v2097 = vld [vmem:[%s5 + $0x9] sm:$0x1]
  %v2098 = vld [vmem:[%s5 + $0xa] sm:$0x1]
  %v2099 = vlaneseq
  %v2100 = vshrl.u32 %v2099, 7
  %v2101 = vsub.s32 0, %v2100
  %v2102 = vrot.slane %v2095, %v2101
  %v2104 = vsel %vm554, %v2074, 0
  %v2107 = vsel %vm554, %v2075, 0
  %v2110 = vsel %vm554, %v2076, 0
  %2112 = vmatprep.subr.mxu0 0.0
  %2113 = vmatpush1.msra.mxu0 %v2078
  %2114 = vmatprep.subr.mxu0 0.0
  %2115 = vmatpush1.msra.mxu0 %v2079
  %2116 = vmatprep.subr.mxu0 0.0
  %2117 = vmatpush1.msra.mxu0 %v2080
  %2118 = vmatprep.subr.mxu0 0.0
  %2119 = vmatpush1.msra.mxu0 %v2081
  %2120 = vmatprep.subr.mxu0 0.0
  %2121 = vmatpush1.msra.mxu0 %v2082
  %2122 = vmatprep.subr.mxu0 0.0
  %2123 = vmatpush1.msra.mxu0 %v2083
  %2124 = vmatprep.subr.mxu0 0.0
  %2125 = vmatpush1.msra.mxu0 %v2084
  %2126 = vmatprep.subr.mxu0 0.0
  %2127 = vmatpush1.msra.mxu0 %v2085
  %2128 = vmatprep.subr.mxu0 0.0
  %2129 = vmatpush1.msra.mxu0 0.0
  %2130 = vmatprep.subr.mxu0 0.0
  %2131 = vmatpush1.msra.mxu0 0.0
  %2132 = vmatprep.subr.mxu0 0.0
  %2133 = vmatpush1.msra.mxu0 0.0
  %2134 = vmatprep.subr.mxu0 0.0
  %2135 = vmatpush1.msra.mxu0 0.0
  %2136 = vmatprep.subr.mxu0 0.0
  %2137 = vmatpush1.msra.mxu0 0.0
  %2138 = vmatprep.subr.mxu0 0.0
  %2139 = vmatpush1.msra.mxu0 0.0
  %2140 = vmatprep.subr.mxu0 0.0
  %2141 = vmatpush1.msra.mxu0 0.0
  %2142 = vmatprep.subr.mxu0 0.0
  %2143 = vmatpush1.msra.mxu0 0.0
  %2144 = vmatprep.subr.mxu0 0.0
  %2145 = vmatpush1.msra.mxu0 0.0
  %2146 = vmatprep.subr.mxu0 0.0
  %2147 = vmatpush1.msra.mxu0 0.0
  %2148 = vmatprep.subr.mxu0 0.0
  %2149 = vmatpush1.msra.mxu0 0.0
  %2150 = vmatprep.subr.mxu0 0.0
  %2151 = vmatpush1.msra.mxu0 0.0
  %2152 = vmatprep.subr.mxu0 0.0
  %2153 = vmatpush1.msra.mxu0 0.0
  %2154 = vmatprep.subr.mxu0 0.0
  %2155 = vmatpush1.msra.mxu0 0.0
  %2156 = vmatprep.subr.mxu0 0.0
  %2157 = vmatpush1.msra.mxu0 0.0
  %2158 = vmatprep.subr.mxu0 0.0
  %2159 = vmatpush1.msra.mxu0 0.0
  %2160 = vmatprep.subr.mxu0 0.0
  %2161 = vmatpush1.msra.mxu0 0.0
  %2162 = vmatprep.subr.mxu0 0.0
  %2163 = vmatpush1.msra.mxu0 0.0
  %2164 = vmatprep.subr.mxu0 0.0
  %2165 = vmatpush1.msra.mxu0 0.0
  %2166 = vmatprep.subr.mxu0 0.0
  %2167 = vmatpush1.msra.mxu0 0.0
  %2168 = vmatprep.subr.mxu0 0.0
  %2169 = vmatpush1.msra.mxu0 0.0
  %2170 = vmatprep.subr.mxu0 0.0
  %2171 = vmatpush1.msra.mxu0 0.0
  %2172 = vmatprep.subr.mxu0 0.0
  %2173 = vmatpush1.msra.mxu0 0.0
  %2174 = vmatprep.subr.mxu0 0.0
  %2175 = vmatpush1.msra.mxu0 0.0
  %2176 = vmatprep.mubr.f32.mxu0 0.0
  %2177 = vmatmul.mubr.f32.gmra.mrb[0].mxu0 %v2104
  %v2178 = vpop.f32.mrb[0].mxu0
  %v2179 = vadd.f32 %v2102, %v2178
  %v2180 = vpop.f32.mrb[0].mxu0
  %2181 = vmatprep.mubr.f32.mxu0 0.0
  %2182 = vmatmul.mubr.f32.gmra.mrb[0].mxu0 %v2107
  %v2183 = vpop.f32.mrb[0].mxu0
  %v2184 = vadd.f32 %v2102, %v2183
  %v2185 = vpop.f32.mrb[0].mxu0
  %2186 = vmatprep.mubr.f32.mxu0 0.0
  %2187 = vmatmul.mubr.f32.gmra.mrb[0].mxu0 %v2110
  %v2188 = vpop.f32.mrb[0].mxu0
  %v2189 = vadd.f32 %v2102, %v2188
  %v2190 = vpop.f32.mrb[0].mxu0
  %2191 = vdwg.mxu0
  %v2192 = vmul.f32 %v2179, 0.5
  %v2193 = vmul.f32 %v2184, 0.5
  %v2194 = vmul.f32 %v2189, 0.5
  %v2195 = vmul.f32 %v2179, 0.70710677
  %v2196 = vmul.f32 %v2184, 0.70710677
  %v2197 = vmul.f32 %v2189, 0.70710677
  %v2198 = vand.u32 2147483647, %v2195
  %v2199 = vand.u32 2147483647, %v2196
  %v2200 = vand.u32 2147483647, %v2197
  %v2201 = vmul.f32 %v2198, 0.3275911
  %v2202 = vmul.f32 %v2199, 0.3275911
  %v2203 = vmul.f32 %v2200, 0.3275911
  %v2204 = vadd.f32 %v2201, 1.0
  %v2205 = vadd.f32 %v2202, 1.0
  %v2206 = vadd.f32 %v2203, 1.0
  %v2207 = vrcp.pop %v2204
  %v2208 = vmul.f32 1.0, %v2207
  %v2209 = vrcp.pop %v2205
  %v2210 = vmul.f32 1.0, %v2209
  %v2211 = vrcp.pop %v2206
  %v2212 = vmul.f32 1.0, %v2211
  %v2213 = vmul.f32 %v2208, 1.0614054
  %v2214 = vmul.f32 %v2210, 1.0614054
  %v2215 = vmul.f32 %v2212, 1.0614054
  %v2216 = vadd.f32 %v2213, -1.4531521
  %v2217 = vadd.f32 %v2214, -1.4531521
  %v2218 = vadd.f32 %v2215, -1.4531521
  %v2219 = vmul.f32 %v2216, %v2208
  %v2220 = vmul.f32 %v2217, %v2210
  %v2221 = vmul.f32 %v2218, %v2212
  %v2222 = vadd.f32 %v2219, 1.4214138
  %v2223 = vadd.f32 %v2220, 1.4214138
  %v2224 = vadd.f32 %v2221, 1.4214138
  %v2225 = vmul.f32 %v2222, %v2208
  %v2226 = vmul.f32 %v2223, %v2210
  %v2227 = vmul.f32 %v2224, %v2212
  %v2228 = vadd.f32 %v2225, -0.28449672
  %v2229 = vadd.f32 %v2226, -0.28449672
  %v2230 = vadd.f32 %v2227, -0.28449672
  %v2231 = vmul.f32 %v2228, %v2208
  %v2232 = vmul.f32 %v2229, %v2210
  %v2233 = vmul.f32 %v2230, %v2212
  %v2234 = vadd.f32 %v2231, 0.2548296
  %v2235 = vadd.f32 %v2232, 0.2548296
  %v2236 = vadd.f32 %v2233, 0.2548296
  %v2237 = vmul.f32 %v2234, %v2208
  %v2238 = vmul.f32 %v2235, %v2210
  %v2239 = vmul.f32 %v2236, %v2212
  %v2240 = vmul.f32 %v2198, %v2198
  %v2241 = vmul.f32 %v2199, %v2199
  %v2242 = vmul.f32 %v2200, %v2200
  %v2243 = vsub.f32 0.0, %v2240
  %v2244 = vsub.f32 0.0, %v2241
  %v2245 = vsub.f32 0.0, %v2242
  %v2246 = vmul.f32 %v2243, 1.442695
  %v2247 = vpow.pop %v2246
  %v2248 = vmul.f32 %v2244, 1.442695
  %v2249 = vpow.pop %v2248
  %v2250 = vmul.f32 %v2245, 1.442695
  %v2251 = vpow.pop %v2250
  %v2252 = vmul.f32 %v2237, %v2247
  %v2253 = vmul.f32 %v2238, %v2249
  %v2254 = vmul.f32 %v2239, %v2251
  %v2255 = vsub.f32 1.0, %v2252
  %v2256 = vsub.f32 1.0, %v2253
  %v2257 = vsub.f32 1.0, %v2254
  %vm2258 = vcmp.ge.f32.partialorder %v2195, 0.0
  %vm2259 = vcmp.ge.f32.partialorder %v2196, 0.0
  %vm2260 = vcmp.ge.f32.partialorder %v2197, 0.0
  %v2261 = vsub.f32 0.0, %v2255
  %v2262 = vsub.f32 0.0, %v2256
  %v2263 = vsub.f32 0.0, %v2257
  %v2264 = vsel %vm2258, %v2255, %v2261
  %v2265 = vsel %vm2259, %v2256, %v2262
  %v2266 = vsel %vm2260, %v2257, %v2263
  %v2267 = vadd.f32 %v2264, 1.0
  %v2268 = vadd.f32 %v2265, 1.0
  %v2269 = vadd.f32 %v2266, 1.0
  %v2270 = vmul.f32 %v2192, %v2267
  %v2271 = vmul.f32 %v2193, %v2268
  %v2272 = vmul.f32 %v2194, %v2269
  %v2273 = vlaneseq
  %v2274 = vshrl.u32 %v2273, 7
  %v2275 = vsub.s32 0, %v2274
  %v2276 = vrot.slane %v2096, %v2275
  %v2278 = vsel %vm554, %v2270, 0
  %v2281 = vsel %vm554, %v2271, 0
  %v2284 = vsel %vm554, %v2272, 0
  %2286 = vmatprep.subr.mxu0 0.0
  %2287 = vmatpush1.msra.mxu0 %v2087
  %2288 = vmatprep.subr.mxu0 0.0
  %2289 = vmatpush1.msra.mxu0 %v2088
  %2290 = vmatprep.subr.mxu0 0.0
  %2291 = vmatpush1.msra.mxu0 %v2089
  %2292 = vmatprep.subr.mxu0 0.0
  %2293 = vmatpush1.msra.mxu0 %v2090
  %2294 = vmatprep.subr.mxu0 0.0
  %2295 = vmatpush1.msra.mxu0 %v2091
  %2296 = vmatprep.subr.mxu0 0.0
  %2297 = vmatpush1.msra.mxu0 %v2092
  %2298 = vmatprep.subr.mxu0 0.0
  %2299 = vmatpush1.msra.mxu0 %v2093
  %2300 = vmatprep.subr.mxu0 0.0
  %2301 = vmatpush1.msra.mxu0 %v2094
  %2302 = vmatprep.subr.mxu0 0.0
  %2303 = vmatpush1.msra.mxu0 0.0
  %2304 = vmatprep.subr.mxu0 0.0
  %2305 = vmatpush1.msra.mxu0 0.0
  %2306 = vmatprep.subr.mxu0 0.0
  %2307 = vmatpush1.msra.mxu0 0.0
  %2308 = vmatprep.subr.mxu0 0.0
  %2309 = vmatpush1.msra.mxu0 0.0
  %2310 = vmatprep.subr.mxu0 0.0
  %2311 = vmatpush1.msra.mxu0 0.0
  %2312 = vmatprep.subr.mxu0 0.0
  %2313 = vmatpush1.msra.mxu0 0.0
  %2314 = vmatprep.subr.mxu0 0.0
  %2315 = vmatpush1.msra.mxu0 0.0
  %2316 = vmatprep.subr.mxu0 0.0
  %2317 = vmatpush1.msra.mxu0 0.0
  %2318 = vmatprep.subr.mxu0 0.0
  %2319 = vmatpush1.msra.mxu0 0.0
  %2320 = vmatprep.subr.mxu0 0.0
  %2321 = vmatpush1.msra.mxu0 0.0
  %2322 = vmatprep.subr.mxu0 0.0
  %2323 = vmatpush1.msra.mxu0 0.0
  %2324 = vmatprep.subr.mxu0 0.0
  %2325 = vmatpush1.msra.mxu0 0.0
  %2326 = vmatprep.subr.mxu0 0.0
  %2327 = vmatpush1.msra.mxu0 0.0
  %2328 = vmatprep.subr.mxu0 0.0
  %2329 = vmatpush1.msra.mxu0 0.0
  %2330 = vmatprep.subr.mxu0 0.0
  %2331 = vmatpush1.msra.mxu0 0.0
  %2332 = vmatprep.subr.mxu0 0.0
  %2333 = vmatpush1.msra.mxu0 0.0
  %2334 = vmatprep.subr.mxu0 0.0
  %2335 = vmatpush1.msra.mxu0 0.0
  %2336 = vmatprep.subr.mxu0 0.0
  %2337 = vmatpush1.msra.mxu0 0.0
  %2338 = vmatprep.subr.mxu0 0.0
  %2339 = vmatpush1.msra.mxu0 0.0
  %2340 = vmatprep.subr.mxu0 0.0
  %2341 = vmatpush1.msra.mxu0 0.0
  %2342 = vmatprep.subr.mxu0 0.0
  %2343 = vmatpush1.msra.mxu0 0.0
  %2344 = vmatprep.subr.mxu0 0.0
  %2345 = vmatpush1.msra.mxu0 0.0
  %2346 = vmatprep.subr.mxu0 0.0
  %2347 = vmatpush1.msra.mxu0 0.0
  %2348 = vmatprep.subr.mxu0 0.0
  %2349 = vmatpush1.msra.mxu0 0.0
  %2350 = vmatprep.mubr.f32.mxu0 0.0
  %2351 = vmatmul.mubr.f32.gmra.mrb[0].mxu0 %v2278
  %v2352 = vpop.f32.mrb[0].mxu0
  %v2353 = vadd.f32 %v2276, %v2352
  %v2354 = vpop.f32.mrb[0].mxu0
  %2355 = vmatprep.mubr.f32.mxu0 0.0
  %2356 = vmatmul.mubr.f32.gmra.mrb[0].mxu0 %v2281
  %v2357 = vpop.f32.mrb[0].mxu0
  %v2358 = vadd.f32 %v2276, %v2357
  %v2359 = vpop.f32.mrb[0].mxu0
  %2360 = vmatprep.mubr.f32.mxu0 0.0
  %2361 = vmatmul.mubr.f32.gmra.mrb[0].mxu0 %v2284
  %v2362 = vpop.f32.mrb[0].mxu0
  %v2363 = vadd.f32 %v2276, %v2362
  %v2364 = vpop.f32.mrb[0].mxu0
  %2365 = vdwg.mxu0
  %v2366 = vadd.f32 %v2074, %v2353
  %v2367 = vadd.f32 %v2075, %v2358
  %v2368 = vadd.f32 %v2076, %v2363
  %v2369 = vsel %vm554, %v2366, 0.0
  %2370 = vadd.xlane.f32.xlu0 %v2369
  %v2371 = vpop.xlane.xlu0 %2370
  %v2372 = vsel %vm554, %v2367, 0.0
  %2373 = vadd.xlane.f32.xlu0 %v2372
  %v2374 = vpop.xlane.xlu0 %2373
  %v2375 = vsel %vm554, %v2368, 0.0
  %2376 = vadd.xlane.f32.xlu0 %v2375
  %v2377 = vpop.xlane.xlu0 %2376
  %v2378 = vmul.f32 %v2371, %v2032
  %v2379 = vmul.f32 %v2374, %v2032
  %v2380 = vmul.f32 %v2377, %v2032
  %v2381 = vsub.f32 %v2366, %v2378
  %v2382 = vsub.f32 %v2367, %v2379
  %v2383 = vsub.f32 %v2368, %v2380
  %v2384 = vmul.f32 %v2381, %v2381
  %v2385 = vmul.f32 %v2382, %v2382
  %v2386 = vmul.f32 %v2383, %v2383
  %v2387 = vsel %vm554, %v2384, 0.0
  %2388 = vadd.xlane.f32.xlu0 %v2387
  %v2389 = vpop.xlane.xlu0 %2388
  %v2390 = vsel %vm554, %v2385, 0.0
  %2391 = vadd.xlane.f32.xlu0 %v2390
  %v2392 = vpop.xlane.xlu0 %2391
  %v2393 = vsel %vm554, %v2386, 0.0
  %2394 = vadd.xlane.f32.xlu0 %v2393
  %v2395 = vpop.xlane.xlu0 %2394
  %v2396 = vmul.f32 %v2389, %v2032
  %v2397 = vmul.f32 %v2392, %v2032
  %v2398 = vmul.f32 %v2395, %v2032
  %v2399 = vadd.f32 %v2396, 1e-05
  %v2400 = vadd.f32 %v2397, 1e-05
  %v2401 = vadd.f32 %v2398, 1e-05
  %v2402 = vrsqrt.pop %v2399
  %v2403 = vrsqrt.pop %v2400
  %v2404 = vrsqrt.pop %v2401
  %v2405 = vmul.f32 %v2381, %v2402
  %v2406 = vmul.f32 %v2382, %v2403
  %v2407 = vmul.f32 %v2383, %v2404
  %v2408 = vlaneseq
  %v2409 = vshrl.u32 %v2408, 7
  %v2410 = vsub.s32 0, %v2409
  %v2411 = vrot.slane %v2097, %v2410
  %v2412 = vmul.f32 %v2405, %v2411
  %v2413 = vmul.f32 %v2406, %v2411
  %v2414 = vmul.f32 %v2407, %v2411
  %v2415 = vlaneseq
  %v2416 = vshrl.u32 %v2415, 7
  %v2417 = vsub.s32 0, %v2416
  %v2418 = vrot.slane %v2098, %v2417
  %v2419 = vadd.f32 %v2412, %v2418
  %v2420 = vadd.f32 %v2413, %v2418
  %v2421 = vadd.f32 %v2414, %v2418
  %s2422 = scalar_lea.vmem %s4, 576
  %v2423 = vld [vmem:[%s2422] sm:$0xff]
  %v2424 = vld [vmem:[%s2422 + $0x8] sm:$0xff]
  %v2425 = vld [vmem:[%s2422 + $0x10] sm:$0xff]
  %v2426 = vld [vmem:[%s2422 + $0x18] sm:$0xff]
  %v2427 = vld [vmem:[%s2422 + $0x20] sm:$0xff]
  %v2428 = vld [vmem:[%s2422 + $0x28] sm:$0xff]
  %v2429 = vld [vmem:[%s2422 + $0x30] sm:$0xff]
  %v2430 = vld [vmem:[%s2422 + $0x38] sm:$0xff]
  %s2431 = scalar_lea.vmem %s4, 640
  %v2432 = vld [vmem:[%s2431] sm:$0xff]
  %v2433 = vld [vmem:[%s2431 + $0x8] sm:$0xff]
  %v2434 = vld [vmem:[%s2431 + $0x10] sm:$0xff]
  %v2435 = vld [vmem:[%s2431 + $0x18] sm:$0xff]
  %v2436 = vld [vmem:[%s2431 + $0x20] sm:$0xff]
  %v2437 = vld [vmem:[%s2431 + $0x28] sm:$0xff]
  %v2438 = vld [vmem:[%s2431 + $0x30] sm:$0xff]
  %v2439 = vld [vmem:[%s2431 + $0x38] sm:$0xff]
  %s2440 = scalar_lea.vmem %s4, 704
  %v2441 = vld [vmem:[%s2440] sm:$0xff]
  %v2442 = vld [vmem:[%s2440 + $0x8] sm:$0xff]
  %v2443 = vld [vmem:[%s2440 + $0x10] sm:$0xff]
  %v2444 = vld [vmem:[%s2440 + $0x18] sm:$0xff]
  %v2445 = vld [vmem:[%s2440 + $0x20] sm:$0xff]
  %v2446 = vld [vmem:[%s2440 + $0x28] sm:$0xff]
  %v2447 = vld [vmem:[%s2440 + $0x30] sm:$0xff]
  %v2448 = vld [vmem:[%s2440 + $0x38] sm:$0xff]
  %v2449 = vld [vmem:[%s5 + $0xb] sm:$0x1]
  %v2450 = vld [vmem:[%s5 + $0xc] sm:$0x1]
  %v2451 = vld [vmem:[%s5 + $0xd] sm:$0x1]
  %2452 = vmatprep.subr.mxu0 0.0
  %2453 = vmatpush1.msra.mxu0 %v2419
  %2454 = vmatprep.subr.mxu0 0.0
  %2455 = vmatpush1.msra.mxu0 %v2420
  %2456 = vmatprep.subr.mxu0 0.0
  %2457 = vmatpush1.msra.mxu0 %v2421
  %2458 = vmatprep.subr.mxu0 0.0
  %2459 = vmatpush1.msra.mxu0 0.0
  %2460 = vmatprep.subr.mxu0 0.0
  %2461 = vmatpush1.msra.mxu0 0.0
  %2462 = vmatprep.subr.mxu0 0.0
  %2463 = vmatpush1.msra.mxu0 0.0
  %2464 = vmatprep.subr.mxu0 0.0
  %2465 = vmatpush1.msra.mxu0 0.0
  %2466 = vmatprep.subr.mxu0 0.0
  %2467 = vmatpush1.msra.mxu0 0.0
  %2468 = vmatprep.subr.mxu0 0.0
  %2469 = vmatpush1.msra.mxu0 0.0
  %2470 = vmatprep.subr.mxu0 0.0
  %2471 = vmatpush1.msra.mxu0 0.0
  %2472 = vmatprep.subr.mxu0 0.0
  %2473 = vmatpush1.msra.mxu0 0.0
  %2474 = vmatprep.subr.mxu0 0.0
  %2475 = vmatpush1.msra.mxu0 0.0
  %2476 = vmatprep.subr.mxu0 0.0
  %2477 = vmatpush1.msra.mxu0 0.0
  %2478 = vmatprep.subr.mxu0 0.0
  %2479 = vmatpush1.msra.mxu0 0.0
  %2480 = vmatprep.subr.mxu0 0.0
  %2481 = vmatpush1.msra.mxu0 0.0
  %2482 = vmatprep.subr.mxu0 0.0
  %2483 = vmatpush1.msra.mxu0 0.0
  %2484 = vmatprep.subr.mxu0 0.0
  %2485 = vmatpush1.msra.mxu0 0.0
  %2486 = vmatprep.subr.mxu0 0.0
  %2487 = vmatpush1.msra.mxu0 0.0
  %2488 = vmatprep.subr.mxu0 0.0
  %2489 = vmatpush1.msra.mxu0 0.0
  %2490 = vmatprep.subr.mxu0 0.0
  %2491 = vmatpush1.msra.mxu0 0.0
  %2492 = vmatprep.subr.mxu0 0.0
  %2493 = vmatpush1.msra.mxu0 0.0
  %2494 = vmatprep.subr.mxu0 0.0
  %2495 = vmatpush1.msra.mxu0 0.0
  %2496 = vmatprep.subr.mxu0 0.0
  %2497 = vmatpush1.msra.mxu0 0.0
  %2498 = vmatprep.subr.mxu0 0.0
  %2499 = vmatpush1.msra.mxu0 0.0
  %2500 = vmatprep.subr.mxu0 0.0
  %2501 = vmatpush1.msra.mxu0 0.0
  %2502 = vmatprep.subr.mxu0 0.0
  %2503 = vmatpush1.msra.mxu0 0.0
  %2504 = vmatprep.subr.mxu0 0.0
  %2505 = vmatpush1.msra.mxu0 0.0
  %2506 = vmatprep.subr.mxu0 0.0
  %2507 = vmatpush1.msra.mxu0 0.0
  %2508 = vmatprep.subr.mxu0 0.0
  %2509 = vmatpush1.msra.mxu0 0.0
  %2510 = vmatprep.subr.mxu0 0.0
  %2511 = vmatpush1.msra.mxu0 0.0
  %2512 = vmatprep.subr.mxu0 0.0
  %2513 = vmatpush1.msra.mxu0 0.0
  %2514 = vmatprep.subr.mxu0 0.0
  %2515 = vmatpush1.msra.mxu0 0.0
  %2516 = vmatprep.mubr.f32.mxu0 0.0
  %2517 = vmatmul.mubr.f32.gmra.mrb[0].mxu0 %v377
  %v2518 = vpop.f32.mrb[0].mxu0
  %v2519 = vadd.f32 0.0, %v2518
  %v2520 = vpop.f32.mrb[0].mxu0
  %2521 = vmatprep.mubr.f32.mxu0 0.0
  %2522 = vmatmul.mubr.f32.gmra.mrb[0].mxu0 %v380
  %v2523 = vpop.f32.mrb[0].mxu0
  %v2524 = vadd.f32 0.0, %v2523
  %v2525 = vpop.f32.mrb[0].mxu0
  %2526 = vmatprep.mubr.f32.mxu0 0.0
  %2527 = vmatmul.mubr.f32.gmra.mrb[0].mxu0 %v383
  %v2528 = vpop.f32.mrb[0].mxu0
  %v2529 = vadd.f32 0.0, %v2528
  %v2530 = vpop.f32.mrb[0].mxu0
  %2531 = vdwg.mxu0
  %2532 = vmatprep.subr.mxu0 0.0
  %2533 = vmatpush1.msra.mxu0 %v2419
  %2534 = vmatprep.subr.mxu0 0.0
  %2535 = vmatpush1.msra.mxu0 %v2420
  %2536 = vmatprep.subr.mxu0 0.0
  %2537 = vmatpush1.msra.mxu0 %v2421
  %2538 = vmatprep.subr.mxu0 0.0
  %2539 = vmatpush1.msra.mxu0 0.0
  %2540 = vmatprep.subr.mxu0 0.0
  %2541 = vmatpush1.msra.mxu0 0.0
  %2542 = vmatprep.subr.mxu0 0.0
  %2543 = vmatpush1.msra.mxu0 0.0
  %2544 = vmatprep.subr.mxu0 0.0
  %2545 = vmatpush1.msra.mxu0 0.0
  %2546 = vmatprep.subr.mxu0 0.0
  %2547 = vmatpush1.msra.mxu0 0.0
  %2548 = vmatprep.subr.mxu0 0.0
  %2549 = vmatpush1.msra.mxu0 0.0
  %2550 = vmatprep.subr.mxu0 0.0
  %2551 = vmatpush1.msra.mxu0 0.0
  %2552 = vmatprep.subr.mxu0 0.0
  %2553 = vmatpush1.msra.mxu0 0.0
  %2554 = vmatprep.subr.mxu0 0.0
  %2555 = vmatpush1.msra.mxu0 0.0
  %2556 = vmatprep.subr.mxu0 0.0
  %2557 = vmatpush1.msra.mxu0 0.0
  %2558 = vmatprep.subr.mxu0 0.0
  %2559 = vmatpush1.msra.mxu0 0.0
  %2560 = vmatprep.subr.mxu0 0.0
  %2561 = vmatpush1.msra.mxu0 0.0
  %2562 = vmatprep.subr.mxu0 0.0
  %2563 = vmatpush1.msra.mxu0 0.0
  %2564 = vmatprep.subr.mxu0 0.0
  %2565 = vmatpush1.msra.mxu0 0.0
  %2566 = vmatprep.subr.mxu0 0.0
  %2567 = vmatpush1.msra.mxu0 0.0
  %2568 = vmatprep.subr.mxu0 0.0
  %2569 = vmatpush1.msra.mxu0 0.0
  %2570 = vmatprep.subr.mxu0 0.0
  %2571 = vmatpush1.msra.mxu0 0.0
  %2572 = vmatprep.subr.mxu0 0.0
  %2573 = vmatpush1.msra.mxu0 0.0
  %2574 = vmatprep.subr.mxu0 0.0
  %2575 = vmatpush1.msra.mxu0 0.0
  %2576 = vmatprep.subr.mxu0 0.0
  %2577 = vmatpush1.msra.mxu0 0.0
  %2578 = vmatprep.subr.mxu0 0.0
  %2579 = vmatpush1.msra.mxu0 0.0
  %2580 = vmatprep.subr.mxu0 0.0
  %2581 = vmatpush1.msra.mxu0 0.0
  %2582 = vmatprep.subr.mxu0 0.0
  %2583 = vmatpush1.msra.mxu0 0.0
  %2584 = vmatprep.subr.mxu0 0.0
  %2585 = vmatpush1.msra.mxu0 0.0
  %2586 = vmatprep.subr.mxu0 0.0
  %2587 = vmatpush1.msra.mxu0 0.0
  %2588 = vmatprep.subr.mxu0 0.0
  %2589 = vmatpush1.msra.mxu0 0.0
  %2590 = vmatprep.subr.mxu0 0.0
  %2591 = vmatpush1.msra.mxu0 0.0
  %2592 = vmatprep.subr.mxu0 0.0
  %2593 = vmatpush1.msra.mxu0 0.0
  %2594 = vmatprep.subr.mxu0 0.0
  %2595 = vmatpush1.msra.mxu0 0.0
  %2596 = vmatprep.mubr.f32.mxu0 0.0
  %2597 = vmatmul.mubr.f32.gmra.mrb[0].mxu0 %v466
  %v2598 = vpop.f32.mrb[0].mxu0
  %v2599 = vadd.f32 0.0, %v2598
  %v2600 = vpop.f32.mrb[0].mxu0
  %2601 = vmatprep.mubr.f32.mxu0 0.0
  %2602 = vmatmul.mubr.f32.gmra.mrb[0].mxu0 %v469
  %v2603 = vpop.f32.mrb[0].mxu0
  %v2604 = vadd.f32 0.0, %v2603
  %v2605 = vpop.f32.mrb[0].mxu0
  %2606 = vmatprep.mubr.f32.mxu0 0.0
  %2607 = vmatmul.mubr.f32.gmra.mrb[0].mxu0 %v472
  %v2608 = vpop.f32.mrb[0].mxu0
  %v2609 = vadd.f32 0.0, %v2608
  %v2610 = vpop.f32.mrb[0].mxu0
  %2611 = vdwg.mxu0
  %v2613 = vsel %vm554, %v2419, 0
  %v2616 = vsel %vm554, %v2420, 0
  %v2619 = vsel %vm554, %v2421, 0
  %2621 = vmatprep.subr.mxu0 0.0
  %2622 = vmatpush1.msra.mxu0 %v2432
  %2623 = vmatprep.subr.mxu0 0.0
  %2624 = vmatpush1.msra.mxu0 %v2433
  %2625 = vmatprep.subr.mxu0 0.0
  %2626 = vmatpush1.msra.mxu0 %v2434
  %2627 = vmatprep.subr.mxu0 0.0
  %2628 = vmatpush1.msra.mxu0 %v2435
  %2629 = vmatprep.subr.mxu0 0.0
  %2630 = vmatpush1.msra.mxu0 %v2436
  %2631 = vmatprep.subr.mxu0 0.0
  %2632 = vmatpush1.msra.mxu0 %v2437
  %2633 = vmatprep.subr.mxu0 0.0
  %2634 = vmatpush1.msra.mxu0 %v2438
  %2635 = vmatprep.subr.mxu0 0.0
  %2636 = vmatpush1.msra.mxu0 %v2439
  %2637 = vmatprep.subr.mxu0 0.0
  %2638 = vmatpush1.msra.mxu0 0.0
  %2639 = vmatprep.subr.mxu0 0.0
  %2640 = vmatpush1.msra.mxu0 0.0
  %2641 = vmatprep.subr.mxu0 0.0
  %2642 = vmatpush1.msra.mxu0 0.0
  %2643 = vmatprep.subr.mxu0 0.0
  %2644 = vmatpush1.msra.mxu0 0.0
  %2645 = vmatprep.subr.mxu0 0.0
  %2646 = vmatpush1.msra.mxu0 0.0
  %2647 = vmatprep.subr.mxu0 0.0
  %2648 = vmatpush1.msra.mxu0 0.0
  %2649 = vmatprep.subr.mxu0 0.0
  %2650 = vmatpush1.msra.mxu0 0.0
  %2651 = vmatprep.subr.mxu0 0.0
  %2652 = vmatpush1.msra.mxu0 0.0
  %2653 = vmatprep.subr.mxu0 0.0
  %2654 = vmatpush1.msra.mxu0 0.0
  %2655 = vmatprep.subr.mxu0 0.0
  %2656 = vmatpush1.msra.mxu0 0.0
  %2657 = vmatprep.subr.mxu0 0.0
  %2658 = vmatpush1.msra.mxu0 0.0
  %2659 = vmatprep.subr.mxu0 0.0
  %2660 = vmatpush1.msra.mxu0 0.0
  %2661 = vmatprep.subr.mxu0 0.0
  %2662 = vmatpush1.msra.mxu0 0.0
  %2663 = vmatprep.subr.mxu0 0.0
  %2664 = vmatpush1.msra.mxu0 0.0
  %2665 = vmatprep.subr.mxu0 0.0
  %2666 = vmatpush1.msra.mxu0 0.0
  %2667 = vmatprep.subr.mxu0 0.0
  %2668 = vmatpush1.msra.mxu0 0.0
  %2669 = vmatprep.subr.mxu0 0.0
  %2670 = vmatpush1.msra.mxu0 0.0
  %2671 = vmatprep.subr.mxu0 0.0
  %2672 = vmatpush1.msra.mxu0 0.0
  %2673 = vmatprep.subr.mxu0 0.0
  %2674 = vmatpush1.msra.mxu0 0.0
  %2675 = vmatprep.subr.mxu0 0.0
  %2676 = vmatpush1.msra.mxu0 0.0
  %2677 = vmatprep.subr.mxu0 0.0
  %2678 = vmatpush1.msra.mxu0 0.0
  %2679 = vmatprep.subr.mxu0 0.0
  %2680 = vmatpush1.msra.mxu0 0.0
  %2681 = vmatprep.subr.mxu0 0.0
  %2682 = vmatpush1.msra.mxu0 0.0
  %2683 = vmatprep.subr.mxu0 0.0
  %2684 = vmatpush1.msra.mxu0 0.0
  %2685 = vmatprep.mubr.f32.mxu0 0.0
  %2686 = vmatmul.mubr.f32.gmra.mrb[0].mxu0 %v2613
  %v2687 = vpop.f32.mrb[0].mxu0
  %v2688 = vadd.f32 0.0, %v2687
  %v2689 = vpop.f32.mrb[0].mxu0
  %2690 = vmatprep.mubr.f32.mxu0 0.0
  %2691 = vmatmul.mubr.f32.gmra.mrb[0].mxu0 %v2616
  %v2692 = vpop.f32.mrb[0].mxu0
  %v2693 = vadd.f32 0.0, %v2692
  %v2694 = vpop.f32.mrb[0].mxu0
  %2695 = vmatprep.mubr.f32.mxu0 0.0
  %2696 = vmatmul.mubr.f32.gmra.mrb[0].mxu0 %v2619
  %v2697 = vpop.f32.mrb[0].mxu0
  %v2698 = vadd.f32 0.0, %v2697
  %v2699 = vpop.f32.mrb[0].mxu0
  %2700 = vdwg.mxu0
  %v2702 = vsel %vm554, %v2519, 0
  %v2705 = vsel %vm554, %v2524, 0
  %v2708 = vsel %vm554, %v2529, 0
  %2710 = vmatprep.subr.mxu0 0.0
  %2711 = vmatpush1.msra.mxu0 %v2423
  %2712 = vmatprep.subr.mxu0 0.0
  %2713 = vmatpush1.msra.mxu0 %v2424
  %2714 = vmatprep.subr.mxu0 0.0
  %2715 = vmatpush1.msra.mxu0 %v2425
  %2716 = vmatprep.subr.mxu0 0.0
  %2717 = vmatpush1.msra.mxu0 %v2426
  %2718 = vmatprep.subr.mxu0 0.0
  %2719 = vmatpush1.msra.mxu0 %v2427
  %2720 = vmatprep.subr.mxu0 0.0
  %2721 = vmatpush1.msra.mxu0 %v2428
  %2722 = vmatprep.subr.mxu0 0.0
  %2723 = vmatpush1.msra.mxu0 %v2429
  %2724 = vmatprep.subr.mxu0 0.0
  %2725 = vmatpush1.msra.mxu0 %v2430
  %2726 = vmatprep.subr.mxu0 0.0
  %2727 = vmatpush1.msra.mxu0 0.0
  %2728 = vmatprep.subr.mxu0 0.0
  %2729 = vmatpush1.msra.mxu0 0.0
  %2730 = vmatprep.subr.mxu0 0.0
  %2731 = vmatpush1.msra.mxu0 0.0
  %2732 = vmatprep.subr.mxu0 0.0
  %2733 = vmatpush1.msra.mxu0 0.0
  %2734 = vmatprep.subr.mxu0 0.0
  %2735 = vmatpush1.msra.mxu0 0.0
  %2736 = vmatprep.subr.mxu0 0.0
  %2737 = vmatpush1.msra.mxu0 0.0
  %2738 = vmatprep.subr.mxu0 0.0
  %2739 = vmatpush1.msra.mxu0 0.0
  %2740 = vmatprep.subr.mxu0 0.0
  %2741 = vmatpush1.msra.mxu0 0.0
  %2742 = vmatprep.subr.mxu0 0.0
  %2743 = vmatpush1.msra.mxu0 0.0
  %2744 = vmatprep.subr.mxu0 0.0
  %2745 = vmatpush1.msra.mxu0 0.0
  %2746 = vmatprep.subr.mxu0 0.0
  %2747 = vmatpush1.msra.mxu0 0.0
  %2748 = vmatprep.subr.mxu0 0.0
  %2749 = vmatpush1.msra.mxu0 0.0
  %2750 = vmatprep.subr.mxu0 0.0
  %2751 = vmatpush1.msra.mxu0 0.0
  %2752 = vmatprep.subr.mxu0 0.0
  %2753 = vmatpush1.msra.mxu0 0.0
  %2754 = vmatprep.subr.mxu0 0.0
  %2755 = vmatpush1.msra.mxu0 0.0
  %2756 = vmatprep.subr.mxu0 0.0
  %2757 = vmatpush1.msra.mxu0 0.0
  %2758 = vmatprep.subr.mxu0 0.0
  %2759 = vmatpush1.msra.mxu0 0.0
  %2760 = vmatprep.subr.mxu0 0.0
  %2761 = vmatpush1.msra.mxu0 0.0
  %2762 = vmatprep.subr.mxu0 0.0
  %2763 = vmatpush1.msra.mxu0 0.0
  %2764 = vmatprep.subr.mxu0 0.0
  %2765 = vmatpush1.msra.mxu0 0.0
  %2766 = vmatprep.subr.mxu0 0.0
  %2767 = vmatpush1.msra.mxu0 0.0
  %2768 = vmatprep.subr.mxu0 0.0
  %2769 = vmatpush1.msra.mxu0 0.0
  %2770 = vmatprep.subr.mxu0 0.0
  %2771 = vmatpush1.msra.mxu0 0.0
  %2772 = vmatprep.subr.mxu0 0.0
  %2773 = vmatpush1.msra.mxu0 0.0
  %2774 = vmatprep.mubr.f32.mxu0 0.0
  %2775 = vmatmul.mubr.f32.gmra.mrb[0].mxu0 %v2702
  %v2776 = vpop.f32.mrb[0].mxu0
  %v2777 = vadd.f32 %v2688, %v2776
  %v2778 = vpop.f32.mrb[0].mxu0
  %2779 = vmatprep.mubr.f32.mxu0 0.0
  %2780 = vmatmul.mubr.f32.gmra.mrb[0].mxu0 %v2705
  %v2781 = vpop.f32.mrb[0].mxu0
  %v2782 = vadd.f32 %v2693, %v2781
  %v2783 = vpop.f32.mrb[0].mxu0
  %2784 = vmatprep.mubr.f32.mxu0 0.0
  %2785 = vmatmul.mubr.f32.gmra.mrb[0].mxu0 %v2708
  %v2786 = vpop.f32.mrb[0].mxu0
  %v2787 = vadd.f32 %v2698, %v2786
  %v2788 = vpop.f32.mrb[0].mxu0
  %2789 = vdwg.mxu0
  %v2791 = vsel %vm554, %v2599, 0
  %v2794 = vsel %vm554, %v2604, 0
  %v2797 = vsel %vm554, %v2609, 0
  %2799 = vmatprep.subr.mxu0 0.0
  %2800 = vmatpush1.msra.mxu0 %v2441
  %2801 = vmatprep.subr.mxu0 0.0
  %2802 = vmatpush1.msra.mxu0 %v2442
  %2803 = vmatprep.subr.mxu0 0.0
  %2804 = vmatpush1.msra.mxu0 %v2443
  %2805 = vmatprep.subr.mxu0 0.0
  %2806 = vmatpush1.msra.mxu0 %v2444
  %2807 = vmatprep.subr.mxu0 0.0
  %2808 = vmatpush1.msra.mxu0 %v2445
  %2809 = vmatprep.subr.mxu0 0.0
  %2810 = vmatpush1.msra.mxu0 %v2446
  %2811 = vmatprep.subr.mxu0 0.0
  %2812 = vmatpush1.msra.mxu0 %v2447
  %2813 = vmatprep.subr.mxu0 0.0
  %2814 = vmatpush1.msra.mxu0 %v2448
  %2815 = vmatprep.subr.mxu0 0.0
  %2816 = vmatpush1.msra.mxu0 0.0
  %2817 = vmatprep.subr.mxu0 0.0
  %2818 = vmatpush1.msra.mxu0 0.0
  %2819 = vmatprep.subr.mxu0 0.0
  %2820 = vmatpush1.msra.mxu0 0.0
  %2821 = vmatprep.subr.mxu0 0.0
  %2822 = vmatpush1.msra.mxu0 0.0
  %2823 = vmatprep.subr.mxu0 0.0
  %2824 = vmatpush1.msra.mxu0 0.0
  %2825 = vmatprep.subr.mxu0 0.0
  %2826 = vmatpush1.msra.mxu0 0.0
  %2827 = vmatprep.subr.mxu0 0.0
  %2828 = vmatpush1.msra.mxu0 0.0
  %2829 = vmatprep.subr.mxu0 0.0
  %2830 = vmatpush1.msra.mxu0 0.0
  %2831 = vmatprep.subr.mxu0 0.0
  %2832 = vmatpush1.msra.mxu0 0.0
  %2833 = vmatprep.subr.mxu0 0.0
  %2834 = vmatpush1.msra.mxu0 0.0
  %2835 = vmatprep.subr.mxu0 0.0
  %2836 = vmatpush1.msra.mxu0 0.0
  %2837 = vmatprep.subr.mxu0 0.0
  %2838 = vmatpush1.msra.mxu0 0.0
  %2839 = vmatprep.subr.mxu0 0.0
  %2840 = vmatpush1.msra.mxu0 0.0
  %2841 = vmatprep.subr.mxu0 0.0
  %2842 = vmatpush1.msra.mxu0 0.0
  %2843 = vmatprep.subr.mxu0 0.0
  %2844 = vmatpush1.msra.mxu0 0.0
  %2845 = vmatprep.subr.mxu0 0.0
  %2846 = vmatpush1.msra.mxu0 0.0
  %2847 = vmatprep.subr.mxu0 0.0
  %2848 = vmatpush1.msra.mxu0 0.0
  %2849 = vmatprep.subr.mxu0 0.0
  %2850 = vmatpush1.msra.mxu0 0.0
  %2851 = vmatprep.subr.mxu0 0.0
  %2852 = vmatpush1.msra.mxu0 0.0
  %2853 = vmatprep.subr.mxu0 0.0
  %2854 = vmatpush1.msra.mxu0 0.0
  %2855 = vmatprep.subr.mxu0 0.0
  %2856 = vmatpush1.msra.mxu0 0.0
  %2857 = vmatprep.subr.mxu0 0.0
  %2858 = vmatpush1.msra.mxu0 0.0
  %2859 = vmatprep.subr.mxu0 0.0
  %2860 = vmatpush1.msra.mxu0 0.0
  %2861 = vmatprep.subr.mxu0 0.0
  %2862 = vmatpush1.msra.mxu0 0.0
  %2863 = vmatprep.mubr.f32.mxu0 0.0
  %2864 = vmatmul.mubr.f32.gmra.mrb[0].mxu0 %v2791
  %v2865 = vpop.f32.mrb[0].mxu0
  %v2866 = vadd.f32 0.0, %v2865
  %v2867 = vpop.f32.mrb[0].mxu0
  %2868 = vmatprep.mubr.f32.mxu0 0.0
  %2869 = vmatmul.mubr.f32.gmra.mrb[0].mxu0 %v2794
  %v2870 = vpop.f32.mrb[0].mxu0
  %v2871 = vadd.f32 0.0, %v2870
  %v2872 = vpop.f32.mrb[0].mxu0
  %2873 = vmatprep.mubr.f32.mxu0 0.0
  %2874 = vmatmul.mubr.f32.gmra.mrb[0].mxu0 %v2797
  %v2875 = vpop.f32.mrb[0].mxu0
  %v2876 = vadd.f32 0.0, %v2875
  %v2877 = vpop.f32.mrb[0].mxu0
  %2878 = vdwg.mxu0
  %v2879 = vadd.f32 %v2777, %v2866
  %v2880 = vadd.f32 %v2782, %v2871
  %v2881 = vadd.f32 %v2787, %v2876
  %v2882 = vlaneseq
  %v2883 = vshrl.u32 %v2882, 7
  %v2884 = vsub.s32 0, %v2883
  %v2885 = vrot.slane %v2449, %v2884
  %v2886 = vadd.f32 %v2879, %v2885
  %v2887 = vadd.f32 %v2880, %v2885
  %v2888 = vadd.f32 %v2881, %v2885
  %v2889 = vsel %vm554, %v2886, 0.0
  %v2890 = vsel %vm554, %v2887, 0.0
  %v2891 = vadd.f32 %v2889, %v2890
  %v2892 = vsel %vm554, %v2888, 0.0
  %v2893 = vadd.f32 %v2891, %v2892
  %v2894 = vrot.slane %v2893, 4
  %v2895 = vadd.f32 %v2893, %v2894
  %v2896 = vrot.slane %v2895, 2
  %v2897 = vadd.f32 %v2895, %v2896
  %v2898 = vrot.slane %v2897, 1
  %v2899 = vadd.f32 %v2897, %v2898
  %v2900 = vmul.f32 %v2899, 0.041666668
  %v2901 = vsub.f32 %v2886, %v2900
  %v2902 = vsub.f32 %v2887, %v2900
  %v2903 = vsub.f32 %v2888, %v2900
  %v2904 = vmul.f32 %v2901, %v2901
  %v2905 = vmul.f32 %v2902, %v2902
  %v2906 = vmul.f32 %v2903, %v2903
  %v2907 = vsel %vm554, %v2904, 0.0
  %v2908 = vsel %vm554, %v2905, 0.0
  %v2909 = vadd.f32 %v2907, %v2908
  %v2910 = vsel %vm554, %v2906, 0.0
  %v2911 = vadd.f32 %v2909, %v2910
  %v2912 = vrot.slane %v2911, 4
  %v2913 = vadd.f32 %v2911, %v2912
  %v2914 = vrot.slane %v2913, 2
  %v2915 = vadd.f32 %v2913, %v2914
  %v2916 = vrot.slane %v2915, 1
  %v2917 = vadd.f32 %v2915, %v2916
  %v2918 = vmul.f32 %v2917, 0.041666668
  %v2919 = vadd.f32 %v2918, 1e-05
  %v2920 = vrsqrt.pop %v2919
  %v2921 = vmul.f32 %v2901, %v2920
  %v2922 = vmul.f32 %v2902, %v2920
  %v2923 = vmul.f32 %v2903, %v2920
  %v2924 = vlaneseq
  %v2925 = vshrl.u32 %v2924, 7
  %v2926 = vsub.s32 0, %v2925
  %v2927 = vrot.slane %v2450, %v2926
  %v2928 = vmul.f32 %v2921, %v2927
  %v2929 = vmul.f32 %v2922, %v2927
  %v2930 = vmul.f32 %v2923, %v2927
  %v2931 = vlaneseq
  %v2932 = vshrl.u32 %v2931, 7
  %v2933 = vsub.s32 0, %v2932
  %v2934 = vrot.slane %v2451, %v2933
  %v2935 = vadd.f32 %v2928, %v2934
  %v2936 = vadd.f32 %v2929, %v2934
  %v2937 = vadd.f32 %v2930, %v2934
  %vm2938 = vcmp.gt.f32.partialorder %v2935, 0.0
  %vm2939 = vcmp.gt.f32.partialorder %v2936, 0.0
  %vm2940 = vcmp.gt.f32.partialorder %v2937, 0.0
  %v2941 = vmin.f32 %v2935, 0.0
  %v2942 = vmin.f32 %v2936, 0.0
  %v2943 = vmin.f32 %v2937, 0.0
  %v2944 = vmul.f32 %v2941, 1.442695
  %v2945 = vpow.pop %v2944
  %v2946 = vmul.f32 %v2942, 1.442695
  %v2947 = vpow.pop %v2946
  %v2948 = vmul.f32 %v2943, 1.442695
  %v2949 = vpow.pop %v2948
  %v2950 = vsub.f32 %v2945, 1.0
  %v2951 = vsub.f32 %v2947, 1.0
  %v2952 = vsub.f32 %v2949, 1.0
  %v2953 = vsel %vm2938, %v2935, %v2950
  %v2954 = vsel %vm2939, %v2936, %v2951
  %v2955 = vsel %vm2940, %v2937, %v2952
  %vm2956 = vcmp.ge.s32.totalorder %v30, 6
  %vm2957 = vcmp.ge.s32.totalorder %v31, 6
  %v2958 = vsel %vm2956, 1, 0
  %v2959 = vsel %vm2957, 1, 0
  %v2960 = vmul.u32 %v2958, 6
  %v2961 = vmul.u32 %v2959, 6
  %v2962 = vsub.s32 %v30, %v2960
  %v2963 = vsub.s32 %v31, %v2961
  %v2964 = vmul.u32 %v2958, 12
  %v2965 = vmul.u32 %v2959, 12
  %v2966 = vmul.u32 %v2962, 2
  %v2967 = vmul.u32 %v2963, 2
  %v2968 = vadd.s32 %v2964, %v2966
  %v2969 = vadd.s32 %v2965, %v2967
  %vm2970 = vcmp.eq.s32.totalorder %v34, %v2968
  %vm2971 = vcmp.eq.s32.totalorder %v34, %v2969
  %v2972 = vsel %vm2970, 1.0, 0.0
  %v2973 = vsel %vm2971, 1.0, 0.0
  %v2974 = vadd.s32 %v2966, 1
  %v2975 = vadd.s32 %v2967, 1
  %vm2976 = vcmp.lt.s32.totalorder %v2974, 11
  %v2977 = vsel %vm2976, %v2974, 11
  %vm2978 = vcmp.lt.s32.totalorder %v2975, 11
  %v2979 = vsel %vm2978, %v2975, 11
  %v2980 = vadd.s32 %v2964, %v2977
  %v2981 = vadd.s32 %v2965, %v2979
  %vm2982 = vcmp.eq.s32.totalorder %v34, %v2980
  %vm2983 = vcmp.eq.s32.totalorder %v34, %v2981
  %v2984 = vsel %vm2982, 1.0, 0.0
  %v2985 = vsel %vm2983, 1.0, 0.0
  %v2986 = vsub.s32 %v2966, 1
  %v2987 = vsub.s32 %v2967, 1
  %vm2988 = vcmp.gt.s32.totalorder %v2986, 0
  %v2989 = vsel %vm2988, %v2986, 0
  %vm2990 = vcmp.gt.s32.totalorder %v2987, 0
  %v2991 = vsel %vm2990, %v2987, 0
  %v2992 = vadd.s32 %v2964, %v2989
  %v2993 = vadd.s32 %v2965, %v2991
  %vm2994 = vcmp.eq.s32.totalorder %v34, %v2992
  %vm2995 = vcmp.eq.s32.totalorder %v34, %v2993
  %v2996 = vsel %vm2994, 1.0, 0.0
  %v2997 = vsel %vm2995, 1.0, 0.0
  %v2999 = vsel %vm375, %v2972, 0
  %v3002 = vsel %vm375, %v2973, 0
  %3004 = vmatprep.subr.mxu0 0.0
  %3005 = vmatpush1.msra.mxu0 %v2953
  %3006 = vmatprep.subr.mxu0 0.0
  %3007 = vmatpush1.msra.mxu0 %v2954
  %3008 = vmatprep.subr.mxu0 0.0
  %3009 = vmatpush1.msra.mxu0 %v2955
  %3010 = vmatprep.subr.mxu0 0.0
  %3011 = vmatpush1.msra.mxu0 0.0
  %3012 = vmatprep.subr.mxu0 0.0
  %3013 = vmatpush1.msra.mxu0 0.0
  %3014 = vmatprep.subr.mxu0 0.0
  %3015 = vmatpush1.msra.mxu0 0.0
  %3016 = vmatprep.subr.mxu0 0.0
  %3017 = vmatpush1.msra.mxu0 0.0
  %3018 = vmatprep.subr.mxu0 0.0
  %3019 = vmatpush1.msra.mxu0 0.0
  %3020 = vmatprep.subr.mxu0 0.0
  %3021 = vmatpush1.msra.mxu0 0.0
  %3022 = vmatprep.subr.mxu0 0.0
  %3023 = vmatpush1.msra.mxu0 0.0
  %3024 = vmatprep.subr.mxu0 0.0
  %3025 = vmatpush1.msra.mxu0 0.0
  %3026 = vmatprep.subr.mxu0 0.0
  %3027 = vmatpush1.msra.mxu0 0.0
  %3028 = vmatprep.subr.mxu0 0.0
  %3029 = vmatpush1.msra.mxu0 0.0
  %3030 = vmatprep.subr.mxu0 0.0
  %3031 = vmatpush1.msra.mxu0 0.0
  %3032 = vmatprep.subr.mxu0 0.0
  %3033 = vmatpush1.msra.mxu0 0.0
  %3034 = vmatprep.subr.mxu0 0.0
  %3035 = vmatpush1.msra.mxu0 0.0
  %3036 = vmatprep.subr.mxu0 0.0
  %3037 = vmatpush1.msra.mxu0 0.0
  %3038 = vmatprep.subr.mxu0 0.0
  %3039 = vmatpush1.msra.mxu0 0.0
  %3040 = vmatprep.subr.mxu0 0.0
  %3041 = vmatpush1.msra.mxu0 0.0
  %3042 = vmatprep.subr.mxu0 0.0
  %3043 = vmatpush1.msra.mxu0 0.0
  %3044 = vmatprep.subr.mxu0 0.0
  %3045 = vmatpush1.msra.mxu0 0.0
  %3046 = vmatprep.subr.mxu0 0.0
  %3047 = vmatpush1.msra.mxu0 0.0
  %3048 = vmatprep.subr.mxu0 0.0
  %3049 = vmatpush1.msra.mxu0 0.0
  %3050 = vmatprep.subr.mxu0 0.0
  %3051 = vmatpush1.msra.mxu0 0.0
  %3052 = vmatprep.subr.mxu0 0.0
  %3053 = vmatpush1.msra.mxu0 0.0
  %3054 = vmatprep.subr.mxu0 0.0
  %3055 = vmatpush1.msra.mxu0 0.0
  %3056 = vmatprep.subr.mxu0 0.0
  %3057 = vmatpush1.msra.mxu0 0.0
  %3058 = vmatprep.subr.mxu0 0.0
  %3059 = vmatpush1.msra.mxu0 0.0
  %3060 = vmatprep.subr.mxu0 0.0
  %3061 = vmatpush1.msra.mxu0 0.0
  %3062 = vmatprep.subr.mxu0 0.0
  %3063 = vmatpush1.msra.mxu0 0.0
  %3064 = vmatprep.subr.mxu0 0.0
  %3065 = vmatpush1.msra.mxu0 0.0
  %3066 = vmatprep.subr.mxu0 0.0
  %3067 = vmatpush1.msra.mxu0 0.0
  %3068 = vmatprep.mubr.f32.mxu0 0.0
  %3069 = vmatmul.mubr.f32.gmra.mrb[0].mxu0 %v2999
  %v3070 = vpop.f32.mrb[0].mxu0
  %v3071 = vadd.f32 0.0, %v3070
  %v3072 = vpop.f32.mrb[0].mxu0
  %3073 = vmatprep.mubr.f32.mxu0 0.0
  %3074 = vmatmul.mubr.f32.gmra.mrb[0].mxu0 %v3002
  %v3075 = vpop.f32.mrb[0].mxu0
  %v3076 = vadd.f32 0.0, %v3075
  %v3077 = vpop.f32.mrb[0].mxu0
  %3078 = vdwg.mxu0
  %v3080 = vsel %vm375, %v2984, 0
  %v3083 = vsel %vm375, %v2985, 0
  %3085 = vmatprep.subr.mxu0 0.0
  %3086 = vmatpush1.msra.mxu0 %v2953
  %3087 = vmatprep.subr.mxu0 0.0
  %3088 = vmatpush1.msra.mxu0 %v2954
  %3089 = vmatprep.subr.mxu0 0.0
  %3090 = vmatpush1.msra.mxu0 %v2955
  %3091 = vmatprep.subr.mxu0 0.0
  %3092 = vmatpush1.msra.mxu0 0.0
  %3093 = vmatprep.subr.mxu0 0.0
  %3094 = vmatpush1.msra.mxu0 0.0
  %3095 = vmatprep.subr.mxu0 0.0
  %3096 = vmatpush1.msra.mxu0 0.0
  %3097 = vmatprep.subr.mxu0 0.0
  %3098 = vmatpush1.msra.mxu0 0.0
  %3099 = vmatprep.subr.mxu0 0.0
  %3100 = vmatpush1.msra.mxu0 0.0
  %3101 = vmatprep.subr.mxu0 0.0
  %3102 = vmatpush1.msra.mxu0 0.0
  %3103 = vmatprep.subr.mxu0 0.0
  %3104 = vmatpush1.msra.mxu0 0.0
  %3105 = vmatprep.subr.mxu0 0.0
  %3106 = vmatpush1.msra.mxu0 0.0
  %3107 = vmatprep.subr.mxu0 0.0
  %3108 = vmatpush1.msra.mxu0 0.0
  %3109 = vmatprep.subr.mxu0 0.0
  %3110 = vmatpush1.msra.mxu0 0.0
  %3111 = vmatprep.subr.mxu0 0.0
  %3112 = vmatpush1.msra.mxu0 0.0
  %3113 = vmatprep.subr.mxu0 0.0
  %3114 = vmatpush1.msra.mxu0 0.0
  %3115 = vmatprep.subr.mxu0 0.0
  %3116 = vmatpush1.msra.mxu0 0.0
  %3117 = vmatprep.subr.mxu0 0.0
  %3118 = vmatpush1.msra.mxu0 0.0
  %3119 = vmatprep.subr.mxu0 0.0
  %3120 = vmatpush1.msra.mxu0 0.0
  %3121 = vmatprep.subr.mxu0 0.0
  %3122 = vmatpush1.msra.mxu0 0.0
  %3123 = vmatprep.subr.mxu0 0.0
  %3124 = vmatpush1.msra.mxu0 0.0
  %3125 = vmatprep.subr.mxu0 0.0
  %3126 = vmatpush1.msra.mxu0 0.0
  %3127 = vmatprep.subr.mxu0 0.0
  %3128 = vmatpush1.msra.mxu0 0.0
  %3129 = vmatprep.subr.mxu0 0.0
  %3130 = vmatpush1.msra.mxu0 0.0
  %3131 = vmatprep.subr.mxu0 0.0
  %3132 = vmatpush1.msra.mxu0 0.0
  %3133 = vmatprep.subr.mxu0 0.0
  %3134 = vmatpush1.msra.mxu0 0.0
  %3135 = vmatprep.subr.mxu0 0.0
  %3136 = vmatpush1.msra.mxu0 0.0
  %3137 = vmatprep.subr.mxu0 0.0
  %3138 = vmatpush1.msra.mxu0 0.0
  %3139 = vmatprep.subr.mxu0 0.0
  %3140 = vmatpush1.msra.mxu0 0.0
  %3141 = vmatprep.subr.mxu0 0.0
  %3142 = vmatpush1.msra.mxu0 0.0
  %3143 = vmatprep.subr.mxu0 0.0
  %3144 = vmatpush1.msra.mxu0 0.0
  %3145 = vmatprep.subr.mxu0 0.0
  %3146 = vmatpush1.msra.mxu0 0.0
  %3147 = vmatprep.subr.mxu0 0.0
  %3148 = vmatpush1.msra.mxu0 0.0
  %3149 = vmatprep.mubr.f32.mxu0 0.0
  %3150 = vmatmul.mubr.f32.gmra.mrb[0].mxu0 %v3080
  %v3151 = vpop.f32.mrb[0].mxu0
  %v3152 = vadd.f32 0.0, %v3151
  %v3153 = vpop.f32.mrb[0].mxu0
  %3154 = vmatprep.mubr.f32.mxu0 0.0
  %3155 = vmatmul.mubr.f32.gmra.mrb[0].mxu0 %v3083
  %v3156 = vpop.f32.mrb[0].mxu0
  %v3157 = vadd.f32 0.0, %v3156
  %v3158 = vpop.f32.mrb[0].mxu0
  %3159 = vdwg.mxu0
  %v3160 = vmax.f32 %v3071, %v3152
  %v3161 = vmax.f32 %v3076, %v3157
  %v3163 = vsel %vm375, %v2996, 0
  %v3166 = vsel %vm375, %v2997, 0
  %3168 = vmatprep.subr.mxu0 0.0
  %3169 = vmatpush1.msra.mxu0 %v2953
  %3170 = vmatprep.subr.mxu0 0.0
  %3171 = vmatpush1.msra.mxu0 %v2954
  %3172 = vmatprep.subr.mxu0 0.0
  %3173 = vmatpush1.msra.mxu0 %v2955
  %3174 = vmatprep.subr.mxu0 0.0
  %3175 = vmatpush1.msra.mxu0 0.0
  %3176 = vmatprep.subr.mxu0 0.0
  %3177 = vmatpush1.msra.mxu0 0.0
  %3178 = vmatprep.subr.mxu0 0.0
  %3179 = vmatpush1.msra.mxu0 0.0
  %3180 = vmatprep.subr.mxu0 0.0
  %3181 = vmatpush1.msra.mxu0 0.0
  %3182 = vmatprep.subr.mxu0 0.0
  %3183 = vmatpush1.msra.mxu0 0.0
  %3184 = vmatprep.subr.mxu0 0.0
  %3185 = vmatpush1.msra.mxu0 0.0
  %3186 = vmatprep.subr.mxu0 0.0
  %3187 = vmatpush1.msra.mxu0 0.0
  %3188 = vmatprep.subr.mxu0 0.0
  %3189 = vmatpush1.msra.mxu0 0.0
  %3190 = vmatprep.subr.mxu0 0.0
  %3191 = vmatpush1.msra.mxu0 0.0
  %3192 = vmatprep.subr.mxu0 0.0
  %3193 = vmatpush1.msra.mxu0 0.0
  %3194 = vmatprep.subr.mxu0 0.0
  %3195 = vmatpush1.msra.mxu0 0.0
  %3196 = vmatprep.subr.mxu0 0.0
  %3197 = vmatpush1.msra.mxu0 0.0
  %3198 = vmatprep.subr.mxu0 0.0
  %3199 = vmatpush1.msra.mxu0 0.0
  %3200 = vmatprep.subr.mxu0 0.0
  %3201 = vmatpush1.msra.mxu0 0.0
  %3202 = vmatprep.subr.mxu0 0.0
  %3203 = vmatpush1.msra.mxu0 0.0
  %3204 = vmatprep.subr.mxu0 0.0
  %3205 = vmatpush1.msra.mxu0 0.0
  %3206 = vmatprep.subr.mxu0 0.0
  %3207 = vmatpush1.msra.mxu0 0.0
  %3208 = vmatprep.subr.mxu0 0.0
  %3209 = vmatpush1.msra.mxu0 0.0
  %3210 = vmatprep.subr.mxu0 0.0
  %3211 = vmatpush1.msra.mxu0 0.0
  %3212 = vmatprep.subr.mxu0 0.0
  %3213 = vmatpush1.msra.mxu0 0.0
  %3214 = vmatprep.subr.mxu0 0.0
  %3215 = vmatpush1.msra.mxu0 0.0
  %3216 = vmatprep.subr.mxu0 0.0
  %3217 = vmatpush1.msra.mxu0 0.0
  %3218 = vmatprep.subr.mxu0 0.0
  %3219 = vmatpush1.msra.mxu0 0.0
  %3220 = vmatprep.subr.mxu0 0.0
  %3221 = vmatpush1.msra.mxu0 0.0
  %3222 = vmatprep.subr.mxu0 0.0
  %3223 = vmatpush1.msra.mxu0 0.0
  %3224 = vmatprep.subr.mxu0 0.0
  %3225 = vmatpush1.msra.mxu0 0.0
  %3226 = vmatprep.subr.mxu0 0.0
  %3227 = vmatpush1.msra.mxu0 0.0
  %3228 = vmatprep.subr.mxu0 0.0
  %3229 = vmatpush1.msra.mxu0 0.0
  %3230 = vmatprep.subr.mxu0 0.0
  %3231 = vmatpush1.msra.mxu0 0.0
  %3232 = vmatprep.mubr.f32.mxu0 0.0
  %3233 = vmatmul.mubr.f32.gmra.mrb[0].mxu0 %v3163
  %v3234 = vpop.f32.mrb[0].mxu0
  %v3235 = vadd.f32 0.0, %v3234
  %v3236 = vpop.f32.mrb[0].mxu0
  %3237 = vmatprep.mubr.f32.mxu0 0.0
  %3238 = vmatmul.mubr.f32.gmra.mrb[0].mxu0 %v3166
  %v3239 = vpop.f32.mrb[0].mxu0
  %v3240 = vadd.f32 0.0, %v3239
  %v3241 = vpop.f32.mrb[0].mxu0
  %3242 = vdwg.mxu0
  %v3243 = vmax.f32 %v3160, %v3235
  %v3244 = vmax.f32 %v3161, %v3240
  %s3245 = scalar_lea.vmem %s4, 768
  %v3246 = vld [vmem:[%s3245] sm:$0xff]
  %v3247 = vld [vmem:[%s3245 + $0x8] sm:$0xff]
  %v3248 = vld [vmem:[%s3245 + $0x10] sm:$0xff]
  %v3249 = vld [vmem:[%s3245 + $0x18] sm:$0xff]
  %v3250 = vld [vmem:[%s3245 + $0x20] sm:$0xff]
  %v3251 = vld [vmem:[%s3245 + $0x28] sm:$0xff]
  %v3252 = vld [vmem:[%s3245 + $0x30] sm:$0xff]
  %v3253 = vld [vmem:[%s3245 + $0x38] sm:$0xff]
  %s3254 = scalar_lea.vmem %s4, 832
  %v3255 = vld [vmem:[%s3254] sm:$0xff]
  %v3256 = vld [vmem:[%s3254 + $0x8] sm:$0xff]
  %v3257 = vld [vmem:[%s3254 + $0x10] sm:$0xff]
  %v3258 = vld [vmem:[%s3254 + $0x18] sm:$0xff]
  %v3259 = vld [vmem:[%s3254 + $0x20] sm:$0xff]
  %v3260 = vld [vmem:[%s3254 + $0x28] sm:$0xff]
  %v3261 = vld [vmem:[%s3254 + $0x30] sm:$0xff]
  %v3262 = vld [vmem:[%s3254 + $0x38] sm:$0xff]
  %s3263 = scalar_lea.vmem %s4, 896
  %v3264 = vld [vmem:[%s3263] sm:$0xff]
  %v3265 = vld [vmem:[%s3263 + $0x8] sm:$0xff]
  %v3266 = vld [vmem:[%s3263 + $0x10] sm:$0xff]
  %v3267 = vld [vmem:[%s3263 + $0x18] sm:$0xff]
  %v3268 = vld [vmem:[%s3263 + $0x20] sm:$0xff]
  %v3269 = vld [vmem:[%s3263 + $0x28] sm:$0xff]
  %v3270 = vld [vmem:[%s3263 + $0x30] sm:$0xff]
  %v3271 = vld [vmem:[%s3263 + $0x38] sm:$0xff]
  %s3272 = scalar_lea.vmem %s4, 960
  %v3273 = vld [vmem:[%s3272] sm:$0xff]
  %v3274 = vld [vmem:[%s3272 + $0x8] sm:$0xff]
  %v3275 = vld [vmem:[%s3272 + $0x10] sm:$0xff]
  %v3276 = vld [vmem:[%s3272 + $0x18] sm:$0xff]
  %v3277 = vld [vmem:[%s3272 + $0x20] sm:$0xff]
  %v3278 = vld [vmem:[%s3272 + $0x28] sm:$0xff]
  %v3279 = vld [vmem:[%s3272 + $0x30] sm:$0xff]
  %v3280 = vld [vmem:[%s3272 + $0x38] sm:$0xff]
  %v3281 = vld [vmem:[%s5 + $0xe] sm:$0x1]
  %v3282 = vld [vmem:[%s5 + $0xf] sm:$0x1]
  %v3283 = vld [vmem:[%s5 + $0x10] sm:$0x1]
  %v3284 = vld [vmem:[%s5 + $0x11] sm:$0x1]
  %v3285 = vld [vmem:[%s5 + $0x12] sm:$0x1]
  %v3286 = vld [vmem:[%s5 + $0x13] sm:$0x1]
  %v3287 = vlaneseq
  %v3288 = vshrl.u32 %v3287, 7
  %v3289 = vsub.s32 0, %v3288
  %v3290 = vrot.slane %v3281, %v3289
  %v3292 = vsel %vm554, %v3243, 0
  %v3295 = vsel %vm554, %v3244, 0
  %3297 = vmatprep.subr.mxu0 0.0
  %3298 = vmatpush1.msra.mxu0 %v3246
  %3299 = vmatprep.subr.mxu0 0.0
  %3300 = vmatpush1.msra.mxu0 %v3247
  %3301 = vmatprep.subr.mxu0 0.0
  %3302 = vmatpush1.msra.mxu0 %v3248
  %3303 = vmatprep.subr.mxu0 0.0
  %3304 = vmatpush1.msra.mxu0 %v3249
  %3305 = vmatprep.subr.mxu0 0.0
  %3306 = vmatpush1.msra.mxu0 %v3250
  %3307 = vmatprep.subr.mxu0 0.0
  %3308 = vmatpush1.msra.mxu0 %v3251
  %3309 = vmatprep.subr.mxu0 0.0
  %3310 = vmatpush1.msra.mxu0 %v3252
  %3311 = vmatprep.subr.mxu0 0.0
  %3312 = vmatpush1.msra.mxu0 %v3253
  %3313 = vmatprep.subr.mxu0 0.0
  %3314 = vmatpush1.msra.mxu0 0.0
  %3315 = vmatprep.subr.mxu0 0.0
  %3316 = vmatpush1.msra.mxu0 0.0
  %3317 = vmatprep.subr.mxu0 0.0
  %3318 = vmatpush1.msra.mxu0 0.0
  %3319 = vmatprep.subr.mxu0 0.0
  %3320 = vmatpush1.msra.mxu0 0.0
  %3321 = vmatprep.subr.mxu0 0.0
  %3322 = vmatpush1.msra.mxu0 0.0
  %3323 = vmatprep.subr.mxu0 0.0
  %3324 = vmatpush1.msra.mxu0 0.0
  %3325 = vmatprep.subr.mxu0 0.0
  %3326 = vmatpush1.msra.mxu0 0.0
  %3327 = vmatprep.subr.mxu0 0.0
  %3328 = vmatpush1.msra.mxu0 0.0
  %3329 = vmatprep.subr.mxu0 0.0
  %3330 = vmatpush1.msra.mxu0 0.0
  %3331 = vmatprep.subr.mxu0 0.0
  %3332 = vmatpush1.msra.mxu0 0.0
  %3333 = vmatprep.subr.mxu0 0.0
  %3334 = vmatpush1.msra.mxu0 0.0
  %3335 = vmatprep.subr.mxu0 0.0
  %3336 = vmatpush1.msra.mxu0 0.0
  %3337 = vmatprep.subr.mxu0 0.0
  %3338 = vmatpush1.msra.mxu0 0.0
  %3339 = vmatprep.subr.mxu0 0.0
  %3340 = vmatpush1.msra.mxu0 0.0
  %3341 = vmatprep.subr.mxu0 0.0
  %3342 = vmatpush1.msra.mxu0 0.0
  %3343 = vmatprep.subr.mxu0 0.0
  %3344 = vmatpush1.msra.mxu0 0.0
  %3345 = vmatprep.subr.mxu0 0.0
  %3346 = vmatpush1.msra.mxu0 0.0
  %3347 = vmatprep.subr.mxu0 0.0
  %3348 = vmatpush1.msra.mxu0 0.0
  %3349 = vmatprep.subr.mxu0 0.0
  %3350 = vmatpush1.msra.mxu0 0.0
  %3351 = vmatprep.subr.mxu0 0.0
  %3352 = vmatpush1.msra.mxu0 0.0
  %3353 = vmatprep.subr.mxu0 0.0
  %3354 = vmatpush1.msra.mxu0 0.0
  %3355 = vmatprep.subr.mxu0 0.0
  %3356 = vmatpush1.msra.mxu0 0.0
  %3357 = vmatprep.subr.mxu0 0.0
  %3358 = vmatpush1.msra.mxu0 0.0
  %3359 = vmatprep.subr.mxu0 0.0
  %3360 = vmatpush1.msra.mxu0 0.0
  %3361 = vmatprep.mubr.f32.mxu0 0.0
  %3362 = vmatmul.mubr.f32.gmra.mrb[0].mxu0 %v3292
  %v3363 = vpop.f32.mrb[0].mxu0
  %v3364 = vadd.f32 %v3290, %v3363
  %v3365 = vpop.f32.mrb[0].mxu0
  %3366 = vmatprep.mubr.f32.mxu0 0.0
  %3367 = vmatmul.mubr.f32.gmra.mrb[0].mxu0 %v3295
  %v3368 = vpop.f32.mrb[0].mxu0
  %v3369 = vadd.f32 %v3290, %v3368
  %v3370 = vpop.f32.mrb[0].mxu0
  %3371 = vdwg.mxu0
  %v3372 = vlaneseq
  %v3373 = vshrl.u32 %v3372, 7
  %v3374 = vsub.s32 0, %v3373
  %v3375 = vrot.slane %v3282, %v3374
  %3376 = vmatprep.subr.mxu0 0.0
  %3377 = vmatpush1.msra.mxu0 %v3255
  %3378 = vmatprep.subr.mxu0 0.0
  %3379 = vmatpush1.msra.mxu0 %v3256
  %3380 = vmatprep.subr.mxu0 0.0
  %3381 = vmatpush1.msra.mxu0 %v3257
  %3382 = vmatprep.subr.mxu0 0.0
  %3383 = vmatpush1.msra.mxu0 %v3258
  %3384 = vmatprep.subr.mxu0 0.0
  %3385 = vmatpush1.msra.mxu0 %v3259
  %3386 = vmatprep.subr.mxu0 0.0
  %3387 = vmatpush1.msra.mxu0 %v3260
  %3388 = vmatprep.subr.mxu0 0.0
  %3389 = vmatpush1.msra.mxu0 %v3261
  %3390 = vmatprep.subr.mxu0 0.0
  %3391 = vmatpush1.msra.mxu0 %v3262
  %3392 = vmatprep.subr.mxu0 0.0
  %3393 = vmatpush1.msra.mxu0 0.0
  %3394 = vmatprep.subr.mxu0 0.0
  %3395 = vmatpush1.msra.mxu0 0.0
  %3396 = vmatprep.subr.mxu0 0.0
  %3397 = vmatpush1.msra.mxu0 0.0
  %3398 = vmatprep.subr.mxu0 0.0
  %3399 = vmatpush1.msra.mxu0 0.0
  %3400 = vmatprep.subr.mxu0 0.0
  %3401 = vmatpush1.msra.mxu0 0.0
  %3402 = vmatprep.subr.mxu0 0.0
  %3403 = vmatpush1.msra.mxu0 0.0
  %3404 = vmatprep.subr.mxu0 0.0
  %3405 = vmatpush1.msra.mxu0 0.0
  %3406 = vmatprep.subr.mxu0 0.0
  %3407 = vmatpush1.msra.mxu0 0.0
  %3408 = vmatprep.subr.mxu0 0.0
  %3409 = vmatpush1.msra.mxu0 0.0
  %3410 = vmatprep.subr.mxu0 0.0
  %3411 = vmatpush1.msra.mxu0 0.0
  %3412 = vmatprep.subr.mxu0 0.0
  %3413 = vmatpush1.msra.mxu0 0.0
  %3414 = vmatprep.subr.mxu0 0.0
  %3415 = vmatpush1.msra.mxu0 0.0
  %3416 = vmatprep.subr.mxu0 0.0
  %3417 = vmatpush1.msra.mxu0 0.0
  %3418 = vmatprep.subr.mxu0 0.0
  %3419 = vmatpush1.msra.mxu0 0.0
  %3420 = vmatprep.subr.mxu0 0.0
  %3421 = vmatpush1.msra.mxu0 0.0
  %3422 = vmatprep.subr.mxu0 0.0
  %3423 = vmatpush1.msra.mxu0 0.0
  %3424 = vmatprep.subr.mxu0 0.0
  %3425 = vmatpush1.msra.mxu0 0.0
  %3426 = vmatprep.subr.mxu0 0.0
  %3427 = vmatpush1.msra.mxu0 0.0
  %3428 = vmatprep.subr.mxu0 0.0
  %3429 = vmatpush1.msra.mxu0 0.0
  %3430 = vmatprep.subr.mxu0 0.0
  %3431 = vmatpush1.msra.mxu0 0.0
  %3432 = vmatprep.subr.mxu0 0.0
  %3433 = vmatpush1.msra.mxu0 0.0
  %3434 = vmatprep.subr.mxu0 0.0
  %3435 = vmatpush1.msra.mxu0 0.0
  %3436 = vmatprep.subr.mxu0 0.0
  %3437 = vmatpush1.msra.mxu0 0.0
  %3438 = vmatprep.subr.mxu0 0.0
  %3439 = vmatpush1.msra.mxu0 0.0
  %3440 = vmatprep.mubr.f32.mxu0 0.0
  %3441 = vmatmul.mubr.f32.gmra.mrb[0].mxu0 %v3292
  %v3442 = vpop.f32.mrb[0].mxu0
  %v3443 = vadd.f32 %v3375, %v3442
  %v3444 = vpop.f32.mrb[0].mxu0
  %3445 = vmatprep.mubr.f32.mxu0 0.0
  %3446 = vmatmul.mubr.f32.gmra.mrb[0].mxu0 %v3295
  %v3447 = vpop.f32.mrb[0].mxu0
  %v3448 = vadd.f32 %v3375, %v3447
  %v3449 = vpop.f32.mrb[0].mxu0
  %3450 = vdwg.mxu0
  %v3451 = vlaneseq
  %v3452 = vshrl.u32 %v3451, 7
  %v3453 = vsub.s32 0, %v3452
  %v3454 = vrot.slane %v3283, %v3453
  %3455 = vmatprep.subr.mxu0 0.0
  %3456 = vmatpush1.msra.mxu0 %v3264
  %3457 = vmatprep.subr.mxu0 0.0
  %3458 = vmatpush1.msra.mxu0 %v3265
  %3459 = vmatprep.subr.mxu0 0.0
  %3460 = vmatpush1.msra.mxu0 %v3266
  %3461 = vmatprep.subr.mxu0 0.0
  %3462 = vmatpush1.msra.mxu0 %v3267
  %3463 = vmatprep.subr.mxu0 0.0
  %3464 = vmatpush1.msra.mxu0 %v3268
  %3465 = vmatprep.subr.mxu0 0.0
  %3466 = vmatpush1.msra.mxu0 %v3269
  %3467 = vmatprep.subr.mxu0 0.0
  %3468 = vmatpush1.msra.mxu0 %v3270
  %3469 = vmatprep.subr.mxu0 0.0
  %3470 = vmatpush1.msra.mxu0 %v3271
  %3471 = vmatprep.subr.mxu0 0.0
  %3472 = vmatpush1.msra.mxu0 0.0
  %3473 = vmatprep.subr.mxu0 0.0
  %3474 = vmatpush1.msra.mxu0 0.0
  %3475 = vmatprep.subr.mxu0 0.0
  %3476 = vmatpush1.msra.mxu0 0.0
  %3477 = vmatprep.subr.mxu0 0.0
  %3478 = vmatpush1.msra.mxu0 0.0
  %3479 = vmatprep.subr.mxu0 0.0
  %3480 = vmatpush1.msra.mxu0 0.0
  %3481 = vmatprep.subr.mxu0 0.0
  %3482 = vmatpush1.msra.mxu0 0.0
  %3483 = vmatprep.subr.mxu0 0.0
  %3484 = vmatpush1.msra.mxu0 0.0
  %3485 = vmatprep.subr.mxu0 0.0
  %3486 = vmatpush1.msra.mxu0 0.0
  %3487 = vmatprep.subr.mxu0 0.0
  %3488 = vmatpush1.msra.mxu0 0.0
  %3489 = vmatprep.subr.mxu0 0.0
  %3490 = vmatpush1.msra.mxu0 0.0
  %3491 = vmatprep.subr.mxu0 0.0
  %3492 = vmatpush1.msra.mxu0 0.0
  %3493 = vmatprep.subr.mxu0 0.0
  %3494 = vmatpush1.msra.mxu0 0.0
  %3495 = vmatprep.subr.mxu0 0.0
  %3496 = vmatpush1.msra.mxu0 0.0
  %3497 = vmatprep.subr.mxu0 0.0
  %3498 = vmatpush1.msra.mxu0 0.0
  %3499 = vmatprep.subr.mxu0 0.0
  %3500 = vmatpush1.msra.mxu0 0.0
  %3501 = vmatprep.subr.mxu0 0.0
  %3502 = vmatpush1.msra.mxu0 0.0
  %3503 = vmatprep.subr.mxu0 0.0
  %3504 = vmatpush1.msra.mxu0 0.0
  %3505 = vmatprep.subr.mxu0 0.0
  %3506 = vmatpush1.msra.mxu0 0.0
  %3507 = vmatprep.subr.mxu0 0.0
  %3508 = vmatpush1.msra.mxu0 0.0
  %3509 = vmatprep.subr.mxu0 0.0
  %3510 = vmatpush1.msra.mxu0 0.0
  %3511 = vmatprep.subr.mxu0 0.0
  %3512 = vmatpush1.msra.mxu0 0.0
  %3513 = vmatprep.subr.mxu0 0.0
  %3514 = vmatpush1.msra.mxu0 0.0
  %3515 = vmatprep.subr.mxu0 0.0
  %3516 = vmatpush1.msra.mxu0 0.0
  %3517 = vmatprep.subr.mxu0 0.0
  %3518 = vmatpush1.msra.mxu0 0.0
  %3519 = vmatprep.mubr.f32.mxu0 0.0
  %3520 = vmatmul.mubr.f32.gmra.mrb[0].mxu0 %v3292
  %v3521 = vpop.f32.mrb[0].mxu0
  %v3522 = vadd.f32 %v3454, %v3521
  %v3523 = vpop.f32.mrb[0].mxu0
  %3524 = vmatprep.mubr.f32.mxu0 0.0
  %3525 = vmatmul.mubr.f32.gmra.mrb[0].mxu0 %v3295
  %v3526 = vpop.f32.mrb[0].mxu0
  %v3527 = vadd.f32 %v3454, %v3526
  %v3528 = vpop.f32.mrb[0].mxu0
  %3529 = vdwg.mxu0
  %vm3530 = vcmask 97280
  %v3532 = vsel %vm3530, %v321, 0
  %v3535 = vsel %vm3530, %v322, 0
  %v3538 = vsel %vm3530, %v323, 0
  %v3541 = vsel %vm3530, %v324, 0
  %v3544 = vsel %vm3530, %v325, 0
  %v3547 = vsel %vm3530, %v326, 0
  %vm3549 = vcmask 1043456
  %v3551 = vsel %vm3549, %v3369, 0
  %3553 = vmatprep.subr.mxu0 0.0
  %3554 = vmatpush1.msra.mxu0 %v3364
  %3555 = vmatprep.subr.mxu0 0.0
  %3556 = vmatpush1.msra.mxu0 %v3551
  %3557 = vmatprep.subr.mxu0 0.0
  %3558 = vmatpush1.msra.mxu0 0.0
  %3559 = vmatprep.subr.mxu0 0.0
  %3560 = vmatpush1.msra.mxu0 0.0
  %3561 = vmatprep.subr.mxu0 0.0
  %3562 = vmatpush1.msra.mxu0 0.0
  %3563 = vmatprep.subr.mxu0 0.0
  %3564 = vmatpush1.msra.mxu0 0.0
  %3565 = vmatprep.subr.mxu0 0.0
  %3566 = vmatpush1.msra.mxu0 0.0
  %3567 = vmatprep.subr.mxu0 0.0
  %3568 = vmatpush1.msra.mxu0 0.0
  %3569 = vmatprep.subr.mxu0 0.0
  %3570 = vmatpush1.msra.mxu0 0.0
  %3571 = vmatprep.subr.mxu0 0.0
  %3572 = vmatpush1.msra.mxu0 0.0
  %3573 = vmatprep.subr.mxu0 0.0
  %3574 = vmatpush1.msra.mxu0 0.0
  %3575 = vmatprep.subr.mxu0 0.0
  %3576 = vmatpush1.msra.mxu0 0.0
  %3577 = vmatprep.subr.mxu0 0.0
  %3578 = vmatpush1.msra.mxu0 0.0
  %3579 = vmatprep.subr.mxu0 0.0
  %3580 = vmatpush1.msra.mxu0 0.0
  %3581 = vmatprep.subr.mxu0 0.0
  %3582 = vmatpush1.msra.mxu0 0.0
  %3583 = vmatprep.subr.mxu0 0.0
  %3584 = vmatpush1.msra.mxu0 0.0
  %3585 = vmatprep.subr.mxu0 0.0
  %3586 = vmatpush1.msra.mxu0 0.0
  %3587 = vmatprep.subr.mxu0 0.0
  %3588 = vmatpush1.msra.mxu0 0.0
  %3589 = vmatprep.subr.mxu0 0.0
  %3590 = vmatpush1.msra.mxu0 0.0
  %3591 = vmatprep.subr.mxu0 0.0
  %3592 = vmatpush1.msra.mxu0 0.0
  %3593 = vmatprep.subr.mxu0 0.0
  %3594 = vmatpush1.msra.mxu0 0.0
  %3595 = vmatprep.subr.mxu0 0.0
  %3596 = vmatpush1.msra.mxu0 0.0
  %3597 = vmatprep.subr.mxu0 0.0
  %3598 = vmatpush1.msra.mxu0 0.0
  %3599 = vmatprep.subr.mxu0 0.0
  %3600 = vmatpush1.msra.mxu0 0.0
  %3601 = vmatprep.subr.mxu0 0.0
  %3602 = vmatpush1.msra.mxu0 0.0
  %3603 = vmatprep.subr.mxu0 0.0
  %3604 = vmatpush1.msra.mxu0 0.0
  %3605 = vmatprep.subr.mxu0 0.0
  %3606 = vmatpush1.msra.mxu0 0.0
  %3607 = vmatprep.subr.mxu0 0.0
  %3608 = vmatpush1.msra.mxu0 0.0
  %3609 = vmatprep.subr.mxu0 0.0
  %3610 = vmatpush1.msra.mxu0 0.0
  %3611 = vmatprep.subr.mxu0 0.0
  %3612 = vmatpush1.msra.mxu0 0.0
  %3613 = vmatprep.subr.mxu0 0.0
  %3614 = vmatpush1.msra.mxu0 0.0
  %3615 = vmatprep.subr.mxu0 0.0
  %3616 = vmatpush1.msra.mxu0 0.0
  %3617 = vmatprep.mubr.f32.mxu0 0.0
  %3618 = vmatmul.mubr.f32.gmra.mrb[0].mxu0 %v3532
  %v3619 = vpop.f32.mrb[0].mxu0
  %v3620 = vadd.f32 0.0, %v3619
  %v3621 = vpop.f32.mrb[0].mxu0
  %3622 = vmatprep.mubr.f32.mxu0 0.0
  %3623 = vmatmul.mubr.f32.gmra.mrb[0].mxu0 %v3535
  %v3624 = vpop.f32.mrb[0].mxu0
  %v3625 = vadd.f32 0.0, %v3624
  %v3626 = vpop.f32.mrb[0].mxu0
  %3627 = vmatprep.mubr.f32.mxu0 0.0
  %3628 = vmatmul.mubr.f32.gmra.mrb[0].mxu0 %v3538
  %v3629 = vpop.f32.mrb[0].mxu0
  %v3630 = vadd.f32 0.0, %v3629
  %v3631 = vpop.f32.mrb[0].mxu0
  %3632 = vmatprep.mubr.f32.mxu0 0.0
  %3633 = vmatmul.mubr.f32.gmra.mrb[0].mxu0 %v3541
  %v3634 = vpop.f32.mrb[0].mxu0
  %v3635 = vadd.f32 0.0, %v3634
  %v3636 = vpop.f32.mrb[0].mxu0
  %3637 = vmatprep.mubr.f32.mxu0 0.0
  %3638 = vmatmul.mubr.f32.gmra.mrb[0].mxu0 %v3544
  %v3639 = vpop.f32.mrb[0].mxu0
  %v3640 = vadd.f32 0.0, %v3639
  %v3641 = vpop.f32.mrb[0].mxu0
  %3642 = vmatprep.mubr.f32.mxu0 0.0
  %3643 = vmatmul.mubr.f32.gmra.mrb[0].mxu0 %v3547
  %v3644 = vpop.f32.mrb[0].mxu0
  %v3645 = vadd.f32 0.0, %v3644
  %v3646 = vpop.f32.mrb[0].mxu0
  %3647 = vdwg.mxu0
  %v3648 = vsel %vm339, %v3620, 0.0
  %v3649 = vsel %vm340, %v3625, 0.0
  %v3650 = vsel %vm341, %v3630, 0.0
  %v3651 = vsel %vm342, %v3635, 0.0
  %v3652 = vsel %vm343, %v3640, 0.0
  %v3653 = vsel %vm344, %v3645, 0.0
  %v3655 = vsel %vm554, %v3648, 0
  %v3658 = vsel %vm554, %v3649, 0
  %v3661 = vsel %vm554, %v3650, 0
  %v3664 = vsel %vm554, %v3651, 0
  %v3667 = vsel %vm554, %v3652, 0
  %v3670 = vsel %vm554, %v3653, 0
  %v3673 = vsel %vm554, %v3443, 0
  %v3676 = vsel %vm554, %v3448, 0
  %3678 = vmatprep.subr.mxu0 0.0
  %3679 = vmatpush1.xpose.msra.mxu0 %v3673
  %3680 = vmatprep.subr.mxu0 0.0
  %3681 = vmatpush1.xpose.msra.mxu0 %v3676
  %3682 = vmatprep.subr.mxu0 0.0
  %3683 = vmatpush1.xpose.msra.mxu0 0.0
  %3684 = vmatprep.subr.mxu0 0.0
  %3685 = vmatpush1.xpose.msra.mxu0 0.0
  %3686 = vmatprep.subr.mxu0 0.0
  %3687 = vmatpush1.xpose.msra.mxu0 0.0
  %3688 = vmatprep.subr.mxu0 0.0
  %3689 = vmatpush1.xpose.msra.mxu0 0.0
  %3690 = vmatprep.subr.mxu0 0.0
  %3691 = vmatpush1.xpose.msra.mxu0 0.0
  %3692 = vmatprep.subr.mxu0 0.0
  %3693 = vmatpush1.xpose.msra.mxu0 0.0
  %3694 = vmatprep.subr.mxu0 0.0
  %3695 = vmatpush1.xpose.msra.mxu0 0.0
  %3696 = vmatprep.subr.mxu0 0.0
  %3697 = vmatpush1.xpose.msra.mxu0 0.0
  %3698 = vmatprep.subr.mxu0 0.0
  %3699 = vmatpush1.xpose.msra.mxu0 0.0
  %3700 = vmatprep.subr.mxu0 0.0
  %3701 = vmatpush1.xpose.msra.mxu0 0.0
  %3702 = vmatprep.subr.mxu0 0.0
  %3703 = vmatpush1.xpose.msra.mxu0 0.0
  %3704 = vmatprep.subr.mxu0 0.0
  %3705 = vmatpush1.xpose.msra.mxu0 0.0
  %3706 = vmatprep.subr.mxu0 0.0
  %3707 = vmatpush1.xpose.msra.mxu0 0.0
  %3708 = vmatprep.subr.mxu0 0.0
  %3709 = vmatpush1.xpose.msra.mxu0 0.0
  %3710 = vmatprep.subr.mxu0 0.0
  %3711 = vmatpush1.xpose.msra.mxu0 0.0
  %3712 = vmatprep.subr.mxu0 0.0
  %3713 = vmatpush1.xpose.msra.mxu0 0.0
  %3714 = vmatprep.subr.mxu0 0.0
  %3715 = vmatpush1.xpose.msra.mxu0 0.0
  %3716 = vmatprep.subr.mxu0 0.0
  %3717 = vmatpush1.xpose.msra.mxu0 0.0
  %3718 = vmatprep.subr.mxu0 0.0
  %3719 = vmatpush1.xpose.msra.mxu0 0.0
  %3720 = vmatprep.subr.mxu0 0.0
  %3721 = vmatpush1.xpose.msra.mxu0 0.0
  %3722 = vmatprep.subr.mxu0 0.0
  %3723 = vmatpush1.xpose.msra.mxu0 0.0
  %3724 = vmatprep.subr.mxu0 0.0
  %3725 = vmatpush1.xpose.msra.mxu0 0.0
  %3726 = vmatprep.subr.mxu0 0.0
  %3727 = vmatpush1.xpose.msra.mxu0 0.0
  %3728 = vmatprep.subr.mxu0 0.0
  %3729 = vmatpush1.xpose.msra.mxu0 0.0
  %3730 = vmatprep.subr.mxu0 0.0
  %3731 = vmatpush1.xpose.msra.mxu0 0.0
  %3732 = vmatprep.subr.mxu0 0.0
  %3733 = vmatpush1.xpose.msra.mxu0 0.0
  %3734 = vmatprep.subr.mxu0 0.0
  %3735 = vmatpush1.xpose.msra.mxu0 0.0
  %3736 = vmatprep.subr.mxu0 0.0
  %3737 = vmatpush1.xpose.msra.mxu0 0.0
  %3738 = vmatprep.subr.mxu0 0.0
  %3739 = vmatpush1.xpose.msra.mxu0 0.0
  %3740 = vmatprep.subr.mxu0 0.0
  %3741 = vmatpush1.xpose.msra.mxu0 0.0
  %3742 = vmatprep.mubr.f32.mxu0 0.0
  %3743 = vmatmul.mubr.f32.gmra.mrb[0].mxu0 %v3655
  %v3744 = vpop.f32.mrb[0].mxu0
  %v3745 = vadd.f32 0.0, %v3744
  %v3746 = vpop.f32.mrb[0].mxu0
  %3747 = vmatprep.mubr.f32.mxu0 0.0
  %3748 = vmatmul.mubr.f32.gmra.mrb[0].mxu0 %v3658
  %v3749 = vpop.f32.mrb[0].mxu0
  %v3750 = vadd.f32 0.0, %v3749
  %v3751 = vpop.f32.mrb[0].mxu0
  %3752 = vmatprep.mubr.f32.mxu0 0.0
  %3753 = vmatmul.mubr.f32.gmra.mrb[0].mxu0 %v3661
  %v3754 = vpop.f32.mrb[0].mxu0
  %v3755 = vadd.f32 0.0, %v3754
  %v3756 = vpop.f32.mrb[0].mxu0
  %3757 = vmatprep.mubr.f32.mxu0 0.0
  %3758 = vmatmul.mubr.f32.gmra.mrb[0].mxu0 %v3664
  %v3759 = vpop.f32.mrb[0].mxu0
  %v3760 = vadd.f32 0.0, %v3759
  %v3761 = vpop.f32.mrb[0].mxu0
  %3762 = vmatprep.mubr.f32.mxu0 0.0
  %3763 = vmatmul.mubr.f32.gmra.mrb[0].mxu0 %v3667
  %v3764 = vpop.f32.mrb[0].mxu0
  %v3765 = vadd.f32 0.0, %v3764
  %v3766 = vpop.f32.mrb[0].mxu0
  %3767 = vmatprep.mubr.f32.mxu0 0.0
  %3768 = vmatmul.mubr.f32.gmra.mrb[0].mxu0 %v3670
  %v3769 = vpop.f32.mrb[0].mxu0
  %v3770 = vadd.f32 0.0, %v3769
  %v3771 = vpop.f32.mrb[0].mxu0
  %3772 = vdwg.mxu0
  %vm3773 = vcmp.ge.s32.totalorder %v309, 6
  %vm3774 = vcmp.ge.s32.totalorder %v310, 6
  %vm3775 = vcmp.ge.s32.totalorder %v311, 6
  %vm3776 = vcmp.ge.s32.totalorder %v312, 6
  %vm3777 = vcmp.ge.s32.totalorder %v313, 6
  %vm3778 = vcmp.ge.s32.totalorder %v314, 6
  %v3779 = vsel %vm3773, 1, 0
  %v3780 = vsel %vm3774, 1, 0
  %v3781 = vsel %vm3775, 1, 0
  %v3782 = vsel %vm3776, 1, 0
  %v3783 = vsel %vm3777, 1, 0
  %v3784 = vsel %vm3778, 1, 0
  %vm3785 = vcmp.ge.s32.totalorder %v34, 6
  %v3786 = vsel %vm3785, 1, 0
  %vm3787 = vcmp.eq.s32.totalorder %v3779, %v3786
  %vm3788 = vcmp.eq.s32.totalorder %v3780, %v3786
  %vm3789 = vcmp.eq.s32.totalorder %v3781, %v3786
  %vm3790 = vcmp.eq.s32.totalorder %v3782, %v3786
  %vm3791 = vcmp.eq.s32.totalorder %v3783, %v3786
  %vm3792 = vcmp.eq.s32.totalorder %v3784, %v3786
  %v3793 = vsel %vm3787, %v3745, -1e+30
  %v3794 = vsel %vm3788, %v3750, -1e+30
  %v3795 = vsel %vm3789, %v3755, -1e+30
  %v3796 = vsel %vm3790, %v3760, -1e+30
  %v3797 = vsel %vm3791, %v3765, -1e+30
  %v3798 = vsel %vm3792, %v3770, -1e+30
  %v3799 = vsel %vm3530, %v3793, -inf
  %3800 = vmax.xlane.f32.xlu0 %v3799
  %v3801 = vpop.xlane.xlu0 %3800
  %v3802 = vsel %vm3530, %v3794, -inf
  %3803 = vmax.xlane.f32.xlu0 %v3802
  %v3804 = vpop.xlane.xlu0 %3803
  %v3805 = vsel %vm3530, %v3795, -inf
  %3806 = vmax.xlane.f32.xlu0 %v3805
  %v3807 = vpop.xlane.xlu0 %3806
  %v3808 = vsel %vm3530, %v3796, -inf
  %3809 = vmax.xlane.f32.xlu0 %v3808
  %v3810 = vpop.xlane.xlu0 %3809
  %v3811 = vsel %vm3530, %v3797, -inf
  %3812 = vmax.xlane.f32.xlu0 %v3811
  %v3813 = vpop.xlane.xlu0 %3812
  %v3814 = vsel %vm3530, %v3798, -inf
  %3815 = vmax.xlane.f32.xlu0 %v3814
  %v3816 = vpop.xlane.xlu0 %3815
  %v3817 = vsub.f32 %v3793, %v3801
  %v3818 = vsub.f32 %v3794, %v3804
  %v3819 = vsub.f32 %v3795, %v3807
  %v3820 = vsub.f32 %v3796, %v3810
  %v3821 = vsub.f32 %v3797, %v3813
  %v3822 = vsub.f32 %v3798, %v3816
  %v3823 = vmul.f32 %v3817, 1.442695
  %v3824 = vpow.pop %v3823
  %v3825 = vmul.f32 %v3818, 1.442695
  %v3826 = vpow.pop %v3825
  %v3827 = vmul.f32 %v3819, 1.442695
  %v3828 = vpow.pop %v3827
  %v3829 = vmul.f32 %v3820, 1.442695
  %v3830 = vpow.pop %v3829
  %v3831 = vmul.f32 %v3821, 1.442695
  %v3832 = vpow.pop %v3831
  %v3833 = vmul.f32 %v3822, 1.442695
  %v3834 = vpow.pop %v3833
  %v3835 = vsel %vm3530, %v3824, 0.0
  %3836 = vadd.xlane.f32.xlu0 %v3835
  %v3837 = vpop.xlane.xlu0 %3836
  %v3838 = vsel %vm3530, %v3826, 0.0
  %3839 = vadd.xlane.f32.xlu0 %v3838
  %v3840 = vpop.xlane.xlu0 %3839
  %v3841 = vsel %vm3530, %v3828, 0.0
  %3842 = vadd.xlane.f32.xlu0 %v3841
  %v3843 = vpop.xlane.xlu0 %3842
  %v3844 = vsel %vm3530, %v3830, 0.0
  %3845 = vadd.xlane.f32.xlu0 %v3844
  %v3846 = vpop.xlane.xlu0 %3845
  %v3847 = vsel %vm3530, %v3832, 0.0
  %3848 = vadd.xlane.f32.xlu0 %v3847
  %v3849 = vpop.xlane.xlu0 %3848
  %v3850 = vsel %vm3530, %v3834, 0.0
  %3851 = vadd.xlane.f32.xlu0 %v3850
  %v3852 = vpop.xlane.xlu0 %3851
  %v3853 = vrcp.pop %v3837
  %v3854 = vmul.f32 %v3824, %v3853
  %v3855 = vrcp.pop %v3840
  %v3856 = vmul.f32 %v3826, %v3855
  %v3857 = vrcp.pop %v3843
  %v3858 = vmul.f32 %v3828, %v3857
  %v3859 = vrcp.pop %v3846
  %v3860 = vmul.f32 %v3830, %v3859
  %v3861 = vrcp.pop %v3849
  %v3862 = vmul.f32 %v3832, %v3861
  %v3863 = vrcp.pop %v3852
  %v3864 = vmul.f32 %v3834, %v3863
  %v3866 = vsel %vm3530, %v3854, 0
  %v3869 = vsel %vm3530, %v3856, 0
  %v3872 = vsel %vm3530, %v3858, 0
  %v3875 = vsel %vm3530, %v3860, 0
  %v3878 = vsel %vm3530, %v3862, 0
  %v3881 = vsel %vm3530, %v3864, 0
  %v3884 = vsel %vm3549, %v3527, 0
  %3886 = vmatprep.subr.mxu0 0.0
  %3887 = vmatpush1.msra.mxu0 %v3522
  %3888 = vmatprep.subr.mxu0 0.0
  %3889 = vmatpush1.msra.mxu0 %v3884
  %3890 = vmatprep.subr.mxu0 0.0
  %3891 = vmatpush1.msra.mxu0 0.0
  %3892 = vmatprep.subr.mxu0 0.0
  %3893 = vmatpush1.msra.mxu0 0.0
  %3894 = vmatprep.subr.mxu0 0.0
  %3895 = vmatpush1.msra.mxu0 0.0
  %3896 = vmatprep.subr.mxu0 0.0
  %3897 = vmatpush1.msra.mxu0 0.0
  %3898 = vmatprep.subr.mxu0 0.0
  %3899 = vmatpush1.msra.mxu0 0.0
  %3900 = vmatprep.subr.mxu0 0.0
  %3901 = vmatpush1.msra.mxu0 0.0
  %3902 = vmatprep.subr.mxu0 0.0
  %3903 = vmatpush1.msra.mxu0 0.0
  %3904 = vmatprep.subr.mxu0 0.0
  %3905 = vmatpush1.msra.mxu0 0.0
  %3906 = vmatprep.subr.mxu0 0.0
  %3907 = vmatpush1.msra.mxu0 0.0
  %3908 = vmatprep.subr.mxu0 0.0
  %3909 = vmatpush1.msra.mxu0 0.0
  %3910 = vmatprep.subr.mxu0 0.0
  %3911 = vmatpush1.msra.mxu0 0.0
  %3912 = vmatprep.subr.mxu0 0.0
  %3913 = vmatpush1.msra.mxu0 0.0
  %3914 = vmatprep.subr.mxu0 0.0
  %3915 = vmatpush1.msra.mxu0 0.0
  %3916 = vmatprep.subr.mxu0 0.0
  %3917 = vmatpush1.msra.mxu0 0.0
  %3918 = vmatprep.subr.mxu0 0.0
  %3919 = vmatpush1.msra.mxu0 0.0
  %3920 = vmatprep.subr.mxu0 0.0
  %3921 = vmatpush1.msra.mxu0 0.0
  %3922 = vmatprep.subr.mxu0 0.0
  %3923 = vmatpush1.msra.mxu0 0.0
  %3924 = vmatprep.subr.mxu0 0.0
  %3925 = vmatpush1.msra.mxu0 0.0
  %3926 = vmatprep.subr.mxu0 0.0
  %3927 = vmatpush1.msra.mxu0 0.0
  %3928 = vmatprep.subr.mxu0 0.0
  %3929 = vmatpush1.msra.mxu0 0.0
  %3930 = vmatprep.subr.mxu0 0.0
  %3931 = vmatpush1.msra.mxu0 0.0
  %3932 = vmatprep.subr.mxu0 0.0
  %3933 = vmatpush1.msra.mxu0 0.0
  %3934 = vmatprep.subr.mxu0 0.0
  %3935 = vmatpush1.msra.mxu0 0.0
  %3936 = vmatprep.subr.mxu0 0.0
  %3937 = vmatpush1.msra.mxu0 0.0
  %3938 = vmatprep.subr.mxu0 0.0
  %3939 = vmatpush1.msra.mxu0 0.0
  %3940 = vmatprep.subr.mxu0 0.0
  %3941 = vmatpush1.msra.mxu0 0.0
  %3942 = vmatprep.subr.mxu0 0.0
  %3943 = vmatpush1.msra.mxu0 0.0
  %3944 = vmatprep.subr.mxu0 0.0
  %3945 = vmatpush1.msra.mxu0 0.0
  %3946 = vmatprep.subr.mxu0 0.0
  %3947 = vmatpush1.msra.mxu0 0.0
  %3948 = vmatprep.subr.mxu0 0.0
  %3949 = vmatpush1.msra.mxu0 0.0
  %3950 = vmatprep.mubr.f32.mxu0 0.0
  %3951 = vmatmul.mubr.f32.gmra.mrb[0].mxu0 %v3866
  %v3952 = vpop.f32.mrb[0].mxu0
  %v3953 = vadd.f32 0.0, %v3952
  %v3954 = vpop.f32.mrb[0].mxu0
  %3955 = vmatprep.mubr.f32.mxu0 0.0
  %3956 = vmatmul.mubr.f32.gmra.mrb[0].mxu0 %v3869
  %v3957 = vpop.f32.mrb[0].mxu0
  %v3958 = vadd.f32 0.0, %v3957
  %v3959 = vpop.f32.mrb[0].mxu0
  %3960 = vmatprep.mubr.f32.mxu0 0.0
  %3961 = vmatmul.mubr.f32.gmra.mrb[0].mxu0 %v3872
  %v3962 = vpop.f32.mrb[0].mxu0
  %v3963 = vadd.f32 0.0, %v3962
  %v3964 = vpop.f32.mrb[0].mxu0
  %3965 = vmatprep.mubr.f32.mxu0 0.0
  %3966 = vmatmul.mubr.f32.gmra.mrb[0].mxu0 %v3875
  %v3967 = vpop.f32.mrb[0].mxu0
  %v3968 = vadd.f32 0.0, %v3967
  %v3969 = vpop.f32.mrb[0].mxu0
  %3970 = vmatprep.mubr.f32.mxu0 0.0
  %3971 = vmatmul.mubr.f32.gmra.mrb[0].mxu0 %v3878
  %v3972 = vpop.f32.mrb[0].mxu0
  %v3973 = vadd.f32 0.0, %v3972
  %v3974 = vpop.f32.mrb[0].mxu0
  %3975 = vmatprep.mubr.f32.mxu0 0.0
  %3976 = vmatmul.mubr.f32.gmra.mrb[0].mxu0 %v3881
  %v3977 = vpop.f32.mrb[0].mxu0
  %v3978 = vadd.f32 0.0, %v3977
  %v3979 = vpop.f32.mrb[0].mxu0
  %3980 = vdwg.mxu0
  %v3981 = vsel %vm339, %v3953, 0.0
  %v3982 = vsel %vm340, %v3958, 0.0
  %v3983 = vsel %vm341, %v3963, 0.0
  %v3984 = vsel %vm342, %v3968, 0.0
  %v3985 = vsel %vm343, %v3973, 0.0
  %v3986 = vsel %vm344, %v3978, 0.0
  %vm3987 = vcmask 392192
  %v3989 = vsel %vm3987, %v337, 0
  %v3992 = vsel %vm3987, %v338, 0
  %3994 = vmatprep.subr.mxu0 0.0
  %3995 = vmatpush1.msra.mxu0 %v3981
  %3996 = vmatprep.subr.mxu0 0.0
  %3997 = vmatpush1.msra.mxu0 %v3982
  %3998 = vmatprep.subr.mxu0 0.0
  %3999 = vmatpush1.msra.mxu0 %v3983
  %4000 = vmatprep.subr.mxu0 0.0
  %4001 = vmatpush1.msra.mxu0 %v3984
  %4002 = vmatprep.subr.mxu0 0.0
  %4003 = vmatpush1.msra.mxu0 %v3985
  %4004 = vmatprep.subr.mxu0 0.0
  %4005 = vmatpush1.msra.mxu0 %v3986
  %4006 = vmatprep.subr.mxu0 0.0
  %4007 = vmatpush1.msra.mxu0 0.0
  %4008 = vmatprep.subr.mxu0 0.0
  %4009 = vmatpush1.msra.mxu0 0.0
  %4010 = vmatprep.subr.mxu0 0.0
  %4011 = vmatpush1.msra.mxu0 0.0
  %4012 = vmatprep.subr.mxu0 0.0
  %4013 = vmatpush1.msra.mxu0 0.0
  %4014 = vmatprep.subr.mxu0 0.0
  %4015 = vmatpush1.msra.mxu0 0.0
  %4016 = vmatprep.subr.mxu0 0.0
  %4017 = vmatpush1.msra.mxu0 0.0
  %4018 = vmatprep.subr.mxu0 0.0
  %4019 = vmatpush1.msra.mxu0 0.0
  %4020 = vmatprep.subr.mxu0 0.0
  %4021 = vmatpush1.msra.mxu0 0.0
  %4022 = vmatprep.subr.mxu0 0.0
  %4023 = vmatpush1.msra.mxu0 0.0
  %4024 = vmatprep.subr.mxu0 0.0
  %4025 = vmatpush1.msra.mxu0 0.0
  %4026 = vmatprep.subr.mxu0 0.0
  %4027 = vmatpush1.msra.mxu0 0.0
  %4028 = vmatprep.subr.mxu0 0.0
  %4029 = vmatpush1.msra.mxu0 0.0
  %4030 = vmatprep.subr.mxu0 0.0
  %4031 = vmatpush1.msra.mxu0 0.0
  %4032 = vmatprep.subr.mxu0 0.0
  %4033 = vmatpush1.msra.mxu0 0.0
  %4034 = vmatprep.subr.mxu0 0.0
  %4035 = vmatpush1.msra.mxu0 0.0
  %4036 = vmatprep.subr.mxu0 0.0
  %4037 = vmatpush1.msra.mxu0 0.0
  %4038 = vmatprep.subr.mxu0 0.0
  %4039 = vmatpush1.msra.mxu0 0.0
  %4040 = vmatprep.subr.mxu0 0.0
  %4041 = vmatpush1.msra.mxu0 0.0
  %4042 = vmatprep.subr.mxu0 0.0
  %4043 = vmatpush1.msra.mxu0 0.0
  %4044 = vmatprep.subr.mxu0 0.0
  %4045 = vmatpush1.msra.mxu0 0.0
  %4046 = vmatprep.subr.mxu0 0.0
  %4047 = vmatpush1.msra.mxu0 0.0
  %4048 = vmatprep.subr.mxu0 0.0
  %4049 = vmatpush1.msra.mxu0 0.0
  %4050 = vmatprep.subr.mxu0 0.0
  %4051 = vmatpush1.msra.mxu0 0.0
  %4052 = vmatprep.subr.mxu0 0.0
  %4053 = vmatpush1.msra.mxu0 0.0
  %4054 = vmatprep.subr.mxu0 0.0
  %4055 = vmatpush1.msra.mxu0 0.0
  %4056 = vmatprep.subr.mxu0 0.0
  %4057 = vmatpush1.msra.mxu0 0.0
  %4058 = vmatprep.mubr.f32.mxu0 0.0
  %4059 = vmatmul.mubr.f32.gmra.mrb[0].mxu0 %v3989
  %v4060 = vpop.f32.mrb[0].mxu0
  %v4061 = vadd.f32 0.0, %v4060
  %v4062 = vpop.f32.mrb[0].mxu0
  %4063 = vmatprep.mubr.f32.mxu0 0.0
  %4064 = vmatmul.mubr.f32.gmra.mrb[0].mxu0 %v3992
  %v4065 = vpop.f32.mrb[0].mxu0
  %v4066 = vadd.f32 0.0, %v4065
  %v4067 = vpop.f32.mrb[0].mxu0
  %4068 = vdwg.mxu0
  %v4069 = vlaneseq
  %v4070 = vshrl.u32 %v4069, 7
  %v4071 = vsub.s32 0, %v4070
  %v4072 = vrot.slane %v3284, %v4071
  %v4074 = vsel %vm554, %v4061, 0
  %v4077 = vsel %vm554, %v4066, 0
  %4079 = vmatprep.subr.mxu0 0.0
  %4080 = vmatpush1.msra.mxu0 %v3273
  %4081 = vmatprep.subr.mxu0 0.0
  %4082 = vmatpush1.msra.mxu0 %v3274
  %4083 = vmatprep.subr.mxu0 0.0
  %4084 = vmatpush1.msra.mxu0 %v3275
  %4085 = vmatprep.subr.mxu0 0.0
  %4086 = vmatpush1.msra.mxu0 %v3276
  %4087 = vmatprep.subr.mxu0 0.0
  %4088 = vmatpush1.msra.mxu0 %v3277
  %4089 = vmatprep.subr.mxu0 0.0
  %4090 = vmatpush1.msra.mxu0 %v3278
  %4091 = vmatprep.subr.mxu0 0.0
  %4092 = vmatpush1.msra.mxu0 %v3279
  %4093 = vmatprep.subr.mxu0 0.0
  %4094 = vmatpush1.msra.mxu0 %v3280
  %4095 = vmatprep.subr.mxu0 0.0
  %4096 = vmatpush1.msra.mxu0 0.0
  %4097 = vmatprep.subr.mxu0 0.0
  %4098 = vmatpush1.msra.mxu0 0.0
  %4099 = vmatprep.subr.mxu0 0.0
  %4100 = vmatpush1.msra.mxu0 0.0
  %4101 = vmatprep.subr.mxu0 0.0
  %4102 = vmatpush1.msra.mxu0 0.0
  %4103 = vmatprep.subr.mxu0 0.0
  %4104 = vmatpush1.msra.mxu0 0.0
  %4105 = vmatprep.subr.mxu0 0.0
  %4106 = vmatpush1.msra.mxu0 0.0
  %4107 = vmatprep.subr.mxu0 0.0
  %4108 = vmatpush1.msra.mxu0 0.0
  %4109 = vmatprep.subr.mxu0 0.0
  %4110 = vmatpush1.msra.mxu0 0.0
  %4111 = vmatprep.subr.mxu0 0.0
  %4112 = vmatpush1.msra.mxu0 0.0
  %4113 = vmatprep.subr.mxu0 0.0
  %4114 = vmatpush1.msra.mxu0 0.0
  %4115 = vmatprep.subr.mxu0 0.0
  %4116 = vmatpush1.msra.mxu0 0.0
  %4117 = vmatprep.subr.mxu0 0.0
  %4118 = vmatpush1.msra.mxu0 0.0
  %4119 = vmatprep.subr.mxu0 0.0
  %4120 = vmatpush1.msra.mxu0 0.0
  %4121 = vmatprep.subr.mxu0 0.0
  %4122 = vmatpush1.msra.mxu0 0.0
  %4123 = vmatprep.subr.mxu0 0.0
  %4124 = vmatpush1.msra.mxu0 0.0
  %4125 = vmatprep.subr.mxu0 0.0
  %4126 = vmatpush1.msra.mxu0 0.0
  %4127 = vmatprep.subr.mxu0 0.0
  %4128 = vmatpush1.msra.mxu0 0.0
  %4129 = vmatprep.subr.mxu0 0.0
  %4130 = vmatpush1.msra.mxu0 0.0
  %4131 = vmatprep.subr.mxu0 0.0
  %4132 = vmatpush1.msra.mxu0 0.0
  %4133 = vmatprep.subr.mxu0 0.0
  %4134 = vmatpush1.msra.mxu0 0.0
  %4135 = vmatprep.subr.mxu0 0.0
  %4136 = vmatpush1.msra.mxu0 0.0
  %4137 = vmatprep.subr.mxu0 0.0
  %4138 = vmatpush1.msra.mxu0 0.0
  %4139 = vmatprep.subr.mxu0 0.0
  %4140 = vmatpush1.msra.mxu0 0.0
  %4141 = vmatprep.subr.mxu0 0.0
  %4142 = vmatpush1.msra.mxu0 0.0
  %4143 = vmatprep.mubr.f32.mxu0 0.0
  %4144 = vmatmul.mubr.f32.gmra.mrb[0].mxu0 %v4074
  %v4145 = vpop.f32.mrb[0].mxu0
  %v4146 = vadd.f32 %v4072, %v4145
  %v4147 = vpop.f32.mrb[0].mxu0
  %4148 = vmatprep.mubr.f32.mxu0 0.0
  %4149 = vmatmul.mubr.f32.gmra.mrb[0].mxu0 %v4077
  %v4150 = vpop.f32.mrb[0].mxu0
  %v4151 = vadd.f32 %v4072, %v4150
  %v4152 = vpop.f32.mrb[0].mxu0
  %4153 = vdwg.mxu0
  %v4154 = vadd.f32 %v3243, %v4146
  %v4155 = vadd.f32 %v3244, %v4151
  %v4156 = vsel %vm554, %v4154, 0.0
  %4157 = vadd.xlane.f32.xlu0 %v4156
  %v4158 = vpop.xlane.xlu0 %4157
  %vm4159 = vcmask 519168
  %v4160 = vsel %vm4159, %v4155, 0.0
  %4161 = vadd.xlane.f32.xlu0 %v4160
  %v4162 = vpop.xlane.xlu0 %4161
  %v4163 = vmul.f32 %v4158, %v2032
  %v4164 = vmul.f32 %v4162, %v2032
  %v4165 = vsub.f32 %v4154, %v4163
  %v4166 = vsub.f32 %v4155, %v4164
  %v4167 = vmul.f32 %v4165, %v4165
  %v4168 = vmul.f32 %v4166, %v4166
  %v4169 = vsel %vm554, %v4167, 0.0
  %4170 = vadd.xlane.f32.xlu0 %v4169
  %v4171 = vpop.xlane.xlu0 %4170
  %v4172 = vsel %vm4159, %v4168, 0.0
  %4173 = vadd.xlane.f32.xlu0 %v4172
  %v4174 = vpop.xlane.xlu0 %4173
  %v4175 = vmul.f32 %v4171, %v2032
  %v4176 = vmul.f32 %v4174, %v2032
  %v4177 = vadd.f32 %v4175, 1e-05
  %v4178 = vadd.f32 %v4176, 1e-05
  %v4179 = vrsqrt.pop %v4177
  %v4180 = vrsqrt.pop %v4178
  %v4181 = vmul.f32 %v4165, %v4179
  %v4182 = vmul.f32 %v4166, %v4180
  %v4183 = vlaneseq
  %v4184 = vshrl.u32 %v4183, 7
  %v4185 = vsub.s32 0, %v4184
  %v4186 = vrot.slane %v3285, %v4185
  %v4187 = vmul.f32 %v4181, %v4186
  %v4188 = vmul.f32 %v4182, %v4186
  %v4189 = vlaneseq
  %v4190 = vshrl.u32 %v4189, 7
  %v4191 = vsub.s32 0, %v4190
  %v4192 = vrot.slane %v3286, %v4191
  %v4193 = vadd.f32 %v4187, %v4192
  %v4194 = vadd.f32 %v4188, %v4192
  %s4195 = scalar_lea.vmem %s4, 1024
  %v4196 = vld [vmem:[%s4195] sm:$0xff]
  %v4197 = vld [vmem:[%s4195 + $0x8] sm:$0xff]
  %v4198 = vld [vmem:[%s4195 + $0x10] sm:$0xff]
  %v4199 = vld [vmem:[%s4195 + $0x18] sm:$0xff]
  %v4200 = vld [vmem:[%s4195 + $0x20] sm:$0xff]
  %v4201 = vld [vmem:[%s4195 + $0x28] sm:$0xff]
  %v4202 = vld [vmem:[%s4195 + $0x30] sm:$0xff]
  %v4203 = vld [vmem:[%s4195 + $0x38] sm:$0xff]
  %s4204 = scalar_lea.vmem %s4, 1088
  %v4205 = vld [vmem:[%s4204] sm:$0xff]
  %v4206 = vld [vmem:[%s4204 + $0x8] sm:$0xff]
  %v4207 = vld [vmem:[%s4204 + $0x10] sm:$0xff]
  %v4208 = vld [vmem:[%s4204 + $0x18] sm:$0xff]
  %v4209 = vld [vmem:[%s4204 + $0x20] sm:$0xff]
  %v4210 = vld [vmem:[%s4204 + $0x28] sm:$0xff]
  %v4211 = vld [vmem:[%s4204 + $0x30] sm:$0xff]
  %v4212 = vld [vmem:[%s4204 + $0x38] sm:$0xff]
  %v4213 = vld [vmem:[%s5 + $0x14] sm:$0x1]
  %v4214 = vld [vmem:[%s5 + $0x15] sm:$0x1]
  %v4215 = vld [vmem:[%s5 + $0x16] sm:$0x1]
  %v4216 = vld [vmem:[%s5 + $0x17] sm:$0x1]
  %v4217 = vlaneseq
  %v4218 = vshrl.u32 %v4217, 7
  %v4219 = vsub.s32 0, %v4218
  %v4220 = vrot.slane %v4213, %v4219
  %v4222 = vsel %vm554, %v4193, 0
  %v4225 = vsel %vm554, %v4194, 0
  %4227 = vmatprep.subr.mxu0 0.0
  %4228 = vmatpush1.msra.mxu0 %v4196
  %4229 = vmatprep.subr.mxu0 0.0
  %4230 = vmatpush1.msra.mxu0 %v4197
  %4231 = vmatprep.subr.mxu0 0.0
  %4232 = vmatpush1.msra.mxu0 %v4198
  %4233 = vmatprep.subr.mxu0 0.0
  %4234 = vmatpush1.msra.mxu0 %v4199
  %4235 = vmatprep.subr.mxu0 0.0
  %4236 = vmatpush1.msra.mxu0 %v4200
  %4237 = vmatprep.subr.mxu0 0.0
  %4238 = vmatpush1.msra.mxu0 %v4201
  %4239 = vmatprep.subr.mxu0 0.0
  %4240 = vmatpush1.msra.mxu0 %v4202
  %4241 = vmatprep.subr.mxu0 0.0
  %4242 = vmatpush1.msra.mxu0 %v4203
  %4243 = vmatprep.subr.mxu0 0.0
  %4244 = vmatpush1.msra.mxu0 0.0
  %4245 = vmatprep.subr.mxu0 0.0
  %4246 = vmatpush1.msra.mxu0 0.0
  %4247 = vmatprep.subr.mxu0 0.0
  %4248 = vmatpush1.msra.mxu0 0.0
  %4249 = vmatprep.subr.mxu0 0.0
  %4250 = vmatpush1.msra.mxu0 0.0
  %4251 = vmatprep.subr.mxu0 0.0
  %4252 = vmatpush1.msra.mxu0 0.0
  %4253 = vmatprep.subr.mxu0 0.0
  %4254 = vmatpush1.msra.mxu0 0.0
  %4255 = vmatprep.subr.mxu0 0.0
  %4256 = vmatpush1.msra.mxu0 0.0
  %4257 = vmatprep.subr.mxu0 0.0
  %4258 = vmatpush1.msra.mxu0 0.0
  %4259 = vmatprep.subr.mxu0 0.0
  %4260 = vmatpush1.msra.mxu0 0.0
  %4261 = vmatprep.subr.mxu0 0.0
  %4262 = vmatpush1.msra.mxu0 0.0
  %4263 = vmatprep.subr.mxu0 0.0
  %4264 = vmatpush1.msra.mxu0 0.0
  %4265 = vmatprep.subr.mxu0 0.0
  %4266 = vmatpush1.msra.mxu0 0.0
  %4267 = vmatprep.subr.mxu0 0.0
  %4268 = vmatpush1.msra.mxu0 0.0
  %4269 = vmatprep.subr.mxu0 0.0
  %4270 = vmatpush1.msra.mxu0 0.0
  %4271 = vmatprep.subr.mxu0 0.0
  %4272 = vmatpush1.msra.mxu0 0.0
  %4273 = vmatprep.subr.mxu0 0.0
  %4274 = vmatpush1.msra.mxu0 0.0
  %4275 = vmatprep.subr.mxu0 0.0
  %4276 = vmatpush1.msra.mxu0 0.0
  %4277 = vmatprep.subr.mxu0 0.0
  %4278 = vmatpush1.msra.mxu0 0.0
  %4279 = vmatprep.subr.mxu0 0.0
  %4280 = vmatpush1.msra.mxu0 0.0
  %4281 = vmatprep.subr.mxu0 0.0
  %4282 = vmatpush1.msra.mxu0 0.0
  %4283 = vmatprep.subr.mxu0 0.0
  %4284 = vmatpush1.msra.mxu0 0.0
  %4285 = vmatprep.subr.mxu0 0.0
  %4286 = vmatpush1.msra.mxu0 0.0
  %4287 = vmatprep.subr.mxu0 0.0
  %4288 = vmatpush1.msra.mxu0 0.0
  %4289 = vmatprep.subr.mxu0 0.0
  %4290 = vmatpush1.msra.mxu0 0.0
  %4291 = vmatprep.mubr.f32.mxu0 0.0
  %4292 = vmatmul.mubr.f32.gmra.mrb[0].mxu0 %v4222
  %v4293 = vpop.f32.mrb[0].mxu0
  %v4294 = vadd.f32 %v4220, %v4293
  %v4295 = vpop.f32.mrb[0].mxu0
  %4296 = vmatprep.mubr.f32.mxu0 0.0
  %4297 = vmatmul.mubr.f32.gmra.mrb[0].mxu0 %v4225
  %v4298 = vpop.f32.mrb[0].mxu0
  %v4299 = vadd.f32 %v4220, %v4298
  %v4300 = vpop.f32.mrb[0].mxu0
  %4301 = vdwg.mxu0
  %v4302 = vmul.f32 %v4294, 0.5
  %v4303 = vmul.f32 %v4299, 0.5
  %v4304 = vmul.f32 %v4294, 0.70710677
  %v4305 = vmul.f32 %v4299, 0.70710677
  %v4306 = vand.u32 2147483647, %v4304
  %v4307 = vand.u32 2147483647, %v4305
  %v4308 = vmul.f32 %v4306, 0.3275911
  %v4309 = vmul.f32 %v4307, 0.3275911
  %v4310 = vadd.f32 %v4308, 1.0
  %v4311 = vadd.f32 %v4309, 1.0
  %v4312 = vrcp.pop %v4310
  %v4313 = vmul.f32 1.0, %v4312
  %v4314 = vrcp.pop %v4311
  %v4315 = vmul.f32 1.0, %v4314
  %v4316 = vmul.f32 %v4313, 1.0614054
  %v4317 = vmul.f32 %v4315, 1.0614054
  %v4318 = vadd.f32 %v4316, -1.4531521
  %v4319 = vadd.f32 %v4317, -1.4531521
  %v4320 = vmul.f32 %v4318, %v4313
  %v4321 = vmul.f32 %v4319, %v4315
  %v4322 = vadd.f32 %v4320, 1.4214138
  %v4323 = vadd.f32 %v4321, 1.4214138
  %v4324 = vmul.f32 %v4322, %v4313
  %v4325 = vmul.f32 %v4323, %v4315
  %v4326 = vadd.f32 %v4324, -0.28449672
  %v4327 = vadd.f32 %v4325, -0.28449672
  %v4328 = vmul.f32 %v4326, %v4313
  %v4329 = vmul.f32 %v4327, %v4315
  %v4330 = vadd.f32 %v4328, 0.2548296
  %v4331 = vadd.f32 %v4329, 0.2548296
  %v4332 = vmul.f32 %v4330, %v4313
  %v4333 = vmul.f32 %v4331, %v4315
  %v4334 = vmul.f32 %v4306, %v4306
  %v4335 = vmul.f32 %v4307, %v4307
  %v4336 = vsub.f32 0.0, %v4334
  %v4337 = vsub.f32 0.0, %v4335
  %v4338 = vmul.f32 %v4336, 1.442695
  %v4339 = vpow.pop %v4338
  %v4340 = vmul.f32 %v4337, 1.442695
  %v4341 = vpow.pop %v4340
  %v4342 = vmul.f32 %v4332, %v4339
  %v4343 = vmul.f32 %v4333, %v4341
  %v4344 = vsub.f32 1.0, %v4342
  %v4345 = vsub.f32 1.0, %v4343
  %vm4346 = vcmp.ge.f32.partialorder %v4304, 0.0
  %vm4347 = vcmp.ge.f32.partialorder %v4305, 0.0
  %v4348 = vsub.f32 0.0, %v4344
  %v4349 = vsub.f32 0.0, %v4345
  %v4350 = vsel %vm4346, %v4344, %v4348
  %v4351 = vsel %vm4347, %v4345, %v4349
  %v4352 = vadd.f32 %v4350, 1.0
  %v4353 = vadd.f32 %v4351, 1.0
  %v4354 = vmul.f32 %v4302, %v4352
  %v4355 = vmul.f32 %v4303, %v4353
  %v4356 = vlaneseq
  %v4357 = vshrl.u32 %v4356, 7
  %v4358 = vsub.s32 0, %v4357
  %v4359 = vrot.slane %v4214, %v4358
  %v4361 = vsel %vm554, %v4354, 0
  %v4364 = vsel %vm554, %v4355, 0
  %4366 = vmatprep.subr.mxu0 0.0
  %4367 = vmatpush1.msra.mxu0 %v4205
  %4368 = vmatprep.subr.mxu0 0.0
  %4369 = vmatpush1.msra.mxu0 %v4206
  %4370 = vmatprep.subr.mxu0 0.0
  %4371 = vmatpush1.msra.mxu0 %v4207
  %4372 = vmatprep.subr.mxu0 0.0
  %4373 = vmatpush1.msra.mxu0 %v4208
  %4374 = vmatprep.subr.mxu0 0.0
  %4375 = vmatpush1.msra.mxu0 %v4209
  %4376 = vmatprep.subr.mxu0 0.0
  %4377 = vmatpush1.msra.mxu0 %v4210
  %4378 = vmatprep.subr.mxu0 0.0
  %4379 = vmatpush1.msra.mxu0 %v4211
  %4380 = vmatprep.subr.mxu0 0.0
  %4381 = vmatpush1.msra.mxu0 %v4212
  %4382 = vmatprep.subr.mxu0 0.0
  %4383 = vmatpush1.msra.mxu0 0.0
  %4384 = vmatprep.subr.mxu0 0.0
  %4385 = vmatpush1.msra.mxu0 0.0
  %4386 = vmatprep.subr.mxu0 0.0
  %4387 = vmatpush1.msra.mxu0 0.0
  %4388 = vmatprep.subr.mxu0 0.0
  %4389 = vmatpush1.msra.mxu0 0.0
  %4390 = vmatprep.subr.mxu0 0.0
  %4391 = vmatpush1.msra.mxu0 0.0
  %4392 = vmatprep.subr.mxu0 0.0
  %4393 = vmatpush1.msra.mxu0 0.0
  %4394 = vmatprep.subr.mxu0 0.0
  %4395 = vmatpush1.msra.mxu0 0.0
  %4396 = vmatprep.subr.mxu0 0.0
  %4397 = vmatpush1.msra.mxu0 0.0
  %4398 = vmatprep.subr.mxu0 0.0
  %4399 = vmatpush1.msra.mxu0 0.0
  %4400 = vmatprep.subr.mxu0 0.0
  %4401 = vmatpush1.msra.mxu0 0.0
  %4402 = vmatprep.subr.mxu0 0.0
  %4403 = vmatpush1.msra.mxu0 0.0
  %4404 = vmatprep.subr.mxu0 0.0
  %4405 = vmatpush1.msra.mxu0 0.0
  %4406 = vmatprep.subr.mxu0 0.0
  %4407 = vmatpush1.msra.mxu0 0.0
  %4408 = vmatprep.subr.mxu0 0.0
  %4409 = vmatpush1.msra.mxu0 0.0
  %4410 = vmatprep.subr.mxu0 0.0
  %4411 = vmatpush1.msra.mxu0 0.0
  %4412 = vmatprep.subr.mxu0 0.0
  %4413 = vmatpush1.msra.mxu0 0.0
  %4414 = vmatprep.subr.mxu0 0.0
  %4415 = vmatpush1.msra.mxu0 0.0
  %4416 = vmatprep.subr.mxu0 0.0
  %4417 = vmatpush1.msra.mxu0 0.0
  %4418 = vmatprep.subr.mxu0 0.0
  %4419 = vmatpush1.msra.mxu0 0.0
  %4420 = vmatprep.subr.mxu0 0.0
  %4421 = vmatpush1.msra.mxu0 0.0
  %4422 = vmatprep.subr.mxu0 0.0
  %4423 = vmatpush1.msra.mxu0 0.0
  %4424 = vmatprep.subr.mxu0 0.0
  %4425 = vmatpush1.msra.mxu0 0.0
  %4426 = vmatprep.subr.mxu0 0.0
  %4427 = vmatpush1.msra.mxu0 0.0
  %4428 = vmatprep.subr.mxu0 0.0
  %4429 = vmatpush1.msra.mxu0 0.0
  %4430 = vmatprep.mubr.f32.mxu0 0.0
  %4431 = vmatmul.mubr.f32.gmra.mrb[0].mxu0 %v4361
  %v4432 = vpop.f32.mrb[0].mxu0
  %v4433 = vadd.f32 %v4359, %v4432
  %v4434 = vpop.f32.mrb[0].mxu0
  %4435 = vmatprep.mubr.f32.mxu0 0.0
  %4436 = vmatmul.mubr.f32.gmra.mrb[0].mxu0 %v4364
  %v4437 = vpop.f32.mrb[0].mxu0
  %v4438 = vadd.f32 %v4359, %v4437
  %v4439 = vpop.f32.mrb[0].mxu0
  %4440 = vdwg.mxu0
  %v4441 = vadd.f32 %v4193, %v4433
  %v4442 = vadd.f32 %v4194, %v4438
  %v4443 = vsel %vm554, %v4441, 0.0
  %4444 = vadd.xlane.f32.xlu0 %v4443
  %v4445 = vpop.xlane.xlu0 %4444
  %v4446 = vsel %vm4159, %v4442, 0.0
  %4447 = vadd.xlane.f32.xlu0 %v4446
  %v4448 = vpop.xlane.xlu0 %4447
  %v4449 = vmul.f32 %v4445, %v2032
  %v4450 = vmul.f32 %v4448, %v2032
  %v4451 = vsub.f32 %v4441, %v4449
  %v4452 = vsub.f32 %v4442, %v4450
  %v4453 = vmul.f32 %v4451, %v4451
  %v4454 = vmul.f32 %v4452, %v4452
  %v4455 = vsel %vm554, %v4453, 0.0
  %4456 = vadd.xlane.f32.xlu0 %v4455
  %v4457 = vpop.xlane.xlu0 %4456
  %v4458 = vsel %vm4159, %v4454, 0.0
  %4459 = vadd.xlane.f32.xlu0 %v4458
  %v4460 = vpop.xlane.xlu0 %4459
  %v4461 = vmul.f32 %v4457, %v2032
  %v4462 = vmul.f32 %v4460, %v2032
  %v4463 = vadd.f32 %v4461, 1e-05
  %v4464 = vadd.f32 %v4462, 1e-05
  %v4465 = vrsqrt.pop %v4463
  %v4466 = vrsqrt.pop %v4464
  %v4467 = vmul.f32 %v4451, %v4465
  %v4468 = vmul.f32 %v4452, %v4466
  %v4469 = vlaneseq
  %v4470 = vshrl.u32 %v4469, 7
  %v4471 = vsub.s32 0, %v4470
  %v4472 = vrot.slane %v4215, %v4471
  %v4473 = vmul.f32 %v4467, %v4472
  %v4474 = vmul.f32 %v4468, %v4472
  %v4475 = vlaneseq
  %v4476 = vshrl.u32 %v4475, 7
  %v4477 = vsub.s32 0, %v4476
  %v4478 = vrot.slane %v4216, %v4477
  %v4479 = vadd.f32 %v4473, %v4478
  %v4480 = vadd.f32 %v4474, %v4478
  %v4481 = vld [vmem:[%s5 + $0x18] sm:$0x1]
  %v4482 = vld [vmem:[%s5 + $0x19] sm:$0x1]
  %v4483 = vsel %vm554, %v4479, 0.0
  %4484 = vadd.xlane.f32.xlu0 %v4483
  %v4485 = vpop.xlane.xlu0 %4484
  %v4486 = vsel %vm4159, %v4480, 0.0
  %4487 = vadd.xlane.f32.xlu0 %v4486
  %v4488 = vpop.xlane.xlu0 %4487
  %v4489 = vmul.f32 %v4485, %v2032
  %v4490 = vmul.f32 %v4488, %v2032
  %v4491 = vsub.f32 %v4479, %v4489
  %v4492 = vsub.f32 %v4480, %v4490
  %v4493 = vmul.f32 %v4491, %v4491
  %v4494 = vmul.f32 %v4492, %v4492
  %v4495 = vsel %vm554, %v4493, 0.0
  %4496 = vadd.xlane.f32.xlu0 %v4495
  %v4497 = vpop.xlane.xlu0 %4496
  %v4498 = vsel %vm4159, %v4494, 0.0
  %4499 = vadd.xlane.f32.xlu0 %v4498
  %v4500 = vpop.xlane.xlu0 %4499
  %v4501 = vmul.f32 %v4497, %v2032
  %v4502 = vmul.f32 %v4500, %v2032
  %v4503 = vadd.f32 %v4501, 1e-05
  %v4504 = vadd.f32 %v4502, 1e-05
  %v4505 = vrsqrt.pop %v4503
  %v4506 = vrsqrt.pop %v4504
  %v4507 = vmul.f32 %v4491, %v4505
  %v4508 = vmul.f32 %v4492, %v4506
  %v4509 = vlaneseq
  %v4510 = vshrl.u32 %v4509, 7
  %v4511 = vsub.s32 0, %v4510
  %v4512 = vrot.slane %v4481, %v4511
  %v4513 = vmul.f32 %v4507, %v4512
  %v4514 = vmul.f32 %v4508, %v4512
  %v4515 = vlaneseq
  %v4516 = vshrl.u32 %v4515, 7
  %v4517 = vsub.s32 0, %v4516
  %v4518 = vrot.slane %v4482, %v4517
  %v4519 = vadd.f32 %v4513, %v4518
  %v4520 = vadd.f32 %v4514, %v4518
  %s4521 = scalar_lea.vmem %s4, 1152
  %v4522 = vld [vmem:[%s4521] sm:$0xff]
  %v4523 = vld [vmem:[%s4521 + $0x8] sm:$0xff]
  %v4524 = vld [vmem:[%s4521 + $0x10] sm:$0xff]
  %v4525 = vld [vmem:[%s4521 + $0x18] sm:$0xff]
  %v4526 = vld [vmem:[%s4521 + $0x20] sm:$0xff]
  %v4527 = vld [vmem:[%s4521 + $0x28] sm:$0xff]
  %v4528 = vld [vmem:[%s4521 + $0x30] sm:$0xff]
  %v4529 = vld [vmem:[%s4521 + $0x38] sm:$0xff]
  %s4530 = scalar_lea.vmem %s4, 1216
  %v4531 = vld [vmem:[%s4530] sm:$0xff]
  %v4532 = vld [vmem:[%s4530 + $0x8] sm:$0xff]
  %v4533 = vld [vmem:[%s4530 + $0x10] sm:$0xff]
  %v4534 = vld [vmem:[%s4530 + $0x18] sm:$0xff]
  %v4535 = vld [vmem:[%s4530 + $0x20] sm:$0xff]
  %v4536 = vld [vmem:[%s4530 + $0x28] sm:$0xff]
  %v4537 = vld [vmem:[%s4530 + $0x30] sm:$0xff]
  %v4538 = vld [vmem:[%s4530 + $0x38] sm:$0xff]
  %s4539 = scalar_lea.vmem %s4, 1280
  %v4540 = vld [vmem:[%s4539] sm:$0xff]
  %v4541 = vld [vmem:[%s4539 + $0x8] sm:$0xff]
  %v4542 = vld [vmem:[%s4539 + $0x10] sm:$0xff]
  %v4543 = vld [vmem:[%s4539 + $0x18] sm:$0xff]
  %v4544 = vld [vmem:[%s4539 + $0x20] sm:$0xff]
  %v4545 = vld [vmem:[%s4539 + $0x28] sm:$0xff]
  %v4546 = vld [vmem:[%s4539 + $0x30] sm:$0xff]
  %v4547 = vld [vmem:[%s4539 + $0x38] sm:$0xff]
  %v4548 = vld [vmem:[%s5 + $0x1a] sm:$0x1]
  %v4549 = vld [vmem:[%s1] sm:$0xff]
  %v4550 = vld [vmem:[%s1 + $0x8] sm:$0xff]
  %v4551 = vld [vmem:[%s1 + $0x10] sm:$0xff]
  %4552 = vmatprep.subr.mxu0 0.0
  %4553 = vmatpush1.msra.mxu0 %v4549
  %4554 = vmatprep.subr.mxu0 0.0
  %4555 = vmatpush1.msra.mxu0 %v4550
  %4556 = vmatprep.subr.mxu0 0.0
  %4557 = vmatpush1.msra.mxu0 %v4551
  %4558 = vmatprep.subr.mxu0 0.0
  %4559 = vmatpush1.msra.mxu0 0.0
  %4560 = vmatprep.subr.mxu0 0.0
  %4561 = vmatpush1.msra.mxu0 0.0
  %4562 = vmatprep.subr.mxu0 0.0
  %4563 = vmatpush1.msra.mxu0 0.0
  %4564 = vmatprep.subr.mxu0 0.0
  %4565 = vmatpush1.msra.mxu0 0.0
  %4566 = vmatprep.subr.mxu0 0.0
  %4567 = vmatpush1.msra.mxu0 0.0
  %4568 = vmatprep.subr.mxu0 0.0
  %4569 = vmatpush1.msra.mxu0 0.0
  %4570 = vmatprep.subr.mxu0 0.0
  %4571 = vmatpush1.msra.mxu0 0.0
  %4572 = vmatprep.subr.mxu0 0.0
  %4573 = vmatpush1.msra.mxu0 0.0
  %4574 = vmatprep.subr.mxu0 0.0
  %4575 = vmatpush1.msra.mxu0 0.0
  %4576 = vmatprep.subr.mxu0 0.0
  %4577 = vmatpush1.msra.mxu0 0.0
  %4578 = vmatprep.subr.mxu0 0.0
  %4579 = vmatpush1.msra.mxu0 0.0
  %4580 = vmatprep.subr.mxu0 0.0
  %4581 = vmatpush1.msra.mxu0 0.0
  %4582 = vmatprep.subr.mxu0 0.0
  %4583 = vmatpush1.msra.mxu0 0.0
  %4584 = vmatprep.subr.mxu0 0.0
  %4585 = vmatpush1.msra.mxu0 0.0
  %4586 = vmatprep.subr.mxu0 0.0
  %4587 = vmatpush1.msra.mxu0 0.0
  %4588 = vmatprep.subr.mxu0 0.0
  %4589 = vmatpush1.msra.mxu0 0.0
  %4590 = vmatprep.subr.mxu0 0.0
  %4591 = vmatpush1.msra.mxu0 0.0
  %4592 = vmatprep.subr.mxu0 0.0
  %4593 = vmatpush1.msra.mxu0 0.0
  %4594 = vmatprep.subr.mxu0 0.0
  %4595 = vmatpush1.msra.mxu0 0.0
  %4596 = vmatprep.subr.mxu0 0.0
  %4597 = vmatpush1.msra.mxu0 0.0
  %4598 = vmatprep.subr.mxu0 0.0
  %4599 = vmatpush1.msra.mxu0 0.0
  %4600 = vmatprep.subr.mxu0 0.0
  %4601 = vmatpush1.msra.mxu0 0.0
  %4602 = vmatprep.subr.mxu0 0.0
  %4603 = vmatpush1.msra.mxu0 0.0
  %4604 = vmatprep.subr.mxu0 0.0
  %4605 = vmatpush1.msra.mxu0 0.0
  %4606 = vmatprep.subr.mxu0 0.0
  %4607 = vmatpush1.msra.mxu0 0.0
  %4608 = vmatprep.subr.mxu0 0.0
  %4609 = vmatpush1.msra.mxu0 0.0
  %4610 = vmatprep.subr.mxu0 0.0
  %4611 = vmatpush1.msra.mxu0 0.0
  %4612 = vmatprep.subr.mxu0 0.0
  %4613 = vmatpush1.msra.mxu0 0.0
  %4614 = vmatprep.subr.mxu0 0.0
  %4615 = vmatpush1.msra.mxu0 0.0
  %4616 = vmatprep.mubr.f32.mxu0 0.0
  %4617 = vmatmul.mubr.f32.gmra.mrb[0].mxu0 %v377
  %v4618 = vpop.f32.mrb[0].mxu0
  %v4619 = vadd.f32 0.0, %v4618
  %v4620 = vpop.f32.mrb[0].mxu0
  %4621 = vmatprep.mubr.f32.mxu0 0.0
  %4622 = vmatmul.mubr.f32.gmra.mrb[0].mxu0 %v380
  %v4623 = vpop.f32.mrb[0].mxu0
  %v4624 = vadd.f32 0.0, %v4623
  %v4625 = vpop.f32.mrb[0].mxu0
  %4626 = vmatprep.mubr.f32.mxu0 0.0
  %4627 = vmatmul.mubr.f32.gmra.mrb[0].mxu0 %v383
  %v4628 = vpop.f32.mrb[0].mxu0
  %v4629 = vadd.f32 0.0, %v4628
  %v4630 = vpop.f32.mrb[0].mxu0
  %4631 = vdwg.mxu0
  %4632 = vmatprep.subr.mxu0 0.0
  %4633 = vmatpush1.msra.mxu0 %v4549
  %4634 = vmatprep.subr.mxu0 0.0
  %4635 = vmatpush1.msra.mxu0 %v4550
  %4636 = vmatprep.subr.mxu0 0.0
  %4637 = vmatpush1.msra.mxu0 %v4551
  %4638 = vmatprep.subr.mxu0 0.0
  %4639 = vmatpush1.msra.mxu0 0.0
  %4640 = vmatprep.subr.mxu0 0.0
  %4641 = vmatpush1.msra.mxu0 0.0
  %4642 = vmatprep.subr.mxu0 0.0
  %4643 = vmatpush1.msra.mxu0 0.0
  %4644 = vmatprep.subr.mxu0 0.0
  %4645 = vmatpush1.msra.mxu0 0.0
  %4646 = vmatprep.subr.mxu0 0.0
  %4647 = vmatpush1.msra.mxu0 0.0
  %4648 = vmatprep.subr.mxu0 0.0
  %4649 = vmatpush1.msra.mxu0 0.0
  %4650 = vmatprep.subr.mxu0 0.0
  %4651 = vmatpush1.msra.mxu0 0.0
  %4652 = vmatprep.subr.mxu0 0.0
  %4653 = vmatpush1.msra.mxu0 0.0
  %4654 = vmatprep.subr.mxu0 0.0
  %4655 = vmatpush1.msra.mxu0 0.0
  %4656 = vmatprep.subr.mxu0 0.0
  %4657 = vmatpush1.msra.mxu0 0.0
  %4658 = vmatprep.subr.mxu0 0.0
  %4659 = vmatpush1.msra.mxu0 0.0
  %4660 = vmatprep.subr.mxu0 0.0
  %4661 = vmatpush1.msra.mxu0 0.0
  %4662 = vmatprep.subr.mxu0 0.0
  %4663 = vmatpush1.msra.mxu0 0.0
  %4664 = vmatprep.subr.mxu0 0.0
  %4665 = vmatpush1.msra.mxu0 0.0
  %4666 = vmatprep.subr.mxu0 0.0
  %4667 = vmatpush1.msra.mxu0 0.0
  %4668 = vmatprep.subr.mxu0 0.0
  %4669 = vmatpush1.msra.mxu0 0.0
  %4670 = vmatprep.subr.mxu0 0.0
  %4671 = vmatpush1.msra.mxu0 0.0
  %4672 = vmatprep.subr.mxu0 0.0
  %4673 = vmatpush1.msra.mxu0 0.0
  %4674 = vmatprep.subr.mxu0 0.0
  %4675 = vmatpush1.msra.mxu0 0.0
  %4676 = vmatprep.subr.mxu0 0.0
  %4677 = vmatpush1.msra.mxu0 0.0
  %4678 = vmatprep.subr.mxu0 0.0
  %4679 = vmatpush1.msra.mxu0 0.0
  %4680 = vmatprep.subr.mxu0 0.0
  %4681 = vmatpush1.msra.mxu0 0.0
  %4682 = vmatprep.subr.mxu0 0.0
  %4683 = vmatpush1.msra.mxu0 0.0
  %4684 = vmatprep.subr.mxu0 0.0
  %4685 = vmatpush1.msra.mxu0 0.0
  %4686 = vmatprep.subr.mxu0 0.0
  %4687 = vmatpush1.msra.mxu0 0.0
  %4688 = vmatprep.subr.mxu0 0.0
  %4689 = vmatpush1.msra.mxu0 0.0
  %4690 = vmatprep.subr.mxu0 0.0
  %4691 = vmatpush1.msra.mxu0 0.0
  %4692 = vmatprep.subr.mxu0 0.0
  %4693 = vmatpush1.msra.mxu0 0.0
  %4694 = vmatprep.subr.mxu0 0.0
  %4695 = vmatpush1.msra.mxu0 0.0
  %4696 = vmatprep.mubr.f32.mxu0 0.0
  %4697 = vmatmul.mubr.f32.gmra.mrb[0].mxu0 %v466
  %v4698 = vpop.f32.mrb[0].mxu0
  %v4699 = vadd.f32 0.0, %v4698
  %v4700 = vpop.f32.mrb[0].mxu0
  %4701 = vmatprep.mubr.f32.mxu0 0.0
  %4702 = vmatmul.mubr.f32.gmra.mrb[0].mxu0 %v469
  %v4703 = vpop.f32.mrb[0].mxu0
  %v4704 = vadd.f32 0.0, %v4703
  %v4705 = vpop.f32.mrb[0].mxu0
  %4706 = vmatprep.mubr.f32.mxu0 0.0
  %4707 = vmatmul.mubr.f32.gmra.mrb[0].mxu0 %v472
  %v4708 = vpop.f32.mrb[0].mxu0
  %v4709 = vadd.f32 0.0, %v4708
  %v4710 = vpop.f32.mrb[0].mxu0
  %4711 = vdwg.mxu0
  %v4713 = vsel %vm554, %v4549, 0
  %v4716 = vsel %vm554, %v4550, 0
  %v4719 = vsel %vm554, %v4551, 0
  %4721 = vmatprep.subr.mxu0 0.0
  %4722 = vmatpush1.msra.mxu0 %v4531
  %4723 = vmatprep.subr.mxu0 0.0
  %4724 = vmatpush1.msra.mxu0 %v4532
  %4725 = vmatprep.subr.mxu0 0.0
  %4726 = vmatpush1.msra.mxu0 %v4533
  %4727 = vmatprep.subr.mxu0 0.0
  %4728 = vmatpush1.msra.mxu0 %v4534
  %4729 = vmatprep.subr.mxu0 0.0
  %4730 = vmatpush1.msra.mxu0 %v4535
  %4731 = vmatprep.subr.mxu0 0.0
  %4732 = vmatpush1.msra.mxu0 %v4536
  %4733 = vmatprep.subr.mxu0 0.0
  %4734 = vmatpush1.msra.mxu0 %v4537
  %4735 = vmatprep.subr.mxu0 0.0
  %4736 = vmatpush1.msra.mxu0 %v4538
  %4737 = vmatprep.subr.mxu0 0.0
  %4738 = vmatpush1.msra.mxu0 0.0
  %4739 = vmatprep.subr.mxu0 0.0
  %4740 = vmatpush1.msra.mxu0 0.0
  %4741 = vmatprep.subr.mxu0 0.0
  %4742 = vmatpush1.msra.mxu0 0.0
  %4743 = vmatprep.subr.mxu0 0.0
  %4744 = vmatpush1.msra.mxu0 0.0
  %4745 = vmatprep.subr.mxu0 0.0
  %4746 = vmatpush1.msra.mxu0 0.0
  %4747 = vmatprep.subr.mxu0 0.0
  %4748 = vmatpush1.msra.mxu0 0.0
  %4749 = vmatprep.subr.mxu0 0.0
  %4750 = vmatpush1.msra.mxu0 0.0
  %4751 = vmatprep.subr.mxu0 0.0
  %4752 = vmatpush1.msra.mxu0 0.0
  %4753 = vmatprep.subr.mxu0 0.0
  %4754 = vmatpush1.msra.mxu0 0.0
  %4755 = vmatprep.subr.mxu0 0.0
  %4756 = vmatpush1.msra.mxu0 0.0
  %4757 = vmatprep.subr.mxu0 0.0
  %4758 = vmatpush1.msra.mxu0 0.0
  %4759 = vmatprep.subr.mxu0 0.0
  %4760 = vmatpush1.msra.mxu0 0.0
  %4761 = vmatprep.subr.mxu0 0.0
  %4762 = vmatpush1.msra.mxu0 0.0
  %4763 = vmatprep.subr.mxu0 0.0
  %4764 = vmatpush1.msra.mxu0 0.0
  %4765 = vmatprep.subr.mxu0 0.0
  %4766 = vmatpush1.msra.mxu0 0.0
  %4767 = vmatprep.subr.mxu0 0.0
  %4768 = vmatpush1.msra.mxu0 0.0
  %4769 = vmatprep.subr.mxu0 0.0
  %4770 = vmatpush1.msra.mxu0 0.0
  %4771 = vmatprep.subr.mxu0 0.0
  %4772 = vmatpush1.msra.mxu0 0.0
  %4773 = vmatprep.subr.mxu0 0.0
  %4774 = vmatpush1.msra.mxu0 0.0
  %4775 = vmatprep.subr.mxu0 0.0
  %4776 = vmatpush1.msra.mxu0 0.0
  %4777 = vmatprep.subr.mxu0 0.0
  %4778 = vmatpush1.msra.mxu0 0.0
  %4779 = vmatprep.subr.mxu0 0.0
  %4780 = vmatpush1.msra.mxu0 0.0
  %4781 = vmatprep.subr.mxu0 0.0
  %4782 = vmatpush1.msra.mxu0 0.0
  %4783 = vmatprep.subr.mxu0 0.0
  %4784 = vmatpush1.msra.mxu0 0.0
  %4785 = vmatprep.mubr.f32.mxu0 0.0
  %4786 = vmatmul.mubr.f32.gmra.mrb[0].mxu0 %v4713
  %v4787 = vpop.f32.mrb[0].mxu0
  %v4788 = vadd.f32 0.0, %v4787
  %v4789 = vpop.f32.mrb[0].mxu0
  %4790 = vmatprep.mubr.f32.mxu0 0.0
  %4791 = vmatmul.mubr.f32.gmra.mrb[0].mxu0 %v4716
  %v4792 = vpop.f32.mrb[0].mxu0
  %v4793 = vadd.f32 0.0, %v4792
  %v4794 = vpop.f32.mrb[0].mxu0
  %4795 = vmatprep.mubr.f32.mxu0 0.0
  %4796 = vmatmul.mubr.f32.gmra.mrb[0].mxu0 %v4719
  %v4797 = vpop.f32.mrb[0].mxu0
  %v4798 = vadd.f32 0.0, %v4797
  %v4799 = vpop.f32.mrb[0].mxu0
  %4800 = vdwg.mxu0
  %v4802 = vsel %vm554, %v4619, 0
  %v4805 = vsel %vm554, %v4624, 0
  %v4808 = vsel %vm554, %v4629, 0
  %4810 = vmatprep.subr.mxu0 0.0
  %4811 = vmatpush1.msra.mxu0 %v4522
  %4812 = vmatprep.subr.mxu0 0.0
  %4813 = vmatpush1.msra.mxu0 %v4523
  %4814 = vmatprep.subr.mxu0 0.0
  %4815 = vmatpush1.msra.mxu0 %v4524
  %4816 = vmatprep.subr.mxu0 0.0
  %4817 = vmatpush1.msra.mxu0 %v4525
  %4818 = vmatprep.subr.mxu0 0.0
  %4819 = vmatpush1.msra.mxu0 %v4526
  %4820 = vmatprep.subr.mxu0 0.0
  %4821 = vmatpush1.msra.mxu0 %v4527
  %4822 = vmatprep.subr.mxu0 0.0
  %4823 = vmatpush1.msra.mxu0 %v4528
  %4824 = vmatprep.subr.mxu0 0.0
  %4825 = vmatpush1.msra.mxu0 %v4529
  %4826 = vmatprep.subr.mxu0 0.0
  %4827 = vmatpush1.msra.mxu0 0.0
  %4828 = vmatprep.subr.mxu0 0.0
  %4829 = vmatpush1.msra.mxu0 0.0
  %4830 = vmatprep.subr.mxu0 0.0
  %4831 = vmatpush1.msra.mxu0 0.0
  %4832 = vmatprep.subr.mxu0 0.0
  %4833 = vmatpush1.msra.mxu0 0.0
  %4834 = vmatprep.subr.mxu0 0.0
  %4835 = vmatpush1.msra.mxu0 0.0
  %4836 = vmatprep.subr.mxu0 0.0
  %4837 = vmatpush1.msra.mxu0 0.0
  %4838 = vmatprep.subr.mxu0 0.0
  %4839 = vmatpush1.msra.mxu0 0.0
  %4840 = vmatprep.subr.mxu0 0.0
  %4841 = vmatpush1.msra.mxu0 0.0
  %4842 = vmatprep.subr.mxu0 0.0
  %4843 = vmatpush1.msra.mxu0 0.0
  %4844 = vmatprep.subr.mxu0 0.0
  %4845 = vmatpush1.msra.mxu0 0.0
  %4846 = vmatprep.subr.mxu0 0.0
  %4847 = vmatpush1.msra.mxu0 0.0
  %4848 = vmatprep.subr.mxu0 0.0
  %4849 = vmatpush1.msra.mxu0 0.0
  %4850 = vmatprep.subr.mxu0 0.0
  %4851 = vmatpush1.msra.mxu0 0.0
  %4852 = vmatprep.subr.mxu0 0.0
  %4853 = vmatpush1.msra.mxu0 0.0
  %4854 = vmatprep.subr.mxu0 0.0
  %4855 = vmatpush1.msra.mxu0 0.0
  %4856 = vmatprep.subr.mxu0 0.0
  %4857 = vmatpush1.msra.mxu0 0.0
  %4858 = vmatprep.subr.mxu0 0.0
  %4859 = vmatpush1.msra.mxu0 0.0
  %4860 = vmatprep.subr.mxu0 0.0
  %4861 = vmatpush1.msra.mxu0 0.0
  %4862 = vmatprep.subr.mxu0 0.0
  %4863 = vmatpush1.msra.mxu0 0.0
  %4864 = vmatprep.subr.mxu0 0.0
  %4865 = vmatpush1.msra.mxu0 0.0
  %4866 = vmatprep.subr.mxu0 0.0
  %4867 = vmatpush1.msra.mxu0 0.0
  %4868 = vmatprep.subr.mxu0 0.0
  %4869 = vmatpush1.msra.mxu0 0.0
  %4870 = vmatprep.subr.mxu0 0.0
  %4871 = vmatpush1.msra.mxu0 0.0
  %4872 = vmatprep.subr.mxu0 0.0
  %4873 = vmatpush1.msra.mxu0 0.0
  %4874 = vmatprep.mubr.f32.mxu0 0.0
  %4875 = vmatmul.mubr.f32.gmra.mrb[0].mxu0 %v4802
  %v4876 = vpop.f32.mrb[0].mxu0
  %v4877 = vadd.f32 %v4788, %v4876
  %v4878 = vpop.f32.mrb[0].mxu0
  %4879 = vmatprep.mubr.f32.mxu0 0.0
  %4880 = vmatmul.mubr.f32.gmra.mrb[0].mxu0 %v4805
  %v4881 = vpop.f32.mrb[0].mxu0
  %v4882 = vadd.f32 %v4793, %v4881
  %v4883 = vpop.f32.mrb[0].mxu0
  %4884 = vmatprep.mubr.f32.mxu0 0.0
  %4885 = vmatmul.mubr.f32.gmra.mrb[0].mxu0 %v4808
  %v4886 = vpop.f32.mrb[0].mxu0
  %v4887 = vadd.f32 %v4798, %v4886
  %v4888 = vpop.f32.mrb[0].mxu0
  %4889 = vdwg.mxu0
  %v4891 = vsel %vm554, %v4699, 0
  %v4894 = vsel %vm554, %v4704, 0
  %v4897 = vsel %vm554, %v4709, 0
  %4899 = vmatprep.subr.mxu0 0.0
  %4900 = vmatpush1.msra.mxu0 %v4540
  %4901 = vmatprep.subr.mxu0 0.0
  %4902 = vmatpush1.msra.mxu0 %v4541
  %4903 = vmatprep.subr.mxu0 0.0
  %4904 = vmatpush1.msra.mxu0 %v4542
  %4905 = vmatprep.subr.mxu0 0.0
  %4906 = vmatpush1.msra.mxu0 %v4543
  %4907 = vmatprep.subr.mxu0 0.0
  %4908 = vmatpush1.msra.mxu0 %v4544
  %4909 = vmatprep.subr.mxu0 0.0
  %4910 = vmatpush1.msra.mxu0 %v4545
  %4911 = vmatprep.subr.mxu0 0.0
  %4912 = vmatpush1.msra.mxu0 %v4546
  %4913 = vmatprep.subr.mxu0 0.0
  %4914 = vmatpush1.msra.mxu0 %v4547
  %4915 = vmatprep.subr.mxu0 0.0
  %4916 = vmatpush1.msra.mxu0 0.0
  %4917 = vmatprep.subr.mxu0 0.0
  %4918 = vmatpush1.msra.mxu0 0.0
  %4919 = vmatprep.subr.mxu0 0.0
  %4920 = vmatpush1.msra.mxu0 0.0
  %4921 = vmatprep.subr.mxu0 0.0
  %4922 = vmatpush1.msra.mxu0 0.0
  %4923 = vmatprep.subr.mxu0 0.0
  %4924 = vmatpush1.msra.mxu0 0.0
  %4925 = vmatprep.subr.mxu0 0.0
  %4926 = vmatpush1.msra.mxu0 0.0
  %4927 = vmatprep.subr.mxu0 0.0
  %4928 = vmatpush1.msra.mxu0 0.0
  %4929 = vmatprep.subr.mxu0 0.0
  %4930 = vmatpush1.msra.mxu0 0.0
  %4931 = vmatprep.subr.mxu0 0.0
  %4932 = vmatpush1.msra.mxu0 0.0
  %4933 = vmatprep.subr.mxu0 0.0
  %4934 = vmatpush1.msra.mxu0 0.0
  %4935 = vmatprep.subr.mxu0 0.0
  %4936 = vmatpush1.msra.mxu0 0.0
  %4937 = vmatprep.subr.mxu0 0.0
  %4938 = vmatpush1.msra.mxu0 0.0
  %4939 = vmatprep.subr.mxu0 0.0
  %4940 = vmatpush1.msra.mxu0 0.0
  %4941 = vmatprep.subr.mxu0 0.0
  %4942 = vmatpush1.msra.mxu0 0.0
  %4943 = vmatprep.subr.mxu0 0.0
  %4944 = vmatpush1.msra.mxu0 0.0
  %4945 = vmatprep.subr.mxu0 0.0
  %4946 = vmatpush1.msra.mxu0 0.0
  %4947 = vmatprep.subr.mxu0 0.0
  %4948 = vmatpush1.msra.mxu0 0.0
  %4949 = vmatprep.subr.mxu0 0.0
  %4950 = vmatpush1.msra.mxu0 0.0
  %4951 = vmatprep.subr.mxu0 0.0
  %4952 = vmatpush1.msra.mxu0 0.0
  %4953 = vmatprep.subr.mxu0 0.0
  %4954 = vmatpush1.msra.mxu0 0.0
  %4955 = vmatprep.subr.mxu0 0.0
  %4956 = vmatpush1.msra.mxu0 0.0
  %4957 = vmatprep.subr.mxu0 0.0
  %4958 = vmatpush1.msra.mxu0 0.0
  %4959 = vmatprep.subr.mxu0 0.0
  %4960 = vmatpush1.msra.mxu0 0.0
  %4961 = vmatprep.subr.mxu0 0.0
  %4962 = vmatpush1.msra.mxu0 0.0
  %4963 = vmatprep.mubr.f32.mxu0 0.0
  %4964 = vmatmul.mubr.f32.gmra.mrb[0].mxu0 %v4891
  %v4965 = vpop.f32.mrb[0].mxu0
  %v4966 = vadd.f32 0.0, %v4965
  %v4967 = vpop.f32.mrb[0].mxu0
  %4968 = vmatprep.mubr.f32.mxu0 0.0
  %4969 = vmatmul.mubr.f32.gmra.mrb[0].mxu0 %v4894
  %v4970 = vpop.f32.mrb[0].mxu0
  %v4971 = vadd.f32 0.0, %v4970
  %v4972 = vpop.f32.mrb[0].mxu0
  %4973 = vmatprep.mubr.f32.mxu0 0.0
  %4974 = vmatmul.mubr.f32.gmra.mrb[0].mxu0 %v4897
  %v4975 = vpop.f32.mrb[0].mxu0
  %v4976 = vadd.f32 0.0, %v4975
  %v4977 = vpop.f32.mrb[0].mxu0
  %4978 = vdwg.mxu0
  %v4979 = vadd.f32 %v4877, %v4966
  %v4980 = vadd.f32 %v4882, %v4971
  %v4981 = vadd.f32 %v4887, %v4976
  %v4982 = vlaneseq
  %v4983 = vshrl.u32 %v4982, 7
  %v4984 = vsub.s32 0, %v4983
  %v4985 = vrot.slane %v4548, %v4984
  %v4986 = vadd.f32 %v4979, %v4985
  %v4987 = vadd.f32 %v4980, %v4985
  %v4988 = vadd.f32 %v4981, %v4985
  %v4989 = vld [vmem:[%s3] sm:$0xff]
  %v4990 = vld [vmem:[%s3 + $0x8] sm:$0xff]
  %v4991 = vld [vmem:[%s3 + $0x10] sm:$0xff]
  %v4992 = vadd.f32 %v4986, %v4989
  %v4993 = vadd.f32 %v4987, %v4990
  %v4994 = vadd.f32 %v4988, %v4991
  %s4995 = scalar_lea.vmem %s4, 1344
  %v4996 = vld [vmem:[%s4995] sm:$0xff]
  %v4997 = vld [vmem:[%s4995 + $0x8] sm:$0xff]
  %v4998 = vld [vmem:[%s4995 + $0x10] sm:$0xff]
  %v4999 = vld [vmem:[%s4995 + $0x18] sm:$0xff]
  %v5000 = vld [vmem:[%s4995 + $0x20] sm:$0xff]
  %v5001 = vld [vmem:[%s4995 + $0x28] sm:$0xff]
  %v5002 = vld [vmem:[%s4995 + $0x30] sm:$0xff]
  %v5003 = vld [vmem:[%s4995 + $0x38] sm:$0xff]
  %s5004 = scalar_lea.vmem %s4, 1408
  %v5005 = vld [vmem:[%s5004] sm:$0xff]
  %v5006 = vld [vmem:[%s5004 + $0x8] sm:$0xff]
  %v5007 = vld [vmem:[%s5004 + $0x10] sm:$0xff]
  %v5008 = vld [vmem:[%s5004 + $0x18] sm:$0xff]
  %v5009 = vld [vmem:[%s5004 + $0x20] sm:$0xff]
  %v5010 = vld [vmem:[%s5004 + $0x28] sm:$0xff]
  %v5011 = vld [vmem:[%s5004 + $0x30] sm:$0xff]
  %v5012 = vld [vmem:[%s5004 + $0x38] sm:$0xff]
  %s5013 = scalar_lea.vmem %s4, 1472
  %v5014 = vld [vmem:[%s5013] sm:$0xff]
  %v5015 = vld [vmem:[%s5013 + $0x8] sm:$0xff]
  %v5016 = vld [vmem:[%s5013 + $0x10] sm:$0xff]
  %v5017 = vld [vmem:[%s5013 + $0x18] sm:$0xff]
  %v5018 = vld [vmem:[%s5013 + $0x20] sm:$0xff]
  %v5019 = vld [vmem:[%s5013 + $0x28] sm:$0xff]
  %v5020 = vld [vmem:[%s5013 + $0x30] sm:$0xff]
  %v5021 = vld [vmem:[%s5013 + $0x38] sm:$0xff]
  %s5022 = scalar_lea.vmem %s4, 1536
  %v5023 = vld [vmem:[%s5022] sm:$0xff]
  %v5024 = vld [vmem:[%s5022 + $0x8] sm:$0xff]
  %v5025 = vld [vmem:[%s5022 + $0x10] sm:$0xff]
  %v5026 = vld [vmem:[%s5022 + $0x18] sm:$0xff]
  %v5027 = vld [vmem:[%s5022 + $0x20] sm:$0xff]
  %v5028 = vld [vmem:[%s5022 + $0x28] sm:$0xff]
  %v5029 = vld [vmem:[%s5022 + $0x30] sm:$0xff]
  %v5030 = vld [vmem:[%s5022 + $0x38] sm:$0xff]
  %s5031 = scalar_lea.vmem %s4, 1600
  %v5032 = vld [vmem:[%s5031] sm:$0xff]
  %v5033 = vld [vmem:[%s5031 + $0x8] sm:$0xff]
  %v5034 = vld [vmem:[%s5031 + $0x10] sm:$0xff]
  %v5035 = vld [vmem:[%s5031 + $0x18] sm:$0xff]
  %v5036 = vld [vmem:[%s5031 + $0x20] sm:$0xff]
  %v5037 = vld [vmem:[%s5031 + $0x28] sm:$0xff]
  %v5038 = vld [vmem:[%s5031 + $0x30] sm:$0xff]
  %v5039 = vld [vmem:[%s5031 + $0x38] sm:$0xff]
  %s5040 = scalar_lea.vmem %s4, 1664
  %v5041 = vld [vmem:[%s5040] sm:$0xff]
  %v5042 = vld [vmem:[%s5040 + $0x8] sm:$0xff]
  %v5043 = vld [vmem:[%s5040 + $0x10] sm:$0xff]
  %v5044 = vld [vmem:[%s5040 + $0x18] sm:$0xff]
  %v5045 = vld [vmem:[%s5040 + $0x20] sm:$0xff]
  %v5046 = vld [vmem:[%s5040 + $0x28] sm:$0xff]
  %v5047 = vld [vmem:[%s5040 + $0x30] sm:$0xff]
  %v5048 = vld [vmem:[%s5040 + $0x38] sm:$0xff]
  %s5049 = scalar_lea.vmem %s4, 1728
  %v5050 = vld [vmem:[%s5049] sm:$0xff]
  %v5051 = vld [vmem:[%s5049 + $0x8] sm:$0xff]
  %v5052 = vld [vmem:[%s5049 + $0x10] sm:$0xff]
  %v5053 = vld [vmem:[%s5049 + $0x18] sm:$0xff]
  %v5054 = vld [vmem:[%s5049 + $0x20] sm:$0xff]
  %v5055 = vld [vmem:[%s5049 + $0x28] sm:$0xff]
  %v5056 = vld [vmem:[%s5049 + $0x30] sm:$0xff]
  %v5057 = vld [vmem:[%s5049 + $0x38] sm:$0xff]
  %v5058 = vld [vmem:[%s5 + $0x1b] sm:$0x1]
  %v5059 = vld [vmem:[%s5 + $0x1c] sm:$0x1]
  %v5060 = vld [vmem:[%s5 + $0x1d] sm:$0x1]
  %v5061 = vld [vmem:[%s5 + $0x1e] sm:$0x1]
  %v5062 = vld [vmem:[%s5 + $0x1f] sm:$0x1]
  %v5063 = vld [vmem:[%s5 + $0x20] sm:$0x1]
  %v5064 = vlaneseq
  %v5065 = vshrl.u32 %v5064, 7
  %v5066 = vsub.s32 0, %v5065
  %v5067 = vrot.slane %v5058, %v5066
  %v5069 = vsel %vm554, %v4992, 0
  %v5072 = vsel %vm554, %v4993, 0
  %v5075 = vsel %vm554, %v4994, 0
  %5077 = vmatprep.subr.mxu0 0.0
  %5078 = vmatpush1.msra.mxu0 %v4996
  %5079 = vmatprep.subr.mxu0 0.0
  %5080 = vmatpush1.msra.mxu0 %v4997
  %5081 = vmatprep.subr.mxu0 0.0
  %5082 = vmatpush1.msra.mxu0 %v4998
  %5083 = vmatprep.subr.mxu0 0.0
  %5084 = vmatpush1.msra.mxu0 %v4999
  %5085 = vmatprep.subr.mxu0 0.0
  %5086 = vmatpush1.msra.mxu0 %v5000
  %5087 = vmatprep.subr.mxu0 0.0
  %5088 = vmatpush1.msra.mxu0 %v5001
  %5089 = vmatprep.subr.mxu0 0.0
  %5090 = vmatpush1.msra.mxu0 %v5002
  %5091 = vmatprep.subr.mxu0 0.0
  %5092 = vmatpush1.msra.mxu0 %v5003
  %5093 = vmatprep.subr.mxu0 0.0
  %5094 = vmatpush1.msra.mxu0 0.0
  %5095 = vmatprep.subr.mxu0 0.0
  %5096 = vmatpush1.msra.mxu0 0.0
  %5097 = vmatprep.subr.mxu0 0.0
  %5098 = vmatpush1.msra.mxu0 0.0
  %5099 = vmatprep.subr.mxu0 0.0
  %5100 = vmatpush1.msra.mxu0 0.0
  %5101 = vmatprep.subr.mxu0 0.0
  %5102 = vmatpush1.msra.mxu0 0.0
  %5103 = vmatprep.subr.mxu0 0.0
  %5104 = vmatpush1.msra.mxu0 0.0
  %5105 = vmatprep.subr.mxu0 0.0
  %5106 = vmatpush1.msra.mxu0 0.0
  %5107 = vmatprep.subr.mxu0 0.0
  %5108 = vmatpush1.msra.mxu0 0.0
  %5109 = vmatprep.subr.mxu0 0.0
  %5110 = vmatpush1.msra.mxu0 0.0
  %5111 = vmatprep.subr.mxu0 0.0
  %5112 = vmatpush1.msra.mxu0 0.0
  %5113 = vmatprep.subr.mxu0 0.0
  %5114 = vmatpush1.msra.mxu0 0.0
  %5115 = vmatprep.subr.mxu0 0.0
  %5116 = vmatpush1.msra.mxu0 0.0
  %5117 = vmatprep.subr.mxu0 0.0
  %5118 = vmatpush1.msra.mxu0 0.0
  %5119 = vmatprep.subr.mxu0 0.0
  %5120 = vmatpush1.msra.mxu0 0.0
  %5121 = vmatprep.subr.mxu0 0.0
  %5122 = vmatpush1.msra.mxu0 0.0
  %5123 = vmatprep.subr.mxu0 0.0
  %5124 = vmatpush1.msra.mxu0 0.0
  %5125 = vmatprep.subr.mxu0 0.0
  %5126 = vmatpush1.msra.mxu0 0.0
  %5127 = vmatprep.subr.mxu0 0.0
  %5128 = vmatpush1.msra.mxu0 0.0
  %5129 = vmatprep.subr.mxu0 0.0
  %5130 = vmatpush1.msra.mxu0 0.0
  %5131 = vmatprep.subr.mxu0 0.0
  %5132 = vmatpush1.msra.mxu0 0.0
  %5133 = vmatprep.subr.mxu0 0.0
  %5134 = vmatpush1.msra.mxu0 0.0
  %5135 = vmatprep.subr.mxu0 0.0
  %5136 = vmatpush1.msra.mxu0 0.0
  %5137 = vmatprep.subr.mxu0 0.0
  %5138 = vmatpush1.msra.mxu0 0.0
  %5139 = vmatprep.subr.mxu0 0.0
  %5140 = vmatpush1.msra.mxu0 0.0
  %5141 = vmatprep.mubr.f32.mxu0 0.0
  %5142 = vmatmul.mubr.f32.gmra.mrb[0].mxu0 %v5069
  %v5143 = vpop.f32.mrb[0].mxu0
  %v5144 = vadd.f32 %v5067, %v5143
  %v5145 = vpop.f32.mrb[0].mxu0
  %5146 = vmatprep.mubr.f32.mxu0 0.0
  %5147 = vmatmul.mubr.f32.gmra.mrb[0].mxu0 %v5072
  %v5148 = vpop.f32.mrb[0].mxu0
  %v5149 = vadd.f32 %v5067, %v5148
  %v5150 = vpop.f32.mrb[0].mxu0
  %5151 = vmatprep.mubr.f32.mxu0 0.0
  %5152 = vmatmul.mubr.f32.gmra.mrb[0].mxu0 %v5075
  %v5153 = vpop.f32.mrb[0].mxu0
  %v5154 = vadd.f32 %v5067, %v5153
  %v5155 = vpop.f32.mrb[0].mxu0
  %5156 = vdwg.mxu0
  %v5157 = vlaneseq
  %v5158 = vshrl.u32 %v5157, 7
  %v5159 = vsub.s32 0, %v5158
  %v5160 = vrot.slane %v5059, %v5159
  %5161 = vmatprep.subr.mxu0 0.0
  %5162 = vmatpush1.msra.mxu0 %v5005
  %5163 = vmatprep.subr.mxu0 0.0
  %5164 = vmatpush1.msra.mxu0 %v5006
  %5165 = vmatprep.subr.mxu0 0.0
  %5166 = vmatpush1.msra.mxu0 %v5007
  %5167 = vmatprep.subr.mxu0 0.0
  %5168 = vmatpush1.msra.mxu0 %v5008
  %5169 = vmatprep.subr.mxu0 0.0
  %5170 = vmatpush1.msra.mxu0 %v5009
  %5171 = vmatprep.subr.mxu0 0.0
  %5172 = vmatpush1.msra.mxu0 %v5010
  %5173 = vmatprep.subr.mxu0 0.0
  %5174 = vmatpush1.msra.mxu0 %v5011
  %5175 = vmatprep.subr.mxu0 0.0
  %5176 = vmatpush1.msra.mxu0 %v5012
  %5177 = vmatprep.subr.mxu0 0.0
  %5178 = vmatpush1.msra.mxu0 0.0
  %5179 = vmatprep.subr.mxu0 0.0
  %5180 = vmatpush1.msra.mxu0 0.0
  %5181 = vmatprep.subr.mxu0 0.0
  %5182 = vmatpush1.msra.mxu0 0.0
  %5183 = vmatprep.subr.mxu0 0.0
  %5184 = vmatpush1.msra.mxu0 0.0
  %5185 = vmatprep.subr.mxu0 0.0
  %5186 = vmatpush1.msra.mxu0 0.0
  %5187 = vmatprep.subr.mxu0 0.0
  %5188 = vmatpush1.msra.mxu0 0.0
  %5189 = vmatprep.subr.mxu0 0.0
  %5190 = vmatpush1.msra.mxu0 0.0
  %5191 = vmatprep.subr.mxu0 0.0
  %5192 = vmatpush1.msra.mxu0 0.0
  %5193 = vmatprep.subr.mxu0 0.0
  %5194 = vmatpush1.msra.mxu0 0.0
  %5195 = vmatprep.subr.mxu0 0.0
  %5196 = vmatpush1.msra.mxu0 0.0
  %5197 = vmatprep.subr.mxu0 0.0
  %5198 = vmatpush1.msra.mxu0 0.0
  %5199 = vmatprep.subr.mxu0 0.0
  %5200 = vmatpush1.msra.mxu0 0.0
  %5201 = vmatprep.subr.mxu0 0.0
  %5202 = vmatpush1.msra.mxu0 0.0
  %5203 = vmatprep.subr.mxu0 0.0
  %5204 = vmatpush1.msra.mxu0 0.0
  %5205 = vmatprep.subr.mxu0 0.0
  %5206 = vmatpush1.msra.mxu0 0.0
  %5207 = vmatprep.subr.mxu0 0.0
  %5208 = vmatpush1.msra.mxu0 0.0
  %5209 = vmatprep.subr.mxu0 0.0
  %5210 = vmatpush1.msra.mxu0 0.0
  %5211 = vmatprep.subr.mxu0 0.0
  %5212 = vmatpush1.msra.mxu0 0.0
  %5213 = vmatprep.subr.mxu0 0.0
  %5214 = vmatpush1.msra.mxu0 0.0
  %5215 = vmatprep.subr.mxu0 0.0
  %5216 = vmatpush1.msra.mxu0 0.0
  %5217 = vmatprep.subr.mxu0 0.0
  %5218 = vmatpush1.msra.mxu0 0.0
  %5219 = vmatprep.subr.mxu0 0.0
  %5220 = vmatpush1.msra.mxu0 0.0
  %5221 = vmatprep.subr.mxu0 0.0
  %5222 = vmatpush1.msra.mxu0 0.0
  %5223 = vmatprep.subr.mxu0 0.0
  %5224 = vmatpush1.msra.mxu0 0.0
  %5225 = vmatprep.mubr.f32.mxu0 0.0
  %5226 = vmatmul.mubr.f32.gmra.mrb[0].mxu0 %v5069
  %v5227 = vpop.f32.mrb[0].mxu0
  %v5228 = vadd.f32 %v5160, %v5227
  %v5229 = vpop.f32.mrb[0].mxu0
  %5230 = vmatprep.mubr.f32.mxu0 0.0
  %5231 = vmatmul.mubr.f32.gmra.mrb[0].mxu0 %v5072
  %v5232 = vpop.f32.mrb[0].mxu0
  %v5233 = vadd.f32 %v5160, %v5232
  %v5234 = vpop.f32.mrb[0].mxu0
  %5235 = vmatprep.mubr.f32.mxu0 0.0
  %5236 = vmatmul.mubr.f32.gmra.mrb[0].mxu0 %v5075
  %v5237 = vpop.f32.mrb[0].mxu0
  %v5238 = vadd.f32 %v5160, %v5237
  %v5239 = vpop.f32.mrb[0].mxu0
  %5240 = vdwg.mxu0
  %v5241 = vlaneseq
  %v5242 = vshrl.u32 %v5241, 7
  %v5243 = vsub.s32 0, %v5242
  %v5244 = vrot.slane %v5060, %v5243
  %5245 = vmatprep.subr.mxu0 0.0
  %5246 = vmatpush1.msra.mxu0 %v5014
  %5247 = vmatprep.subr.mxu0 0.0
  %5248 = vmatpush1.msra.mxu0 %v5015
  %5249 = vmatprep.subr.mxu0 0.0
  %5250 = vmatpush1.msra.mxu0 %v5016
  %5251 = vmatprep.subr.mxu0 0.0
  %5252 = vmatpush1.msra.mxu0 %v5017
  %5253 = vmatprep.subr.mxu0 0.0
  %5254 = vmatpush1.msra.mxu0 %v5018
  %5255 = vmatprep.subr.mxu0 0.0
  %5256 = vmatpush1.msra.mxu0 %v5019
  %5257 = vmatprep.subr.mxu0 0.0
  %5258 = vmatpush1.msra.mxu0 %v5020
  %5259 = vmatprep.subr.mxu0 0.0
  %5260 = vmatpush1.msra.mxu0 %v5021
  %5261 = vmatprep.subr.mxu0 0.0
  %5262 = vmatpush1.msra.mxu0 0.0
  %5263 = vmatprep.subr.mxu0 0.0
  %5264 = vmatpush1.msra.mxu0 0.0
  %5265 = vmatprep.subr.mxu0 0.0
  %5266 = vmatpush1.msra.mxu0 0.0
  %5267 = vmatprep.subr.mxu0 0.0
  %5268 = vmatpush1.msra.mxu0 0.0
  %5269 = vmatprep.subr.mxu0 0.0
  %5270 = vmatpush1.msra.mxu0 0.0
  %5271 = vmatprep.subr.mxu0 0.0
  %5272 = vmatpush1.msra.mxu0 0.0
  %5273 = vmatprep.subr.mxu0 0.0
  %5274 = vmatpush1.msra.mxu0 0.0
  %5275 = vmatprep.subr.mxu0 0.0
  %5276 = vmatpush1.msra.mxu0 0.0
  %5277 = vmatprep.subr.mxu0 0.0
  %5278 = vmatpush1.msra.mxu0 0.0
  %5279 = vmatprep.subr.mxu0 0.0
  %5280 = vmatpush1.msra.mxu0 0.0
  %5281 = vmatprep.subr.mxu0 0.0
  %5282 = vmatpush1.msra.mxu0 0.0
  %5283 = vmatprep.subr.mxu0 0.0
  %5284 = vmatpush1.msra.mxu0 0.0
  %5285 = vmatprep.subr.mxu0 0.0
  %5286 = vmatpush1.msra.mxu0 0.0
  %5287 = vmatprep.subr.mxu0 0.0
  %5288 = vmatpush1.msra.mxu0 0.0
  %5289 = vmatprep.subr.mxu0 0.0
  %5290 = vmatpush1.msra.mxu0 0.0
  %5291 = vmatprep.subr.mxu0 0.0
  %5292 = vmatpush1.msra.mxu0 0.0
  %5293 = vmatprep.subr.mxu0 0.0
  %5294 = vmatpush1.msra.mxu0 0.0
  %5295 = vmatprep.subr.mxu0 0.0
  %5296 = vmatpush1.msra.mxu0 0.0
  %5297 = vmatprep.subr.mxu0 0.0
  %5298 = vmatpush1.msra.mxu0 0.0
  %5299 = vmatprep.subr.mxu0 0.0
  %5300 = vmatpush1.msra.mxu0 0.0
  %5301 = vmatprep.subr.mxu0 0.0
  %5302 = vmatpush1.msra.mxu0 0.0
  %5303 = vmatprep.subr.mxu0 0.0
  %5304 = vmatpush1.msra.mxu0 0.0
  %5305 = vmatprep.subr.mxu0 0.0
  %5306 = vmatpush1.msra.mxu0 0.0
  %5307 = vmatprep.subr.mxu0 0.0
  %5308 = vmatpush1.msra.mxu0 0.0
  %5309 = vmatprep.mubr.f32.mxu0 0.0
  %5310 = vmatmul.mubr.f32.gmra.mrb[0].mxu0 %v5069
  %v5311 = vpop.f32.mrb[0].mxu0
  %v5312 = vadd.f32 %v5244, %v5311
  %v5313 = vpop.f32.mrb[0].mxu0
  %5314 = vmatprep.mubr.f32.mxu0 0.0
  %5315 = vmatmul.mubr.f32.gmra.mrb[0].mxu0 %v5072
  %v5316 = vpop.f32.mrb[0].mxu0
  %v5317 = vadd.f32 %v5244, %v5316
  %v5318 = vpop.f32.mrb[0].mxu0
  %5319 = vmatprep.mubr.f32.mxu0 0.0
  %5320 = vmatmul.mubr.f32.gmra.mrb[0].mxu0 %v5075
  %v5321 = vpop.f32.mrb[0].mxu0
  %v5322 = vadd.f32 %v5244, %v5321
  %v5323 = vpop.f32.mrb[0].mxu0
  %5324 = vdwg.mxu0
  %5325 = vmatprep.subr.mxu0 0.0
  %5326 = vmatpush1.msra.mxu0 %v5144
  %5327 = vmatprep.subr.mxu0 0.0
  %5328 = vmatpush1.msra.mxu0 %v5149
  %5329 = vmatprep.subr.mxu0 0.0
  %5330 = vmatpush1.msra.mxu0 %v5154
  %5331 = vmatprep.subr.mxu0 0.0
  %5332 = vmatpush1.msra.mxu0 0.0
  %5333 = vmatprep.subr.mxu0 0.0
  %5334 = vmatpush1.msra.mxu0 0.0
  %5335 = vmatprep.subr.mxu0 0.0
  %5336 = vmatpush1.msra.mxu0 0.0
  %5337 = vmatprep.subr.mxu0 0.0
  %5338 = vmatpush1.msra.mxu0 0.0
  %5339 = vmatprep.subr.mxu0 0.0
  %5340 = vmatpush1.msra.mxu0 0.0
  %5341 = vmatprep.subr.mxu0 0.0
  %5342 = vmatpush1.msra.mxu0 0.0
  %5343 = vmatprep.subr.mxu0 0.0
  %5344 = vmatpush1.msra.mxu0 0.0
  %5345 = vmatprep.subr.mxu0 0.0
  %5346 = vmatpush1.msra.mxu0 0.0
  %5347 = vmatprep.subr.mxu0 0.0
  %5348 = vmatpush1.msra.mxu0 0.0
  %5349 = vmatprep.subr.mxu0 0.0
  %5350 = vmatpush1.msra.mxu0 0.0
  %5351 = vmatprep.subr.mxu0 0.0
  %5352 = vmatpush1.msra.mxu0 0.0
  %5353 = vmatprep.subr.mxu0 0.0
  %5354 = vmatpush1.msra.mxu0 0.0
  %5355 = vmatprep.subr.mxu0 0.0
  %5356 = vmatpush1.msra.mxu0 0.0
  %5357 = vmatprep.subr.mxu0 0.0
  %5358 = vmatpush1.msra.mxu0 0.0
  %5359 = vmatprep.subr.mxu0 0.0
  %5360 = vmatpush1.msra.mxu0 0.0
  %5361 = vmatprep.subr.mxu0 0.0
  %5362 = vmatpush1.msra.mxu0 0.0
  %5363 = vmatprep.subr.mxu0 0.0
  %5364 = vmatpush1.msra.mxu0 0.0
  %5365 = vmatprep.subr.mxu0 0.0
  %5366 = vmatpush1.msra.mxu0 0.0
  %5367 = vmatprep.subr.mxu0 0.0
  %5368 = vmatpush1.msra.mxu0 0.0
  %5369 = vmatprep.subr.mxu0 0.0
  %5370 = vmatpush1.msra.mxu0 0.0
  %5371 = vmatprep.subr.mxu0 0.0
  %5372 = vmatpush1.msra.mxu0 0.0
  %5373 = vmatprep.subr.mxu0 0.0
  %5374 = vmatpush1.msra.mxu0 0.0
  %5375 = vmatprep.subr.mxu0 0.0
  %5376 = vmatpush1.msra.mxu0 0.0
  %5377 = vmatprep.subr.mxu0 0.0
  %5378 = vmatpush1.msra.mxu0 0.0
  %5379 = vmatprep.subr.mxu0 0.0
  %5380 = vmatpush1.msra.mxu0 0.0
  %5381 = vmatprep.subr.mxu0 0.0
  %5382 = vmatpush1.msra.mxu0 0.0
  %5383 = vmatprep.subr.mxu0 0.0
  %5384 = vmatpush1.msra.mxu0 0.0
  %5385 = vmatprep.subr.mxu0 0.0
  %5386 = vmatpush1.msra.mxu0 0.0
  %5387 = vmatprep.subr.mxu0 0.0
  %5388 = vmatpush1.msra.mxu0 0.0
  %5389 = vmatprep.mubr.f32.mxu0 0.0
  %5390 = vmatmul.mubr.f32.gmra.mrb[0].mxu0 %v1142
  %v5391 = vpop.f32.mrb[0].mxu0
  %v5392 = vadd.f32 0.0, %v5391
  %v5393 = vpop.f32.mrb[0].mxu0
  %5394 = vmatprep.mubr.f32.mxu0 0.0
  %5395 = vmatmul.mubr.f32.gmra.mrb[0].mxu0 %v1145
  %v5396 = vpop.f32.mrb[0].mxu0
  %v5397 = vadd.f32 0.0, %v5396
  %v5398 = vpop.f32.mrb[0].mxu0
  %5399 = vmatprep.mubr.f32.mxu0 0.0
  %5400 = vmatmul.mubr.f32.gmra.mrb[0].mxu0 %v1148
  %v5401 = vpop.f32.mrb[0].mxu0
  %v5402 = vadd.f32 0.0, %v5401
  %v5403 = vpop.f32.mrb[0].mxu0
  %5404 = vmatprep.mubr.f32.mxu0 0.0
  %5405 = vmatmul.mubr.f32.gmra.mrb[0].mxu0 %v1151
  %v5406 = vpop.f32.mrb[0].mxu0
  %v5407 = vadd.f32 0.0, %v5406
  %v5408 = vpop.f32.mrb[0].mxu0
  %5409 = vmatprep.mubr.f32.mxu0 0.0
  %5410 = vmatmul.mubr.f32.gmra.mrb[0].mxu0 %v1154
  %v5411 = vpop.f32.mrb[0].mxu0
  %v5412 = vadd.f32 0.0, %v5411
  %v5413 = vpop.f32.mrb[0].mxu0
  %5414 = vmatprep.mubr.f32.mxu0 0.0
  %5415 = vmatmul.mubr.f32.gmra.mrb[0].mxu0 %v1157
  %v5416 = vpop.f32.mrb[0].mxu0
  %v5417 = vadd.f32 0.0, %v5416
  %v5418 = vpop.f32.mrb[0].mxu0
  %5419 = vmatprep.mubr.f32.mxu0 0.0
  %5420 = vmatmul.mubr.f32.gmra.mrb[0].mxu0 %v1160
  %v5421 = vpop.f32.mrb[0].mxu0
  %v5422 = vadd.f32 0.0, %v5421
  %v5423 = vpop.f32.mrb[0].mxu0
  %5424 = vmatprep.mubr.f32.mxu0 0.0
  %5425 = vmatmul.mubr.f32.gmra.mrb[0].mxu0 %v1163
  %v5426 = vpop.f32.mrb[0].mxu0
  %v5427 = vadd.f32 0.0, %v5426
  %v5428 = vpop.f32.mrb[0].mxu0
  %5429 = vmatprep.mubr.f32.mxu0 0.0
  %5430 = vmatmul.mubr.f32.gmra.mrb[0].mxu0 %v1166
  %v5431 = vpop.f32.mrb[0].mxu0
  %v5432 = vadd.f32 0.0, %v5431
  %v5433 = vpop.f32.mrb[0].mxu0
  %5434 = vmatprep.mubr.f32.mxu0 0.0
  %5435 = vmatmul.mubr.f32.gmra.mrb[0].mxu0 %v1169
  %v5436 = vpop.f32.mrb[0].mxu0
  %v5437 = vadd.f32 0.0, %v5436
  %v5438 = vpop.f32.mrb[0].mxu0
  %5439 = vmatprep.mubr.f32.mxu0 0.0
  %5440 = vmatmul.mubr.f32.gmra.mrb[0].mxu0 %v1172
  %v5441 = vpop.f32.mrb[0].mxu0
  %v5442 = vadd.f32 0.0, %v5441
  %v5443 = vpop.f32.mrb[0].mxu0
  %5444 = vmatprep.mubr.f32.mxu0 0.0
  %5445 = vmatmul.mubr.f32.gmra.mrb[0].mxu0 %v1175
  %v5446 = vpop.f32.mrb[0].mxu0
  %v5447 = vadd.f32 0.0, %v5446
  %v5448 = vpop.f32.mrb[0].mxu0
  %5449 = vdwg.mxu0
  %v5450 = vsel %vm261, %v5392, 0.0
  %v5451 = vsel %vm262, %v5397, 0.0
  %v5452 = vsel %vm263, %v5402, 0.0
  %v5453 = vsel %vm264, %v5407, 0.0
  %v5454 = vsel %vm265, %v5412, 0.0
  %v5455 = vsel %vm266, %v5417, 0.0
  %v5456 = vsel %vm267, %v5422, 0.0
  %v5457 = vsel %vm268, %v5427, 0.0
  %v5458 = vsel %vm269, %v5432, 0.0
  %v5459 = vsel %vm270, %v5437, 0.0
  %v5460 = vsel %vm271, %v5442, 0.0
  %v5461 = vsel %vm272, %v5447, 0.0
  %v5463 = vsel %vm554, %v5450, 0
  %v5466 = vsel %vm554, %v5451, 0
  %v5469 = vsel %vm554, %v5452, 0
  %v5472 = vsel %vm554, %v5453, 0
  %v5475 = vsel %vm554, %v5454, 0
  %v5478 = vsel %vm554, %v5455, 0
  %v5481 = vsel %vm554, %v5456, 0
  %v5484 = vsel %vm554, %v5457, 0
  %v5487 = vsel %vm554, %v5458, 0
  %v5490 = vsel %vm554, %v5459, 0
  %v5493 = vsel %vm554, %v5460, 0
  %v5496 = vsel %vm554, %v5461, 0
  %v5499 = vsel %vm554, %v5228, 0
  %v5502 = vsel %vm554, %v5233, 0
  %v5505 = vsel %vm554, %v5238, 0
  %5507 = vmatprep.subr.mxu0 0.0
  %5508 = vmatpush1.xpose.msra.mxu0 %v5499
  %5509 = vmatprep.subr.mxu0 0.0
  %5510 = vmatpush1.xpose.msra.mxu0 %v5502
  %5511 = vmatprep.subr.mxu0 0.0
  %5512 = vmatpush1.xpose.msra.mxu0 %v5505
  %5513 = vmatprep.subr.mxu0 0.0
  %5514 = vmatpush1.xpose.msra.mxu0 0.0
  %5515 = vmatprep.subr.mxu0 0.0
  %5516 = vmatpush1.xpose.msra.mxu0 0.0
  %5517 = vmatprep.subr.mxu0 0.0
  %5518 = vmatpush1.xpose.msra.mxu0 0.0
  %5519 = vmatprep.subr.mxu0 0.0
  %5520 = vmatpush1.xpose.msra.mxu0 0.0
  %5521 = vmatprep.subr.mxu0 0.0
  %5522 = vmatpush1.xpose.msra.mxu0 0.0
  %5523 = vmatprep.subr.mxu0 0.0
  %5524 = vmatpush1.xpose.msra.mxu0 0.0
  %5525 = vmatprep.subr.mxu0 0.0
  %5526 = vmatpush1.xpose.msra.mxu0 0.0
  %5527 = vmatprep.subr.mxu0 0.0
  %5528 = vmatpush1.xpose.msra.mxu0 0.0
  %5529 = vmatprep.subr.mxu0 0.0
  %5530 = vmatpush1.xpose.msra.mxu0 0.0
  %5531 = vmatprep.subr.mxu0 0.0
  %5532 = vmatpush1.xpose.msra.mxu0 0.0
  %5533 = vmatprep.subr.mxu0 0.0
  %5534 = vmatpush1.xpose.msra.mxu0 0.0
  %5535 = vmatprep.subr.mxu0 0.0
  %5536 = vmatpush1.xpose.msra.mxu0 0.0
  %5537 = vmatprep.subr.mxu0 0.0
  %5538 = vmatpush1.xpose.msra.mxu0 0.0
  %5539 = vmatprep.subr.mxu0 0.0
  %5540 = vmatpush1.xpose.msra.mxu0 0.0
  %5541 = vmatprep.subr.mxu0 0.0
  %5542 = vmatpush1.xpose.msra.mxu0 0.0
  %5543 = vmatprep.subr.mxu0 0.0
  %5544 = vmatpush1.xpose.msra.mxu0 0.0
  %5545 = vmatprep.subr.mxu0 0.0
  %5546 = vmatpush1.xpose.msra.mxu0 0.0
  %5547 = vmatprep.subr.mxu0 0.0
  %5548 = vmatpush1.xpose.msra.mxu0 0.0
  %5549 = vmatprep.subr.mxu0 0.0
  %5550 = vmatpush1.xpose.msra.mxu0 0.0
  %5551 = vmatprep.subr.mxu0 0.0
  %5552 = vmatpush1.xpose.msra.mxu0 0.0
  %5553 = vmatprep.subr.mxu0 0.0
  %5554 = vmatpush1.xpose.msra.mxu0 0.0
  %5555 = vmatprep.subr.mxu0 0.0
  %5556 = vmatpush1.xpose.msra.mxu0 0.0
  %5557 = vmatprep.subr.mxu0 0.0
  %5558 = vmatpush1.xpose.msra.mxu0 0.0
  %5559 = vmatprep.subr.mxu0 0.0
  %5560 = vmatpush1.xpose.msra.mxu0 0.0
  %5561 = vmatprep.subr.mxu0 0.0
  %5562 = vmatpush1.xpose.msra.mxu0 0.0
  %5563 = vmatprep.subr.mxu0 0.0
  %5564 = vmatpush1.xpose.msra.mxu0 0.0
  %5565 = vmatprep.subr.mxu0 0.0
  %5566 = vmatpush1.xpose.msra.mxu0 0.0
  %5567 = vmatprep.subr.mxu0 0.0
  %5568 = vmatpush1.xpose.msra.mxu0 0.0
  %5569 = vmatprep.subr.mxu0 0.0
  %5570 = vmatpush1.xpose.msra.mxu0 0.0
  %5571 = vmatprep.mubr.f32.mxu0 0.0
  %5572 = vmatmul.mubr.f32.gmra.mrb[0].mxu0 %v5463
  %v5573 = vpop.f32.mrb[0].mxu0
  %v5574 = vadd.f32 0.0, %v5573
  %v5575 = vpop.f32.mrb[0].mxu0
  %5576 = vmatprep.mubr.f32.mxu0 0.0
  %5577 = vmatmul.mubr.f32.gmra.mrb[0].mxu0 %v5466
  %v5578 = vpop.f32.mrb[0].mxu0
  %v5579 = vadd.f32 0.0, %v5578
  %v5580 = vpop.f32.mrb[0].mxu0
  %5581 = vmatprep.mubr.f32.mxu0 0.0
  %5582 = vmatmul.mubr.f32.gmra.mrb[0].mxu0 %v5469
  %v5583 = vpop.f32.mrb[0].mxu0
  %v5584 = vadd.f32 0.0, %v5583
  %v5585 = vpop.f32.mrb[0].mxu0
  %5586 = vmatprep.mubr.f32.mxu0 0.0
  %5587 = vmatmul.mubr.f32.gmra.mrb[0].mxu0 %v5472
  %v5588 = vpop.f32.mrb[0].mxu0
  %v5589 = vadd.f32 0.0, %v5588
  %v5590 = vpop.f32.mrb[0].mxu0
  %5591 = vmatprep.mubr.f32.mxu0 0.0
  %5592 = vmatmul.mubr.f32.gmra.mrb[0].mxu0 %v5475
  %v5593 = vpop.f32.mrb[0].mxu0
  %v5594 = vadd.f32 0.0, %v5593
  %v5595 = vpop.f32.mrb[0].mxu0
  %5596 = vmatprep.mubr.f32.mxu0 0.0
  %5597 = vmatmul.mubr.f32.gmra.mrb[0].mxu0 %v5478
  %v5598 = vpop.f32.mrb[0].mxu0
  %v5599 = vadd.f32 0.0, %v5598
  %v5600 = vpop.f32.mrb[0].mxu0
  %5601 = vmatprep.mubr.f32.mxu0 0.0
  %5602 = vmatmul.mubr.f32.gmra.mrb[0].mxu0 %v5481
  %v5603 = vpop.f32.mrb[0].mxu0
  %v5604 = vadd.f32 0.0, %v5603
  %v5605 = vpop.f32.mrb[0].mxu0
  %5606 = vmatprep.mubr.f32.mxu0 0.0
  %5607 = vmatmul.mubr.f32.gmra.mrb[0].mxu0 %v5484
  %v5608 = vpop.f32.mrb[0].mxu0
  %v5609 = vadd.f32 0.0, %v5608
  %v5610 = vpop.f32.mrb[0].mxu0
  %5611 = vmatprep.mubr.f32.mxu0 0.0
  %5612 = vmatmul.mubr.f32.gmra.mrb[0].mxu0 %v5487
  %v5613 = vpop.f32.mrb[0].mxu0
  %v5614 = vadd.f32 0.0, %v5613
  %v5615 = vpop.f32.mrb[0].mxu0
  %5616 = vmatprep.mubr.f32.mxu0 0.0
  %5617 = vmatmul.mubr.f32.gmra.mrb[0].mxu0 %v5490
  %v5618 = vpop.f32.mrb[0].mxu0
  %v5619 = vadd.f32 0.0, %v5618
  %v5620 = vpop.f32.mrb[0].mxu0
  %5621 = vmatprep.mubr.f32.mxu0 0.0
  %5622 = vmatmul.mubr.f32.gmra.mrb[0].mxu0 %v5493
  %v5623 = vpop.f32.mrb[0].mxu0
  %v5624 = vadd.f32 0.0, %v5623
  %v5625 = vpop.f32.mrb[0].mxu0
  %5626 = vmatprep.mubr.f32.mxu0 0.0
  %5627 = vmatmul.mubr.f32.gmra.mrb[0].mxu0 %v5496
  %v5628 = vpop.f32.mrb[0].mxu0
  %v5629 = vadd.f32 0.0, %v5628
  %v5630 = vpop.f32.mrb[0].mxu0
  %5631 = vdwg.mxu0
  %v5632 = vmul.u32 %v328, 12
  %v5633 = vsub.s32 %v34, %v5632
  %v5634 = vmul.u32 %v1496, 12
  %v5635 = vmul.u32 %v1497, 12
  %v5636 = vmul.u32 %v1498, 12
  %v5637 = vmul.u32 %v1499, 12
  %v5638 = vmul.u32 %v1500, 12
  %v5639 = vmul.u32 %v1501, 12
  %v5640 = vmul.u32 %v1502, 12
  %v5641 = vmul.u32 %v1503, 12
  %v5642 = vmul.u32 %v1504, 12
  %v5643 = vmul.u32 %v1505, 12
  %v5644 = vmul.u32 %v1506, 12
  %v5645 = vmul.u32 %v1507, 12
  %v5646 = vsub.s32 %v203, %v5634
  %v5647 = vsub.s32 %v204, %v5635
  %v5648 = vsub.s32 %v205, %v5636
  %v5649 = vsub.s32 %v206, %v5637
  %v5650 = vsub.s32 %v207, %v5638
  %v5651 = vsub.s32 %v208, %v5639
  %v5652 = vsub.s32 %v209, %v5640
  %v5653 = vsub.s32 %v210, %v5641
  %v5654 = vsub.s32 %v211, %v5642
  %v5655 = vsub.s32 %v212, %v5643
  %v5656 = vsub.s32 %v213, %v5644
  %v5657 = vsub.s32 %v214, %v5645
  %vm5658 = vcmp.le.s32.totalorder %v5633, %v5646
  %vm5659 = vcmp.le.s32.totalorder %v5633, %v5647
  %vm5660 = vcmp.le.s32.totalorder %v5633, %v5648
  %vm5661 = vcmp.le.s32.totalorder %v5633, %v5649
  %vm5662 = vcmp.le.s32.totalorder %v5633, %v5650
  %vm5663 = vcmp.le.s32.totalorder %v5633, %v5651
  %vm5664 = vcmp.le.s32.totalorder %v5633, %v5652
  %vm5665 = vcmp.le.s32.totalorder %v5633, %v5653
  %vm5666 = vcmp.le.s32.totalorder %v5633, %v5654
  %vm5667 = vcmp.le.s32.totalorder %v5633, %v5655
  %vm5668 = vcmp.le.s32.totalorder %v5633, %v5656
  %vm5669 = vcmp.le.s32.totalorder %v5633, %v5657
  %vm5670 = vmand %vm1508, %vm5658
  %vm5671 = vmand %vm1509, %vm5659
  %vm5672 = vmand %vm1510, %vm5660
  %vm5673 = vmand %vm1511, %vm5661
  %vm5674 = vmand %vm1512, %vm5662
  %vm5675 = vmand %vm1513, %vm5663
  %vm5676 = vmand %vm1514, %vm5664
  %vm5677 = vmand %vm1515, %vm5665
  %vm5678 = vmand %vm1516, %vm5666
  %vm5679 = vmand %vm1517, %vm5667
  %vm5680 = vmand %vm1518, %vm5668
  %vm5681 = vmand %vm1519, %vm5669
  %v5682 = vsel %vm5670, %v5574, -1e+30
  %v5683 = vsel %vm5671, %v5579, -1e+30
  %v5684 = vsel %vm5672, %v5584, -1e+30
  %v5685 = vsel %vm5673, %v5589, -1e+30
  %v5686 = vsel %vm5674, %v5594, -1e+30
  %v5687 = vsel %vm5675, %v5599, -1e+30
  %v5688 = vsel %vm5676, %v5604, -1e+30
  %v5689 = vsel %vm5677, %v5609, -1e+30
  %v5690 = vsel %vm5678, %v5614, -1e+30
  %v5691 = vsel %vm5679, %v5619, -1e+30
  %v5692 = vsel %vm5680, %v5624, -1e+30
  %v5693 = vsel %vm5681, %v5629, -1e+30
  %v5694 = vsel %vm375, %v5682, -inf
  %5695 = vmax.xlane.f32.xlu0 %v5694
  %v5696 = vpop.xlane.xlu0 %5695
  %v5697 = vsel %vm375, %v5683, -inf
  %5698 = vmax.xlane.f32.xlu0 %v5697
  %v5699 = vpop.xlane.xlu0 %5698
  %v5700 = vsel %vm375, %v5684, -inf
  %5701 = vmax.xlane.f32.xlu0 %v5700
  %v5702 = vpop.xlane.xlu0 %5701
  %v5703 = vsel %vm375, %v5685, -inf
  %5704 = vmax.xlane.f32.xlu0 %v5703
  %v5705 = vpop.xlane.xlu0 %5704
  %v5706 = vsel %vm375, %v5686, -inf
  %5707 = vmax.xlane.f32.xlu0 %v5706
  %v5708 = vpop.xlane.xlu0 %5707
  %v5709 = vsel %vm375, %v5687, -inf
  %5710 = vmax.xlane.f32.xlu0 %v5709
  %v5711 = vpop.xlane.xlu0 %5710
  %v5712 = vsel %vm375, %v5688, -inf
  %5713 = vmax.xlane.f32.xlu0 %v5712
  %v5714 = vpop.xlane.xlu0 %5713
  %v5715 = vsel %vm375, %v5689, -inf
  %5716 = vmax.xlane.f32.xlu0 %v5715
  %v5717 = vpop.xlane.xlu0 %5716
  %v5718 = vsel %vm375, %v5690, -inf
  %5719 = vmax.xlane.f32.xlu0 %v5718
  %v5720 = vpop.xlane.xlu0 %5719
  %v5721 = vsel %vm375, %v5691, -inf
  %5722 = vmax.xlane.f32.xlu0 %v5721
  %v5723 = vpop.xlane.xlu0 %5722
  %v5724 = vsel %vm375, %v5692, -inf
  %5725 = vmax.xlane.f32.xlu0 %v5724
  %v5726 = vpop.xlane.xlu0 %5725
  %v5727 = vsel %vm375, %v5693, -inf
  %5728 = vmax.xlane.f32.xlu0 %v5727
  %v5729 = vpop.xlane.xlu0 %5728
  %v5730 = vsub.f32 %v5682, %v5696
  %v5731 = vsub.f32 %v5683, %v5699
  %v5732 = vsub.f32 %v5684, %v5702
  %v5733 = vsub.f32 %v5685, %v5705
  %v5734 = vsub.f32 %v5686, %v5708
  %v5735 = vsub.f32 %v5687, %v5711
  %v5736 = vsub.f32 %v5688, %v5714
  %v5737 = vsub.f32 %v5689, %v5717
  %v5738 = vsub.f32 %v5690, %v5720
  %v5739 = vsub.f32 %v5691, %v5723
  %v5740 = vsub.f32 %v5692, %v5726
  %v5741 = vsub.f32 %v5693, %v5729
  %v5742 = vmul.f32 %v5730, 1.442695
  %v5743 = vpow.pop %v5742
  %v5744 = vmul.f32 %v5731, 1.442695
  %v5745 = vpow.pop %v5744
  %v5746 = vmul.f32 %v5732, 1.442695
  %v5747 = vpow.pop %v5746
  %v5748 = vmul.f32 %v5733, 1.442695
  %v5749 = vpow.pop %v5748
  %v5750 = vmul.f32 %v5734, 1.442695
  %v5751 = vpow.pop %v5750
  %v5752 = vmul.f32 %v5735, 1.442695
  %v5753 = vpow.pop %v5752
  %v5754 = vmul.f32 %v5736, 1.442695
  %v5755 = vpow.pop %v5754
  %v5756 = vmul.f32 %v5737, 1.442695
  %v5757 = vpow.pop %v5756
  %v5758 = vmul.f32 %v5738, 1.442695
  %v5759 = vpow.pop %v5758
  %v5760 = vmul.f32 %v5739, 1.442695
  %v5761 = vpow.pop %v5760
  %v5762 = vmul.f32 %v5740, 1.442695
  %v5763 = vpow.pop %v5762
  %v5764 = vmul.f32 %v5741, 1.442695
  %v5765 = vpow.pop %v5764
  %v5766 = vsel %vm375, %v5743, 0.0
  %5767 = vadd.xlane.f32.xlu0 %v5766
  %v5768 = vpop.xlane.xlu0 %5767
  %v5769 = vsel %vm375, %v5745, 0.0
  %5770 = vadd.xlane.f32.xlu0 %v5769
  %v5771 = vpop.xlane.xlu0 %5770
  %v5772 = vsel %vm375, %v5747, 0.0
  %5773 = vadd.xlane.f32.xlu0 %v5772
  %v5774 = vpop.xlane.xlu0 %5773
  %v5775 = vsel %vm375, %v5749, 0.0
  %5776 = vadd.xlane.f32.xlu0 %v5775
  %v5777 = vpop.xlane.xlu0 %5776
  %v5778 = vsel %vm375, %v5751, 0.0
  %5779 = vadd.xlane.f32.xlu0 %v5778
  %v5780 = vpop.xlane.xlu0 %5779
  %v5781 = vsel %vm375, %v5753, 0.0
  %5782 = vadd.xlane.f32.xlu0 %v5781
  %v5783 = vpop.xlane.xlu0 %5782
  %v5784 = vsel %vm375, %v5755, 0.0
  %5785 = vadd.xlane.f32.xlu0 %v5784
  %v5786 = vpop.xlane.xlu0 %5785
  %v5787 = vsel %vm375, %v5757, 0.0
  %5788 = vadd.xlane.f32.xlu0 %v5787
  %v5789 = vpop.xlane.xlu0 %5788
  %v5790 = vsel %vm375, %v5759, 0.0
  %5791 = vadd.xlane.f32.xlu0 %v5790
  %v5792 = vpop.xlane.xlu0 %5791
  %v5793 = vsel %vm375, %v5761, 0.0
  %5794 = vadd.xlane.f32.xlu0 %v5793
  %v5795 = vpop.xlane.xlu0 %5794
  %v5796 = vsel %vm375, %v5763, 0.0
  %5797 = vadd.xlane.f32.xlu0 %v5796
  %v5798 = vpop.xlane.xlu0 %5797
  %v5799 = vsel %vm375, %v5765, 0.0
  %5800 = vadd.xlane.f32.xlu0 %v5799
  %v5801 = vpop.xlane.xlu0 %5800
  %v5802 = vrcp.pop %v5768
  %v5803 = vmul.f32 %v5743, %v5802
  %v5804 = vrcp.pop %v5771
  %v5805 = vmul.f32 %v5745, %v5804
  %v5806 = vrcp.pop %v5774
  %v5807 = vmul.f32 %v5747, %v5806
  %v5808 = vrcp.pop %v5777
  %v5809 = vmul.f32 %v5749, %v5808
  %v5810 = vrcp.pop %v5780
  %v5811 = vmul.f32 %v5751, %v5810
  %v5812 = vrcp.pop %v5783
  %v5813 = vmul.f32 %v5753, %v5812
  %v5814 = vrcp.pop %v5786
  %v5815 = vmul.f32 %v5755, %v5814
  %v5816 = vrcp.pop %v5789
  %v5817 = vmul.f32 %v5757, %v5816
  %v5818 = vrcp.pop %v5792
  %v5819 = vmul.f32 %v5759, %v5818
  %v5820 = vrcp.pop %v5795
  %v5821 = vmul.f32 %v5761, %v5820
  %v5822 = vrcp.pop %v5798
  %v5823 = vmul.f32 %v5763, %v5822
  %v5824 = vrcp.pop %v5801
  %v5825 = vmul.f32 %v5765, %v5824
  %v5827 = vsel %vm375, %v5803, 0
  %v5830 = vsel %vm375, %v5805, 0
  %v5833 = vsel %vm375, %v5807, 0
  %v5836 = vsel %vm375, %v5809, 0
  %v5839 = vsel %vm375, %v5811, 0
  %v5842 = vsel %vm375, %v5813, 0
  %v5845 = vsel %vm375, %v5815, 0
  %v5848 = vsel %vm375, %v5817, 0
  %v5851 = vsel %vm375, %v5819, 0
  %v5854 = vsel %vm375, %v5821, 0
  %v5857 = vsel %vm375, %v5823, 0
  %v5860 = vsel %vm375, %v5825, 0
  %5862 = vmatprep.subr.mxu0 0.0
  %5863 = vmatpush1.msra.mxu0 %v5312
  %5864 = vmatprep.subr.mxu0 0.0
  %5865 = vmatpush1.msra.mxu0 %v5317
  %5866 = vmatprep.subr.mxu0 0.0
  %5867 = vmatpush1.msra.mxu0 %v5322
  %5868 = vmatprep.subr.mxu0 0.0
  %5869 = vmatpush1.msra.mxu0 0.0
  %5870 = vmatprep.subr.mxu0 0.0
  %5871 = vmatpush1.msra.mxu0 0.0
  %5872 = vmatprep.subr.mxu0 0.0
  %5873 = vmatpush1.msra.mxu0 0.0
  %5874 = vmatprep.subr.mxu0 0.0
  %5875 = vmatpush1.msra.mxu0 0.0
  %5876 = vmatprep.subr.mxu0 0.0
  %5877 = vmatpush1.msra.mxu0 0.0
  %5878 = vmatprep.subr.mxu0 0.0
  %5879 = vmatpush1.msra.mxu0 0.0
  %5880 = vmatprep.subr.mxu0 0.0
  %5881 = vmatpush1.msra.mxu0 0.0
  %5882 = vmatprep.subr.mxu0 0.0
  %5883 = vmatpush1.msra.mxu0 0.0
  %5884 = vmatprep.subr.mxu0 0.0
  %5885 = vmatpush1.msra.mxu0 0.0
  %5886 = vmatprep.subr.mxu0 0.0
  %5887 = vmatpush1.msra.mxu0 0.0
  %5888 = vmatprep.subr.mxu0 0.0
  %5889 = vmatpush1.msra.mxu0 0.0
  %5890 = vmatprep.subr.mxu0 0.0
  %5891 = vmatpush1.msra.mxu0 0.0
  %5892 = vmatprep.subr.mxu0 0.0
  %5893 = vmatpush1.msra.mxu0 0.0
  %5894 = vmatprep.subr.mxu0 0.0
  %5895 = vmatpush1.msra.mxu0 0.0
  %5896 = vmatprep.subr.mxu0 0.0
  %5897 = vmatpush1.msra.mxu0 0.0
  %5898 = vmatprep.subr.mxu0 0.0
  %5899 = vmatpush1.msra.mxu0 0.0
  %5900 = vmatprep.subr.mxu0 0.0
  %5901 = vmatpush1.msra.mxu0 0.0
  %5902 = vmatprep.subr.mxu0 0.0
  %5903 = vmatpush1.msra.mxu0 0.0
  %5904 = vmatprep.subr.mxu0 0.0
  %5905 = vmatpush1.msra.mxu0 0.0
  %5906 = vmatprep.subr.mxu0 0.0
  %5907 = vmatpush1.msra.mxu0 0.0
  %5908 = vmatprep.subr.mxu0 0.0
  %5909 = vmatpush1.msra.mxu0 0.0
  %5910 = vmatprep.subr.mxu0 0.0
  %5911 = vmatpush1.msra.mxu0 0.0
  %5912 = vmatprep.subr.mxu0 0.0
  %5913 = vmatpush1.msra.mxu0 0.0
  %5914 = vmatprep.subr.mxu0 0.0
  %5915 = vmatpush1.msra.mxu0 0.0
  %5916 = vmatprep.subr.mxu0 0.0
  %5917 = vmatpush1.msra.mxu0 0.0
  %5918 = vmatprep.subr.mxu0 0.0
  %5919 = vmatpush1.msra.mxu0 0.0
  %5920 = vmatprep.subr.mxu0 0.0
  %5921 = vmatpush1.msra.mxu0 0.0
  %5922 = vmatprep.subr.mxu0 0.0
  %5923 = vmatpush1.msra.mxu0 0.0
  %5924 = vmatprep.subr.mxu0 0.0
  %5925 = vmatpush1.msra.mxu0 0.0
  %5926 = vmatprep.mubr.f32.mxu0 0.0
  %5927 = vmatmul.mubr.f32.gmra.mrb[0].mxu0 %v5827
  %v5928 = vpop.f32.mrb[0].mxu0
  %v5929 = vadd.f32 0.0, %v5928
  %v5930 = vpop.f32.mrb[0].mxu0
  %5931 = vmatprep.mubr.f32.mxu0 0.0
  %5932 = vmatmul.mubr.f32.gmra.mrb[0].mxu0 %v5830
  %v5933 = vpop.f32.mrb[0].mxu0
  %v5934 = vadd.f32 0.0, %v5933
  %v5935 = vpop.f32.mrb[0].mxu0
  %5936 = vmatprep.mubr.f32.mxu0 0.0
  %5937 = vmatmul.mubr.f32.gmra.mrb[0].mxu0 %v5833
  %v5938 = vpop.f32.mrb[0].mxu0
  %v5939 = vadd.f32 0.0, %v5938
  %v5940 = vpop.f32.mrb[0].mxu0
  %5941 = vmatprep.mubr.f32.mxu0 0.0
  %5942 = vmatmul.mubr.f32.gmra.mrb[0].mxu0 %v5836
  %v5943 = vpop.f32.mrb[0].mxu0
  %v5944 = vadd.f32 0.0, %v5943
  %v5945 = vpop.f32.mrb[0].mxu0
  %5946 = vmatprep.mubr.f32.mxu0 0.0
  %5947 = vmatmul.mubr.f32.gmra.mrb[0].mxu0 %v5839
  %v5948 = vpop.f32.mrb[0].mxu0
  %v5949 = vadd.f32 0.0, %v5948
  %v5950 = vpop.f32.mrb[0].mxu0
  %5951 = vmatprep.mubr.f32.mxu0 0.0
  %5952 = vmatmul.mubr.f32.gmra.mrb[0].mxu0 %v5842
  %v5953 = vpop.f32.mrb[0].mxu0
  %v5954 = vadd.f32 0.0, %v5953
  %v5955 = vpop.f32.mrb[0].mxu0
  %5956 = vmatprep.mubr.f32.mxu0 0.0
  %5957 = vmatmul.mubr.f32.gmra.mrb[0].mxu0 %v5845
  %v5958 = vpop.f32.mrb[0].mxu0
  %v5959 = vadd.f32 0.0, %v5958
  %v5960 = vpop.f32.mrb[0].mxu0
  %5961 = vmatprep.mubr.f32.mxu0 0.0
  %5962 = vmatmul.mubr.f32.gmra.mrb[0].mxu0 %v5848
  %v5963 = vpop.f32.mrb[0].mxu0
  %v5964 = vadd.f32 0.0, %v5963
  %v5965 = vpop.f32.mrb[0].mxu0
  %5966 = vmatprep.mubr.f32.mxu0 0.0
  %5967 = vmatmul.mubr.f32.gmra.mrb[0].mxu0 %v5851
  %v5968 = vpop.f32.mrb[0].mxu0
  %v5969 = vadd.f32 0.0, %v5968
  %v5970 = vpop.f32.mrb[0].mxu0
  %5971 = vmatprep.mubr.f32.mxu0 0.0
  %5972 = vmatmul.mubr.f32.gmra.mrb[0].mxu0 %v5854
  %v5973 = vpop.f32.mrb[0].mxu0
  %v5974 = vadd.f32 0.0, %v5973
  %v5975 = vpop.f32.mrb[0].mxu0
  %5976 = vmatprep.mubr.f32.mxu0 0.0
  %5977 = vmatmul.mubr.f32.gmra.mrb[0].mxu0 %v5857
  %v5978 = vpop.f32.mrb[0].mxu0
  %v5979 = vadd.f32 0.0, %v5978
  %v5980 = vpop.f32.mrb[0].mxu0
  %5981 = vmatprep.mubr.f32.mxu0 0.0
  %5982 = vmatmul.mubr.f32.gmra.mrb[0].mxu0 %v5860
  %v5983 = vpop.f32.mrb[0].mxu0
  %v5984 = vadd.f32 0.0, %v5983
  %v5985 = vpop.f32.mrb[0].mxu0
  %5986 = vdwg.mxu0
  %v5987 = vsel %vm261, %v5929, 0.0
  %v5988 = vsel %vm262, %v5934, 0.0
  %v5989 = vsel %vm263, %v5939, 0.0
  %v5990 = vsel %vm264, %v5944, 0.0
  %v5991 = vsel %vm265, %v5949, 0.0
  %v5992 = vsel %vm266, %v5954, 0.0
  %v5993 = vsel %vm267, %v5959, 0.0
  %v5994 = vsel %vm268, %v5964, 0.0
  %v5995 = vsel %vm269, %v5969, 0.0
  %v5996 = vsel %vm270, %v5974, 0.0
  %v5997 = vsel %vm271, %v5979, 0.0
  %v5998 = vsel %vm272, %v5984, 0.0
  %vm5999 = vcmp.ge.s32.totalorder %v44, 3
  %vm6000 = vcmp.ge.s32.totalorder %v45, 3
  %vm6001 = vcmp.ge.s32.totalorder %v46, 3
  %v6002 = vsel %vm5999, 1, 0
  %v6003 = vsel %vm6000, 1, 0
  %v6004 = vsel %vm6001, 1, 0
  %vm6005 = vcmp.ge.s32.totalorder %v44, 6
  %vm6006 = vcmp.ge.s32.totalorder %v45, 6
  %vm6007 = vcmp.ge.s32.totalorder %v46, 6
  %v6008 = vsel %vm6005, 1, 0
  %v6009 = vsel %vm6006, 1, 0
  %v6010 = vsel %vm6007, 1, 0
  %v6011 = vadd.s32 %v6002, %v6008
  %v6012 = vadd.s32 %v6003, %v6009
  %v6013 = vadd.s32 %v6004, %v6010
  %vm6014 = vcmp.ge.s32.totalorder %v44, 9
  %vm6015 = vcmp.ge.s32.totalorder %v45, 9
  %vm6016 = vcmp.ge.s32.totalorder %v46, 9
  %v6017 = vsel %vm6014, 1, 0
  %v6018 = vsel %vm6015, 1, 0
  %v6019 = vsel %vm6016, 1, 0
  %v6020 = vadd.s32 %v6011, %v6017
  %v6021 = vadd.s32 %v6012, %v6018
  %v6022 = vadd.s32 %v6013, %v6019
  %v6023 = vmul.u32 %v6020, 24
  %v6024 = vmul.u32 %v6021, 24
  %v6025 = vmul.u32 %v6022, 24
  %v6026 = vadd.s32 %v6023, %v47
  %v6027 = vadd.s32 %v6024, %v48
  %v6028 = vadd.s32 %v6025, %v49
  %v6029 = vmul.u32 %v6020, 3
  %v6030 = vmul.u32 %v6021, 3
  %v6031 = vmul.u32 %v6022, 3
  %v6032 = vsub.s32 %v44, %v6029
  %v6033 = vsub.s32 %v45, %v6030
  %v6034 = vsub.s32 %v46, %v6031
  %v6035 = vmul.u32 %v6032, 4
  %v6036 = vmul.u32 %v6033, 4
  %v6037 = vmul.u32 %v6034, 4
  %v6038 = vadd.s32 %v6026, %v6035
  %v6039 = vadd.s32 %v6027, %v6036
  %v6040 = vadd.s32 %v6028, %v6037
  %v6041 = vlaneseq
  %v6042 = vshrl.u32 %v6041, 7
  %v6043 = vsub.s32 0, %v6042
  %v6044 = vrot.slane %v5061, %v6043
  %v6045 = vadd.f32 %v6044, 0.0
  %vm6046 = vcmp.eq.s32.totalorder %v34, %v6038
  %vm6047 = vcmp.eq.s32.totalorder %v34, %v6039
  %vm6048 = vcmp.eq.s32.totalorder %v34, %v6040
  %v6049 = vsel %vm6046, 1.0, 0.0
  %v6050 = vsel %vm6047, 1.0, 0.0
  %v6051 = vsel %vm6048, 1.0, 0.0
  %v6053 = vsel %vm1837, %v6049, 0
  %v6056 = vsel %vm1837, %v6050, 0
  %v6059 = vsel %vm1837, %v6051, 0
  %6061 = vmatprep.subr.mxu0 0.0
  %6062 = vmatpush1.msra.mxu0 %v5987
  %6063 = vmatprep.subr.mxu0 0.0
  %6064 = vmatpush1.msra.mxu0 %v5988
  %6065 = vmatprep.subr.mxu0 0.0
  %6066 = vmatpush1.msra.mxu0 %v5989
  %6067 = vmatprep.subr.mxu0 0.0
  %6068 = vmatpush1.msra.mxu0 %v5990
  %6069 = vmatprep.subr.mxu0 0.0
  %6070 = vmatpush1.msra.mxu0 %v5991
  %6071 = vmatprep.subr.mxu0 0.0
  %6072 = vmatpush1.msra.mxu0 %v5992
  %6073 = vmatprep.subr.mxu0 0.0
  %6074 = vmatpush1.msra.mxu0 %v5993
  %6075 = vmatprep.subr.mxu0 0.0
  %6076 = vmatpush1.msra.mxu0 %v5994
  %6077 = vmatprep.subr.mxu0 0.0
  %6078 = vmatpush1.msra.mxu0 %v5995
  %6079 = vmatprep.subr.mxu0 0.0
  %6080 = vmatpush1.msra.mxu0 %v5996
  %6081 = vmatprep.subr.mxu0 0.0
  %6082 = vmatpush1.msra.mxu0 %v5997
  %6083 = vmatprep.subr.mxu0 0.0
  %6084 = vmatpush1.msra.mxu0 %v5998
  %6085 = vmatprep.subr.mxu0 0.0
  %6086 = vmatpush1.msra.mxu0 0.0
  %6087 = vmatprep.subr.mxu0 0.0
  %6088 = vmatpush1.msra.mxu0 0.0
  %6089 = vmatprep.subr.mxu0 0.0
  %6090 = vmatpush1.msra.mxu0 0.0
  %6091 = vmatprep.subr.mxu0 0.0
  %6092 = vmatpush1.msra.mxu0 0.0
  %6093 = vmatprep.subr.mxu0 0.0
  %6094 = vmatpush1.msra.mxu0 0.0
  %6095 = vmatprep.subr.mxu0 0.0
  %6096 = vmatpush1.msra.mxu0 0.0
  %6097 = vmatprep.subr.mxu0 0.0
  %6098 = vmatpush1.msra.mxu0 0.0
  %6099 = vmatprep.subr.mxu0 0.0
  %6100 = vmatpush1.msra.mxu0 0.0
  %6101 = vmatprep.subr.mxu0 0.0
  %6102 = vmatpush1.msra.mxu0 0.0
  %6103 = vmatprep.subr.mxu0 0.0
  %6104 = vmatpush1.msra.mxu0 0.0
  %6105 = vmatprep.subr.mxu0 0.0
  %6106 = vmatpush1.msra.mxu0 0.0
  %6107 = vmatprep.subr.mxu0 0.0
  %6108 = vmatpush1.msra.mxu0 0.0
  %6109 = vmatprep.subr.mxu0 0.0
  %6110 = vmatpush1.msra.mxu0 0.0
  %6111 = vmatprep.subr.mxu0 0.0
  %6112 = vmatpush1.msra.mxu0 0.0
  %6113 = vmatprep.subr.mxu0 0.0
  %6114 = vmatpush1.msra.mxu0 0.0
  %6115 = vmatprep.subr.mxu0 0.0
  %6116 = vmatpush1.msra.mxu0 0.0
  %6117 = vmatprep.subr.mxu0 0.0
  %6118 = vmatpush1.msra.mxu0 0.0
  %6119 = vmatprep.subr.mxu0 0.0
  %6120 = vmatpush1.msra.mxu0 0.0
  %6121 = vmatprep.subr.mxu0 0.0
  %6122 = vmatpush1.msra.mxu0 0.0
  %6123 = vmatprep.subr.mxu0 0.0
  %6124 = vmatpush1.msra.mxu0 0.0
  %6125 = vmatprep.mubr.f32.mxu0 0.0
  %6126 = vmatmul.mubr.f32.gmra.mrb[0].mxu0 %v6053
  %v6127 = vpop.f32.mrb[0].mxu0
  %v6128 = vadd.f32 0.0, %v6127
  %v6129 = vpop.f32.mrb[0].mxu0
  %6130 = vmatprep.mubr.f32.mxu0 0.0
  %6131 = vmatmul.mubr.f32.gmra.mrb[0].mxu0 %v6056
  %v6132 = vpop.f32.mrb[0].mxu0
  %v6133 = vadd.f32 0.0, %v6132
  %v6134 = vpop.f32.mrb[0].mxu0
  %6135 = vmatprep.mubr.f32.mxu0 0.0
  %6136 = vmatmul.mubr.f32.gmra.mrb[0].mxu0 %v6059
  %v6137 = vpop.f32.mrb[0].mxu0
  %v6138 = vadd.f32 0.0, %v6137
  %v6139 = vpop.f32.mrb[0].mxu0
  %6140 = vdwg.mxu0
  %v6142 = vsel %vm554, %v6128, 0
  %v6145 = vsel %vm554, %v6133, 0
  %v6148 = vsel %vm554, %v6138, 0
  %6150 = vmatprep.subr.mxu0 0.0
  %6151 = vmatpush1.msra.mxu0 %v5023
  %6152 = vmatprep.subr.mxu0 0.0
  %6153 = vmatpush1.msra.mxu0 %v5024
  %6154 = vmatprep.subr.mxu0 0.0
  %6155 = vmatpush1.msra.mxu0 %v5025
  %6156 = vmatprep.subr.mxu0 0.0
  %6157 = vmatpush1.msra.mxu0 %v5026
  %6158 = vmatprep.subr.mxu0 0.0
  %6159 = vmatpush1.msra.mxu0 %v5027
  %6160 = vmatprep.subr.mxu0 0.0
  %6161 = vmatpush1.msra.mxu0 %v5028
  %6162 = vmatprep.subr.mxu0 0.0
  %6163 = vmatpush1.msra.mxu0 %v5029
  %6164 = vmatprep.subr.mxu0 0.0
  %6165 = vmatpush1.msra.mxu0 %v5030
  %6166 = vmatprep.subr.mxu0 0.0
  %6167 = vmatpush1.msra.mxu0 0.0
  %6168 = vmatprep.subr.mxu0 0.0
  %6169 = vmatpush1.msra.mxu0 0.0
  %6170 = vmatprep.subr.mxu0 0.0
  %6171 = vmatpush1.msra.mxu0 0.0
  %6172 = vmatprep.subr.mxu0 0.0
  %6173 = vmatpush1.msra.mxu0 0.0
  %6174 = vmatprep.subr.mxu0 0.0
  %6175 = vmatpush1.msra.mxu0 0.0
  %6176 = vmatprep.subr.mxu0 0.0
  %6177 = vmatpush1.msra.mxu0 0.0
  %6178 = vmatprep.subr.mxu0 0.0
  %6179 = vmatpush1.msra.mxu0 0.0
  %6180 = vmatprep.subr.mxu0 0.0
  %6181 = vmatpush1.msra.mxu0 0.0
  %6182 = vmatprep.subr.mxu0 0.0
  %6183 = vmatpush1.msra.mxu0 0.0
  %6184 = vmatprep.subr.mxu0 0.0
  %6185 = vmatpush1.msra.mxu0 0.0
  %6186 = vmatprep.subr.mxu0 0.0
  %6187 = vmatpush1.msra.mxu0 0.0
  %6188 = vmatprep.subr.mxu0 0.0
  %6189 = vmatpush1.msra.mxu0 0.0
  %6190 = vmatprep.subr.mxu0 0.0
  %6191 = vmatpush1.msra.mxu0 0.0
  %6192 = vmatprep.subr.mxu0 0.0
  %6193 = vmatpush1.msra.mxu0 0.0
  %6194 = vmatprep.subr.mxu0 0.0
  %6195 = vmatpush1.msra.mxu0 0.0
  %6196 = vmatprep.subr.mxu0 0.0
  %6197 = vmatpush1.msra.mxu0 0.0
  %6198 = vmatprep.subr.mxu0 0.0
  %6199 = vmatpush1.msra.mxu0 0.0
  %6200 = vmatprep.subr.mxu0 0.0
  %6201 = vmatpush1.msra.mxu0 0.0
  %6202 = vmatprep.subr.mxu0 0.0
  %6203 = vmatpush1.msra.mxu0 0.0
  %6204 = vmatprep.subr.mxu0 0.0
  %6205 = vmatpush1.msra.mxu0 0.0
  %6206 = vmatprep.subr.mxu0 0.0
  %6207 = vmatpush1.msra.mxu0 0.0
  %6208 = vmatprep.subr.mxu0 0.0
  %6209 = vmatpush1.msra.mxu0 0.0
  %6210 = vmatprep.subr.mxu0 0.0
  %6211 = vmatpush1.msra.mxu0 0.0
  %6212 = vmatprep.subr.mxu0 0.0
  %6213 = vmatpush1.msra.mxu0 0.0
  %6214 = vmatprep.mubr.f32.mxu0 0.0
  %6215 = vmatmul.mubr.f32.gmra.mrb[0].mxu0 %v6142
  %v6216 = vpop.f32.mrb[0].mxu0
  %v6217 = vadd.f32 0.0, %v6216
  %v6218 = vpop.f32.mrb[0].mxu0
  %6219 = vmatprep.mubr.f32.mxu0 0.0
  %6220 = vmatmul.mubr.f32.gmra.mrb[0].mxu0 %v6145
  %v6221 = vpop.f32.mrb[0].mxu0
  %v6222 = vadd.f32 0.0, %v6221
  %v6223 = vpop.f32.mrb[0].mxu0
  %6224 = vmatprep.mubr.f32.mxu0 0.0
  %6225 = vmatmul.mubr.f32.gmra.mrb[0].mxu0 %v6148
  %v6226 = vpop.f32.mrb[0].mxu0
  %v6227 = vadd.f32 0.0, %v6226
  %v6228 = vpop.f32.mrb[0].mxu0
  %6229 = vdwg.mxu0
  %v6230 = vadd.f32 %v6045, %v6217
  %v6231 = vadd.f32 %v6045, %v6222
  %v6232 = vadd.f32 %v6045, %v6227
  %v6233 = vadd.s32 %v6038, 1
  %v6234 = vadd.s32 %v6039, 1
  %v6235 = vadd.s32 %v6040, 1
  %vm6236 = vcmp.eq.s32.totalorder %v34, %v6233
  %vm6237 = vcmp.eq.s32.totalorder %v34, %v6234
  %vm6238 = vcmp.eq.s32.totalorder %v34, %v6235
  %v6239 = vsel %vm6236, 1.0, 0.0
  %v6240 = vsel %vm6237, 1.0, 0.0
  %v6241 = vsel %vm6238, 1.0, 0.0
  %v6243 = vsel %vm1837, %v6239, 0
  %v6246 = vsel %vm1837, %v6240, 0
  %v6249 = vsel %vm1837, %v6241, 0
  %6251 = vmatprep.subr.mxu0 0.0
  %6252 = vmatpush1.msra.mxu0 %v5987
  %6253 = vmatprep.subr.mxu0 0.0
  %6254 = vmatpush1.msra.mxu0 %v5988
  %6255 = vmatprep.subr.mxu0 0.0
  %6256 = vmatpush1.msra.mxu0 %v5989
  %6257 = vmatprep.subr.mxu0 0.0
  %6258 = vmatpush1.msra.mxu0 %v5990
  %6259 = vmatprep.subr.mxu0 0.0
  %6260 = vmatpush1.msra.mxu0 %v5991
  %6261 = vmatprep.subr.mxu0 0.0
  %6262 = vmatpush1.msra.mxu0 %v5992
  %6263 = vmatprep.subr.mxu0 0.0
  %6264 = vmatpush1.msra.mxu0 %v5993
  %6265 = vmatprep.subr.mxu0 0.0
  %6266 = vmatpush1.msra.mxu0 %v5994
  %6267 = vmatprep.subr.mxu0 0.0
  %6268 = vmatpush1.msra.mxu0 %v5995
  %6269 = vmatprep.subr.mxu0 0.0
  %6270 = vmatpush1.msra.mxu0 %v5996
  %6271 = vmatprep.subr.mxu0 0.0
  %6272 = vmatpush1.msra.mxu0 %v5997
  %6273 = vmatprep.subr.mxu0 0.0
  %6274 = vmatpush1.msra.mxu0 %v5998
  %6275 = vmatprep.subr.mxu0 0.0
  %6276 = vmatpush1.msra.mxu0 0.0
  %6277 = vmatprep.subr.mxu0 0.0
  %6278 = vmatpush1.msra.mxu0 0.0
  %6279 = vmatprep.subr.mxu0 0.0
  %6280 = vmatpush1.msra.mxu0 0.0
  %6281 = vmatprep.subr.mxu0 0.0
  %6282 = vmatpush1.msra.mxu0 0.0
  %6283 = vmatprep.subr.mxu0 0.0
  %6284 = vmatpush1.msra.mxu0 0.0
  %6285 = vmatprep.subr.mxu0 0.0
  %6286 = vmatpush1.msra.mxu0 0.0
  %6287 = vmatprep.subr.mxu0 0.0
  %6288 = vmatpush1.msra.mxu0 0.0
  %6289 = vmatprep.subr.mxu0 0.0
  %6290 = vmatpush1.msra.mxu0 0.0
  %6291 = vmatprep.subr.mxu0 0.0
  %6292 = vmatpush1.msra.mxu0 0.0
  %6293 = vmatprep.subr.mxu0 0.0
  %6294 = vmatpush1.msra.mxu0 0.0
  %6295 = vmatprep.subr.mxu0 0.0
  %6296 = vmatpush1.msra.mxu0 0.0
  %6297 = vmatprep.subr.mxu0 0.0
  %6298 = vmatpush1.msra.mxu0 0.0
  %6299 = vmatprep.subr.mxu0 0.0
  %6300 = vmatpush1.msra.mxu0 0.0
  %6301 = vmatprep.subr.mxu0 0.0
  %6302 = vmatpush1.msra.mxu0 0.0
  %6303 = vmatprep.subr.mxu0 0.0
  %6304 = vmatpush1.msra.mxu0 0.0
  %6305 = vmatprep.subr.mxu0 0.0
  %6306 = vmatpush1.msra.mxu0 0.0
  %6307 = vmatprep.subr.mxu0 0.0
  %6308 = vmatpush1.msra.mxu0 0.0
  %6309 = vmatprep.subr.mxu0 0.0
  %6310 = vmatpush1.msra.mxu0 0.0
  %6311 = vmatprep.subr.mxu0 0.0
  %6312 = vmatpush1.msra.mxu0 0.0
  %6313 = vmatprep.subr.mxu0 0.0
  %6314 = vmatpush1.msra.mxu0 0.0
  %6315 = vmatprep.mubr.f32.mxu0 0.0
  %6316 = vmatmul.mubr.f32.gmra.mrb[0].mxu0 %v6243
  %v6317 = vpop.f32.mrb[0].mxu0
  %v6318 = vadd.f32 0.0, %v6317
  %v6319 = vpop.f32.mrb[0].mxu0
  %6320 = vmatprep.mubr.f32.mxu0 0.0
  %6321 = vmatmul.mubr.f32.gmra.mrb[0].mxu0 %v6246
  %v6322 = vpop.f32.mrb[0].mxu0
  %v6323 = vadd.f32 0.0, %v6322
  %v6324 = vpop.f32.mrb[0].mxu0
  %6325 = vmatprep.mubr.f32.mxu0 0.0
  %6326 = vmatmul.mubr.f32.gmra.mrb[0].mxu0 %v6249
  %v6327 = vpop.f32.mrb[0].mxu0
  %v6328 = vadd.f32 0.0, %v6327
  %v6329 = vpop.f32.mrb[0].mxu0
  %6330 = vdwg.mxu0
  %v6332 = vsel %vm554, %v6318, 0
  %v6335 = vsel %vm554, %v6323, 0
  %v6338 = vsel %vm554, %v6328, 0
  %6340 = vmatprep.subr.mxu0 0.0
  %6341 = vmatpush1.msra.mxu0 %v5032
  %6342 = vmatprep.subr.mxu0 0.0
  %6343 = vmatpush1.msra.mxu0 %v5033
  %6344 = vmatprep.subr.mxu0 0.0
  %6345 = vmatpush1.msra.mxu0 %v5034
  %6346 = vmatprep.subr.mxu0 0.0
  %6347 = vmatpush1.msra.mxu0 %v5035
  %6348 = vmatprep.subr.mxu0 0.0
  %6349 = vmatpush1.msra.mxu0 %v5036
  %6350 = vmatprep.subr.mxu0 0.0
  %6351 = vmatpush1.msra.mxu0 %v5037
  %6352 = vmatprep.subr.mxu0 0.0
  %6353 = vmatpush1.msra.mxu0 %v5038
  %6354 = vmatprep.subr.mxu0 0.0
  %6355 = vmatpush1.msra.mxu0 %v5039
  %6356 = vmatprep.subr.mxu0 0.0
  %6357 = vmatpush1.msra.mxu0 0.0
  %6358 = vmatprep.subr.mxu0 0.0
  %6359 = vmatpush1.msra.mxu0 0.0
  %6360 = vmatprep.subr.mxu0 0.0
  %6361 = vmatpush1.msra.mxu0 0.0
  %6362 = vmatprep.subr.mxu0 0.0
  %6363 = vmatpush1.msra.mxu0 0.0
  %6364 = vmatprep.subr.mxu0 0.0
  %6365 = vmatpush1.msra.mxu0 0.0
  %6366 = vmatprep.subr.mxu0 0.0
  %6367 = vmatpush1.msra.mxu0 0.0
  %6368 = vmatprep.subr.mxu0 0.0
  %6369 = vmatpush1.msra.mxu0 0.0
  %6370 = vmatprep.subr.mxu0 0.0
  %6371 = vmatpush1.msra.mxu0 0.0
  %6372 = vmatprep.subr.mxu0 0.0
  %6373 = vmatpush1.msra.mxu0 0.0
  %6374 = vmatprep.subr.mxu0 0.0
  %6375 = vmatpush1.msra.mxu0 0.0
  %6376 = vmatprep.subr.mxu0 0.0
  %6377 = vmatpush1.msra.mxu0 0.0
  %6378 = vmatprep.subr.mxu0 0.0
  %6379 = vmatpush1.msra.mxu0 0.0
  %6380 = vmatprep.subr.mxu0 0.0
  %6381 = vmatpush1.msra.mxu0 0.0
  %6382 = vmatprep.subr.mxu0 0.0
  %6383 = vmatpush1.msra.mxu0 0.0
  %6384 = vmatprep.subr.mxu0 0.0
  %6385 = vmatpush1.msra.mxu0 0.0
  %6386 = vmatprep.subr.mxu0 0.0
  %6387 = vmatpush1.msra.mxu0 0.0
  %6388 = vmatprep.subr.mxu0 0.0
  %6389 = vmatpush1.msra.mxu0 0.0
  %6390 = vmatprep.subr.mxu0 0.0
  %6391 = vmatpush1.msra.mxu0 0.0
  %6392 = vmatprep.subr.mxu0 0.0
  %6393 = vmatpush1.msra.mxu0 0.0
  %6394 = vmatprep.subr.mxu0 0.0
  %6395 = vmatpush1.msra.mxu0 0.0
  %6396 = vmatprep.subr.mxu0 0.0
  %6397 = vmatpush1.msra.mxu0 0.0
  %6398 = vmatprep.subr.mxu0 0.0
  %6399 = vmatpush1.msra.mxu0 0.0
  %6400 = vmatprep.subr.mxu0 0.0
  %6401 = vmatpush1.msra.mxu0 0.0
  %6402 = vmatprep.subr.mxu0 0.0
  %6403 = vmatpush1.msra.mxu0 0.0
  %6404 = vmatprep.mubr.f32.mxu0 0.0
  %6405 = vmatmul.mubr.f32.gmra.mrb[0].mxu0 %v6332
  %v6406 = vpop.f32.mrb[0].mxu0
  %v6407 = vadd.f32 0.0, %v6406
  %v6408 = vpop.f32.mrb[0].mxu0
  %6409 = vmatprep.mubr.f32.mxu0 0.0
  %6410 = vmatmul.mubr.f32.gmra.mrb[0].mxu0 %v6335
  %v6411 = vpop.f32.mrb[0].mxu0
  %v6412 = vadd.f32 0.0, %v6411
  %v6413 = vpop.f32.mrb[0].mxu0
  %6414 = vmatprep.mubr.f32.mxu0 0.0
  %6415 = vmatmul.mubr.f32.gmra.mrb[0].mxu0 %v6338
  %v6416 = vpop.f32.mrb[0].mxu0
  %v6417 = vadd.f32 0.0, %v6416
  %v6418 = vpop.f32.mrb[0].mxu0
  %6419 = vdwg.mxu0
  %v6420 = vadd.f32 %v6230, %v6407
  %v6421 = vadd.f32 %v6231, %v6412
  %v6422 = vadd.f32 %v6232, %v6417
  %v6423 = vadd.s32 %v6038, 2
  %v6424 = vadd.s32 %v6039, 2
  %v6425 = vadd.s32 %v6040, 2
  %vm6426 = vcmp.eq.s32.totalorder %v34, %v6423
  %vm6427 = vcmp.eq.s32.totalorder %v34, %v6424
  %vm6428 = vcmp.eq.s32.totalorder %v34, %v6425
  %v6429 = vsel %vm6426, 1.0, 0.0
  %v6430 = vsel %vm6427, 1.0, 0.0
  %v6431 = vsel %vm6428, 1.0, 0.0
  %v6433 = vsel %vm1837, %v6429, 0
  %v6436 = vsel %vm1837, %v6430, 0
  %v6439 = vsel %vm1837, %v6431, 0
  %6441 = vmatprep.subr.mxu0 0.0
  %6442 = vmatpush1.msra.mxu0 %v5987
  %6443 = vmatprep.subr.mxu0 0.0
  %6444 = vmatpush1.msra.mxu0 %v5988
  %6445 = vmatprep.subr.mxu0 0.0
  %6446 = vmatpush1.msra.mxu0 %v5989
  %6447 = vmatprep.subr.mxu0 0.0
  %6448 = vmatpush1.msra.mxu0 %v5990
  %6449 = vmatprep.subr.mxu0 0.0
  %6450 = vmatpush1.msra.mxu0 %v5991
  %6451 = vmatprep.subr.mxu0 0.0
  %6452 = vmatpush1.msra.mxu0 %v5992
  %6453 = vmatprep.subr.mxu0 0.0
  %6454 = vmatpush1.msra.mxu0 %v5993
  %6455 = vmatprep.subr.mxu0 0.0
  %6456 = vmatpush1.msra.mxu0 %v5994
  %6457 = vmatprep.subr.mxu0 0.0
  %6458 = vmatpush1.msra.mxu0 %v5995
  %6459 = vmatprep.subr.mxu0 0.0
  %6460 = vmatpush1.msra.mxu0 %v5996
  %6461 = vmatprep.subr.mxu0 0.0
  %6462 = vmatpush1.msra.mxu0 %v5997
  %6463 = vmatprep.subr.mxu0 0.0
  %6464 = vmatpush1.msra.mxu0 %v5998
  %6465 = vmatprep.subr.mxu0 0.0
  %6466 = vmatpush1.msra.mxu0 0.0
  %6467 = vmatprep.subr.mxu0 0.0
  %6468 = vmatpush1.msra.mxu0 0.0
  %6469 = vmatprep.subr.mxu0 0.0
  %6470 = vmatpush1.msra.mxu0 0.0
  %6471 = vmatprep.subr.mxu0 0.0
  %6472 = vmatpush1.msra.mxu0 0.0
  %6473 = vmatprep.subr.mxu0 0.0
  %6474 = vmatpush1.msra.mxu0 0.0
  %6475 = vmatprep.subr.mxu0 0.0
  %6476 = vmatpush1.msra.mxu0 0.0
  %6477 = vmatprep.subr.mxu0 0.0
  %6478 = vmatpush1.msra.mxu0 0.0
  %6479 = vmatprep.subr.mxu0 0.0
  %6480 = vmatpush1.msra.mxu0 0.0
  %6481 = vmatprep.subr.mxu0 0.0
  %6482 = vmatpush1.msra.mxu0 0.0
  %6483 = vmatprep.subr.mxu0 0.0
  %6484 = vmatpush1.msra.mxu0 0.0
  %6485 = vmatprep.subr.mxu0 0.0
  %6486 = vmatpush1.msra.mxu0 0.0
  %6487 = vmatprep.subr.mxu0 0.0
  %6488 = vmatpush1.msra.mxu0 0.0
  %6489 = vmatprep.subr.mxu0 0.0
  %6490 = vmatpush1.msra.mxu0 0.0
  %6491 = vmatprep.subr.mxu0 0.0
  %6492 = vmatpush1.msra.mxu0 0.0
  %6493 = vmatprep.subr.mxu0 0.0
  %6494 = vmatpush1.msra.mxu0 0.0
  %6495 = vmatprep.subr.mxu0 0.0
  %6496 = vmatpush1.msra.mxu0 0.0
  %6497 = vmatprep.subr.mxu0 0.0
  %6498 = vmatpush1.msra.mxu0 0.0
  %6499 = vmatprep.subr.mxu0 0.0
  %6500 = vmatpush1.msra.mxu0 0.0
  %6501 = vmatprep.subr.mxu0 0.0
  %6502 = vmatpush1.msra.mxu0 0.0
  %6503 = vmatprep.subr.mxu0 0.0
  %6504 = vmatpush1.msra.mxu0 0.0
  %6505 = vmatprep.mubr.f32.mxu0 0.0
  %6506 = vmatmul.mubr.f32.gmra.mrb[0].mxu0 %v6433
  %v6507 = vpop.f32.mrb[0].mxu0
  %v6508 = vadd.f32 0.0, %v6507
  %v6509 = vpop.f32.mrb[0].mxu0
  %6510 = vmatprep.mubr.f32.mxu0 0.0
  %6511 = vmatmul.mubr.f32.gmra.mrb[0].mxu0 %v6436
  %v6512 = vpop.f32.mrb[0].mxu0
  %v6513 = vadd.f32 0.0, %v6512
  %v6514 = vpop.f32.mrb[0].mxu0
  %6515 = vmatprep.mubr.f32.mxu0 0.0
  %6516 = vmatmul.mubr.f32.gmra.mrb[0].mxu0 %v6439
  %v6517 = vpop.f32.mrb[0].mxu0
  %v6518 = vadd.f32 0.0, %v6517
  %v6519 = vpop.f32.mrb[0].mxu0
  %6520 = vdwg.mxu0
  %v6522 = vsel %vm554, %v6508, 0
  %v6525 = vsel %vm554, %v6513, 0
  %v6528 = vsel %vm554, %v6518, 0
  %6530 = vmatprep.subr.mxu0 0.0
  %6531 = vmatpush1.msra.mxu0 %v5041
  %6532 = vmatprep.subr.mxu0 0.0
  %6533 = vmatpush1.msra.mxu0 %v5042
  %6534 = vmatprep.subr.mxu0 0.0
  %6535 = vmatpush1.msra.mxu0 %v5043
  %6536 = vmatprep.subr.mxu0 0.0
  %6537 = vmatpush1.msra.mxu0 %v5044
  %6538 = vmatprep.subr.mxu0 0.0
  %6539 = vmatpush1.msra.mxu0 %v5045
  %6540 = vmatprep.subr.mxu0 0.0
  %6541 = vmatpush1.msra.mxu0 %v5046
  %6542 = vmatprep.subr.mxu0 0.0
  %6543 = vmatpush1.msra.mxu0 %v5047
  %6544 = vmatprep.subr.mxu0 0.0
  %6545 = vmatpush1.msra.mxu0 %v5048
  %6546 = vmatprep.subr.mxu0 0.0
  %6547 = vmatpush1.msra.mxu0 0.0
  %6548 = vmatprep.subr.mxu0 0.0
  %6549 = vmatpush1.msra.mxu0 0.0
  %6550 = vmatprep.subr.mxu0 0.0
  %6551 = vmatpush1.msra.mxu0 0.0
  %6552 = vmatprep.subr.mxu0 0.0
  %6553 = vmatpush1.msra.mxu0 0.0
  %6554 = vmatprep.subr.mxu0 0.0
  %6555 = vmatpush1.msra.mxu0 0.0
  %6556 = vmatprep.subr.mxu0 0.0
  %6557 = vmatpush1.msra.mxu0 0.0
  %6558 = vmatprep.subr.mxu0 0.0
  %6559 = vmatpush1.msra.mxu0 0.0
  %6560 = vmatprep.subr.mxu0 0.0
  %6561 = vmatpush1.msra.mxu0 0.0
  %6562 = vmatprep.subr.mxu0 0.0
  %6563 = vmatpush1.msra.mxu0 0.0
  %6564 = vmatprep.subr.mxu0 0.0
  %6565 = vmatpush1.msra.mxu0 0.0
  %6566 = vmatprep.subr.mxu0 0.0
  %6567 = vmatpush1.msra.mxu0 0.0
  %6568 = vmatprep.subr.mxu0 0.0
  %6569 = vmatpush1.msra.mxu0 0.0
  %6570 = vmatprep.subr.mxu0 0.0
  %6571 = vmatpush1.msra.mxu0 0.0
  %6572 = vmatprep.subr.mxu0 0.0
  %6573 = vmatpush1.msra.mxu0 0.0
  %6574 = vmatprep.subr.mxu0 0.0
  %6575 = vmatpush1.msra.mxu0 0.0
  %6576 = vmatprep.subr.mxu0 0.0
  %6577 = vmatpush1.msra.mxu0 0.0
  %6578 = vmatprep.subr.mxu0 0.0
  %6579 = vmatpush1.msra.mxu0 0.0
  %6580 = vmatprep.subr.mxu0 0.0
  %6581 = vmatpush1.msra.mxu0 0.0
  %6582 = vmatprep.subr.mxu0 0.0
  %6583 = vmatpush1.msra.mxu0 0.0
  %6584 = vmatprep.subr.mxu0 0.0
  %6585 = vmatpush1.msra.mxu0 0.0
  %6586 = vmatprep.subr.mxu0 0.0
  %6587 = vmatpush1.msra.mxu0 0.0
  %6588 = vmatprep.subr.mxu0 0.0
  %6589 = vmatpush1.msra.mxu0 0.0
  %6590 = vmatprep.subr.mxu0 0.0
  %6591 = vmatpush1.msra.mxu0 0.0
  %6592 = vmatprep.subr.mxu0 0.0
  %6593 = vmatpush1.msra.mxu0 0.0
  %6594 = vmatprep.mubr.f32.mxu0 0.0
  %6595 = vmatmul.mubr.f32.gmra.mrb[0].mxu0 %v6522
  %v6596 = vpop.f32.mrb[0].mxu0
  %v6597 = vadd.f32 0.0, %v6596
  %v6598 = vpop.f32.mrb[0].mxu0
  %6599 = vmatprep.mubr.f32.mxu0 0.0
  %6600 = vmatmul.mubr.f32.gmra.mrb[0].mxu0 %v6525
  %v6601 = vpop.f32.mrb[0].mxu0
  %v6602 = vadd.f32 0.0, %v6601
  %v6603 = vpop.f32.mrb[0].mxu0
  %6604 = vmatprep.mubr.f32.mxu0 0.0
  %6605 = vmatmul.mubr.f32.gmra.mrb[0].mxu0 %v6528
  %v6606 = vpop.f32.mrb[0].mxu0
  %v6607 = vadd.f32 0.0, %v6606
  %v6608 = vpop.f32.mrb[0].mxu0
  %6609 = vdwg.mxu0
  %v6610 = vadd.f32 %v6420, %v6597
  %v6611 = vadd.f32 %v6421, %v6602
  %v6612 = vadd.f32 %v6422, %v6607
  %v6613 = vadd.s32 %v6038, 3
  %v6614 = vadd.s32 %v6039, 3
  %v6615 = vadd.s32 %v6040, 3
  %vm6616 = vcmp.eq.s32.totalorder %v34, %v6613
  %vm6617 = vcmp.eq.s32.totalorder %v34, %v6614
  %vm6618 = vcmp.eq.s32.totalorder %v34, %v6615
  %v6619 = vsel %vm6616, 1.0, 0.0
  %v6620 = vsel %vm6617, 1.0, 0.0
  %v6621 = vsel %vm6618, 1.0, 0.0
  %v6623 = vsel %vm1837, %v6619, 0
  %v6626 = vsel %vm1837, %v6620, 0
  %v6629 = vsel %vm1837, %v6621, 0
  %6631 = vmatprep.subr.mxu0 0.0
  %6632 = vmatpush1.msra.mxu0 %v5987
  %6633 = vmatprep.subr.mxu0 0.0
  %6634 = vmatpush1.msra.mxu0 %v5988
  %6635 = vmatprep.subr.mxu0 0.0
  %6636 = vmatpush1.msra.mxu0 %v5989
  %6637 = vmatprep.subr.mxu0 0.0
  %6638 = vmatpush1.msra.mxu0 %v5990
  %6639 = vmatprep.subr.mxu0 0.0
  %6640 = vmatpush1.msra.mxu0 %v5991
  %6641 = vmatprep.subr.mxu0 0.0
  %6642 = vmatpush1.msra.mxu0 %v5992
  %6643 = vmatprep.subr.mxu0 0.0
  %6644 = vmatpush1.msra.mxu0 %v5993
  %6645 = vmatprep.subr.mxu0 0.0
  %6646 = vmatpush1.msra.mxu0 %v5994
  %6647 = vmatprep.subr.mxu0 0.0
  %6648 = vmatpush1.msra.mxu0 %v5995
  %6649 = vmatprep.subr.mxu0 0.0
  %6650 = vmatpush1.msra.mxu0 %v5996
  %6651 = vmatprep.subr.mxu0 0.0
  %6652 = vmatpush1.msra.mxu0 %v5997
  %6653 = vmatprep.subr.mxu0 0.0
  %6654 = vmatpush1.msra.mxu0 %v5998
  %6655 = vmatprep.subr.mxu0 0.0
  %6656 = vmatpush1.msra.mxu0 0.0
  %6657 = vmatprep.subr.mxu0 0.0
  %6658 = vmatpush1.msra.mxu0 0.0
  %6659 = vmatprep.subr.mxu0 0.0
  %6660 = vmatpush1.msra.mxu0 0.0
  %6661 = vmatprep.subr.mxu0 0.0
  %6662 = vmatpush1.msra.mxu0 0.0
  %6663 = vmatprep.subr.mxu0 0.0
  %6664 = vmatpush1.msra.mxu0 0.0
  %6665 = vmatprep.subr.mxu0 0.0
  %6666 = vmatpush1.msra.mxu0 0.0
  %6667 = vmatprep.subr.mxu0 0.0
  %6668 = vmatpush1.msra.mxu0 0.0
  %6669 = vmatprep.subr.mxu0 0.0
  %6670 = vmatpush1.msra.mxu0 0.0
  %6671 = vmatprep.subr.mxu0 0.0
  %6672 = vmatpush1.msra.mxu0 0.0
  %6673 = vmatprep.subr.mxu0 0.0
  %6674 = vmatpush1.msra.mxu0 0.0
  %6675 = vmatprep.subr.mxu0 0.0
  %6676 = vmatpush1.msra.mxu0 0.0
  %6677 = vmatprep.subr.mxu0 0.0
  %6678 = vmatpush1.msra.mxu0 0.0
  %6679 = vmatprep.subr.mxu0 0.0
  %6680 = vmatpush1.msra.mxu0 0.0
  %6681 = vmatprep.subr.mxu0 0.0
  %6682 = vmatpush1.msra.mxu0 0.0
  %6683 = vmatprep.subr.mxu0 0.0
  %6684 = vmatpush1.msra.mxu0 0.0
  %6685 = vmatprep.subr.mxu0 0.0
  %6686 = vmatpush1.msra.mxu0 0.0
  %6687 = vmatprep.subr.mxu0 0.0
  %6688 = vmatpush1.msra.mxu0 0.0
  %6689 = vmatprep.subr.mxu0 0.0
  %6690 = vmatpush1.msra.mxu0 0.0
  %6691 = vmatprep.subr.mxu0 0.0
  %6692 = vmatpush1.msra.mxu0 0.0
  %6693 = vmatprep.subr.mxu0 0.0
  %6694 = vmatpush1.msra.mxu0 0.0
  %6695 = vmatprep.mubr.f32.mxu0 0.0
  %6696 = vmatmul.mubr.f32.gmra.mrb[0].mxu0 %v6623
  %v6697 = vpop.f32.mrb[0].mxu0
  %v6698 = vadd.f32 0.0, %v6697
  %v6699 = vpop.f32.mrb[0].mxu0
  %6700 = vmatprep.mubr.f32.mxu0 0.0
  %6701 = vmatmul.mubr.f32.gmra.mrb[0].mxu0 %v6626
  %v6702 = vpop.f32.mrb[0].mxu0
  %v6703 = vadd.f32 0.0, %v6702
  %v6704 = vpop.f32.mrb[0].mxu0
  %6705 = vmatprep.mubr.f32.mxu0 0.0
  %6706 = vmatmul.mubr.f32.gmra.mrb[0].mxu0 %v6629
  %v6707 = vpop.f32.mrb[0].mxu0
  %v6708 = vadd.f32 0.0, %v6707
  %v6709 = vpop.f32.mrb[0].mxu0
  %6710 = vdwg.mxu0
  %v6712 = vsel %vm554, %v6698, 0
  %v6715 = vsel %vm554, %v6703, 0
  %v6718 = vsel %vm554, %v6708, 0
  %6720 = vmatprep.subr.mxu0 0.0
  %6721 = vmatpush1.msra.mxu0 %v5050
  %6722 = vmatprep.subr.mxu0 0.0
  %6723 = vmatpush1.msra.mxu0 %v5051
  %6724 = vmatprep.subr.mxu0 0.0
  %6725 = vmatpush1.msra.mxu0 %v5052
  %6726 = vmatprep.subr.mxu0 0.0
  %6727 = vmatpush1.msra.mxu0 %v5053
  %6728 = vmatprep.subr.mxu0 0.0
  %6729 = vmatpush1.msra.mxu0 %v5054
  %6730 = vmatprep.subr.mxu0 0.0
  %6731 = vmatpush1.msra.mxu0 %v5055
  %6732 = vmatprep.subr.mxu0 0.0
  %6733 = vmatpush1.msra.mxu0 %v5056
  %6734 = vmatprep.subr.mxu0 0.0
  %6735 = vmatpush1.msra.mxu0 %v5057
  %6736 = vmatprep.subr.mxu0 0.0
  %6737 = vmatpush1.msra.mxu0 0.0
  %6738 = vmatprep.subr.mxu0 0.0
  %6739 = vmatpush1.msra.mxu0 0.0
  %6740 = vmatprep.subr.mxu0 0.0
  %6741 = vmatpush1.msra.mxu0 0.0
  %6742 = vmatprep.subr.mxu0 0.0
  %6743 = vmatpush1.msra.mxu0 0.0
  %6744 = vmatprep.subr.mxu0 0.0
  %6745 = vmatpush1.msra.mxu0 0.0
  %6746 = vmatprep.subr.mxu0 0.0
  %6747 = vmatpush1.msra.mxu0 0.0
  %6748 = vmatprep.subr.mxu0 0.0
  %6749 = vmatpush1.msra.mxu0 0.0
  %6750 = vmatprep.subr.mxu0 0.0
  %6751 = vmatpush1.msra.mxu0 0.0
  %6752 = vmatprep.subr.mxu0 0.0
  %6753 = vmatpush1.msra.mxu0 0.0
  %6754 = vmatprep.subr.mxu0 0.0
  %6755 = vmatpush1.msra.mxu0 0.0
  %6756 = vmatprep.subr.mxu0 0.0
  %6757 = vmatpush1.msra.mxu0 0.0
  %6758 = vmatprep.subr.mxu0 0.0
  %6759 = vmatpush1.msra.mxu0 0.0
  %6760 = vmatprep.subr.mxu0 0.0
  %6761 = vmatpush1.msra.mxu0 0.0
  %6762 = vmatprep.subr.mxu0 0.0
  %6763 = vmatpush1.msra.mxu0 0.0
  %6764 = vmatprep.subr.mxu0 0.0
  %6765 = vmatpush1.msra.mxu0 0.0
  %6766 = vmatprep.subr.mxu0 0.0
  %6767 = vmatpush1.msra.mxu0 0.0
  %6768 = vmatprep.subr.mxu0 0.0
  %6769 = vmatpush1.msra.mxu0 0.0
  %6770 = vmatprep.subr.mxu0 0.0
  %6771 = vmatpush1.msra.mxu0 0.0
  %6772 = vmatprep.subr.mxu0 0.0
  %6773 = vmatpush1.msra.mxu0 0.0
  %6774 = vmatprep.subr.mxu0 0.0
  %6775 = vmatpush1.msra.mxu0 0.0
  %6776 = vmatprep.subr.mxu0 0.0
  %6777 = vmatpush1.msra.mxu0 0.0
  %6778 = vmatprep.subr.mxu0 0.0
  %6779 = vmatpush1.msra.mxu0 0.0
  %6780 = vmatprep.subr.mxu0 0.0
  %6781 = vmatpush1.msra.mxu0 0.0
  %6782 = vmatprep.subr.mxu0 0.0
  %6783 = vmatpush1.msra.mxu0 0.0
  %6784 = vmatprep.mubr.f32.mxu0 0.0
  %6785 = vmatmul.mubr.f32.gmra.mrb[0].mxu0 %v6712
  %v6786 = vpop.f32.mrb[0].mxu0
  %v6787 = vadd.f32 0.0, %v6786
  %v6788 = vpop.f32.mrb[0].mxu0
  %6789 = vmatprep.mubr.f32.mxu0 0.0
  %6790 = vmatmul.mubr.f32.gmra.mrb[0].mxu0 %v6715
  %v6791 = vpop.f32.mrb[0].mxu0
  %v6792 = vadd.f32 0.0, %v6791
  %v6793 = vpop.f32.mrb[0].mxu0
  %6794 = vmatprep.mubr.f32.mxu0 0.0
  %6795 = vmatmul.mubr.f32.gmra.mrb[0].mxu0 %v6718
  %v6796 = vpop.f32.mrb[0].mxu0
  %v6797 = vadd.f32 0.0, %v6796
  %v6798 = vpop.f32.mrb[0].mxu0
  %6799 = vdwg.mxu0
  %v6800 = vadd.f32 %v6610, %v6787
  %v6801 = vadd.f32 %v6611, %v6792
  %v6802 = vadd.f32 %v6612, %v6797
  %v6803 = vadd.f32 %v4992, %v6800
  %v6804 = vadd.f32 %v4993, %v6801
  %v6805 = vadd.f32 %v4994, %v6802
  %v6806 = vsel %vm554, %v6803, 0.0
  %6807 = vadd.xlane.f32.xlu0 %v6806
  %v6808 = vpop.xlane.xlu0 %6807
  %v6809 = vsel %vm554, %v6804, 0.0
  %6810 = vadd.xlane.f32.xlu0 %v6809
  %v6811 = vpop.xlane.xlu0 %6810
  %v6812 = vsel %vm554, %v6805, 0.0
  %6813 = vadd.xlane.f32.xlu0 %v6812
  %v6814 = vpop.xlane.xlu0 %6813
  %v6815 = vmul.f32 %v6808, %v2032
  %v6816 = vmul.f32 %v6811, %v2032
  %v6817 = vmul.f32 %v6814, %v2032
  %v6818 = vsub.f32 %v6803, %v6815
  %v6819 = vsub.f32 %v6804, %v6816
  %v6820 = vsub.f32 %v6805, %v6817
  %v6821 = vmul.f32 %v6818, %v6818
  %v6822 = vmul.f32 %v6819, %v6819
  %v6823 = vmul.f32 %v6820, %v6820
  %v6824 = vsel %vm554, %v6821, 0.0
  %6825 = vadd.xlane.f32.xlu0 %v6824
  %v6826 = vpop.xlane.xlu0 %6825
  %v6827 = vsel %vm554, %v6822, 0.0
  %6828 = vadd.xlane.f32.xlu0 %v6827
  %v6829 = vpop.xlane.xlu0 %6828
  %v6830 = vsel %vm554, %v6823, 0.0
  %6831 = vadd.xlane.f32.xlu0 %v6830
  %v6832 = vpop.xlane.xlu0 %6831
  %v6833 = vmul.f32 %v6826, %v2032
  %v6834 = vmul.f32 %v6829, %v2032
  %v6835 = vmul.f32 %v6832, %v2032
  %v6836 = vadd.f32 %v6833, 1e-05
  %v6837 = vadd.f32 %v6834, 1e-05
  %v6838 = vadd.f32 %v6835, 1e-05
  %v6839 = vrsqrt.pop %v6836
  %v6840 = vrsqrt.pop %v6837
  %v6841 = vrsqrt.pop %v6838
  %v6842 = vmul.f32 %v6818, %v6839
  %v6843 = vmul.f32 %v6819, %v6840
  %v6844 = vmul.f32 %v6820, %v6841
  %v6845 = vlaneseq
  %v6846 = vshrl.u32 %v6845, 7
  %v6847 = vsub.s32 0, %v6846
  %v6848 = vrot.slane %v5062, %v6847
  %v6849 = vmul.f32 %v6842, %v6848
  %v6850 = vmul.f32 %v6843, %v6848
  %v6851 = vmul.f32 %v6844, %v6848
  %v6852 = vlaneseq
  %v6853 = vshrl.u32 %v6852, 7
  %v6854 = vsub.s32 0, %v6853
  %v6855 = vrot.slane %v5063, %v6854
  %v6856 = vadd.f32 %v6849, %v6855
  %v6857 = vadd.f32 %v6850, %v6855
  %v6858 = vadd.f32 %v6851, %v6855
  %s6859 = scalar_lea.vmem %s4, 1792
  %v6860 = vld [vmem:[%s6859] sm:$0xff]
  %v6861 = vld [vmem:[%s6859 + $0x8] sm:$0xff]
  %v6862 = vld [vmem:[%s6859 + $0x10] sm:$0xff]
  %v6863 = vld [vmem:[%s6859 + $0x18] sm:$0xff]
  %v6864 = vld [vmem:[%s6859 + $0x20] sm:$0xff]
  %v6865 = vld [vmem:[%s6859 + $0x28] sm:$0xff]
  %v6866 = vld [vmem:[%s6859 + $0x30] sm:$0xff]
  %v6867 = vld [vmem:[%s6859 + $0x38] sm:$0xff]
  %s6868 = scalar_lea.vmem %s4, 1856
  %v6869 = vld [vmem:[%s6868] sm:$0xff]
  %v6870 = vld [vmem:[%s6868 + $0x8] sm:$0xff]
  %v6871 = vld [vmem:[%s6868 + $0x10] sm:$0xff]
  %v6872 = vld [vmem:[%s6868 + $0x18] sm:$0xff]
  %v6873 = vld [vmem:[%s6868 + $0x20] sm:$0xff]
  %v6874 = vld [vmem:[%s6868 + $0x28] sm:$0xff]
  %v6875 = vld [vmem:[%s6868 + $0x30] sm:$0xff]
  %v6876 = vld [vmem:[%s6868 + $0x38] sm:$0xff]
  %s6877 = scalar_lea.vmem %s4, 1920
  %v6878 = vld [vmem:[%s6877] sm:$0xff]
  %v6879 = vld [vmem:[%s6877 + $0x8] sm:$0xff]
  %v6880 = vld [vmem:[%s6877 + $0x10] sm:$0xff]
  %v6881 = vld [vmem:[%s6877 + $0x18] sm:$0xff]
  %v6882 = vld [vmem:[%s6877 + $0x20] sm:$0xff]
  %v6883 = vld [vmem:[%s6877 + $0x28] sm:$0xff]
  %v6884 = vld [vmem:[%s6877 + $0x30] sm:$0xff]
  %v6885 = vld [vmem:[%s6877 + $0x38] sm:$0xff]
  %s6886 = scalar_lea.vmem %s4, 1984
  %v6887 = vld [vmem:[%s6886] sm:$0xff]
  %v6888 = vld [vmem:[%s6886 + $0x8] sm:$0xff]
  %v6889 = vld [vmem:[%s6886 + $0x10] sm:$0xff]
  %v6890 = vld [vmem:[%s6886 + $0x18] sm:$0xff]
  %v6891 = vld [vmem:[%s6886 + $0x20] sm:$0xff]
  %v6892 = vld [vmem:[%s6886 + $0x28] sm:$0xff]
  %v6893 = vld [vmem:[%s6886 + $0x30] sm:$0xff]
  %v6894 = vld [vmem:[%s6886 + $0x38] sm:$0xff]
  %v6895 = vld [vmem:[%s5 + $0x21] sm:$0x1]
  %v6896 = vld [vmem:[%s5 + $0x22] sm:$0x1]
  %v6897 = vld [vmem:[%s5 + $0x23] sm:$0x1]
  %v6898 = vld [vmem:[%s5 + $0x24] sm:$0x1]
  %v6899 = vld [vmem:[%s5 + $0x25] sm:$0x1]
  %v6900 = vld [vmem:[%s5 + $0x26] sm:$0x1]
  %v6901 = vlaneseq
  %v6902 = vshrl.u32 %v6901, 7
  %v6903 = vsub.s32 0, %v6902
  %v6904 = vrot.slane %v6895, %v6903
  %v6906 = vsel %vm554, %v6856, 0
  %v6909 = vsel %vm554, %v6857, 0
  %v6912 = vsel %vm554, %v6858, 0
  %6914 = vmatprep.subr.mxu0 0.0
  %6915 = vmatpush1.msra.mxu0 %v6860
  %6916 = vmatprep.subr.mxu0 0.0
  %6917 = vmatpush1.msra.mxu0 %v6861
  %6918 = vmatprep.subr.mxu0 0.0
  %6919 = vmatpush1.msra.mxu0 %v6862
  %6920 = vmatprep.subr.mxu0 0.0
  %6921 = vmatpush1.msra.mxu0 %v6863
  %6922 = vmatprep.subr.mxu0 0.0
  %6923 = vmatpush1.msra.mxu0 %v6864
  %6924 = vmatprep.subr.mxu0 0.0
  %6925 = vmatpush1.msra.mxu0 %v6865
  %6926 = vmatprep.subr.mxu0 0.0
  %6927 = vmatpush1.msra.mxu0 %v6866
  %6928 = vmatprep.subr.mxu0 0.0
  %6929 = vmatpush1.msra.mxu0 %v6867
  %6930 = vmatprep.subr.mxu0 0.0
  %6931 = vmatpush1.msra.mxu0 0.0
  %6932 = vmatprep.subr.mxu0 0.0
  %6933 = vmatpush1.msra.mxu0 0.0
  %6934 = vmatprep.subr.mxu0 0.0
  %6935 = vmatpush1.msra.mxu0 0.0
  %6936 = vmatprep.subr.mxu0 0.0
  %6937 = vmatpush1.msra.mxu0 0.0
  %6938 = vmatprep.subr.mxu0 0.0
  %6939 = vmatpush1.msra.mxu0 0.0
  %6940 = vmatprep.subr.mxu0 0.0
  %6941 = vmatpush1.msra.mxu0 0.0
  %6942 = vmatprep.subr.mxu0 0.0
  %6943 = vmatpush1.msra.mxu0 0.0
  %6944 = vmatprep.subr.mxu0 0.0
  %6945 = vmatpush1.msra.mxu0 0.0
  %6946 = vmatprep.subr.mxu0 0.0
  %6947 = vmatpush1.msra.mxu0 0.0
  %6948 = vmatprep.subr.mxu0 0.0
  %6949 = vmatpush1.msra.mxu0 0.0
  %6950 = vmatprep.subr.mxu0 0.0
  %6951 = vmatpush1.msra.mxu0 0.0
  %6952 = vmatprep.subr.mxu0 0.0
  %6953 = vmatpush1.msra.mxu0 0.0
  %6954 = vmatprep.subr.mxu0 0.0
  %6955 = vmatpush1.msra.mxu0 0.0
  %6956 = vmatprep.subr.mxu0 0.0
  %6957 = vmatpush1.msra.mxu0 0.0
  %6958 = vmatprep.subr.mxu0 0.0
  %6959 = vmatpush1.msra.mxu0 0.0
  %6960 = vmatprep.subr.mxu0 0.0
  %6961 = vmatpush1.msra.mxu0 0.0
  %6962 = vmatprep.subr.mxu0 0.0
  %6963 = vmatpush1.msra.mxu0 0.0
  %6964 = vmatprep.subr.mxu0 0.0
  %6965 = vmatpush1.msra.mxu0 0.0
  %6966 = vmatprep.subr.mxu0 0.0
  %6967 = vmatpush1.msra.mxu0 0.0
  %6968 = vmatprep.subr.mxu0 0.0
  %6969 = vmatpush1.msra.mxu0 0.0
  %6970 = vmatprep.subr.mxu0 0.0
  %6971 = vmatpush1.msra.mxu0 0.0
  %6972 = vmatprep.subr.mxu0 0.0
  %6973 = vmatpush1.msra.mxu0 0.0
  %6974 = vmatprep.subr.mxu0 0.0
  %6975 = vmatpush1.msra.mxu0 0.0
  %6976 = vmatprep.subr.mxu0 0.0
  %6977 = vmatpush1.msra.mxu0 0.0
  %6978 = vmatprep.mubr.f32.mxu0 0.0
  %6979 = vmatmul.mubr.f32.gmra.mrb[0].mxu0 %v6906
  %v6980 = vpop.f32.mrb[0].mxu0
  %v6981 = vadd.f32 %v6904, %v6980
  %v6982 = vpop.f32.mrb[0].mxu0
  %6983 = vmatprep.mubr.f32.mxu0 0.0
  %6984 = vmatmul.mubr.f32.gmra.mrb[0].mxu0 %v6909
  %v6985 = vpop.f32.mrb[0].mxu0
  %v6986 = vadd.f32 %v6904, %v6985
  %v6987 = vpop.f32.mrb[0].mxu0
  %6988 = vmatprep.mubr.f32.mxu0 0.0
  %6989 = vmatmul.mubr.f32.gmra.mrb[0].mxu0 %v6912
  %v6990 = vpop.f32.mrb[0].mxu0
  %v6991 = vadd.f32 %v6904, %v6990
  %v6992 = vpop.f32.mrb[0].mxu0
  %6993 = vdwg.mxu0
  %v6994 = vlaneseq
  %v6995 = vshrl.u32 %v6994, 7
  %v6996 = vsub.s32 0, %v6995
  %v6997 = vrot.slane %v6896, %v6996
  %v6999 = vsel %vm554, %v4519, 0
  %v7002 = vsel %vm554, %v4520, 0
  %7004 = vmatprep.subr.mxu0 0.0
  %7005 = vmatpush1.msra.mxu0 %v6869
  %7006 = vmatprep.subr.mxu0 0.0
  %7007 = vmatpush1.msra.mxu0 %v6870
  %7008 = vmatprep.subr.mxu0 0.0
  %7009 = vmatpush1.msra.mxu0 %v6871
  %7010 = vmatprep.subr.mxu0 0.0
  %7011 = vmatpush1.msra.mxu0 %v6872
  %7012 = vmatprep.subr.mxu0 0.0
  %7013 = vmatpush1.msra.mxu0 %v6873
  %7014 = vmatprep.subr.mxu0 0.0
  %7015 = vmatpush1.msra.mxu0 %v6874
  %7016 = vmatprep.subr.mxu0 0.0
  %7017 = vmatpush1.msra.mxu0 %v6875
  %7018 = vmatprep.subr.mxu0 0.0
  %7019 = vmatpush1.msra.mxu0 %v6876
  %7020 = vmatprep.subr.mxu0 0.0
  %7021 = vmatpush1.msra.mxu0 0.0
  %7022 = vmatprep.subr.mxu0 0.0
  %7023 = vmatpush1.msra.mxu0 0.0
  %7024 = vmatprep.subr.mxu0 0.0
  %7025 = vmatpush1.msra.mxu0 0.0
  %7026 = vmatprep.subr.mxu0 0.0
  %7027 = vmatpush1.msra.mxu0 0.0
  %7028 = vmatprep.subr.mxu0 0.0
  %7029 = vmatpush1.msra.mxu0 0.0
  %7030 = vmatprep.subr.mxu0 0.0
  %7031 = vmatpush1.msra.mxu0 0.0
  %7032 = vmatprep.subr.mxu0 0.0
  %7033 = vmatpush1.msra.mxu0 0.0
  %7034 = vmatprep.subr.mxu0 0.0
  %7035 = vmatpush1.msra.mxu0 0.0
  %7036 = vmatprep.subr.mxu0 0.0
  %7037 = vmatpush1.msra.mxu0 0.0
  %7038 = vmatprep.subr.mxu0 0.0
  %7039 = vmatpush1.msra.mxu0 0.0
  %7040 = vmatprep.subr.mxu0 0.0
  %7041 = vmatpush1.msra.mxu0 0.0
  %7042 = vmatprep.subr.mxu0 0.0
  %7043 = vmatpush1.msra.mxu0 0.0
  %7044 = vmatprep.subr.mxu0 0.0
  %7045 = vmatpush1.msra.mxu0 0.0
  %7046 = vmatprep.subr.mxu0 0.0
  %7047 = vmatpush1.msra.mxu0 0.0
  %7048 = vmatprep.subr.mxu0 0.0
  %7049 = vmatpush1.msra.mxu0 0.0
  %7050 = vmatprep.subr.mxu0 0.0
  %7051 = vmatpush1.msra.mxu0 0.0
  %7052 = vmatprep.subr.mxu0 0.0
  %7053 = vmatpush1.msra.mxu0 0.0
  %7054 = vmatprep.subr.mxu0 0.0
  %7055 = vmatpush1.msra.mxu0 0.0
  %7056 = vmatprep.subr.mxu0 0.0
  %7057 = vmatpush1.msra.mxu0 0.0
  %7058 = vmatprep.subr.mxu0 0.0
  %7059 = vmatpush1.msra.mxu0 0.0
  %7060 = vmatprep.subr.mxu0 0.0
  %7061 = vmatpush1.msra.mxu0 0.0
  %7062 = vmatprep.subr.mxu0 0.0
  %7063 = vmatpush1.msra.mxu0 0.0
  %7064 = vmatprep.subr.mxu0 0.0
  %7065 = vmatpush1.msra.mxu0 0.0
  %7066 = vmatprep.subr.mxu0 0.0
  %7067 = vmatpush1.msra.mxu0 0.0
  %7068 = vmatprep.mubr.f32.mxu0 0.0
  %7069 = vmatmul.mubr.f32.gmra.mrb[0].mxu0 %v6999
  %v7070 = vpop.f32.mrb[0].mxu0
  %v7071 = vadd.f32 %v6997, %v7070
  %v7072 = vpop.f32.mrb[0].mxu0
  %7073 = vmatprep.mubr.f32.mxu0 0.0
  %7074 = vmatmul.mubr.f32.gmra.mrb[0].mxu0 %v7002
  %v7075 = vpop.f32.mrb[0].mxu0
  %v7076 = vadd.f32 %v6997, %v7075
  %v7077 = vpop.f32.mrb[0].mxu0
  %7078 = vdwg.mxu0
  %v7079 = vlaneseq
  %v7080 = vshrl.u32 %v7079, 7
  %v7081 = vsub.s32 0, %v7080
  %v7082 = vrot.slane %v6897, %v7081
  %7083 = vmatprep.subr.mxu0 0.0
  %7084 = vmatpush1.msra.mxu0 %v6878
  %7085 = vmatprep.subr.mxu0 0.0
  %7086 = vmatpush1.msra.mxu0 %v6879
  %7087 = vmatprep.subr.mxu0 0.0
  %7088 = vmatpush1.msra.mxu0 %v6880
  %7089 = vmatprep.subr.mxu0 0.0
  %7090 = vmatpush1.msra.mxu0 %v6881
  %7091 = vmatprep.subr.mxu0 0.0
  %7092 = vmatpush1.msra.mxu0 %v6882
  %7093 = vmatprep.subr.mxu0 0.0
  %7094 = vmatpush1.msra.mxu0 %v6883
  %7095 = vmatprep.subr.mxu0 0.0
  %7096 = vmatpush1.msra.mxu0 %v6884
  %7097 = vmatprep.subr.mxu0 0.0
  %7098 = vmatpush1.msra.mxu0 %v6885
  %7099 = vmatprep.subr.mxu0 0.0
  %7100 = vmatpush1.msra.mxu0 0.0
  %7101 = vmatprep.subr.mxu0 0.0
  %7102 = vmatpush1.msra.mxu0 0.0
  %7103 = vmatprep.subr.mxu0 0.0
  %7104 = vmatpush1.msra.mxu0 0.0
  %7105 = vmatprep.subr.mxu0 0.0
  %7106 = vmatpush1.msra.mxu0 0.0
  %7107 = vmatprep.subr.mxu0 0.0
  %7108 = vmatpush1.msra.mxu0 0.0
  %7109 = vmatprep.subr.mxu0 0.0
  %7110 = vmatpush1.msra.mxu0 0.0
  %7111 = vmatprep.subr.mxu0 0.0
  %7112 = vmatpush1.msra.mxu0 0.0
  %7113 = vmatprep.subr.mxu0 0.0
  %7114 = vmatpush1.msra.mxu0 0.0
  %7115 = vmatprep.subr.mxu0 0.0
  %7116 = vmatpush1.msra.mxu0 0.0
  %7117 = vmatprep.subr.mxu0 0.0
  %7118 = vmatpush1.msra.mxu0 0.0
  %7119 = vmatprep.subr.mxu0 0.0
  %7120 = vmatpush1.msra.mxu0 0.0
  %7121 = vmatprep.subr.mxu0 0.0
  %7122 = vmatpush1.msra.mxu0 0.0
  %7123 = vmatprep.subr.mxu0 0.0
  %7124 = vmatpush1.msra.mxu0 0.0
  %7125 = vmatprep.subr.mxu0 0.0
  %7126 = vmatpush1.msra.mxu0 0.0
  %7127 = vmatprep.subr.mxu0 0.0
  %7128 = vmatpush1.msra.mxu0 0.0
  %7129 = vmatprep.subr.mxu0 0.0
  %7130 = vmatpush1.msra.mxu0 0.0
  %7131 = vmatprep.subr.mxu0 0.0
  %7132 = vmatpush1.msra.mxu0 0.0
  %7133 = vmatprep.subr.mxu0 0.0
  %7134 = vmatpush1.msra.mxu0 0.0
  %7135 = vmatprep.subr.mxu0 0.0
  %7136 = vmatpush1.msra.mxu0 0.0
  %7137 = vmatprep.subr.mxu0 0.0
  %7138 = vmatpush1.msra.mxu0 0.0
  %7139 = vmatprep.subr.mxu0 0.0
  %7140 = vmatpush1.msra.mxu0 0.0
  %7141 = vmatprep.subr.mxu0 0.0
  %7142 = vmatpush1.msra.mxu0 0.0
  %7143 = vmatprep.subr.mxu0 0.0
  %7144 = vmatpush1.msra.mxu0 0.0
  %7145 = vmatprep.subr.mxu0 0.0
  %7146 = vmatpush1.msra.mxu0 0.0
  %7147 = vmatprep.mubr.f32.mxu0 0.0
  %7148 = vmatmul.mubr.f32.gmra.mrb[0].mxu0 %v6999
  %v7149 = vpop.f32.mrb[0].mxu0
  %v7150 = vadd.f32 %v7082, %v7149
  %v7151 = vpop.f32.mrb[0].mxu0
  %7152 = vmatprep.mubr.f32.mxu0 0.0
  %7153 = vmatmul.mubr.f32.gmra.mrb[0].mxu0 %v7002
  %v7154 = vpop.f32.mrb[0].mxu0
  %v7155 = vadd.f32 %v7082, %v7154
  %v7156 = vpop.f32.mrb[0].mxu0
  %7157 = vdwg.mxu0
  %7158 = vmatprep.subr.mxu0 0.0
  %7159 = vmatpush1.msra.mxu0 %v6981
  %7160 = vmatprep.subr.mxu0 0.0
  %7161 = vmatpush1.msra.mxu0 %v6986
  %7162 = vmatprep.subr.mxu0 0.0
  %7163 = vmatpush1.msra.mxu0 %v6991
  %7164 = vmatprep.subr.mxu0 0.0
  %7165 = vmatpush1.msra.mxu0 0.0
  %7166 = vmatprep.subr.mxu0 0.0
  %7167 = vmatpush1.msra.mxu0 0.0
  %7168 = vmatprep.subr.mxu0 0.0
  %7169 = vmatpush1.msra.mxu0 0.0
  %7170 = vmatprep.subr.mxu0 0.0
  %7171 = vmatpush1.msra.mxu0 0.0
  %7172 = vmatprep.subr.mxu0 0.0
  %7173 = vmatpush1.msra.mxu0 0.0
  %7174 = vmatprep.subr.mxu0 0.0
  %7175 = vmatpush1.msra.mxu0 0.0
  %7176 = vmatprep.subr.mxu0 0.0
  %7177 = vmatpush1.msra.mxu0 0.0
  %7178 = vmatprep.subr.mxu0 0.0
  %7179 = vmatpush1.msra.mxu0 0.0
  %7180 = vmatprep.subr.mxu0 0.0
  %7181 = vmatpush1.msra.mxu0 0.0
  %7182 = vmatprep.subr.mxu0 0.0
  %7183 = vmatpush1.msra.mxu0 0.0
  %7184 = vmatprep.subr.mxu0 0.0
  %7185 = vmatpush1.msra.mxu0 0.0
  %7186 = vmatprep.subr.mxu0 0.0
  %7187 = vmatpush1.msra.mxu0 0.0
  %7188 = vmatprep.subr.mxu0 0.0
  %7189 = vmatpush1.msra.mxu0 0.0
  %7190 = vmatprep.subr.mxu0 0.0
  %7191 = vmatpush1.msra.mxu0 0.0
  %7192 = vmatprep.subr.mxu0 0.0
  %7193 = vmatpush1.msra.mxu0 0.0
  %7194 = vmatprep.subr.mxu0 0.0
  %7195 = vmatpush1.msra.mxu0 0.0
  %7196 = vmatprep.subr.mxu0 0.0
  %7197 = vmatpush1.msra.mxu0 0.0
  %7198 = vmatprep.subr.mxu0 0.0
  %7199 = vmatpush1.msra.mxu0 0.0
  %7200 = vmatprep.subr.mxu0 0.0
  %7201 = vmatpush1.msra.mxu0 0.0
  %7202 = vmatprep.subr.mxu0 0.0
  %7203 = vmatpush1.msra.mxu0 0.0
  %7204 = vmatprep.subr.mxu0 0.0
  %7205 = vmatpush1.msra.mxu0 0.0
  %7206 = vmatprep.subr.mxu0 0.0
  %7207 = vmatpush1.msra.mxu0 0.0
  %7208 = vmatprep.subr.mxu0 0.0
  %7209 = vmatpush1.msra.mxu0 0.0
  %7210 = vmatprep.subr.mxu0 0.0
  %7211 = vmatpush1.msra.mxu0 0.0
  %7212 = vmatprep.subr.mxu0 0.0
  %7213 = vmatpush1.msra.mxu0 0.0
  %7214 = vmatprep.subr.mxu0 0.0
  %7215 = vmatpush1.msra.mxu0 0.0
  %7216 = vmatprep.subr.mxu0 0.0
  %7217 = vmatpush1.msra.mxu0 0.0
  %7218 = vmatprep.subr.mxu0 0.0
  %7219 = vmatpush1.msra.mxu0 0.0
  %7220 = vmatprep.subr.mxu0 0.0
  %7221 = vmatpush1.msra.mxu0 0.0
  %7222 = vmatprep.mubr.f32.mxu0 0.0
  %7223 = vmatmul.mubr.f32.gmra.mrb[0].mxu0 %v1142
  %v7224 = vpop.f32.mrb[0].mxu0
  %v7225 = vadd.f32 0.0, %v7224
  %v7226 = vpop.f32.mrb[0].mxu0
  %7227 = vmatprep.mubr.f32.mxu0 0.0
  %7228 = vmatmul.mubr.f32.gmra.mrb[0].mxu0 %v1145
  %v7229 = vpop.f32.mrb[0].mxu0
  %v7230 = vadd.f32 0.0, %v7229
  %v7231 = vpop.f32.mrb[0].mxu0
  %7232 = vmatprep.mubr.f32.mxu0 0.0
  %7233 = vmatmul.mubr.f32.gmra.mrb[0].mxu0 %v1148
  %v7234 = vpop.f32.mrb[0].mxu0
  %v7235 = vadd.f32 0.0, %v7234
  %v7236 = vpop.f32.mrb[0].mxu0
  %7237 = vmatprep.mubr.f32.mxu0 0.0
  %7238 = vmatmul.mubr.f32.gmra.mrb[0].mxu0 %v1151
  %v7239 = vpop.f32.mrb[0].mxu0
  %v7240 = vadd.f32 0.0, %v7239
  %v7241 = vpop.f32.mrb[0].mxu0
  %7242 = vmatprep.mubr.f32.mxu0 0.0
  %7243 = vmatmul.mubr.f32.gmra.mrb[0].mxu0 %v1154
  %v7244 = vpop.f32.mrb[0].mxu0
  %v7245 = vadd.f32 0.0, %v7244
  %v7246 = vpop.f32.mrb[0].mxu0
  %7247 = vmatprep.mubr.f32.mxu0 0.0
  %7248 = vmatmul.mubr.f32.gmra.mrb[0].mxu0 %v1157
  %v7249 = vpop.f32.mrb[0].mxu0
  %v7250 = vadd.f32 0.0, %v7249
  %v7251 = vpop.f32.mrb[0].mxu0
  %7252 = vmatprep.mubr.f32.mxu0 0.0
  %7253 = vmatmul.mubr.f32.gmra.mrb[0].mxu0 %v1160
  %v7254 = vpop.f32.mrb[0].mxu0
  %v7255 = vadd.f32 0.0, %v7254
  %v7256 = vpop.f32.mrb[0].mxu0
  %7257 = vmatprep.mubr.f32.mxu0 0.0
  %7258 = vmatmul.mubr.f32.gmra.mrb[0].mxu0 %v1163
  %v7259 = vpop.f32.mrb[0].mxu0
  %v7260 = vadd.f32 0.0, %v7259
  %v7261 = vpop.f32.mrb[0].mxu0
  %7262 = vmatprep.mubr.f32.mxu0 0.0
  %7263 = vmatmul.mubr.f32.gmra.mrb[0].mxu0 %v1166
  %v7264 = vpop.f32.mrb[0].mxu0
  %v7265 = vadd.f32 0.0, %v7264
  %v7266 = vpop.f32.mrb[0].mxu0
  %7267 = vmatprep.mubr.f32.mxu0 0.0
  %7268 = vmatmul.mubr.f32.gmra.mrb[0].mxu0 %v1169
  %v7269 = vpop.f32.mrb[0].mxu0
  %v7270 = vadd.f32 0.0, %v7269
  %v7271 = vpop.f32.mrb[0].mxu0
  %7272 = vmatprep.mubr.f32.mxu0 0.0
  %7273 = vmatmul.mubr.f32.gmra.mrb[0].mxu0 %v1172
  %v7274 = vpop.f32.mrb[0].mxu0
  %v7275 = vadd.f32 0.0, %v7274
  %v7276 = vpop.f32.mrb[0].mxu0
  %7277 = vmatprep.mubr.f32.mxu0 0.0
  %7278 = vmatmul.mubr.f32.gmra.mrb[0].mxu0 %v1175
  %v7279 = vpop.f32.mrb[0].mxu0
  %v7280 = vadd.f32 0.0, %v7279
  %v7281 = vpop.f32.mrb[0].mxu0
  %7282 = vdwg.mxu0
  %v7283 = vsel %vm261, %v7225, 0.0
  %v7284 = vsel %vm262, %v7230, 0.0
  %v7285 = vsel %vm263, %v7235, 0.0
  %v7286 = vsel %vm264, %v7240, 0.0
  %v7287 = vsel %vm265, %v7245, 0.0
  %v7288 = vsel %vm266, %v7250, 0.0
  %v7289 = vsel %vm267, %v7255, 0.0
  %v7290 = vsel %vm268, %v7260, 0.0
  %v7291 = vsel %vm269, %v7265, 0.0
  %v7292 = vsel %vm270, %v7270, 0.0
  %v7293 = vsel %vm271, %v7275, 0.0
  %v7294 = vsel %vm272, %v7280, 0.0
  %v7296 = vsel %vm554, %v7283, 0
  %v7299 = vsel %vm554, %v7284, 0
  %v7302 = vsel %vm554, %v7285, 0
  %v7305 = vsel %vm554, %v7286, 0
  %v7308 = vsel %vm554, %v7287, 0
  %v7311 = vsel %vm554, %v7288, 0
  %v7314 = vsel %vm554, %v7289, 0
  %v7317 = vsel %vm554, %v7290, 0
  %v7320 = vsel %vm554, %v7291, 0
  %v7323 = vsel %vm554, %v7292, 0
  %v7326 = vsel %vm554, %v7293, 0
  %v7329 = vsel %vm554, %v7294, 0
  %v7332 = vsel %vm554, %v7071, 0
  %v7335 = vsel %vm554, %v7076, 0
  %7337 = vmatprep.subr.mxu0 0.0
  %7338 = vmatpush1.xpose.msra.mxu0 %v7332
  %7339 = vmatprep.subr.mxu0 0.0
  %7340 = vmatpush1.xpose.msra.mxu0 %v7335
  %7341 = vmatprep.subr.mxu0 0.0
  %7342 = vmatpush1.xpose.msra.mxu0 0.0
  %7343 = vmatprep.subr.mxu0 0.0
  %7344 = vmatpush1.xpose.msra.mxu0 0.0
  %7345 = vmatprep.subr.mxu0 0.0
  %7346 = vmatpush1.xpose.msra.mxu0 0.0
  %7347 = vmatprep.subr.mxu0 0.0
  %7348 = vmatpush1.xpose.msra.mxu0 0.0
  %7349 = vmatprep.subr.mxu0 0.0
  %7350 = vmatpush1.xpose.msra.mxu0 0.0
  %7351 = vmatprep.subr.mxu0 0.0
  %7352 = vmatpush1.xpose.msra.mxu0 0.0
  %7353 = vmatprep.subr.mxu0 0.0
  %7354 = vmatpush1.xpose.msra.mxu0 0.0
  %7355 = vmatprep.subr.mxu0 0.0
  %7356 = vmatpush1.xpose.msra.mxu0 0.0
  %7357 = vmatprep.subr.mxu0 0.0
  %7358 = vmatpush1.xpose.msra.mxu0 0.0
  %7359 = vmatprep.subr.mxu0 0.0
  %7360 = vmatpush1.xpose.msra.mxu0 0.0
  %7361 = vmatprep.subr.mxu0 0.0
  %7362 = vmatpush1.xpose.msra.mxu0 0.0
  %7363 = vmatprep.subr.mxu0 0.0
  %7364 = vmatpush1.xpose.msra.mxu0 0.0
  %7365 = vmatprep.subr.mxu0 0.0
  %7366 = vmatpush1.xpose.msra.mxu0 0.0
  %7367 = vmatprep.subr.mxu0 0.0
  %7368 = vmatpush1.xpose.msra.mxu0 0.0
  %7369 = vmatprep.subr.mxu0 0.0
  %7370 = vmatpush1.xpose.msra.mxu0 0.0
  %7371 = vmatprep.subr.mxu0 0.0
  %7372 = vmatpush1.xpose.msra.mxu0 0.0
  %7373 = vmatprep.subr.mxu0 0.0
  %7374 = vmatpush1.xpose.msra.mxu0 0.0
  %7375 = vmatprep.subr.mxu0 0.0
  %7376 = vmatpush1.xpose.msra.mxu0 0.0
  %7377 = vmatprep.subr.mxu0 0.0
  %7378 = vmatpush1.xpose.msra.mxu0 0.0
  %7379 = vmatprep.subr.mxu0 0.0
  %7380 = vmatpush1.xpose.msra.mxu0 0.0
  %7381 = vmatprep.subr.mxu0 0.0
  %7382 = vmatpush1.xpose.msra.mxu0 0.0
  %7383 = vmatprep.subr.mxu0 0.0
  %7384 = vmatpush1.xpose.msra.mxu0 0.0
  %7385 = vmatprep.subr.mxu0 0.0
  %7386 = vmatpush1.xpose.msra.mxu0 0.0
  %7387 = vmatprep.subr.mxu0 0.0
  %7388 = vmatpush1.xpose.msra.mxu0 0.0
  %7389 = vmatprep.subr.mxu0 0.0
  %7390 = vmatpush1.xpose.msra.mxu0 0.0
  %7391 = vmatprep.subr.mxu0 0.0
  %7392 = vmatpush1.xpose.msra.mxu0 0.0
  %7393 = vmatprep.subr.mxu0 0.0
  %7394 = vmatpush1.xpose.msra.mxu0 0.0
  %7395 = vmatprep.subr.mxu0 0.0
  %7396 = vmatpush1.xpose.msra.mxu0 0.0
  %7397 = vmatprep.subr.mxu0 0.0
  %7398 = vmatpush1.xpose.msra.mxu0 0.0
  %7399 = vmatprep.subr.mxu0 0.0
  %7400 = vmatpush1.xpose.msra.mxu0 0.0
  %7401 = vmatprep.mubr.f32.mxu0 0.0
  %7402 = vmatmul.mubr.f32.gmra.mrb[0].mxu0 %v7296
  %v7403 = vpop.f32.mrb[0].mxu0
  %v7404 = vadd.f32 0.0, %v7403
  %v7405 = vpop.f32.mrb[0].mxu0
  %7406 = vmatprep.mubr.f32.mxu0 0.0
  %7407 = vmatmul.mubr.f32.gmra.mrb[0].mxu0 %v7299
  %v7408 = vpop.f32.mrb[0].mxu0
  %v7409 = vadd.f32 0.0, %v7408
  %v7410 = vpop.f32.mrb[0].mxu0
  %7411 = vmatprep.mubr.f32.mxu0 0.0
  %7412 = vmatmul.mubr.f32.gmra.mrb[0].mxu0 %v7302
  %v7413 = vpop.f32.mrb[0].mxu0
  %v7414 = vadd.f32 0.0, %v7413
  %v7415 = vpop.f32.mrb[0].mxu0
  %7416 = vmatprep.mubr.f32.mxu0 0.0
  %7417 = vmatmul.mubr.f32.gmra.mrb[0].mxu0 %v7305
  %v7418 = vpop.f32.mrb[0].mxu0
  %v7419 = vadd.f32 0.0, %v7418
  %v7420 = vpop.f32.mrb[0].mxu0
  %7421 = vmatprep.mubr.f32.mxu0 0.0
  %7422 = vmatmul.mubr.f32.gmra.mrb[0].mxu0 %v7308
  %v7423 = vpop.f32.mrb[0].mxu0
  %v7424 = vadd.f32 0.0, %v7423
  %v7425 = vpop.f32.mrb[0].mxu0
  %7426 = vmatprep.mubr.f32.mxu0 0.0
  %7427 = vmatmul.mubr.f32.gmra.mrb[0].mxu0 %v7311
  %v7428 = vpop.f32.mrb[0].mxu0
  %v7429 = vadd.f32 0.0, %v7428
  %v7430 = vpop.f32.mrb[0].mxu0
  %7431 = vmatprep.mubr.f32.mxu0 0.0
  %7432 = vmatmul.mubr.f32.gmra.mrb[0].mxu0 %v7314
  %v7433 = vpop.f32.mrb[0].mxu0
  %v7434 = vadd.f32 0.0, %v7433
  %v7435 = vpop.f32.mrb[0].mxu0
  %7436 = vmatprep.mubr.f32.mxu0 0.0
  %7437 = vmatmul.mubr.f32.gmra.mrb[0].mxu0 %v7317
  %v7438 = vpop.f32.mrb[0].mxu0
  %v7439 = vadd.f32 0.0, %v7438
  %v7440 = vpop.f32.mrb[0].mxu0
  %7441 = vmatprep.mubr.f32.mxu0 0.0
  %7442 = vmatmul.mubr.f32.gmra.mrb[0].mxu0 %v7320
  %v7443 = vpop.f32.mrb[0].mxu0
  %v7444 = vadd.f32 0.0, %v7443
  %v7445 = vpop.f32.mrb[0].mxu0
  %7446 = vmatprep.mubr.f32.mxu0 0.0
  %7447 = vmatmul.mubr.f32.gmra.mrb[0].mxu0 %v7323
  %v7448 = vpop.f32.mrb[0].mxu0
  %v7449 = vadd.f32 0.0, %v7448
  %v7450 = vpop.f32.mrb[0].mxu0
  %7451 = vmatprep.mubr.f32.mxu0 0.0
  %7452 = vmatmul.mubr.f32.gmra.mrb[0].mxu0 %v7326
  %v7453 = vpop.f32.mrb[0].mxu0
  %v7454 = vadd.f32 0.0, %v7453
  %v7455 = vpop.f32.mrb[0].mxu0
  %7456 = vmatprep.mubr.f32.mxu0 0.0
  %7457 = vmatmul.mubr.f32.gmra.mrb[0].mxu0 %v7329
  %v7458 = vpop.f32.mrb[0].mxu0
  %v7459 = vadd.f32 0.0, %v7458
  %v7460 = vpop.f32.mrb[0].mxu0
  %7461 = vdwg.mxu0
  %vm7462 = vcmp.eq.s32.totalorder %v1496, %v3786
  %vm7463 = vcmp.eq.s32.totalorder %v1497, %v3786
  %vm7464 = vcmp.eq.s32.totalorder %v1498, %v3786
  %vm7465 = vcmp.eq.s32.totalorder %v1499, %v3786
  %vm7466 = vcmp.eq.s32.totalorder %v1500, %v3786
  %vm7467 = vcmp.eq.s32.totalorder %v1501, %v3786
  %vm7468 = vcmp.eq.s32.totalorder %v1502, %v3786
  %vm7469 = vcmp.eq.s32.totalorder %v1503, %v3786
  %vm7470 = vcmp.eq.s32.totalorder %v1504, %v3786
  %vm7471 = vcmp.eq.s32.totalorder %v1505, %v3786
  %vm7472 = vcmp.eq.s32.totalorder %v1506, %v3786
  %vm7473 = vcmp.eq.s32.totalorder %v1507, %v3786
  %v7474 = vsel %vm7462, %v7404, -1e+30
  %v7475 = vsel %vm7463, %v7409, -1e+30
  %v7476 = vsel %vm7464, %v7414, -1e+30
  %v7477 = vsel %vm7465, %v7419, -1e+30
  %v7478 = vsel %vm7466, %v7424, -1e+30
  %v7479 = vsel %vm7467, %v7429, -1e+30
  %v7480 = vsel %vm7468, %v7434, -1e+30
  %v7481 = vsel %vm7469, %v7439, -1e+30
  %v7482 = vsel %vm7470, %v7444, -1e+30
  %v7483 = vsel %vm7471, %v7449, -1e+30
  %v7484 = vsel %vm7472, %v7454, -1e+30
  %v7485 = vsel %vm7473, %v7459, -1e+30
  %v7486 = vsel %vm3530, %v7474, -inf
  %7487 = vmax.xlane.f32.xlu0 %v7486
  %v7488 = vpop.xlane.xlu0 %7487
  %v7489 = vsel %vm3530, %v7475, -inf
  %7490 = vmax.xlane.f32.xlu0 %v7489
  %v7491 = vpop.xlane.xlu0 %7490
  %v7492 = vsel %vm3530, %v7476, -inf
  %7493 = vmax.xlane.f32.xlu0 %v7492
  %v7494 = vpop.xlane.xlu0 %7493
  %v7495 = vsel %vm3530, %v7477, -inf
  %7496 = vmax.xlane.f32.xlu0 %v7495
  %v7497 = vpop.xlane.xlu0 %7496
  %v7498 = vsel %vm3530, %v7478, -inf
  %7499 = vmax.xlane.f32.xlu0 %v7498
  %v7500 = vpop.xlane.xlu0 %7499
  %v7501 = vsel %vm3530, %v7479, -inf
  %7502 = vmax.xlane.f32.xlu0 %v7501
  %v7503 = vpop.xlane.xlu0 %7502
  %v7504 = vsel %vm3530, %v7480, -inf
  %7505 = vmax.xlane.f32.xlu0 %v7504
  %v7506 = vpop.xlane.xlu0 %7505
  %v7507 = vsel %vm3530, %v7481, -inf
  %7508 = vmax.xlane.f32.xlu0 %v7507
  %v7509 = vpop.xlane.xlu0 %7508
  %v7510 = vsel %vm3530, %v7482, -inf
  %7511 = vmax.xlane.f32.xlu0 %v7510
  %v7512 = vpop.xlane.xlu0 %7511
  %v7513 = vsel %vm3530, %v7483, -inf
  %7514 = vmax.xlane.f32.xlu0 %v7513
  %v7515 = vpop.xlane.xlu0 %7514
  %v7516 = vsel %vm3530, %v7484, -inf
  %7517 = vmax.xlane.f32.xlu0 %v7516
  %v7518 = vpop.xlane.xlu0 %7517
  %v7519 = vsel %vm3530, %v7485, -inf
  %7520 = vmax.xlane.f32.xlu0 %v7519
  %v7521 = vpop.xlane.xlu0 %7520
  %v7522 = vsub.f32 %v7474, %v7488
  %v7523 = vsub.f32 %v7475, %v7491
  %v7524 = vsub.f32 %v7476, %v7494
  %v7525 = vsub.f32 %v7477, %v7497
  %v7526 = vsub.f32 %v7478, %v7500
  %v7527 = vsub.f32 %v7479, %v7503
  %v7528 = vsub.f32 %v7480, %v7506
  %v7529 = vsub.f32 %v7481, %v7509
  %v7530 = vsub.f32 %v7482, %v7512
  %v7531 = vsub.f32 %v7483, %v7515
  %v7532 = vsub.f32 %v7484, %v7518
  %v7533 = vsub.f32 %v7485, %v7521
  %v7534 = vmul.f32 %v7522, 1.442695
  %v7535 = vpow.pop %v7534
  %v7536 = vmul.f32 %v7523, 1.442695
  %v7537 = vpow.pop %v7536
  %v7538 = vmul.f32 %v7524, 1.442695
  %v7539 = vpow.pop %v7538
  %v7540 = vmul.f32 %v7525, 1.442695
  %v7541 = vpow.pop %v7540
  %v7542 = vmul.f32 %v7526, 1.442695
  %v7543 = vpow.pop %v7542
  %v7544 = vmul.f32 %v7527, 1.442695
  %v7545 = vpow.pop %v7544
  %v7546 = vmul.f32 %v7528, 1.442695
  %v7547 = vpow.pop %v7546
  %v7548 = vmul.f32 %v7529, 1.442695
  %v7549 = vpow.pop %v7548
  %v7550 = vmul.f32 %v7530, 1.442695
  %v7551 = vpow.pop %v7550
  %v7552 = vmul.f32 %v7531, 1.442695
  %v7553 = vpow.pop %v7552
  %v7554 = vmul.f32 %v7532, 1.442695
  %v7555 = vpow.pop %v7554
  %v7556 = vmul.f32 %v7533, 1.442695
  %v7557 = vpow.pop %v7556
  %v7558 = vsel %vm3530, %v7535, 0.0
  %7559 = vadd.xlane.f32.xlu0 %v7558
  %v7560 = vpop.xlane.xlu0 %7559
  %v7561 = vsel %vm3530, %v7537, 0.0
  %7562 = vadd.xlane.f32.xlu0 %v7561
  %v7563 = vpop.xlane.xlu0 %7562
  %v7564 = vsel %vm3530, %v7539, 0.0
  %7565 = vadd.xlane.f32.xlu0 %v7564
  %v7566 = vpop.xlane.xlu0 %7565
  %v7567 = vsel %vm3530, %v7541, 0.0
  %7568 = vadd.xlane.f32.xlu0 %v7567
  %v7569 = vpop.xlane.xlu0 %7568
  %v7570 = vsel %vm3530, %v7543, 0.0
  %7571 = vadd.xlane.f32.xlu0 %v7570
  %v7572 = vpop.xlane.xlu0 %7571
  %v7573 = vsel %vm3530, %v7545, 0.0
  %7574 = vadd.xlane.f32.xlu0 %v7573
  %v7575 = vpop.xlane.xlu0 %7574
  %v7576 = vsel %vm3530, %v7547, 0.0
  %7577 = vadd.xlane.f32.xlu0 %v7576
  %v7578 = vpop.xlane.xlu0 %7577
  %v7579 = vsel %vm3530, %v7549, 0.0
  %7580 = vadd.xlane.f32.xlu0 %v7579
  %v7581 = vpop.xlane.xlu0 %7580
  %v7582 = vsel %vm3530, %v7551, 0.0
  %7583 = vadd.xlane.f32.xlu0 %v7582
  %v7584 = vpop.xlane.xlu0 %7583
  %v7585 = vsel %vm3530, %v7553, 0.0
  %7586 = vadd.xlane.f32.xlu0 %v7585
  %v7587 = vpop.xlane.xlu0 %7586
  %v7588 = vsel %vm3530, %v7555, 0.0
  %7589 = vadd.xlane.f32.xlu0 %v7588
  %v7590 = vpop.xlane.xlu0 %7589
  %v7591 = vsel %vm3530, %v7557, 0.0
  %7592 = vadd.xlane.f32.xlu0 %v7591
  %v7593 = vpop.xlane.xlu0 %7592
  %v7594 = vrcp.pop %v7560
  %v7595 = vmul.f32 %v7535, %v7594
  %v7596 = vrcp.pop %v7563
  %v7597 = vmul.f32 %v7537, %v7596
  %v7598 = vrcp.pop %v7566
  %v7599 = vmul.f32 %v7539, %v7598
  %v7600 = vrcp.pop %v7569
  %v7601 = vmul.f32 %v7541, %v7600
  %v7602 = vrcp.pop %v7572
  %v7603 = vmul.f32 %v7543, %v7602
  %v7604 = vrcp.pop %v7575
  %v7605 = vmul.f32 %v7545, %v7604
  %v7606 = vrcp.pop %v7578
  %v7607 = vmul.f32 %v7547, %v7606
  %v7608 = vrcp.pop %v7581
  %v7609 = vmul.f32 %v7549, %v7608
  %v7610 = vrcp.pop %v7584
  %v7611 = vmul.f32 %v7551, %v7610
  %v7612 = vrcp.pop %v7587
  %v7613 = vmul.f32 %v7553, %v7612
  %v7614 = vrcp.pop %v7590
  %v7615 = vmul.f32 %v7555, %v7614
  %v7616 = vrcp.pop %v7593
  %v7617 = vmul.f32 %v7557, %v7616
  %v7619 = vsel %vm3530, %v7595, 0
  %v7622 = vsel %vm3530, %v7597, 0
  %v7625 = vsel %vm3530, %v7599, 0
  %v7628 = vsel %vm3530, %v7601, 0
  %v7631 = vsel %vm3530, %v7603, 0
  %v7634 = vsel %vm3530, %v7605, 0
  %v7637 = vsel %vm3530, %v7607, 0
  %v7640 = vsel %vm3530, %v7609, 0
  %v7643 = vsel %vm3530, %v7611, 0
  %v7646 = vsel %vm3530, %v7613, 0
  %v7649 = vsel %vm3530, %v7615, 0
  %v7652 = vsel %vm3530, %v7617, 0
  %v7655 = vsel %vm3549, %v7155, 0
  %7657 = vmatprep.subr.mxu0 0.0
  %7658 = vmatpush1.msra.mxu0 %v7150
  %7659 = vmatprep.subr.mxu0 0.0
  %7660 = vmatpush1.msra.mxu0 %v7655
  %7661 = vmatprep.subr.mxu0 0.0
  %7662 = vmatpush1.msra.mxu0 0.0
  %7663 = vmatprep.subr.mxu0 0.0
  %7664 = vmatpush1.msra.mxu0 0.0
  %7665 = vmatprep.subr.mxu0 0.0
  %7666 = vmatpush1.msra.mxu0 0.0
  %7667 = vmatprep.subr.mxu0 0.0
  %7668 = vmatpush1.msra.mxu0 0.0
  %7669 = vmatprep.subr.mxu0 0.0
  %7670 = vmatpush1.msra.mxu0 0.0
  %7671 = vmatprep.subr.mxu0 0.0
  %7672 = vmatpush1.msra.mxu0 0.0
  %7673 = vmatprep.subr.mxu0 0.0
  %7674 = vmatpush1.msra.mxu0 0.0
  %7675 = vmatprep.subr.mxu0 0.0
  %7676 = vmatpush1.msra.mxu0 0.0
  %7677 = vmatprep.subr.mxu0 0.0
  %7678 = vmatpush1.msra.mxu0 0.0
  %7679 = vmatprep.subr.mxu0 0.0
  %7680 = vmatpush1.msra.mxu0 0.0
  %7681 = vmatprep.subr.mxu0 0.0
  %7682 = vmatpush1.msra.mxu0 0.0
  %7683 = vmatprep.subr.mxu0 0.0
  %7684 = vmatpush1.msra.mxu0 0.0
  %7685 = vmatprep.subr.mxu0 0.0
  %7686 = vmatpush1.msra.mxu0 0.0
  %7687 = vmatprep.subr.mxu0 0.0
  %7688 = vmatpush1.msra.mxu0 0.0
  %7689 = vmatprep.subr.mxu0 0.0
  %7690 = vmatpush1.msra.mxu0 0.0
  %7691 = vmatprep.subr.mxu0 0.0
  %7692 = vmatpush1.msra.mxu0 0.0
  %7693 = vmatprep.subr.mxu0 0.0
  %7694 = vmatpush1.msra.mxu0 0.0
  %7695 = vmatprep.subr.mxu0 0.0
  %7696 = vmatpush1.msra.mxu0 0.0
  %7697 = vmatprep.subr.mxu0 0.0
  %7698 = vmatpush1.msra.mxu0 0.0
  %7699 = vmatprep.subr.mxu0 0.0
  %7700 = vmatpush1.msra.mxu0 0.0
  %7701 = vmatprep.subr.mxu0 0.0
  %7702 = vmatpush1.msra.mxu0 0.0
  %7703 = vmatprep.subr.mxu0 0.0
  %7704 = vmatpush1.msra.mxu0 0.0
  %7705 = vmatprep.subr.mxu0 0.0
  %7706 = vmatpush1.msra.mxu0 0.0
  %7707 = vmatprep.subr.mxu0 0.0
  %7708 = vmatpush1.msra.mxu0 0.0
  %7709 = vmatprep.subr.mxu0 0.0
  %7710 = vmatpush1.msra.mxu0 0.0
  %7711 = vmatprep.subr.mxu0 0.0
  %7712 = vmatpush1.msra.mxu0 0.0
  %7713 = vmatprep.subr.mxu0 0.0
  %7714 = vmatpush1.msra.mxu0 0.0
  %7715 = vmatprep.subr.mxu0 0.0
  %7716 = vmatpush1.msra.mxu0 0.0
  %7717 = vmatprep.subr.mxu0 0.0
  %7718 = vmatpush1.msra.mxu0 0.0
  %7719 = vmatprep.subr.mxu0 0.0
  %7720 = vmatpush1.msra.mxu0 0.0
  %7721 = vmatprep.mubr.f32.mxu0 0.0
  %7722 = vmatmul.mubr.f32.gmra.mrb[0].mxu0 %v7619
  %v7723 = vpop.f32.mrb[0].mxu0
  %v7724 = vadd.f32 0.0, %v7723
  %v7725 = vpop.f32.mrb[0].mxu0
  %7726 = vmatprep.mubr.f32.mxu0 0.0
  %7727 = vmatmul.mubr.f32.gmra.mrb[0].mxu0 %v7622
  %v7728 = vpop.f32.mrb[0].mxu0
  %v7729 = vadd.f32 0.0, %v7728
  %v7730 = vpop.f32.mrb[0].mxu0
  %7731 = vmatprep.mubr.f32.mxu0 0.0
  %7732 = vmatmul.mubr.f32.gmra.mrb[0].mxu0 %v7625
  %v7733 = vpop.f32.mrb[0].mxu0
  %v7734 = vadd.f32 0.0, %v7733
  %v7735 = vpop.f32.mrb[0].mxu0
  %7736 = vmatprep.mubr.f32.mxu0 0.0
  %7737 = vmatmul.mubr.f32.gmra.mrb[0].mxu0 %v7628
  %v7738 = vpop.f32.mrb[0].mxu0
  %v7739 = vadd.f32 0.0, %v7738
  %v7740 = vpop.f32.mrb[0].mxu0
  %7741 = vmatprep.mubr.f32.mxu0 0.0
  %7742 = vmatmul.mubr.f32.gmra.mrb[0].mxu0 %v7631
  %v7743 = vpop.f32.mrb[0].mxu0
  %v7744 = vadd.f32 0.0, %v7743
  %v7745 = vpop.f32.mrb[0].mxu0
  %7746 = vmatprep.mubr.f32.mxu0 0.0
  %7747 = vmatmul.mubr.f32.gmra.mrb[0].mxu0 %v7634
  %v7748 = vpop.f32.mrb[0].mxu0
  %v7749 = vadd.f32 0.0, %v7748
  %v7750 = vpop.f32.mrb[0].mxu0
  %7751 = vmatprep.mubr.f32.mxu0 0.0
  %7752 = vmatmul.mubr.f32.gmra.mrb[0].mxu0 %v7637
  %v7753 = vpop.f32.mrb[0].mxu0
  %v7754 = vadd.f32 0.0, %v7753
  %v7755 = vpop.f32.mrb[0].mxu0
  %7756 = vmatprep.mubr.f32.mxu0 0.0
  %7757 = vmatmul.mubr.f32.gmra.mrb[0].mxu0 %v7640
  %v7758 = vpop.f32.mrb[0].mxu0
  %v7759 = vadd.f32 0.0, %v7758
  %v7760 = vpop.f32.mrb[0].mxu0
  %7761 = vmatprep.mubr.f32.mxu0 0.0
  %7762 = vmatmul.mubr.f32.gmra.mrb[0].mxu0 %v7643
  %v7763 = vpop.f32.mrb[0].mxu0
  %v7764 = vadd.f32 0.0, %v7763
  %v7765 = vpop.f32.mrb[0].mxu0
  %7766 = vmatprep.mubr.f32.mxu0 0.0
  %7767 = vmatmul.mubr.f32.gmra.mrb[0].mxu0 %v7646
  %v7768 = vpop.f32.mrb[0].mxu0
  %v7769 = vadd.f32 0.0, %v7768
  %v7770 = vpop.f32.mrb[0].mxu0
  %7771 = vmatprep.mubr.f32.mxu0 0.0
  %7772 = vmatmul.mubr.f32.gmra.mrb[0].mxu0 %v7649
  %v7773 = vpop.f32.mrb[0].mxu0
  %v7774 = vadd.f32 0.0, %v7773
  %v7775 = vpop.f32.mrb[0].mxu0
  %7776 = vmatprep.mubr.f32.mxu0 0.0
  %7777 = vmatmul.mubr.f32.gmra.mrb[0].mxu0 %v7652
  %v7778 = vpop.f32.mrb[0].mxu0
  %v7779 = vadd.f32 0.0, %v7778
  %v7780 = vpop.f32.mrb[0].mxu0
  %7781 = vdwg.mxu0
  %v7782 = vsel %vm261, %v7724, 0.0
  %v7783 = vsel %vm262, %v7729, 0.0
  %v7784 = vsel %vm263, %v7734, 0.0
  %v7785 = vsel %vm264, %v7739, 0.0
  %v7786 = vsel %vm265, %v7744, 0.0
  %v7787 = vsel %vm266, %v7749, 0.0
  %v7788 = vsel %vm267, %v7754, 0.0
  %v7789 = vsel %vm268, %v7759, 0.0
  %v7790 = vsel %vm269, %v7764, 0.0
  %v7791 = vsel %vm270, %v7769, 0.0
  %v7792 = vsel %vm271, %v7774, 0.0
  %v7793 = vsel %vm272, %v7779, 0.0
  %7794 = vmatprep.subr.mxu0 0.0
  %7795 = vmatpush1.msra.mxu0 %v7782
  %7796 = vmatprep.subr.mxu0 0.0
  %7797 = vmatpush1.msra.mxu0 %v7783
  %7798 = vmatprep.subr.mxu0 0.0
  %7799 = vmatpush1.msra.mxu0 %v7784
  %7800 = vmatprep.subr.mxu0 0.0
  %7801 = vmatpush1.msra.mxu0 %v7785
  %7802 = vmatprep.subr.mxu0 0.0
  %7803 = vmatpush1.msra.mxu0 %v7786
  %7804 = vmatprep.subr.mxu0 0.0
  %7805 = vmatpush1.msra.mxu0 %v7787
  %7806 = vmatprep.subr.mxu0 0.0
  %7807 = vmatpush1.msra.mxu0 %v7788
  %7808 = vmatprep.subr.mxu0 0.0
  %7809 = vmatpush1.msra.mxu0 %v7789
  %7810 = vmatprep.subr.mxu0 0.0
  %7811 = vmatpush1.msra.mxu0 %v7790
  %7812 = vmatprep.subr.mxu0 0.0
  %7813 = vmatpush1.msra.mxu0 %v7791
  %7814 = vmatprep.subr.mxu0 0.0
  %7815 = vmatpush1.msra.mxu0 %v7792
  %7816 = vmatprep.subr.mxu0 0.0
  %7817 = vmatpush1.msra.mxu0 %v7793
  %7818 = vmatprep.subr.mxu0 0.0
  %7819 = vmatpush1.msra.mxu0 0.0
  %7820 = vmatprep.subr.mxu0 0.0
  %7821 = vmatpush1.msra.mxu0 0.0
  %7822 = vmatprep.subr.mxu0 0.0
  %7823 = vmatpush1.msra.mxu0 0.0
  %7824 = vmatprep.subr.mxu0 0.0
  %7825 = vmatpush1.msra.mxu0 0.0
  %7826 = vmatprep.subr.mxu0 0.0
  %7827 = vmatpush1.msra.mxu0 0.0
  %7828 = vmatprep.subr.mxu0 0.0
  %7829 = vmatpush1.msra.mxu0 0.0
  %7830 = vmatprep.subr.mxu0 0.0
  %7831 = vmatpush1.msra.mxu0 0.0
  %7832 = vmatprep.subr.mxu0 0.0
  %7833 = vmatpush1.msra.mxu0 0.0
  %7834 = vmatprep.subr.mxu0 0.0
  %7835 = vmatpush1.msra.mxu0 0.0
  %7836 = vmatprep.subr.mxu0 0.0
  %7837 = vmatpush1.msra.mxu0 0.0
  %7838 = vmatprep.subr.mxu0 0.0
  %7839 = vmatpush1.msra.mxu0 0.0
  %7840 = vmatprep.subr.mxu0 0.0
  %7841 = vmatpush1.msra.mxu0 0.0
  %7842 = vmatprep.subr.mxu0 0.0
  %7843 = vmatpush1.msra.mxu0 0.0
  %7844 = vmatprep.subr.mxu0 0.0
  %7845 = vmatpush1.msra.mxu0 0.0
  %7846 = vmatprep.subr.mxu0 0.0
  %7847 = vmatpush1.msra.mxu0 0.0
  %7848 = vmatprep.subr.mxu0 0.0
  %7849 = vmatpush1.msra.mxu0 0.0
  %7850 = vmatprep.subr.mxu0 0.0
  %7851 = vmatpush1.msra.mxu0 0.0
  %7852 = vmatprep.subr.mxu0 0.0
  %7853 = vmatpush1.msra.mxu0 0.0
  %7854 = vmatprep.subr.mxu0 0.0
  %7855 = vmatpush1.msra.mxu0 0.0
  %7856 = vmatprep.subr.mxu0 0.0
  %7857 = vmatpush1.msra.mxu0 0.0
  %7858 = vmatprep.mubr.f32.mxu0 0.0
  %7859 = vmatmul.mubr.f32.gmra.mrb[0].mxu0 %v1839
  %v7860 = vpop.f32.mrb[0].mxu0
  %v7861 = vadd.f32 0.0, %v7860
  %v7862 = vpop.f32.mrb[0].mxu0
  %7863 = vmatprep.mubr.f32.mxu0 0.0
  %7864 = vmatmul.mubr.f32.gmra.mrb[0].mxu0 %v1842
  %v7865 = vpop.f32.mrb[0].mxu0
  %v7866 = vadd.f32 0.0, %v7865
  %v7867 = vpop.f32.mrb[0].mxu0
  %7868 = vmatprep.mubr.f32.mxu0 0.0
  %7869 = vmatmul.mubr.f32.gmra.mrb[0].mxu0 %v1845
  %v7870 = vpop.f32.mrb[0].mxu0
  %v7871 = vadd.f32 0.0, %v7870
  %v7872 = vpop.f32.mrb[0].mxu0
  %7873 = vdwg.mxu0
  %v7874 = vlaneseq
  %v7875 = vshrl.u32 %v7874, 7
  %v7876 = vsub.s32 0, %v7875
  %v7877 = vrot.slane %v6898, %v7876
  %v7879 = vsel %vm554, %v7861, 0
  %v7882 = vsel %vm554, %v7866, 0
  %v7885 = vsel %vm554, %v7871, 0
  %7887 = vmatprep.subr.mxu0 0.0
  %7888 = vmatpush1.msra.mxu0 %v6887
  %7889 = vmatprep.subr.mxu0 0.0
  %7890 = vmatpush1.msra.mxu0 %v6888
  %7891 = vmatprep.subr.mxu0 0.0
  %7892 = vmatpush1.msra.mxu0 %v6889
  %7893 = vmatprep.subr.mxu0 0.0
  %7894 = vmatpush1.msra.mxu0 %v6890
  %7895 = vmatprep.subr.mxu0 0.0
  %7896 = vmatpush1.msra.mxu0 %v6891
  %7897 = vmatprep.subr.mxu0 0.0
  %7898 = vmatpush1.msra.mxu0 %v6892
  %7899 = vmatprep.subr.mxu0 0.0
  %7900 = vmatpush1.msra.mxu0 %v6893
  %7901 = vmatprep.subr.mxu0 0.0
  %7902 = vmatpush1.msra.mxu0 %v6894
  %7903 = vmatprep.subr.mxu0 0.0
  %7904 = vmatpush1.msra.mxu0 0.0
  %7905 = vmatprep.subr.mxu0 0.0
  %7906 = vmatpush1.msra.mxu0 0.0
  %7907 = vmatprep.subr.mxu0 0.0
  %7908 = vmatpush1.msra.mxu0 0.0
  %7909 = vmatprep.subr.mxu0 0.0
  %7910 = vmatpush1.msra.mxu0 0.0
  %7911 = vmatprep.subr.mxu0 0.0
  %7912 = vmatpush1.msra.mxu0 0.0
  %7913 = vmatprep.subr.mxu0 0.0
  %7914 = vmatpush1.msra.mxu0 0.0
  %7915 = vmatprep.subr.mxu0 0.0
  %7916 = vmatpush1.msra.mxu0 0.0
  %7917 = vmatprep.subr.mxu0 0.0
  %7918 = vmatpush1.msra.mxu0 0.0
  %7919 = vmatprep.subr.mxu0 0.0
  %7920 = vmatpush1.msra.mxu0 0.0
  %7921 = vmatprep.subr.mxu0 0.0
  %7922 = vmatpush1.msra.mxu0 0.0
  %7923 = vmatprep.subr.mxu0 0.0
  %7924 = vmatpush1.msra.mxu0 0.0
  %7925 = vmatprep.subr.mxu0 0.0
  %7926 = vmatpush1.msra.mxu0 0.0
  %7927 = vmatprep.subr.mxu0 0.0
  %7928 = vmatpush1.msra.mxu0 0.0
  %7929 = vmatprep.subr.mxu0 0.0
  %7930 = vmatpush1.msra.mxu0 0.0
  %7931 = vmatprep.subr.mxu0 0.0
  %7932 = vmatpush1.msra.mxu0 0.0
  %7933 = vmatprep.subr.mxu0 0.0
  %7934 = vmatpush1.msra.mxu0 0.0
  %7935 = vmatprep.subr.mxu0 0.0
  %7936 = vmatpush1.msra.mxu0 0.0
  %7937 = vmatprep.subr.mxu0 0.0
  %7938 = vmatpush1.msra.mxu0 0.0
  %7939 = vmatprep.subr.mxu0 0.0
  %7940 = vmatpush1.msra.mxu0 0.0
  %7941 = vmatprep.subr.mxu0 0.0
  %7942 = vmatpush1.msra.mxu0 0.0
  %7943 = vmatprep.subr.mxu0 0.0
  %7944 = vmatpush1.msra.mxu0 0.0
  %7945 = vmatprep.subr.mxu0 0.0
  %7946 = vmatpush1.msra.mxu0 0.0
  %7947 = vmatprep.subr.mxu0 0.0
  %7948 = vmatpush1.msra.mxu0 0.0
  %7949 = vmatprep.subr.mxu0 0.0
  %7950 = vmatpush1.msra.mxu0 0.0
  %7951 = vmatprep.mubr.f32.mxu0 0.0
  %7952 = vmatmul.mubr.f32.gmra.mrb[0].mxu0 %v7879
  %v7953 = vpop.f32.mrb[0].mxu0
  %v7954 = vadd.f32 %v7877, %v7953
  %v7955 = vpop.f32.mrb[0].mxu0
  %7956 = vmatprep.mubr.f32.mxu0 0.0
  %7957 = vmatmul.mubr.f32.gmra.mrb[0].mxu0 %v7882
  %v7958 = vpop.f32.mrb[0].mxu0
  %v7959 = vadd.f32 %v7877, %v7958
  %v7960 = vpop.f32.mrb[0].mxu0
  %7961 = vmatprep.mubr.f32.mxu0 0.0
  %7962 = vmatmul.mubr.f32.gmra.mrb[0].mxu0 %v7885
  %v7963 = vpop.f32.mrb[0].mxu0
  %v7964 = vadd.f32 %v7877, %v7963
  %v7965 = vpop.f32.mrb[0].mxu0
  %7966 = vdwg.mxu0
  %v7967 = vadd.f32 %v6856, %v7954
  %v7968 = vadd.f32 %v6857, %v7959
  %v7969 = vadd.f32 %v6858, %v7964
  %v7970 = vsel %vm554, %v7967, 0.0
  %7971 = vadd.xlane.f32.xlu0 %v7970
  %v7972 = vpop.xlane.xlu0 %7971
  %v7973 = vsel %vm554, %v7968, 0.0
  %7974 = vadd.xlane.f32.xlu0 %v7973
  %v7975 = vpop.xlane.xlu0 %7974
  %v7976 = vsel %vm554, %v7969, 0.0
  %7977 = vadd.xlane.f32.xlu0 %v7976
  %v7978 = vpop.xlane.xlu0 %7977
  %v7979 = vmul.f32 %v7972, %v2032
  %v7980 = vmul.f32 %v7975, %v2032
  %v7981 = vmul.f32 %v7978, %v2032
  %v7982 = vsub.f32 %v7967, %v7979
  %v7983 = vsub.f32 %v7968, %v7980
  %v7984 = vsub.f32 %v7969, %v7981
  %v7985 = vmul.f32 %v7982, %v7982
  %v7986 = vmul.f32 %v7983, %v7983
  %v7987 = vmul.f32 %v7984, %v7984
  %v7988 = vsel %vm554, %v7985, 0.0
  %7989 = vadd.xlane.f32.xlu0 %v7988
  %v7990 = vpop.xlane.xlu0 %7989
  %v7991 = vsel %vm554, %v7986, 0.0
  %7992 = vadd.xlane.f32.xlu0 %v7991
  %v7993 = vpop.xlane.xlu0 %7992
  %v7994 = vsel %vm554, %v7987, 0.0
  %7995 = vadd.xlane.f32.xlu0 %v7994
  %v7996 = vpop.xlane.xlu0 %7995
  %v7997 = vmul.f32 %v7990, %v2032
  %v7998 = vmul.f32 %v7993, %v2032
  %v7999 = vmul.f32 %v7996, %v2032
  %v8000 = vadd.f32 %v7997, 1e-05
  %v8001 = vadd.f32 %v7998, 1e-05
  %v8002 = vadd.f32 %v7999, 1e-05
  %v8003 = vrsqrt.pop %v8000
  %v8004 = vrsqrt.pop %v8001
  %v8005 = vrsqrt.pop %v8002
  %v8006 = vmul.f32 %v7982, %v8003
  %v8007 = vmul.f32 %v7983, %v8004
  %v8008 = vmul.f32 %v7984, %v8005
  %v8009 = vlaneseq
  %v8010 = vshrl.u32 %v8009, 7
  %v8011 = vsub.s32 0, %v8010
  %v8012 = vrot.slane %v6899, %v8011
  %v8013 = vmul.f32 %v8006, %v8012
  %v8014 = vmul.f32 %v8007, %v8012
  %v8015 = vmul.f32 %v8008, %v8012
  %v8016 = vlaneseq
  %v8017 = vshrl.u32 %v8016, 7
  %v8018 = vsub.s32 0, %v8017
  %v8019 = vrot.slane %v6900, %v8018
  %v8020 = vadd.f32 %v8013, %v8019
  %v8021 = vadd.f32 %v8014, %v8019
  %v8022 = vadd.f32 %v8015, %v8019
  %s8023 = scalar_lea.vmem %s4, 2048
  %v8024 = vld [vmem:[%s8023] sm:$0xff]
  %v8025 = vld [vmem:[%s8023 + $0x8] sm:$0xff]
  %v8026 = vld [vmem:[%s8023 + $0x10] sm:$0xff]
  %v8027 = vld [vmem:[%s8023 + $0x18] sm:$0xff]
  %v8028 = vld [vmem:[%s8023 + $0x20] sm:$0xff]
  %v8029 = vld [vmem:[%s8023 + $0x28] sm:$0xff]
  %v8030 = vld [vmem:[%s8023 + $0x30] sm:$0xff]
  %v8031 = vld [vmem:[%s8023 + $0x38] sm:$0xff]
  %s8032 = scalar_lea.vmem %s4, 2112
  %v8033 = vld [vmem:[%s8032] sm:$0xff]
  %v8034 = vld [vmem:[%s8032 + $0x8] sm:$0xff]
  %v8035 = vld [vmem:[%s8032 + $0x10] sm:$0xff]
  %v8036 = vld [vmem:[%s8032 + $0x18] sm:$0xff]
  %v8037 = vld [vmem:[%s8032 + $0x20] sm:$0xff]
  %v8038 = vld [vmem:[%s8032 + $0x28] sm:$0xff]
  %v8039 = vld [vmem:[%s8032 + $0x30] sm:$0xff]
  %v8040 = vld [vmem:[%s8032 + $0x38] sm:$0xff]
  %v8041 = vld [vmem:[%s5 + $0x27] sm:$0x1]
  %v8042 = vld [vmem:[%s5 + $0x28] sm:$0x1]
  %v8043 = vld [vmem:[%s5 + $0x29] sm:$0x1]
  %v8044 = vld [vmem:[%s5 + $0x2a] sm:$0x1]
  %v8045 = vlaneseq
  %v8046 = vshrl.u32 %v8045, 7
  %v8047 = vsub.s32 0, %v8046
  %v8048 = vrot.slane %v8041, %v8047
  %v8050 = vsel %vm554, %v8020, 0
  %v8053 = vsel %vm554, %v8021, 0
  %v8056 = vsel %vm554, %v8022, 0
  %8058 = vmatprep.subr.mxu0 0.0
  %8059 = vmatpush1.msra.mxu0 %v8024
  %8060 = vmatprep.subr.mxu0 0.0
  %8061 = vmatpush1.msra.mxu0 %v8025
  %8062 = vmatprep.subr.mxu0 0.0
  %8063 = vmatpush1.msra.mxu0 %v8026
  %8064 = vmatprep.subr.mxu0 0.0
  %8065 = vmatpush1.msra.mxu0 %v8027
  %8066 = vmatprep.subr.mxu0 0.0
  %8067 = vmatpush1.msra.mxu0 %v8028
  %8068 = vmatprep.subr.mxu0 0.0
  %8069 = vmatpush1.msra.mxu0 %v8029
  %8070 = vmatprep.subr.mxu0 0.0
  %8071 = vmatpush1.msra.mxu0 %v8030
  %8072 = vmatprep.subr.mxu0 0.0
  %8073 = vmatpush1.msra.mxu0 %v8031
  %8074 = vmatprep.subr.mxu0 0.0
  %8075 = vmatpush1.msra.mxu0 0.0
  %8076 = vmatprep.subr.mxu0 0.0
  %8077 = vmatpush1.msra.mxu0 0.0
  %8078 = vmatprep.subr.mxu0 0.0
  %8079 = vmatpush1.msra.mxu0 0.0
  %8080 = vmatprep.subr.mxu0 0.0
  %8081 = vmatpush1.msra.mxu0 0.0
  %8082 = vmatprep.subr.mxu0 0.0
  %8083 = vmatpush1.msra.mxu0 0.0
  %8084 = vmatprep.subr.mxu0 0.0
  %8085 = vmatpush1.msra.mxu0 0.0
  %8086 = vmatprep.subr.mxu0 0.0
  %8087 = vmatpush1.msra.mxu0 0.0
  %8088 = vmatprep.subr.mxu0 0.0
  %8089 = vmatpush1.msra.mxu0 0.0
  %8090 = vmatprep.subr.mxu0 0.0
  %8091 = vmatpush1.msra.mxu0 0.0
  %8092 = vmatprep.subr.mxu0 0.0
  %8093 = vmatpush1.msra.mxu0 0.0
  %8094 = vmatprep.subr.mxu0 0.0
  %8095 = vmatpush1.msra.mxu0 0.0
  %8096 = vmatprep.subr.mxu0 0.0
  %8097 = vmatpush1.msra.mxu0 0.0
  %8098 = vmatprep.subr.mxu0 0.0
  %8099 = vmatpush1.msra.mxu0 0.0
  %8100 = vmatprep.subr.mxu0 0.0
  %8101 = vmatpush1.msra.mxu0 0.0
  %8102 = vmatprep.subr.mxu0 0.0
  %8103 = vmatpush1.msra.mxu0 0.0
  %8104 = vmatprep.subr.mxu0 0.0
  %8105 = vmatpush1.msra.mxu0 0.0
  %8106 = vmatprep.subr.mxu0 0.0
  %8107 = vmatpush1.msra.mxu0 0.0
  %8108 = vmatprep.subr.mxu0 0.0
  %8109 = vmatpush1.msra.mxu0 0.0
  %8110 = vmatprep.subr.mxu0 0.0
  %8111 = vmatpush1.msra.mxu0 0.0
  %8112 = vmatprep.subr.mxu0 0.0
  %8113 = vmatpush1.msra.mxu0 0.0
  %8114 = vmatprep.subr.mxu0 0.0
  %8115 = vmatpush1.msra.mxu0 0.0
  %8116 = vmatprep.subr.mxu0 0.0
  %8117 = vmatpush1.msra.mxu0 0.0
  %8118 = vmatprep.subr.mxu0 0.0
  %8119 = vmatpush1.msra.mxu0 0.0
  %8120 = vmatprep.subr.mxu0 0.0
  %8121 = vmatpush1.msra.mxu0 0.0
  %8122 = vmatprep.mubr.f32.mxu0 0.0
  %8123 = vmatmul.mubr.f32.gmra.mrb[0].mxu0 %v8050
  %v8124 = vpop.f32.mrb[0].mxu0
  %v8125 = vadd.f32 %v8048, %v8124
  %v8126 = vpop.f32.mrb[0].mxu0
  %8127 = vmatprep.mubr.f32.mxu0 0.0
  %8128 = vmatmul.mubr.f32.gmra.mrb[0].mxu0 %v8053
  %v8129 = vpop.f32.mrb[0].mxu0
  %v8130 = vadd.f32 %v8048, %v8129
  %v8131 = vpop.f32.mrb[0].mxu0
  %8132 = vmatprep.mubr.f32.mxu0 0.0
  %8133 = vmatmul.mubr.f32.gmra.mrb[0].mxu0 %v8056
  %v8134 = vpop.f32.mrb[0].mxu0
  %v8135 = vadd.f32 %v8048, %v8134
  %v8136 = vpop.f32.mrb[0].mxu0
  %8137 = vdwg.mxu0
  %v8138 = vmul.f32 %v8125, 0.5
  %v8139 = vmul.f32 %v8130, 0.5
  %v8140 = vmul.f32 %v8135, 0.5
  %v8141 = vmul.f32 %v8125, 0.70710677
  %v8142 = vmul.f32 %v8130, 0.70710677
  %v8143 = vmul.f32 %v8135, 0.70710677
  %v8144 = vand.u32 2147483647, %v8141
  %v8145 = vand.u32 2147483647, %v8142
  %v8146 = vand.u32 2147483647, %v8143
  %v8147 = vmul.f32 %v8144, 0.3275911
  %v8148 = vmul.f32 %v8145, 0.3275911
  %v8149 = vmul.f32 %v8146, 0.3275911
  %v8150 = vadd.f32 %v8147, 1.0
  %v8151 = vadd.f32 %v8148, 1.0
  %v8152 = vadd.f32 %v8149, 1.0
  %v8153 = vrcp.pop %v8150
  %v8154 = vmul.f32 1.0, %v8153
  %v8155 = vrcp.pop %v8151
  %v8156 = vmul.f32 1.0, %v8155
  %v8157 = vrcp.pop %v8152
  %v8158 = vmul.f32 1.0, %v8157
  %v8159 = vmul.f32 %v8154, 1.0614054
  %v8160 = vmul.f32 %v8156, 1.0614054
  %v8161 = vmul.f32 %v8158, 1.0614054
  %v8162 = vadd.f32 %v8159, -1.4531521
  %v8163 = vadd.f32 %v8160, -1.4531521
  %v8164 = vadd.f32 %v8161, -1.4531521
  %v8165 = vmul.f32 %v8162, %v8154
  %v8166 = vmul.f32 %v8163, %v8156
  %v8167 = vmul.f32 %v8164, %v8158
  %v8168 = vadd.f32 %v8165, 1.4214138
  %v8169 = vadd.f32 %v8166, 1.4214138
  %v8170 = vadd.f32 %v8167, 1.4214138
  %v8171 = vmul.f32 %v8168, %v8154
  %v8172 = vmul.f32 %v8169, %v8156
  %v8173 = vmul.f32 %v8170, %v8158
  %v8174 = vadd.f32 %v8171, -0.28449672
  %v8175 = vadd.f32 %v8172, -0.28449672
  %v8176 = vadd.f32 %v8173, -0.28449672
  %v8177 = vmul.f32 %v8174, %v8154
  %v8178 = vmul.f32 %v8175, %v8156
  %v8179 = vmul.f32 %v8176, %v8158
  %v8180 = vadd.f32 %v8177, 0.2548296
  %v8181 = vadd.f32 %v8178, 0.2548296
  %v8182 = vadd.f32 %v8179, 0.2548296
  %v8183 = vmul.f32 %v8180, %v8154
  %v8184 = vmul.f32 %v8181, %v8156
  %v8185 = vmul.f32 %v8182, %v8158
  %v8186 = vmul.f32 %v8144, %v8144
  %v8187 = vmul.f32 %v8145, %v8145
  %v8188 = vmul.f32 %v8146, %v8146
  %v8189 = vsub.f32 0.0, %v8186
  %v8190 = vsub.f32 0.0, %v8187
  %v8191 = vsub.f32 0.0, %v8188
  %v8192 = vmul.f32 %v8189, 1.442695
  %v8193 = vpow.pop %v8192
  %v8194 = vmul.f32 %v8190, 1.442695
  %v8195 = vpow.pop %v8194
  %v8196 = vmul.f32 %v8191, 1.442695
  %v8197 = vpow.pop %v8196
  %v8198 = vmul.f32 %v8183, %v8193
  %v8199 = vmul.f32 %v8184, %v8195
  %v8200 = vmul.f32 %v8185, %v8197
  %v8201 = vsub.f32 1.0, %v8198
  %v8202 = vsub.f32 1.0, %v8199
  %v8203 = vsub.f32 1.0, %v8200
  %vm8204 = vcmp.ge.f32.partialorder %v8141, 0.0
  %vm8205 = vcmp.ge.f32.partialorder %v8142, 0.0
  %vm8206 = vcmp.ge.f32.partialorder %v8143, 0.0
  %v8207 = vsub.f32 0.0, %v8201
  %v8208 = vsub.f32 0.0, %v8202
  %v8209 = vsub.f32 0.0, %v8203
  %v8210 = vsel %vm8204, %v8201, %v8207
  %v8211 = vsel %vm8205, %v8202, %v8208
  %v8212 = vsel %vm8206, %v8203, %v8209
  %v8213 = vadd.f32 %v8210, 1.0
  %v8214 = vadd.f32 %v8211, 1.0
  %v8215 = vadd.f32 %v8212, 1.0
  %v8216 = vmul.f32 %v8138, %v8213
  %v8217 = vmul.f32 %v8139, %v8214
  %v8218 = vmul.f32 %v8140, %v8215
  %v8219 = vlaneseq
  %v8220 = vshrl.u32 %v8219, 7
  %v8221 = vsub.s32 0, %v8220
  %v8222 = vrot.slane %v8042, %v8221
  %v8224 = vsel %vm554, %v8216, 0
  %v8227 = vsel %vm554, %v8217, 0
  %v8230 = vsel %vm554, %v8218, 0
  %8232 = vmatprep.subr.mxu0 0.0
  %8233 = vmatpush1.msra.mxu0 %v8033
  %8234 = vmatprep.subr.mxu0 0.0
  %8235 = vmatpush1.msra.mxu0 %v8034
  %8236 = vmatprep.subr.mxu0 0.0
  %8237 = vmatpush1.msra.mxu0 %v8035
  %8238 = vmatprep.subr.mxu0 0.0
  %8239 = vmatpush1.msra.mxu0 %v8036
  %8240 = vmatprep.subr.mxu0 0.0
  %8241 = vmatpush1.msra.mxu0 %v8037
  %8242 = vmatprep.subr.mxu0 0.0
  %8243 = vmatpush1.msra.mxu0 %v8038
  %8244 = vmatprep.subr.mxu0 0.0
  %8245 = vmatpush1.msra.mxu0 %v8039
  %8246 = vmatprep.subr.mxu0 0.0
  %8247 = vmatpush1.msra.mxu0 %v8040
  %8248 = vmatprep.subr.mxu0 0.0
  %8249 = vmatpush1.msra.mxu0 0.0
  %8250 = vmatprep.subr.mxu0 0.0
  %8251 = vmatpush1.msra.mxu0 0.0
  %8252 = vmatprep.subr.mxu0 0.0
  %8253 = vmatpush1.msra.mxu0 0.0
  %8254 = vmatprep.subr.mxu0 0.0
  %8255 = vmatpush1.msra.mxu0 0.0
  %8256 = vmatprep.subr.mxu0 0.0
  %8257 = vmatpush1.msra.mxu0 0.0
  %8258 = vmatprep.subr.mxu0 0.0
  %8259 = vmatpush1.msra.mxu0 0.0
  %8260 = vmatprep.subr.mxu0 0.0
  %8261 = vmatpush1.msra.mxu0 0.0
  %8262 = vmatprep.subr.mxu0 0.0
  %8263 = vmatpush1.msra.mxu0 0.0
  %8264 = vmatprep.subr.mxu0 0.0
  %8265 = vmatpush1.msra.mxu0 0.0
  %8266 = vmatprep.subr.mxu0 0.0
  %8267 = vmatpush1.msra.mxu0 0.0
  %8268 = vmatprep.subr.mxu0 0.0
  %8269 = vmatpush1.msra.mxu0 0.0
  %8270 = vmatprep.subr.mxu0 0.0
  %8271 = vmatpush1.msra.mxu0 0.0
  %8272 = vmatprep.subr.mxu0 0.0
  %8273 = vmatpush1.msra.mxu0 0.0
  %8274 = vmatprep.subr.mxu0 0.0
  %8275 = vmatpush1.msra.mxu0 0.0
  %8276 = vmatprep.subr.mxu0 0.0
  %8277 = vmatpush1.msra.mxu0 0.0
  %8278 = vmatprep.subr.mxu0 0.0
  %8279 = vmatpush1.msra.mxu0 0.0
  %8280 = vmatprep.subr.mxu0 0.0
  %8281 = vmatpush1.msra.mxu0 0.0
  %8282 = vmatprep.subr.mxu0 0.0
  %8283 = vmatpush1.msra.mxu0 0.0
  %8284 = vmatprep.subr.mxu0 0.0
  %8285 = vmatpush1.msra.mxu0 0.0
  %8286 = vmatprep.subr.mxu0 0.0
  %8287 = vmatpush1.msra.mxu0 0.0
  %8288 = vmatprep.subr.mxu0 0.0
  %8289 = vmatpush1.msra.mxu0 0.0
  %8290 = vmatprep.subr.mxu0 0.0
  %8291 = vmatpush1.msra.mxu0 0.0
  %8292 = vmatprep.subr.mxu0 0.0
  %8293 = vmatpush1.msra.mxu0 0.0
  %8294 = vmatprep.subr.mxu0 0.0
  %8295 = vmatpush1.msra.mxu0 0.0
  %8296 = vmatprep.mubr.f32.mxu0 0.0
  %8297 = vmatmul.mubr.f32.gmra.mrb[0].mxu0 %v8224
  %v8298 = vpop.f32.mrb[0].mxu0
  %v8299 = vadd.f32 %v8222, %v8298
  %v8300 = vpop.f32.mrb[0].mxu0
  %8301 = vmatprep.mubr.f32.mxu0 0.0
  %8302 = vmatmul.mubr.f32.gmra.mrb[0].mxu0 %v8227
  %v8303 = vpop.f32.mrb[0].mxu0
  %v8304 = vadd.f32 %v8222, %v8303
  %v8305 = vpop.f32.mrb[0].mxu0
  %8306 = vmatprep.mubr.f32.mxu0 0.0
  %8307 = vmatmul.mubr.f32.gmra.mrb[0].mxu0 %v8230
  %v8308 = vpop.f32.mrb[0].mxu0
  %v8309 = vadd.f32 %v8222, %v8308
  %v8310 = vpop.f32.mrb[0].mxu0
  %8311 = vdwg.mxu0
  %v8312 = vadd.f32 %v8020, %v8299
  %v8313 = vadd.f32 %v8021, %v8304
  %v8314 = vadd.f32 %v8022, %v8309
  %v8315 = vsel %vm554, %v8312, 0.0
  %8316 = vadd.xlane.f32.xlu0 %v8315
  %v8317 = vpop.xlane.xlu0 %8316
  %v8318 = vsel %vm554, %v8313, 0.0
  %8319 = vadd.xlane.f32.xlu0 %v8318
  %v8320 = vpop.xlane.xlu0 %8319
  %v8321 = vsel %vm554, %v8314, 0.0
  %8322 = vadd.xlane.f32.xlu0 %v8321
  %v8323 = vpop.xlane.xlu0 %8322
  %v8324 = vmul.f32 %v8317, %v2032
  %v8325 = vmul.f32 %v8320, %v2032
  %v8326 = vmul.f32 %v8323, %v2032
  %v8327 = vsub.f32 %v8312, %v8324
  %v8328 = vsub.f32 %v8313, %v8325
  %v8329 = vsub.f32 %v8314, %v8326
  %v8330 = vmul.f32 %v8327, %v8327
  %v8331 = vmul.f32 %v8328, %v8328
  %v8332 = vmul.f32 %v8329, %v8329
  %v8333 = vsel %vm554, %v8330, 0.0
  %8334 = vadd.xlane.f32.xlu0 %v8333
  %v8335 = vpop.xlane.xlu0 %8334
  %v8336 = vsel %vm554, %v8331, 0.0
  %8337 = vadd.xlane.f32.xlu0 %v8336
  %v8338 = vpop.xlane.xlu0 %8337
  %v8339 = vsel %vm554, %v8332, 0.0
  %8340 = vadd.xlane.f32.xlu0 %v8339
  %v8341 = vpop.xlane.xlu0 %8340
  %v8342 = vmul.f32 %v8335, %v2032
  %v8343 = vmul.f32 %v8338, %v2032
  %v8344 = vmul.f32 %v8341, %v2032
  %v8345 = vadd.f32 %v8342, 1e-05
  %v8346 = vadd.f32 %v8343, 1e-05
  %v8347 = vadd.f32 %v8344, 1e-05
  %v8348 = vrsqrt.pop %v8345
  %v8349 = vrsqrt.pop %v8346
  %v8350 = vrsqrt.pop %v8347
  %v8351 = vmul.f32 %v8327, %v8348
  %v8352 = vmul.f32 %v8328, %v8349
  %v8353 = vmul.f32 %v8329, %v8350
  %v8354 = vlaneseq
  %v8355 = vshrl.u32 %v8354, 7
  %v8356 = vsub.s32 0, %v8355
  %v8357 = vrot.slane %v8043, %v8356
  %v8358 = vmul.f32 %v8351, %v8357
  %v8359 = vmul.f32 %v8352, %v8357
  %v8360 = vmul.f32 %v8353, %v8357
  %v8361 = vlaneseq
  %v8362 = vshrl.u32 %v8361, 7
  %v8363 = vsub.s32 0, %v8362
  %v8364 = vrot.slane %v8044, %v8363
  %v8365 = vadd.f32 %v8358, %v8364
  %v8366 = vadd.f32 %v8359, %v8364
  %v8367 = vadd.f32 %v8360, %v8364
  %v8368 = vld [vmem:[%s5 + $0x2b] sm:$0x1]
  %v8369 = vld [vmem:[%s5 + $0x2c] sm:$0x1]
  %v8370 = vsel %vm554, %v8365, 0.0
  %8371 = vadd.xlane.f32.xlu0 %v8370
  %v8372 = vpop.xlane.xlu0 %8371
  %v8373 = vsel %vm554, %v8366, 0.0
  %8374 = vadd.xlane.f32.xlu0 %v8373
  %v8375 = vpop.xlane.xlu0 %8374
  %v8376 = vsel %vm554, %v8367, 0.0
  %8377 = vadd.xlane.f32.xlu0 %v8376
  %v8378 = vpop.xlane.xlu0 %8377
  %v8379 = vmul.f32 %v8372, %v2032
  %v8380 = vmul.f32 %v8375, %v2032
  %v8381 = vmul.f32 %v8378, %v2032
  %v8382 = vsub.f32 %v8365, %v8379
  %v8383 = vsub.f32 %v8366, %v8380
  %v8384 = vsub.f32 %v8367, %v8381
  %v8385 = vmul.f32 %v8382, %v8382
  %v8386 = vmul.f32 %v8383, %v8383
  %v8387 = vmul.f32 %v8384, %v8384
  %v8388 = vsel %vm554, %v8385, 0.0
  %8389 = vadd.xlane.f32.xlu0 %v8388
  %v8390 = vpop.xlane.xlu0 %8389
  %v8391 = vsel %vm554, %v8386, 0.0
  %8392 = vadd.xlane.f32.xlu0 %v8391
  %v8393 = vpop.xlane.xlu0 %8392
  %v8394 = vsel %vm554, %v8387, 0.0
  %8395 = vadd.xlane.f32.xlu0 %v8394
  %v8396 = vpop.xlane.xlu0 %8395
  %v8397 = vmul.f32 %v8390, %v2032
  %v8398 = vmul.f32 %v8393, %v2032
  %v8399 = vmul.f32 %v8396, %v2032
  %v8400 = vadd.f32 %v8397, 1e-05
  %v8401 = vadd.f32 %v8398, 1e-05
  %v8402 = vadd.f32 %v8399, 1e-05
  %v8403 = vrsqrt.pop %v8400
  %v8404 = vrsqrt.pop %v8401
  %v8405 = vrsqrt.pop %v8402
  %v8406 = vmul.f32 %v8382, %v8403
  %v8407 = vmul.f32 %v8383, %v8404
  %v8408 = vmul.f32 %v8384, %v8405
  %v8409 = vlaneseq
  %v8410 = vshrl.u32 %v8409, 7
  %v8411 = vsub.s32 0, %v8410
  %v8412 = vrot.slane %v8368, %v8411
  %v8413 = vmul.f32 %v8406, %v8412
  %v8414 = vmul.f32 %v8407, %v8412
  %v8415 = vmul.f32 %v8408, %v8412
  %v8416 = vlaneseq
  %v8417 = vshrl.u32 %v8416, 7
  %v8418 = vsub.s32 0, %v8417
  %v8419 = vrot.slane %v8369, %v8418
  %v8420 = vadd.f32 %v8413, %v8419
  %v8421 = vadd.f32 %v8414, %v8419
  %v8422 = vadd.f32 %v8415, %v8419
  %v8423 = vadd.s32 %v2964, 6
  %v8424 = vadd.s32 %v2965, 6
  %v8425 = vadd.s32 %v8423, %v2962
  %v8426 = vadd.s32 %v8424, %v2963
  %vm8427 = vcmp.eq.s32.totalorder %v34, %v8425
  %vm8428 = vcmp.eq.s32.totalorder %v34, %v8426
  %v8429 = vsel %vm8427, 1.0, 0.0
  %v8430 = vsel %vm8428, 1.0, 0.0
  %v8432 = vsel %vm375, %v8429, 0
  %v8435 = vsel %vm375, %v8430, 0
  %8437 = vmatprep.subr.mxu0 0.0
  %8438 = vmatpush1.msra.mxu0 %v8420
  %8439 = vmatprep.subr.mxu0 0.0
  %8440 = vmatpush1.msra.mxu0 %v8421
  %8441 = vmatprep.subr.mxu0 0.0
  %8442 = vmatpush1.msra.mxu0 %v8422
  %8443 = vmatprep.subr.mxu0 0.0
  %8444 = vmatpush1.msra.mxu0 0.0
  %8445 = vmatprep.subr.mxu0 0.0
  %8446 = vmatpush1.msra.mxu0 0.0
  %8447 = vmatprep.subr.mxu0 0.0
  %8448 = vmatpush1.msra.mxu0 0.0
  %8449 = vmatprep.subr.mxu0 0.0
  %8450 = vmatpush1.msra.mxu0 0.0
  %8451 = vmatprep.subr.mxu0 0.0
  %8452 = vmatpush1.msra.mxu0 0.0
  %8453 = vmatprep.subr.mxu0 0.0
  %8454 = vmatpush1.msra.mxu0 0.0
  %8455 = vmatprep.subr.mxu0 0.0
  %8456 = vmatpush1.msra.mxu0 0.0
  %8457 = vmatprep.subr.mxu0 0.0
  %8458 = vmatpush1.msra.mxu0 0.0
  %8459 = vmatprep.subr.mxu0 0.0
  %8460 = vmatpush1.msra.mxu0 0.0
  %8461 = vmatprep.subr.mxu0 0.0
  %8462 = vmatpush1.msra.mxu0 0.0
  %8463 = vmatprep.subr.mxu0 0.0
  %8464 = vmatpush1.msra.mxu0 0.0
  %8465 = vmatprep.subr.mxu0 0.0
  %8466 = vmatpush1.msra.mxu0 0.0
  %8467 = vmatprep.subr.mxu0 0.0
  %8468 = vmatpush1.msra.mxu0 0.0
  %8469 = vmatprep.subr.mxu0 0.0
  %8470 = vmatpush1.msra.mxu0 0.0
  %8471 = vmatprep.subr.mxu0 0.0
  %8472 = vmatpush1.msra.mxu0 0.0
  %8473 = vmatprep.subr.mxu0 0.0
  %8474 = vmatpush1.msra.mxu0 0.0
  %8475 = vmatprep.subr.mxu0 0.0
  %8476 = vmatpush1.msra.mxu0 0.0
  %8477 = vmatprep.subr.mxu0 0.0
  %8478 = vmatpush1.msra.mxu0 0.0
  %8479 = vmatprep.subr.mxu0 0.0
  %8480 = vmatpush1.msra.mxu0 0.0
  %8481 = vmatprep.subr.mxu0 0.0
  %8482 = vmatpush1.msra.mxu0 0.0
  %8483 = vmatprep.subr.mxu0 0.0
  %8484 = vmatpush1.msra.mxu0 0.0
  %8485 = vmatprep.subr.mxu0 0.0
  %8486 = vmatpush1.msra.mxu0 0.0
  %8487 = vmatprep.subr.mxu0 0.0
  %8488 = vmatpush1.msra.mxu0 0.0
  %8489 = vmatprep.subr.mxu0 0.0
  %8490 = vmatpush1.msra.mxu0 0.0
  %8491 = vmatprep.subr.mxu0 0.0
  %8492 = vmatpush1.msra.mxu0 0.0
  %8493 = vmatprep.subr.mxu0 0.0
  %8494 = vmatpush1.msra.mxu0 0.0
  %8495 = vmatprep.subr.mxu0 0.0
  %8496 = vmatpush1.msra.mxu0 0.0
  %8497 = vmatprep.subr.mxu0 0.0
  %8498 = vmatpush1.msra.mxu0 0.0
  %8499 = vmatprep.subr.mxu0 0.0
  %8500 = vmatpush1.msra.mxu0 0.0
  %8501 = vmatprep.mubr.f32.mxu0 0.0
  %8502 = vmatmul.mubr.f32.gmra.mrb[0].mxu0 %v8432
  %v8503 = vpop.f32.mrb[0].mxu0
  %v8504 = vadd.f32 0.0, %v8503
  %v8505 = vpop.f32.mrb[0].mxu0
  %8506 = vmatprep.mubr.f32.mxu0 0.0
  %8507 = vmatmul.mubr.f32.gmra.mrb[0].mxu0 %v8435
  %v8508 = vpop.f32.mrb[0].mxu0
  %v8509 = vadd.f32 0.0, %v8508
  %v8510 = vpop.f32.mrb[0].mxu0
  %8511 = vdwg.mxu0
  %v8512 = vld [vmem:[%s6] sm:$0xff]
  %v8513 = vld [vmem:[%s6 + $0x8] sm:$0xff]
  %v8514 = vld [vmem:[%s6 + $0x10] sm:$0xff]
  %v8515 = vld [vmem:[%s6 + $0x18] sm:$0xff]
  %v8516 = vld [vmem:[%s6 + $0x20] sm:$0xff]
  %v8517 = vld [vmem:[%s6 + $0x28] sm:$0xff]
  %v8518 = vld [vmem:[%s6 + $0x30] sm:$0xff]
  %v8519 = vld [vmem:[%s6 + $0x38] sm:$0xff]
  %v8520 = vld [vmem:[%s7] sm:$0x1]
  %v8522 = vlaneseq
  %v8523 = vshrl.u32 %v8522, 7
  %v8524 = vsub.s32 0, %v8523
  %v8525 = vrot.slane %v8520, %v8524
  %v8528 = vsel %vm554, %v8504, 0
  %v8531 = vsel %vm554, %v8509, 0
  %8533 = vmatprep.subr.mxu0 0.0
  %8534 = vmatpush1.msra.mxu0 %v8512
  %8535 = vmatprep.subr.mxu0 0.0
  %8536 = vmatpush1.msra.mxu0 %v8513
  %8537 = vmatprep.subr.mxu0 0.0
  %8538 = vmatpush1.msra.mxu0 %v8514
  %8539 = vmatprep.subr.mxu0 0.0
  %8540 = vmatpush1.msra.mxu0 %v8515
  %8541 = vmatprep.subr.mxu0 0.0
  %8542 = vmatpush1.msra.mxu0 %v8516
  %8543 = vmatprep.subr.mxu0 0.0
  %8544 = vmatpush1.msra.mxu0 %v8517
  %8545 = vmatprep.subr.mxu0 0.0
  %8546 = vmatpush1.msra.mxu0 %v8518
  %8547 = vmatprep.subr.mxu0 0.0
  %8548 = vmatpush1.msra.mxu0 %v8519
  %8549 = vmatprep.subr.mxu0 0.0
  %8550 = vmatpush1.msra.mxu0 0.0
  %8551 = vmatprep.subr.mxu0 0.0
  %8552 = vmatpush1.msra.mxu0 0.0
  %8553 = vmatprep.subr.mxu0 0.0
  %8554 = vmatpush1.msra.mxu0 0.0
  %8555 = vmatprep.subr.mxu0 0.0
  %8556 = vmatpush1.msra.mxu0 0.0
  %8557 = vmatprep.subr.mxu0 0.0
  %8558 = vmatpush1.msra.mxu0 0.0
  %8559 = vmatprep.subr.mxu0 0.0
  %8560 = vmatpush1.msra.mxu0 0.0
  %8561 = vmatprep.subr.mxu0 0.0
  %8562 = vmatpush1.msra.mxu0 0.0
  %8563 = vmatprep.subr.mxu0 0.0
  %8564 = vmatpush1.msra.mxu0 0.0
  %8565 = vmatprep.subr.mxu0 0.0
  %8566 = vmatpush1.msra.mxu0 0.0
  %8567 = vmatprep.subr.mxu0 0.0
  %8568 = vmatpush1.msra.mxu0 0.0
  %8569 = vmatprep.subr.mxu0 0.0
  %8570 = vmatpush1.msra.mxu0 0.0
  %8571 = vmatprep.subr.mxu0 0.0
  %8572 = vmatpush1.msra.mxu0 0.0
  %8573 = vmatprep.subr.mxu0 0.0
  %8574 = vmatpush1.msra.mxu0 0.0
  %8575 = vmatprep.subr.mxu0 0.0
  %8576 = vmatpush1.msra.mxu0 0.0
  %8577 = vmatprep.subr.mxu0 0.0
  %8578 = vmatpush1.msra.mxu0 0.0
  %8579 = vmatprep.subr.mxu0 0.0
  %8580 = vmatpush1.msra.mxu0 0.0
  %8581 = vmatprep.subr.mxu0 0.0
  %8582 = vmatpush1.msra.mxu0 0.0
  %8583 = vmatprep.subr.mxu0 0.0
  %8584 = vmatpush1.msra.mxu0 0.0
  %8585 = vmatprep.subr.mxu0 0.0
  %8586 = vmatpush1.msra.mxu0 0.0
  %8587 = vmatprep.subr.mxu0 0.0
  %8588 = vmatpush1.msra.mxu0 0.0
  %8589 = vmatprep.subr.mxu0 0.0
  %8590 = vmatpush1.msra.mxu0 0.0
  %8591 = vmatprep.subr.mxu0 0.0
  %8592 = vmatpush1.msra.mxu0 0.0
  %8593 = vmatprep.subr.mxu0 0.0
  %8594 = vmatpush1.msra.mxu0 0.0
  %8595 = vmatprep.subr.mxu0 0.0
  %8596 = vmatpush1.msra.mxu0 0.0
  %8597 = vmatprep.mubr.f32.mxu0 0.0
  %8598 = vmatmul.mubr.f32.gmra.mrb[0].mxu0 %v8528
  %v8599 = vpop.f32.mrb[0].mxu0
  %v8600 = vadd.f32 %v8525, %v8599
  %v8601 = vpop.f32.mrb[0].mxu0
  %8602 = vmatprep.mubr.f32.mxu0 0.0
  %8603 = vmatmul.mubr.f32.gmra.mrb[0].mxu0 %v8531
  %v8604 = vpop.f32.mrb[0].mxu0
  %v8605 = vadd.f32 %v8525, %v8604
  %v8606 = vpop.f32.mrb[0].mxu0
  %8607 = vdwg.mxu0
  %vm8608 = vcmask 31744
  %8609 = vst.msk [vmem:[%s8] sm:$0xff] %vm8608, %v8600
  %vm8610 = vcmask 27648
  %8611 = vst.msk [vmem:[%s8 + $0x8] sm:$0xf] %vm8610, %v8605
  // Predicated region
  $region34: #{informer_forward.1} parent=0 // pred_check
    _
  $region35: #{informer_forward.1} parent=0 // pred_check_branch
    %8613 = sbr.rel (0) target = $region37
  $region36: #{informer_forward.1} parent=0 // pred_region
    _
  $region37: #{informer_forward.1} parent=0 // pred_fallthru
    _
  // Predicated region
  $region38: #{informer_forward.1} parent=0 // pred_check
    _
  $region39: #{informer_forward.1} parent=0 // pred_check_branch
    %8615 = sbr.rel (0) target = $region41
  $region40: #{informer_forward.1} parent=0 // pred_region
    _
  $region41: #{informer_forward.1} parent=0 // pred_fallthru
    _

</llo_original>
